<compile_context>
chip_gen: v7x
topology: tpu7x:2x2x1
jax: 0.10.0
libtpu: 0.0.40
codegen_flags: <defaults>
</compile_context>

<pallas_src>
import functools

import jax
import jax.numpy as jnp
import numpy as np
from jax.experimental import pallas as pl
from jax.experimental.pallas import tpu as pltpu

C = 128  # BGALayer is hard-coded to 128 channels
F32 = jnp.float32
BF16 = jnp.bfloat16


# ----------------------------------------------------------------------------- in-kernel helpers
def _sigmoid(x):
    # computed in f32 and only at low resolution (16x less EUP/VPU work than full-res)
    return 1.0 / (1.0 + jnp.exp(-x))


def _pad1(x, h, w):
    """Zero halo of 1 built in-register (no jnp.pad / extra HBM copy)."""
    zc = jnp.zeros((h, 1, C), F32)
    zr = jnp.zeros((1, w + 2, C), F32)
    return jnp.concatenate([zr, jnp.concatenate([zc, x, zc], axis=1), zr], axis=0)


def _im2col(xp, h, w):
    """(h+2, w+2, C) padded activation -> (h*w, 9*C) slab for one long-K MXU matmul."""
    cols = [xp[ky:ky + h, kx:kx + w, :].reshape(h * w, C)
            for ky in range(3) for kx in range(3)]
    return jnp.concatenate(cols, axis=1)


def _dwconv3x3_bn(xp, dw_ref, scale, bias, h, w):
    """Depthwise 3x3 (VPU taps) -> folded BN."""
    acc = jnp.zeros((h, w, C), F32)
    for ky in range(3):
        for kx in range(3):
            acc += xp[ky:ky + h, kx:kx + w, :] * dw_ref[3 * ky + kx]
    return acc * scale + bias


def _up4(t, h, w):
    """Nearest x4 upsample, in-register (broadcast + reshape), (h,w,C)->(4h,4w,C)."""
    t = jnp.broadcast_to(t[:, :, None, :], (h, w, 4, C)).reshape(h, 4 * w, C)
    t = jnp.broadcast_to(t[:, None, :, :], (h, 4, 4 * w, C)).reshape(4 * h, 4 * w, C)
    return t


# ----------------------------------------------------------------------------- kernels
def _detail_kernel(x_ref, dw_ref, s1_ref, b1_ref, pw_ref,
                   w2_ref, s2_ref, b2_ref, pt_ref,
                   l1_ref, l2_ref, *, H, W):
    """left1 = 1x1(BN(dw3x3(x_d))); left2 = avgpool3x3_s2(BN(conv3x3_s2(x_d)))."""
    x = x_ref[0]                                   # (H, W, C) f32
    xp = _pad1(x, H, W)                            # (H+2, W+2, C)

    # ---- left1: depthwise 3x3 -> BN -> 1x1 conv (bf16 MXU, f32 acc)
    a = _dwconv3x3_bn(xp, dw_ref, s1_ref[0], b1_ref[0], H, W)
    y1 = jnp.dot(a.reshape(H * W, C).astype(BF16), pw_ref[...],
                 preferred_element_type=F32)
    l1_ref[0] = y1.reshape(H, W, C).astype(BF16)

    # ---- left2: 3x3 conv, stride 2 -> BN -> avgpool 3x3, stride 2 (all in-kernel)
    # Rows are subsampled exactly (even/odd phase split on the outer H dim);
    # columns are computed at stride 1 and the W-direction stride-2 subsample +
    # 3-tap pool are folded into one matmul against a 0/1 pooling matrix.
    Hh, Wq = H // 2, W // 4
    xph = x.reshape(Hh, 2, W, C)
    xe, xo = xph[:, 0], xph[:, 1]                  # even / odd input rows
    zrow = jnp.zeros((1, W, C), F32)
    rows = [jnp.concatenate([zrow, xo[:-1]], axis=0),   # ky=0 -> rows 2i-1
            xe,                                         # ky=1 -> rows 2i
            xo]                                         # ky=2 -> rows 2i+1
    zc = jnp.zeros((Hh, 1, C), F32)
    cols = []
    for ky in range(3):
        rp = jnp.concatenate([zc, rows[ky], zc], axis=1)      # (Hh, W+2, C)
        for kx in range(3):
            cols.append(rp[:, kx:kx + W, :].reshape(Hh * W, C))
    slab = jnp.concatenate(cols, axis=1).astype(BF16)         # (Hh*W, 9C)
    gw = jnp.dot(slab, w2_ref[...], preferred_element_type=F32).reshape(Hh, W, C)
    gw = gw * s2_ref[0] + b2_ref[0]                           # folded BN (f32)
    # W direction: subsample(stride 2) + 3-tap pool sum via pooling matrix (f32 MXU)
    pb = jnp.broadcast_to(pt_ref[...][None], (Hh, Wq, W))
    cpool = jnp.einsum('hbw,hwc->hbc', pb, gw, preferred_element_type=F32)
    # H direction: 3-tap pool sum with stride 2 via even/odd phases (outer-dim only)
    cp = cpool.reshape(H // 4, 2, Wq, C)
    ce, co = cp[:, 0], cp[:, 1]
    co_up = jnp.concatenate([jnp.zeros((1, Wq, C), F32), co[:-1]], axis=0)
    l2_ref[0] = (ce + co + co_up) * (1.0 / 9.0)    # count_include_pad=True divisor


def _semantic_kernel(x_ref, w1_ref, s1_ref, b1_ref,
                     dw_ref, s2_ref, b2_ref, pw_ref,
                     r1_ref, r2_ref, *, H, W):
    """right1 = BN(conv3x3(x_s)); right2 = 1x1(BN(dw3x3(x_s))) — one shared x_s read."""
    x = x_ref[0]
    xp = _pad1(x, H, W)
    M = H * W
    # right1: single im2col matmul (M, 9*128)@(9*128, 128), bf16 operands, f32 acc
    slab = _im2col(xp, H, W).astype(BF16)
    y1 = jnp.dot(slab, w1_ref[...], preferred_element_type=F32)
    r1_ref[0] = (y1 * s1_ref[0] + b1_ref[0]).reshape(H, W, C)
    # right2: depthwise 3x3 -> BN -> 1x1
    a = _dwconv3x3_bn(xp, dw_ref, s2_ref[0], b2_ref[0], H, W)
    y2 = jnp.dot(a.reshape(M, C).astype(BF16), pw_ref[...], preferred_element_type=F32)
    r2_ref[0] = y2.reshape(H, W, C)


def _fuse_head_kernel(l1_ref, r1_ref, l2_ref, r2_ref,
                      w_ref, sc_ref, bi_ref, o_ref, *, H, W):
    """s = left1*sig(up4(right1)) + up4(left2*sig(right2));  out = ReLU(BN(conv3x3(s)))."""
    h, w = H // 4, W // 4
    g1 = _sigmoid(r1_ref[0])                       # low-res sigmoid
    g2 = l2_ref[0] * _sigmoid(r2_ref[0])           # low-res gating
    s = l1_ref[0].astype(F32) * _up4(g1, h, w) + _up4(g2, h, w)   # (H, W, C), never hits HBM
    sp = _pad1(s, H, W)
    slab = _im2col(sp, H, W).astype(BF16)
    y = jnp.dot(slab, w_ref[...], preferred_element_type=F32)
    y = y * sc_ref[0] + bi_ref[0]
    o_ref[0] = jnp.maximum(y, 0.0).reshape(H, W, C)


# ----------------------------------------------------------------------------- wrappers
_CPARAMS = pltpu.CompilerParams(dimension_semantics=("parallel",))


def _pb(shape):
    nd = len(shape)
    return pl.BlockSpec((1,) + tuple(shape[1:]), lambda b: (b,) + (0,) * (nd - 1))


def _full(shape):
    nd = len(shape)
    return pl.BlockSpec(tuple(shape), lambda b: (0,) * nd)


def _colpool_matrix(W):
    """PT[b, w] = 1 iff conv column w (stride-1 grid) feeds pooled output column b."""
    b = np.arange(W // 4)[:, None]
    w = np.arange(W)[None, :]
    sel = (w == 4 * b - 2) | (w == 4 * b) | (w == 4 * b + 2)
    return jnp.asarray(sel, dtype=jnp.float32)


def detail_branch(x_d, p):
    N, H, W, _ = x_d.shape
    pw = p['l1_pw'].astype(BF16)
    w2 = p['l2_w'].reshape(9 * C, C).astype(BF16)
    pt = _colpool_matrix(W)
    kernel = functools.partial(_detail_kernel, H=H, W=W)
    return pl.pallas_call(
        kernel,
        out_shape=(jax.ShapeDtypeStruct((N, H, W, C), BF16),
                   jax.ShapeDtypeStruct((N, H // 4, W // 4, C), F32)),
        grid=(N,),
        in_specs=[_pb(x_d.shape), _full(p['l1_dw'].shape), _full(p['l1_scale'].shape),
                  _full(p['l1_bias'].shape), _full(pw.shape), _full(w2.shape),
                  _full(p['l2_scale'].shape), _full(p['l2_bias'].shape), _full(pt.shape)],
        out_specs=(_pb((N, H, W, C)), _pb((N, H // 4, W // 4, C))),
        compiler_params=_CPARAMS,
    )(x_d, p['l1_dw'], p['l1_scale'], p['l1_bias'], pw, w2,
      p['l2_scale'], p['l2_bias'], pt)


def semantic_branch(x_s, p):
    N, H, W, _ = x_s.shape
    w1 = p['r1_w'].reshape(9 * C, C).astype(BF16)
    pw = p['r2_pw'].astype(BF16)
    kernel = functools.partial(_semantic_kernel, H=H, W=W)
    return pl.pallas_call(
        kernel,
        out_shape=(jax.ShapeDtypeStruct((N, H, W, C), F32),
                   jax.ShapeDtypeStruct((N, H, W, C), F32)),
        grid=(N,),
        in_specs=[_pb(x_s.shape), _full(w1.shape), _full(p['r1_scale'].shape),
                  _full(p['r1_bias'].shape), _full(p['r2_dw'].shape),
                  _full(p['r2_scale'].shape), _full(p['r2_bias'].shape), _full(pw.shape)],
        out_specs=(_pb((N, H, W, C)), _pb((N, H, W, C))),
        compiler_params=_CPARAMS,
    )(x_s, w1, p['r1_scale'], p['r1_bias'], p['r2_dw'],
      p['r2_scale'], p['r2_bias'], pw)


def fuse_head(left1, right1, left2, right2, p):
    N, H, W, _ = left1.shape
    w = p['head_w'].reshape(9 * C, C).astype(BF16)
    kernel = functools.partial(_fuse_head_kernel, H=H, W=W)
    return pl.pallas_call(
        kernel,
        out_shape=jax.ShapeDtypeStruct((N, H, W, C), F32),
        grid=(N,),
        in_specs=[_pb(left1.shape), _pb(right1.shape), _pb(left2.shape),
                  _pb(right2.shape), _full(w.shape), _full(p['head_scale'].shape),
                  _full(p['head_bias'].shape)],
        out_specs=_pb((N, H, W, C)),
        compiler_params=_CPARAMS,
    )(left1, right1, left2, right2, w, p['head_scale'], p['head_bias'])


def bga_forward(x_d, x_s, p):
    """x_d: (N, H, W, C) NHWC detail branch; x_s: (N, H/4, W/4, C) NHWC semantic branch."""
    left1, left2 = detail_branch(x_d, p)
    right1, right2 = semantic_branch(x_s, p)
    return fuse_head(left1, right1, left2, right2, p)


# ----------------------------------------------------------------------------- params / reference
def init_params(key):
    keys = iter(jax.random.split(key, 32))

    def conv_w(shape, scl):
        return jax.random.normal(next(keys), shape, jnp.float32) * scl

    def bn_fold():
        gamma = 1.0 + 0.1 * jax.random.normal(next(keys), (C,), jnp.float32)
        beta = 0.1 * jax.random.normal(next(keys), (C,), jnp.float32)
        mean = 0.1 * jax.random.normal(next(keys), (C,), jnp.float32)
        var = jnp.abs(jax.random.normal(next(keys), (C,), jnp.float32)) + 0.5
        scale = gamma * jax.lax.rsqrt(var + 1e-5)
        bias = beta - mean * scale
        return scale.reshape(1, C), bias.reshape(1, C)

    p = {}
    p['l1_dw'] = conv_w((9, C), 0.2)                    # depthwise taps: [3*ky+kx, c]
    p['l1_scale'], p['l1_bias'] = bn_fold()
    p['l1_pw'] = conv_w((C, C), 0.05)                   # 1x1 conv: [cin, cout]
    p['l2_w'] = conv_w((9, C, C), 0.05)                 # 3x3 conv: [3*ky+kx, cin, cout]
    p['l2_scale'], p['l2_bias'] = bn_fold()
    p['r1_w'] = conv_w((9, C, C), 0.05)
    p['r1_scale'], p['r1_bias'] = bn_fold()
    p['r2_dw'] = conv_w((9, C), 0.2)
    p['r2_scale'], p['r2_bias'] = bn_fold()
    p['r2_pw'] = conv_w((C, C), 0.05)
    p['head_w'] = conv_w((9, C, C), 0.05)
    p['head_scale'], p['head_bias'] = bn_fold()
    return p


def reference_forward(x_d, x_s, p):
    """Pure-JAX (XLA conv) reference of the PyTorch forward (inference-mode BN)."""
    dn = ('NHWC', 'HWIO', 'NHWC')

    def conv(x, w9, stride=1, groups=1):
        w = (w9.reshape(3, 3, C, C) if groups == 1
             else w9.reshape(3, 3, C)[:, :, None, :])
        return jax.lax.conv_general_dilated(
            x, w, (stride, stride), ((1, 1), (1, 1)),
            dimension_numbers=dn, feature_group_count=groups)

    def pw_conv(x, pw):
        return jax.lax.conv_general_dilated(
            x, pw[None, None], (1, 1), ((0, 0), (0, 0)), dimension_numbers=dn)

    def bn(x, scale, bias):
        return x * scale.reshape(1, 1, 1, C) + bias.reshape(1, 1, 1, C)

    def avgpool(x):  # AvgPool2d(3, stride=2, pad=1, count_include_pad=True)
        s = jax.lax.reduce_window(x, 0.0, jax.lax.add, (1, 3, 3, 1), (1, 2, 2, 1),
                                  ((0, 0), (1, 1), (1, 1), (0, 0)))
        return s / 9.0

    up4 = lambda t: jnp.repeat(jnp.repeat(t, 4, axis=1), 4, axis=2)

    left1 = pw_conv(bn(conv(x_d, p['l1_dw'], groups=C), p['l1_scale'], p['l1_bias']), p['l1_pw'])
    left2 = avgpool(bn(conv(x_d, p['l2_w'], stride=2), p['l2_scale'], p['l2_bias']))
    right1 = bn(conv(x_s, p['r1_w']), p['r1_scale'], p['r1_bias'])
    right2 = pw_conv(bn(conv(x_s, p['r2_dw'], groups=C), p['r2_scale'], p['r2_bias']), p['r2_pw'])
    left = left1 * jax.nn.sigmoid(up4(right1))
    right = up4(left2 * jax.nn.sigmoid(right2))
    out = bn(conv(left + right, p['head_w']), p['head_scale'], p['head_bias'])
    return jnp.maximum(out, 0.0)


# ----------------------------------------------------------------------------- main
if __name__ == "__main__":
    N, H, W = 2, 16, 16
    key = jax.random.PRNGKey(0)
    kd, ks, kp = jax.random.split(key, 3)

    # PyTorch-convention NCHW inputs, transposed to the kernel's NHWC layout.
    x_d_nchw = jax.random.normal(kd, (N, C, H, W), jnp.float32)
    x_s_nchw = jax.random.normal(ks, (N, C, H // 4, W // 4), jnp.float32)
    x_d = jnp.transpose(x_d_nchw, (0, 2, 3, 1))
    x_s = jnp.transpose(x_s_nchw, (0, 2, 3, 1))
    params = init_params(kp)

    out_nhwc = jax.jit(bga_forward)(x_d, x_s, params)
    out_nhwc = jax.block_until_ready(out_nhwc)
    out_nchw = jnp.transpose(out_nhwc, (0, 3, 1, 2))
    assert out_nchw.shape == (N, C, H, W), out_nchw.shape

    ref = reference_forward(x_d, x_s, params)
    # bf16 MXU operands (f32 accumulation); 3e-2 leaves >2x margin over the
    # estimated worst-case rounding error at these scales.
    np.testing.assert_allclose(np.asarray(out_nhwc), np.asarray(ref),
                               atol=3e-2, rtol=3e-2)
    print("KERNEL_OK")
</pallas_src>

<mosaic_0001>
module attributes {stable_mosaic.version = 11 : i64} {
  func.func @_detail_kernel(%arg0: i32, %arg1: memref<1x16x16x128xf32, #tpu.memory_space<vmem>>, %arg2: memref<9x128xf32, #tpu.memory_space<vmem>>, %arg3: memref<1x128xf32, #tpu.memory_space<vmem>>, %arg4: memref<1x128xf32, #tpu.memory_space<vmem>>, %arg5: memref<128x128xbf16, #tpu.memory_space<vmem>>, %arg6: memref<1152x128xbf16, #tpu.memory_space<vmem>>, %arg7: memref<1x128xf32, #tpu.memory_space<vmem>>, %arg8: memref<1x128xf32, #tpu.memory_space<vmem>>, %arg9: memref<4x16xf32, #tpu.memory_space<vmem>>, %arg10: memref<1x16x16x128xbf16, #tpu.memory_space<vmem>>, %arg11: memref<1x4x4x128xf32, #tpu.memory_space<vmem>>) attributes {dimension_semantics = [#tpu.dimension_semantics<parallel>], iteration_bounds = array<i64: 2>, scalar_prefetch = 0 : i64, scratch_operands = 0 : i64, tpu.core_type = #tpu.core_type<tc>, window_params = [{transform_indices = @transform_0, window_bounds = array<i64: 1, 16, 16, 128>}, {pipeline_mode = #tpu.pipeline_mode<synchronous>, transform_indices = @transform_1, window_bounds = array<i64: 9, 128>}, {pipeline_mode = #tpu.pipeline_mode<synchronous>, transform_indices = @transform_2, window_bounds = array<i64: 1, 128>}, {pipeline_mode = #tpu.pipeline_mode<synchronous>, transform_indices = @transform_3, window_bounds = array<i64: 1, 128>}, {pipeline_mode = #tpu.pipeline_mode<synchronous>, transform_indices = @transform_4, window_bounds = array<i64: 128, 128>}, {pipeline_mode = #tpu.pipeline_mode<synchronous>, transform_indices = @transform_5, window_bounds = array<i64: 1152, 128>}, {pipeline_mode = #tpu.pipeline_mode<synchronous>, transform_indices = @transform_6, window_bounds = array<i64: 1, 128>}, {pipeline_mode = #tpu.pipeline_mode<synchronous>, transform_indices = @transform_7, window_bounds = array<i64: 1, 128>}, {pipeline_mode = #tpu.pipeline_mode<synchronous>, transform_indices = @transform_8, window_bounds = array<i64: 4, 16>}, {transform_indices = @transform_9, window_bounds = array<i64: 1, 16, 16, 128>}, {transform_indices = @transform_10, window_bounds = array<i64: 1, 4, 4, 128>}]} {
    %c0 = arith.constant 0 : index
    %c0_0 = arith.constant 0 : index
    %c0_1 = arith.constant 0 : index
    %c0_2 = arith.constant 0 : index
    %0 = vector.load %arg1[%c0, %c0_0, %c0_1, %c0_2] : memref<1x16x16x128xf32, #tpu.memory_space<vmem>>, vector<1x16x16x128xf32>
    %1 = vector.shape_cast %0 : vector<1x16x16x128xf32> to vector<16x16x128xf32>
    %cst = arith.constant 0.000000e+00 : f32
    %2 = vector.broadcast %cst : f32 to vector<16x1x128xf32>
    %cst_3 = arith.constant 0.000000e+00 : f32
    %3 = vector.broadcast %cst_3 : f32 to vector<1x18x128xf32>
    %4 = tpu.concatenate %2, %1, %2 in 1 : vector<16x1x128xf32>, vector<16x16x128xf32>, vector<16x1x128xf32> -> vector<16x18x128xf32>
    %5 = tpu.concatenate %3, %4, %3 in 0 : vector<1x18x128xf32>, vector<16x18x128xf32>, vector<1x18x128xf32> -> vector<18x18x128xf32>
    %c0_4 = arith.constant 0 : index
    %c0_5 = arith.constant 0 : index
    %6 = vector.load %arg3[%c0_4, %c0_5] : memref<1x128xf32, #tpu.memory_space<vmem>>, vector<1x128xf32>
    %7 = vector.shape_cast %6 : vector<1x128xf32> to vector<128xf32>
    %c0_6 = arith.constant 0 : index
    %c0_7 = arith.constant 0 : index
    %8 = vector.load %arg4[%c0_6, %c0_7] : memref<1x128xf32, #tpu.memory_space<vmem>>, vector<1x128xf32>
    %9 = vector.shape_cast %8 : vector<1x128xf32> to vector<128xf32>
    %cst_8 = arith.constant 0.000000e+00 : f32
    %10 = vector.broadcast %cst_8 : f32 to vector<16x16x128xf32>
    %11 = vector.extract_strided_slice %5 {offsets = [0, 0, 0], sizes = [16, 16, 128], strides = [1, 1, 1]} : vector<18x18x128xf32> to vector<16x16x128xf32>
    %c0_9 = arith.constant 0 : index
    %c0_10 = arith.constant 0 : index
    %12 = vector.load %arg2[%c0_9, %c0_10] : memref<9x128xf32, #tpu.memory_space<vmem>>, vector<1x128xf32>
    %13 = vector.shape_cast %12 : vector<1x128xf32> to vector<128xf32>
    %14 = vector.shape_cast %13 : vector<128xf32> to vector<1x1x128xf32>
    %15 = vector.broadcast %14 : vector<1x1x128xf32> to vector<16x16x128xf32>
    %16 = arith.mulf %11, %15 : vector<16x16x128xf32>
    %17 = arith.addf %10, %16 : vector<16x16x128xf32>
    %18 = vector.extract_strided_slice %5 {offsets = [0, 1, 0], sizes = [16, 16, 128], strides = [1, 1, 1]} : vector<18x18x128xf32> to vector<16x16x128xf32>
    %c1 = arith.constant 1 : index
    %c0_11 = arith.constant 0 : index
    %19 = vector.load %arg2[%c1, %c0_11] : memref<9x128xf32, #tpu.memory_space<vmem>>, vector<1x128xf32>
    %20 = vector.shape_cast %19 : vector<1x128xf32> to vector<128xf32>
    %21 = vector.shape_cast %20 : vector<128xf32> to vector<1x1x128xf32>
    %22 = vector.broadcast %21 : vector<1x1x128xf32> to vector<16x16x128xf32>
    %23 = arith.mulf %18, %22 : vector<16x16x128xf32>
    %24 = arith.addf %17, %23 : vector<16x16x128xf32>
    %25 = vector.extract_strided_slice %5 {offsets = [0, 2, 0], sizes = [16, 16, 128], strides = [1, 1, 1]} : vector<18x18x128xf32> to vector<16x16x128xf32>
    %c2 = arith.constant 2 : index
    %c0_12 = arith.constant 0 : index
    %26 = vector.load %arg2[%c2, %c0_12] : memref<9x128xf32, #tpu.memory_space<vmem>>, vector<1x128xf32>
    %27 = vector.shape_cast %26 : vector<1x128xf32> to vector<128xf32>
    %28 = vector.shape_cast %27 : vector<128xf32> to vector<1x1x128xf32>
    %29 = vector.broadcast %28 : vector<1x1x128xf32> to vector<16x16x128xf32>
    %30 = arith.mulf %25, %29 : vector<16x16x128xf32>
    %31 = arith.addf %24, %30 : vector<16x16x128xf32>
    %32 = vector.extract_strided_slice %5 {offsets = [1, 0, 0], sizes = [16, 16, 128], strides = [1, 1, 1]} : vector<18x18x128xf32> to vector<16x16x128xf32>
    %c3 = arith.constant 3 : index
    %c0_13 = arith.constant 0 : index
    %33 = vector.load %arg2[%c3, %c0_13] : memref<9x128xf32, #tpu.memory_space<vmem>>, vector<1x128xf32>
    %34 = vector.shape_cast %33 : vector<1x128xf32> to vector<128xf32>
    %35 = vector.shape_cast %34 : vector<128xf32> to vector<1x1x128xf32>
    %36 = vector.broadcast %35 : vector<1x1x128xf32> to vector<16x16x128xf32>
    %37 = arith.mulf %32, %36 : vector<16x16x128xf32>
    %38 = arith.addf %31, %37 : vector<16x16x128xf32>
    %39 = vector.extract_strided_slice %5 {offsets = [1, 1, 0], sizes = [16, 16, 128], strides = [1, 1, 1]} : vector<18x18x128xf32> to vector<16x16x128xf32>
    %c4 = arith.constant 4 : index
    %c0_14 = arith.constant 0 : index
    %40 = vector.load %arg2[%c4, %c0_14] : memref<9x128xf32, #tpu.memory_space<vmem>>, vector<1x128xf32>
    %41 = vector.shape_cast %40 : vector<1x128xf32> to vector<128xf32>
    %42 = vector.shape_cast %41 : vector<128xf32> to vector<1x1x128xf32>
    %43 = vector.broadcast %42 : vector<1x1x128xf32> to vector<16x16x128xf32>
    %44 = arith.mulf %39, %43 : vector<16x16x128xf32>
    %45 = arith.addf %38, %44 : vector<16x16x128xf32>
    %46 = vector.extract_strided_slice %5 {offsets = [1, 2, 0], sizes = [16, 16, 128], strides = [1, 1, 1]} : vector<18x18x128xf32> to vector<16x16x128xf32>
    %c5 = arith.constant 5 : index
    %c0_15 = arith.constant 0 : index
    %47 = vector.load %arg2[%c5, %c0_15] : memref<9x128xf32, #tpu.memory_space<vmem>>, vector<1x128xf32>
    %48 = vector.shape_cast %47 : vector<1x128xf32> to vector<128xf32>
    %49 = vector.shape_cast %48 : vector<128xf32> to vector<1x1x128xf32>
    %50 = vector.broadcast %49 : vector<1x1x128xf32> to vector<16x16x128xf32>
    %51 = arith.mulf %46, %50 : vector<16x16x128xf32>
    %52 = arith.addf %45, %51 : vector<16x16x128xf32>
    %53 = vector.extract_strided_slice %5 {offsets = [2, 0, 0], sizes = [16, 16, 128], strides = [1, 1, 1]} : vector<18x18x128xf32> to vector<16x16x128xf32>
    %c6 = arith.constant 6 : index
    %c0_16 = arith.constant 0 : index
    %54 = vector.load %arg2[%c6, %c0_16] : memref<9x128xf32, #tpu.memory_space<vmem>>, vector<1x128xf32>
    %55 = vector.shape_cast %54 : vector<1x128xf32> to vector<128xf32>
    %56 = vector.shape_cast %55 : vector<128xf32> to vector<1x1x128xf32>
    %57 = vector.broadcast %56 : vector<1x1x128xf32> to vector<16x16x128xf32>
    %58 = arith.mulf %53, %57 : vector<16x16x128xf32>
    %59 = arith.addf %52, %58 : vector<16x16x128xf32>
    %60 = vector.extract_strided_slice %5 {offsets = [2, 1, 0], sizes = [16, 16, 128], strides = [1, 1, 1]} : vector<18x18x128xf32> to vector<16x16x128xf32>
    %c7 = arith.constant 7 : index
    %c0_17 = arith.constant 0 : index
    %61 = vector.load %arg2[%c7, %c0_17] : memref<9x128xf32, #tpu.memory_space<vmem>>, vector<1x128xf32>
    %62 = vector.shape_cast %61 : vector<1x128xf32> to vector<128xf32>
    %63 = vector.shape_cast %62 : vector<128xf32> to vector<1x1x128xf32>
    %64 = vector.broadcast %63 : vector<1x1x128xf32> to vector<16x16x128xf32>
    %65 = arith.mulf %60, %64 : vector<16x16x128xf32>
    %66 = arith.addf %59, %65 : vector<16x16x128xf32>
    %67 = vector.extract_strided_slice %5 {offsets = [2, 2, 0], sizes = [16, 16, 128], strides = [1, 1, 1]} : vector<18x18x128xf32> to vector<16x16x128xf32>
    %c8 = arith.constant 8 : index
    %c0_18 = arith.constant 0 : index
    %68 = vector.load %arg2[%c8, %c0_18] : memref<9x128xf32, #tpu.memory_space<vmem>>, vector<1x128xf32>
    %69 = vector.shape_cast %68 : vector<1x128xf32> to vector<128xf32>
    %70 = vector.shape_cast %69 : vector<128xf32> to vector<1x1x128xf32>
    %71 = vector.broadcast %70 : vector<1x1x128xf32> to vector<16x16x128xf32>
    %72 = arith.mulf %67, %71 : vector<16x16x128xf32>
    %73 = arith.addf %66, %72 : vector<16x16x128xf32>
    %74 = vector.shape_cast %7 : vector<128xf32> to vector<1x1x128xf32>
    %75 = vector.broadcast %74 : vector<1x1x128xf32> to vector<16x16x128xf32>
    %76 = arith.mulf %73, %75 : vector<16x16x128xf32>
    %77 = vector.shape_cast %9 : vector<128xf32> to vector<1x1x128xf32>
    %78 = vector.broadcast %77 : vector<1x1x128xf32> to vector<16x16x128xf32>
    %79 = arith.addf %76, %78 : vector<16x16x128xf32>
    %80 = vector.shape_cast %79 : vector<16x16x128xf32> to vector<256x128xf32>
    %81 = arith.truncf %80 : vector<256x128xf32> to vector<256x128xbf16>
    %c0_19 = arith.constant 0 : index
    %c0_20 = arith.constant 0 : index
    %82 = vector.load %arg5[%c0_19, %c0_20] : memref<128x128xbf16, #tpu.memory_space<vmem>>, vector<128x128xbf16>
    %cst_21 = arith.constant dense<0.000000e+00> : vector<256x128xf32>
    %83 = tpu.matmul %81, %82, %cst_21 {dimension_numbers = #tpu.dot_dimension_numbers<[1], [0], [0], [1], [0, 0, 1, 1], [], []>} : vector<256x128xbf16>, vector<128x128xbf16>, vector<256x128xf32> -> vector<256x128xf32>
    %84 = vector.shape_cast %83 : vector<256x128xf32> to vector<16x16x128xf32>
    %85 = arith.truncf %84 : vector<16x16x128xf32> to vector<16x16x128xbf16>
    %c0_22 = arith.constant 0 : index
    %c0_23 = arith.constant 0 : index
    %c0_24 = arith.constant 0 : index
    %c0_25 = arith.constant 0 : index
    %86 = vector.load %arg10[%c0_22, %c0_23, %c0_24, %c0_25] : memref<1x16x16x128xbf16, #tpu.memory_space<vmem>>, vector<1x16x16x128xbf16>
    %87 = vector.shape_cast %86 : vector<1x16x16x128xbf16> to vector<16x16x128xbf16>
    %88 = vector.shape_cast %85 : vector<16x16x128xbf16> to vector<1x16x16x128xbf16>
    tpu.vector_store %arg10[%c0_22, %c0_23, %c0_24, %c0_25], %88 {strides = array<i32>} : memref<1x16x16x128xbf16, #tpu.memory_space<vmem>>, vector<1x16x16x128xbf16>,
    %89 = vector.shape_cast %1 : vector<16x16x128xf32> to vector<8x2x16x128xf32>
    %90 = vector.extract_strided_slice %89 {offsets = [0, 0, 0, 0], sizes = [8, 1, 16, 128], strides = [1, 1, 1, 1]} : vector<8x2x16x128xf32> to vector<8x1x16x128xf32>
    %91 = vector.shape_cast %90 : vector<8x1x16x128xf32> to vector<8x16x128xf32>
    %92 = vector.extract_strided_slice %89 {offsets = [0, 1, 0, 0], sizes = [8, 1, 16, 128], strides = [1, 1, 1, 1]} : vector<8x2x16x128xf32> to vector<8x1x16x128xf32>
    %93 = vector.shape_cast %92 : vector<8x1x16x128xf32> to vector<8x16x128xf32>
    %cst_26 = arith.constant 0.000000e+00 : f32
    %94 = vector.broadcast %cst_26 : f32 to vector<1x16x128xf32>
    %95 = vector.extract_strided_slice %93 {offsets = [0, 0, 0], sizes = [7, 16, 128], strides = [1, 1, 1]} : vector<8x16x128xf32> to vector<7x16x128xf32>
    %96 = tpu.concatenate %94, %95 in 0 : vector<1x16x128xf32>, vector<7x16x128xf32> -> vector<8x16x128xf32>
    %cst_27 = arith.constant 0.000000e+00 : f32
    %97 = vector.broadcast %cst_27 : f32 to vector<8x1x128xf32>
    %98 = tpu.concatenate %97, %96, %97 in 1 : vector<8x1x128xf32>, vector<8x16x128xf32>, vector<8x1x128xf32> -> vector<8x18x128xf32>
    %99 = vector.extract_strided_slice %98 {offsets = [0, 0, 0], sizes = [8, 16, 128], strides = [1, 1, 1]} : vector<8x18x128xf32> to vector<8x16x128xf32>
    %100 = vector.shape_cast %99 : vector<8x16x128xf32> to vector<128x128xf32>
    %101 = vector.extract_strided_slice %98 {offsets = [0, 1, 0], sizes = [8, 16, 128], strides = [1, 1, 1]} : vector<8x18x128xf32> to vector<8x16x128xf32>
    %102 = vector.shape_cast %101 : vector<8x16x128xf32> to vector<128x128xf32>
    %103 = vector.extract_strided_slice %98 {offsets = [0, 2, 0], sizes = [8, 16, 128], strides = [1, 1, 1]} : vector<8x18x128xf32> to vector<8x16x128xf32>
    %104 = vector.shape_cast %103 : vector<8x16x128xf32> to vector<128x128xf32>
    %105 = tpu.concatenate %97, %91, %97 in 1 : vector<8x1x128xf32>, vector<8x16x128xf32>, vector<8x1x128xf32> -> vector<8x18x128xf32>
    %106 = vector.extract_strided_slice %105 {offsets = [0, 0, 0], sizes = [8, 16, 128], strides = [1, 1, 1]} : vector<8x18x128xf32> to vector<8x16x128xf32>
    %107 = vector.shape_cast %106 : vector<8x16x128xf32> to vector<128x128xf32>
    %108 = vector.extract_strided_slice %105 {offsets = [0, 1, 0], sizes = [8, 16, 128], strides = [1, 1, 1]} : vector<8x18x128xf32> to vector<8x16x128xf32>
    %109 = vector.shape_cast %108 : vector<8x16x128xf32> to vector<128x128xf32>
    %110 = vector.extract_strided_slice %105 {offsets = [0, 2, 0], sizes = [8, 16, 128], strides = [1, 1, 1]} : vector<8x18x128xf32> to vector<8x16x128xf32>
    %111 = vector.shape_cast %110 : vector<8x16x128xf32> to vector<128x128xf32>
    %112 = tpu.concatenate %97, %93, %97 in 1 : vector<8x1x128xf32>, vector<8x16x128xf32>, vector<8x1x128xf32> -> vector<8x18x128xf32>
    %113 = vector.extract_strided_slice %112 {offsets = [0, 0, 0], sizes = [8, 16, 128], strides = [1, 1, 1]} : vector<8x18x128xf32> to vector<8x16x128xf32>
    %114 = vector.shape_cast %113 : vector<8x16x128xf32> to vector<128x128xf32>
    %115 = vector.extract_strided_slice %112 {offsets = [0, 1, 0], sizes = [8, 16, 128], strides = [1, 1, 1]} : vector<8x18x128xf32> to vector<8x16x128xf32>
    %116 = vector.shape_cast %115 : vector<8x16x128xf32> to vector<128x128xf32>
    %117 = vector.extract_strided_slice %112 {offsets = [0, 2, 0], sizes = [8, 16, 128], strides = [1, 1, 1]} : vector<8x18x128xf32> to vector<8x16x128xf32>
    %118 = vector.shape_cast %117 : vector<8x16x128xf32> to vector<128x128xf32>
    %119 = tpu.concatenate %100, %102, %104, %107, %109, %111, %114, %116, %118 in 1 : vector<128x128xf32>, vector<128x128xf32>, vector<128x128xf32>, vector<128x128xf32>, vector<128x128xf32>, vector<128x128xf32>, vector<128x128xf32>, vector<128x128xf32>, vector<128x128xf32> -> vector<128x1152xf32>
    %120 = arith.truncf %119 : vector<128x1152xf32> to vector<128x1152xbf16>
    %c0_28 = arith.constant 0 : index
    %c0_29 = arith.constant 0 : index
    %121 = vector.load %arg6[%c0_28, %c0_29] : memref<1152x128xbf16, #tpu.memory_space<vmem>>, vector<1152x128xbf16>
    %cst_30 = arith.constant dense<0.000000e+00> : vector<128x128xf32>
    %122 = tpu.matmul %120, %121, %cst_30 {dimension_numbers = #tpu.dot_dimension_numbers<[1], [0], [0], [1], [0, 0, 1, 1], [], []>} : vector<128x1152xbf16>, vector<1152x128xbf16>, vector<128x128xf32> -> vector<128x128xf32>
    %123 = vector.shape_cast %122 : vector<128x128xf32> to vector<8x16x128xf32>
    %c0_31 = arith.constant 0 : index
    %c0_32 = arith.constant 0 : index
    %124 = vector.load %arg7[%c0_31, %c0_32] : memref<1x128xf32, #tpu.memory_space<vmem>>, vector<1x128xf32>
    %125 = vector.shape_cast %124 : vector<1x128xf32> to vector<128xf32>
    %126 = vector.shape_cast %125 : vector<128xf32> to vector<1x1x128xf32>
    %127 = vector.broadcast %126 : vector<1x1x128xf32> to vector<8x16x128xf32>
    %128 = arith.mulf %123, %127 : vector<8x16x128xf32>
    %c0_33 = arith.constant 0 : index
    %c0_34 = arith.constant 0 : index
    %129 = vector.load %arg8[%c0_33, %c0_34] : memref<1x128xf32, #tpu.memory_space<vmem>>, vector<1x128xf32>
    %130 = vector.shape_cast %129 : vector<1x128xf32> to vector<128xf32>
    %131 = vector.shape_cast %130 : vector<128xf32> to vector<1x1x128xf32>
    %132 = vector.broadcast %131 : vector<1x1x128xf32> to vector<8x16x128xf32>
    %133 = arith.addf %128, %132 : vector<8x16x128xf32>
    %c0_35 = arith.constant 0 : index
    %c0_36 = arith.constant 0 : index
    %134 = vector.load %arg9[%c0_35, %c0_36] : memref<4x16xf32, #tpu.memory_space<vmem>>, vector<4x16xf32>
    %135 = vector.shape_cast %134 : vector<4x16xf32> to vector<1x4x16xf32>
    %136 = vector.shape_cast %135 : vector<1x4x16xf32> to vector<1x4x16xf32>
    %137 = vector.broadcast %136 : vector<1x4x16xf32> to vector<8x4x16xf32>
    "tpu.trace_start"() <{level = 10 : i32, message = "hbw,hwc->hbc"}> : () -> ()
    %cst_37 = arith.constant dense<0.000000e+00> : vector<8x4x128xf32>
    %138 = tpu.matmul %137, %133, %cst_37 {dimension_numbers = #tpu.dot_dimension_numbers<[2], [1], [1], [2], [0, 0, 0, 1, 1, 2], [0], [0]>} : vector<8x4x16xf32>, vector<8x16x128xf32>, vector<8x4x128xf32> -> vector<8x4x128xf32>
    "tpu.trace_stop"() : () -> ()
    %139 = vector.shape_cast %138 : vector<8x4x128xf32> to vector<4x2x4x128xf32>
    %140 = vector.extract_strided_slice %139 {offsets = [0, 0, 0, 0], sizes = [4, 1, 4, 128], strides = [1, 1, 1, 1]} : vector<4x2x4x128xf32> to vector<4x1x4x128xf32>
    %141 = vector.shape_cast %140 : vector<4x1x4x128xf32> to vector<4x4x128xf32>
    %142 = vector.extract_strided_slice %139 {offsets = [0, 1, 0, 0], sizes = [4, 1, 4, 128], strides = [1, 1, 1, 1]} : vector<4x2x4x128xf32> to vector<4x1x4x128xf32>
    %143 = vector.shape_cast %142 : vector<4x1x4x128xf32> to vector<4x4x128xf32>
    %cst_38 = arith.constant 0.000000e+00 : f32
    %144 = vector.broadcast %cst_38 : f32 to vector<1x4x128xf32>
    %145 = vector.extract_strided_slice %143 {offsets = [0, 0, 0], sizes = [3, 4, 128], strides = [1, 1, 1]} : vector<4x4x128xf32> to vector<3x4x128xf32>
    %146 = tpu.concatenate %144, %145 in 0 : vector<1x4x128xf32>, vector<3x4x128xf32> -> vector<4x4x128xf32>
    %147 = arith.addf %141, %143 : vector<4x4x128xf32>
    %148 = arith.addf %147, %146 : vector<4x4x128xf32>
    %cst_39 = arith.constant 0.111111112 : f32
    %149 = vector.broadcast %cst_39 : f32 to vector<4x4x128xf32>
    %150 = arith.mulf %148, %149 : vector<4x4x128xf32>
    %c0_40 = arith.constant 0 : index
    %c0_41 = arith.constant 0 : index
    %c0_42 = arith.constant 0 : index
    %c0_43 = arith.constant 0 : index
    %151 = vector.load %arg11[%c0_40, %c0_41, %c0_42, %c0_43] : memref<1x4x4x128xf32, #tpu.memory_space<vmem>>, vector<1x4x4x128xf32>
    %152 = vector.shape_cast %151 : vector<1x4x4x128xf32> to vector<4x4x128xf32>
    %153 = vector.shape_cast %150 : vector<4x4x128xf32> to vector<1x4x4x128xf32>
    tpu.vector_store %arg11[%c0_40, %c0_41, %c0_42, %c0_43], %153 {strides = array<i32>} : memref<1x4x4x128xf32, #tpu.memory_space<vmem>>, vector<1x4x4x128xf32>,
    return
  }
  func.func @transform_0(%arg0: i32) -> (i32, i32, i32, i32) {
    %c0_i32 = arith.constant 0 : i32
    %c0_i32_0 = arith.constant 0 : i32
    %c0_i32_1 = arith.constant 0 : i32
    %c0_i32_2 = arith.constant 0 : i32
    return %arg0, %c0_i32, %c0_i32_0, %c0_i32_1 : i32, i32, i32, i32
  }
  func.func @transform_1(%arg0: i32) -> (i32, i32) {
    %c0_i32 = arith.constant 0 : i32
    %c0_i32_0 = arith.constant 0 : i32
    %c0_i32_1 = arith.constant 0 : i32
    return %c0_i32, %c0_i32_0 : i32, i32
  }
  func.func @transform_2(%arg0: i32) -> (i32, i32) {
    %c0_i32 = arith.constant 0 : i32
    %c0_i32_0 = arith.constant 0 : i32
    %c0_i32_1 = arith.constant 0 : i32
    return %c0_i32, %c0_i32_0 : i32, i32
  }
  func.func @transform_3(%arg0: i32) -> (i32, i32) {
    %c0_i32 = arith.constant 0 : i32
    %c0_i32_0 = arith.constant 0 : i32
    %c0_i32_1 = arith.constant 0 : i32
    return %c0_i32, %c0_i32_0 : i32, i32
  }
  func.func @transform_4(%arg0: i32) -> (i32, i32) {
    %c0_i32 = arith.constant 0 : i32
    %c0_i32_0 = arith.constant 0 : i32
    %c0_i32_1 = arith.constant 0 : i32
    return %c0_i32, %c0_i32_0 : i32, i32
  }
  func.func @transform_5(%arg0: i32) -> (i32, i32) {
    %c0_i32 = arith.constant 0 : i32
    %c0_i32_0 = arith.constant 0 : i32
    %c0_i32_1 = arith.constant 0 : i32
    return %c0_i32, %c0_i32_0 : i32, i32
  }
  func.func @transform_6(%arg0: i32) -> (i32, i32) {
    %c0_i32 = arith.constant 0 : i32
    %c0_i32_0 = arith.constant 0 : i32
    %c0_i32_1 = arith.constant 0 : i32
    return %c0_i32, %c0_i32_0 : i32, i32
  }
  func.func @transform_7(%arg0: i32) -> (i32, i32) {
    %c0_i32 = arith.constant 0 : i32
    %c0_i32_0 = arith.constant 0 : i32
    %c0_i32_1 = arith.constant 0 : i32
    return %c0_i32, %c0_i32_0 : i32, i32
  }
  func.func @transform_8(%arg0: i32) -> (i32, i32) {
    %c0_i32 = arith.constant 0 : i32
    %c0_i32_0 = arith.constant 0 : i32
    %c0_i32_1 = arith.constant 0 : i32
    return %c0_i32, %c0_i32_0 : i32, i32
  }
  func.func @transform_9(%arg0: i32) -> (i32, i32, i32, i32) {
    %c0_i32 = arith.constant 0 : i32
    %c0_i32_0 = arith.constant 0 : i32
    %c0_i32_1 = arith.constant 0 : i32
    %c0_i32_2 = arith.constant 0 : i32
    return %arg0, %c0_i32, %c0_i32_0, %c0_i32_1 : i32, i32, i32, i32
  }
  func.func @transform_10(%arg0: i32) -> (i32, i32, i32, i32) {
    %c0_i32 = arith.constant 0 : i32
    %c0_i32_0 = arith.constant 0 : i32
    %c0_i32_1 = arith.constant 0 : i32
    %c0_i32_2 = arith.constant 0 : i32
    return %arg0, %c0_i32, %c0_i32_0, %c0_i32_1 : i32, i32, i32, i32
  }
}

module attributes {stable_mosaic.version = 11 : i64} {
  func.func @_fuse_head_kernel(%arg0: i32, %arg1: memref<1x16x16x128xbf16, #tpu.memory_space<vmem>>, %arg2: memref<1x4x4x128xf32, #tpu.memory_space<vmem>>, %arg3: memref<1x4x4x128xf32, #tpu.memory_space<vmem>>, %arg4: memref<1x4x4x128xf32, #tpu.memory_space<vmem>>, %arg5: memref<1152x128xbf16, #tpu.memory_space<vmem>>, %arg6: memref<1x128xf32, #tpu.memory_space<vmem>>, %arg7: memref<1x128xf32, #tpu.memory_space<vmem>>, %arg8: memref<1x16x16x128xf32, #tpu.memory_space<vmem>>) attributes {dimension_semantics = [#tpu.dimension_semantics<parallel>], iteration_bounds = array<i64: 2>, scalar_prefetch = 0 : i64, scratch_operands = 0 : i64, tpu.core_type = #tpu.core_type<tc>, window_params = [{transform_indices = @transform_0, window_bounds = array<i64: 1, 16, 16, 128>}, {transform_indices = @transform_1, window_bounds = array<i64: 1, 4, 4, 128>}, {transform_indices = @transform_2, window_bounds = array<i64: 1, 4, 4, 128>}, {transform_indices = @transform_3, window_bounds = array<i64: 1, 4, 4, 128>}, {pipeline_mode = #tpu.pipeline_mode<synchronous>, transform_indices = @transform_4, window_bounds = array<i64: 1152, 128>}, {pipeline_mode = #tpu.pipeline_mode<synchronous>, transform_indices = @transform_5, window_bounds = array<i64: 1, 128>}, {pipeline_mode = #tpu.pipeline_mode<synchronous>, transform_indices = @transform_6, window_bounds = array<i64: 1, 128>}, {transform_indices = @transform_7, window_bounds = array<i64: 1, 16, 16, 128>}]} {
    %c0 = arith.constant 0 : index
    %c0_0 = arith.constant 0 : index
    %c0_1 = arith.constant 0 : index
    %c0_2 = arith.constant 0 : index
    %0 = vector.load %arg2[%c0, %c0_0, %c0_1, %c0_2] : memref<1x4x4x128xf32, #tpu.memory_space<vmem>>, vector<1x4x4x128xf32>
    %1 = vector.shape_cast %0 : vector<1x4x4x128xf32> to vector<4x4x128xf32>
    %cst = arith.constant 0.000000e+00 : f32
    %2 = vector.broadcast %cst : f32 to vector<4x4x128xf32>
    %3 = arith.subf %2, %1 : vector<4x4x128xf32>
    %4 = math.exp %3 : vector<4x4x128xf32>
    %cst_3 = arith.constant 1.000000e+00 : f32
    %5 = vector.broadcast %cst_3 : f32 to vector<4x4x128xf32>
    %6 = arith.addf %5, %4 : vector<4x4x128xf32>
    %cst_4 = arith.constant 1.000000e+00 : f32
    %7 = vector.broadcast %cst_4 : f32 to vector<4x4x128xf32>
    %8 = arith.divf %7, %6 : vector<4x4x128xf32>
    %c0_5 = arith.constant 0 : index
    %c0_6 = arith.constant 0 : index
    %c0_7 = arith.constant 0 : index
    %c0_8 = arith.constant 0 : index
    %9 = vector.load %arg3[%c0_5, %c0_6, %c0_7, %c0_8] : memref<1x4x4x128xf32, #tpu.memory_space<vmem>>, vector<1x4x4x128xf32>
    %10 = vector.shape_cast %9 : vector<1x4x4x128xf32> to vector<4x4x128xf32>
    %c0_9 = arith.constant 0 : index
    %c0_10 = arith.constant 0 : index
    %c0_11 = arith.constant 0 : index
    %c0_12 = arith.constant 0 : index
    %11 = vector.load %arg4[%c0_9, %c0_10, %c0_11, %c0_12] : memref<1x4x4x128xf32, #tpu.memory_space<vmem>>, vector<1x4x4x128xf32>
    %12 = vector.shape_cast %11 : vector<1x4x4x128xf32> to vector<4x4x128xf32>
    %cst_13 = arith.constant 0.000000e+00 : f32
    %13 = vector.broadcast %cst_13 : f32 to vector<4x4x128xf32>
    %14 = arith.subf %13, %12 : vector<4x4x128xf32>
    %15 = math.exp %14 : vector<4x4x128xf32>
    %cst_14 = arith.constant 1.000000e+00 : f32
    %16 = vector.broadcast %cst_14 : f32 to vector<4x4x128xf32>
    %17 = arith.addf %16, %15 : vector<4x4x128xf32>
    %cst_15 = arith.constant 1.000000e+00 : f32
    %18 = vector.broadcast %cst_15 : f32 to vector<4x4x128xf32>
    %19 = arith.divf %18, %17 : vector<4x4x128xf32>
    %20 = arith.mulf %10, %19 : vector<4x4x128xf32>
    %c0_16 = arith.constant 0 : index
    %c0_17 = arith.constant 0 : index
    %c0_18 = arith.constant 0 : index
    %c0_19 = arith.constant 0 : index
    %21 = vector.load %arg1[%c0_16, %c0_17, %c0_18, %c0_19] : memref<1x16x16x128xbf16, #tpu.memory_space<vmem>>, vector<1x16x16x128xbf16>
    %22 = vector.shape_cast %21 : vector<1x16x16x128xbf16> to vector<16x16x128xbf16>
    %23 = arith.extf %22 : vector<16x16x128xbf16> to vector<16x16x128xf32>
    %24 = vector.shape_cast %8 : vector<4x4x128xf32> to vector<4x4x1x128xf32>
    %25 = vector.shape_cast %24 : vector<4x4x1x128xf32> to vector<4x4x1x128xf32>
    %26 = vector.broadcast %25 : vector<4x4x1x128xf32> to vector<4x4x4x128xf32>
    %27 = vector.shape_cast %26 : vector<4x4x4x128xf32> to vector<4x16x128xf32>
    %28 = vector.shape_cast %27 : vector<4x16x128xf32> to vector<4x1x16x128xf32>
    %29 = vector.shape_cast %28 : vector<4x1x16x128xf32> to vector<4x1x16x128xf32>
    %30 = vector.broadcast %29 : vector<4x1x16x128xf32> to vector<4x4x16x128xf32>
    %31 = vector.shape_cast %30 : vector<4x4x16x128xf32> to vector<16x16x128xf32>
    %32 = arith.mulf %23, %31 : vector<16x16x128xf32>
    %33 = vector.shape_cast %20 : vector<4x4x128xf32> to vector<4x4x1x128xf32>
    %34 = vector.shape_cast %33 : vector<4x4x1x128xf32> to vector<4x4x1x128xf32>
    %35 = vector.broadcast %34 : vector<4x4x1x128xf32> to vector<4x4x4x128xf32>
    %36 = vector.shape_cast %35 : vector<4x4x4x128xf32> to vector<4x16x128xf32>
    %37 = vector.shape_cast %36 : vector<4x16x128xf32> to vector<4x1x16x128xf32>
    %38 = vector.shape_cast %37 : vector<4x1x16x128xf32> to vector<4x1x16x128xf32>
    %39 = vector.broadcast %38 : vector<4x1x16x128xf32> to vector<4x4x16x128xf32>
    %40 = vector.shape_cast %39 : vector<4x4x16x128xf32> to vector<16x16x128xf32>
    %41 = arith.addf %32, %40 : vector<16x16x128xf32>
    %cst_20 = arith.constant 0.000000e+00 : f32
    %42 = vector.broadcast %cst_20 : f32 to vector<16x1x128xf32>
    %cst_21 = arith.constant 0.000000e+00 : f32
    %43 = vector.broadcast %cst_21 : f32 to vector<1x18x128xf32>
    %44 = tpu.concatenate %42, %41, %42 in 1 : vector<16x1x128xf32>, vector<16x16x128xf32>, vector<16x1x128xf32> -> vector<16x18x128xf32>
    %45 = tpu.concatenate %43, %44, %43 in 0 : vector<1x18x128xf32>, vector<16x18x128xf32>, vector<1x18x128xf32> -> vector<18x18x128xf32>
    %46 = vector.extract_strided_slice %45 {offsets = [0, 0, 0], sizes = [16, 16, 128], strides = [1, 1, 1]} : vector<18x18x128xf32> to vector<16x16x128xf32>
    %47 = vector.shape_cast %46 : vector<16x16x128xf32> to vector<256x128xf32>
    %48 = vector.extract_strided_slice %45 {offsets = [0, 1, 0], sizes = [16, 16, 128], strides = [1, 1, 1]} : vector<18x18x128xf32> to vector<16x16x128xf32>
    %49 = vector.shape_cast %48 : vector<16x16x128xf32> to vector<256x128xf32>
    %50 = vector.extract_strided_slice %45 {offsets = [0, 2, 0], sizes = [16, 16, 128], strides = [1, 1, 1]} : vector<18x18x128xf32> to vector<16x16x128xf32>
    %51 = vector.shape_cast %50 : vector<16x16x128xf32> to vector<256x128xf32>
    %52 = vector.extract_strided_slice %45 {offsets = [1, 0, 0], sizes = [16, 16, 128], strides = [1, 1, 1]} : vector<18x18x128xf32> to vector<16x16x128xf32>
    %53 = vector.shape_cast %52 : vector<16x16x128xf32> to vector<256x128xf32>
    %54 = vector.extract_strided_slice %45 {offsets = [1, 1, 0], sizes = [16, 16, 128], strides = [1, 1, 1]} : vector<18x18x128xf32> to vector<16x16x128xf32>
    %55 = vector.shape_cast %54 : vector<16x16x128xf32> to vector<256x128xf32>
    %56 = vector.extract_strided_slice %45 {offsets = [1, 2, 0], sizes = [16, 16, 128], strides = [1, 1, 1]} : vector<18x18x128xf32> to vector<16x16x128xf32>
    %57 = vector.shape_cast %56 : vector<16x16x128xf32> to vector<256x128xf32>
    %58 = vector.extract_strided_slice %45 {offsets = [2, 0, 0], sizes = [16, 16, 128], strides = [1, 1, 1]} : vector<18x18x128xf32> to vector<16x16x128xf32>
    %59 = vector.shape_cast %58 : vector<16x16x128xf32> to vector<256x128xf32>
    %60 = vector.extract_strided_slice %45 {offsets = [2, 1, 0], sizes = [16, 16, 128], strides = [1, 1, 1]} : vector<18x18x128xf32> to vector<16x16x128xf32>
    %61 = vector.shape_cast %60 : vector<16x16x128xf32> to vector<256x128xf32>
    %62 = vector.extract_strided_slice %45 {offsets = [2, 2, 0], sizes = [16, 16, 128], strides = [1, 1, 1]} : vector<18x18x128xf32> to vector<16x16x128xf32>
    %63 = vector.shape_cast %62 : vector<16x16x128xf32> to vector<256x128xf32>
    %64 = tpu.concatenate %47, %49, %51, %53, %55, %57, %59, %61, %63 in 1 : vector<256x128xf32>, vector<256x128xf32>, vector<256x128xf32>, vector<256x128xf32>, vector<256x128xf32>, vector<256x128xf32>, vector<256x128xf32>, vector<256x128xf32>, vector<256x128xf32> -> vector<256x1152xf32>
    %65 = arith.truncf %64 : vector<256x1152xf32> to vector<256x1152xbf16>
    %c0_22 = arith.constant 0 : index
    %c0_23 = arith.constant 0 : index
    %66 = vector.load %arg5[%c0_22, %c0_23] : memref<1152x128xbf16, #tpu.memory_space<vmem>>, vector<1152x128xbf16>
    %cst_24 = arith.constant dense<0.000000e+00> : vector<256x128xf32>
    %67 = tpu.matmul %65, %66, %cst_24 {dimension_numbers = #tpu.dot_dimension_numbers<[1], [0], [0], [1], [0, 0, 1, 1], [], []>} : vector<256x1152xbf16>, vector<1152x128xbf16>, vector<256x128xf32> -> vector<256x128xf32>
    %c0_25 = arith.constant 0 : index
    %c0_26 = arith.constant 0 : index
    %68 = vector.load %arg6[%c0_25, %c0_26] : memref<1x128xf32, #tpu.memory_space<vmem>>, vector<1x128xf32>
    %69 = vector.shape_cast %68 : vector<1x128xf32> to vector<128xf32>
    %70 = vector.shape_cast %69 : vector<128xf32> to vector<1x128xf32>
    %71 = vector.broadcast %70 : vector<1x128xf32> to vector<256x128xf32>
    %72 = arith.mulf %67, %71 : vector<256x128xf32>
    %c0_27 = arith.constant 0 : index
    %c0_28 = arith.constant 0 : index
    %73 = vector.load %arg7[%c0_27, %c0_28] : memref<1x128xf32, #tpu.memory_space<vmem>>, vector<1x128xf32>
    %74 = vector.shape_cast %73 : vector<1x128xf32> to vector<128xf32>
    %75 = vector.shape_cast %74 : vector<128xf32> to vector<1x128xf32>
    %76 = vector.broadcast %75 : vector<1x128xf32> to vector<256x128xf32>
    %77 = arith.addf %72, %76 : vector<256x128xf32>
    %cst_29 = arith.constant 0.000000e+00 : f32
    %78 = vector.broadcast %cst_29 : f32 to vector<256x128xf32>
    %79 = arith.maximumf %77, %78 : vector<256x128xf32>
    %80 = vector.shape_cast %79 : vector<256x128xf32> to vector<16x16x128xf32>
    %c0_30 = arith.constant 0 : index
    %c0_31 = arith.constant 0 : index
    %c0_32 = arith.constant 0 : index
    %c0_33 = arith.constant 0 : index
    %81 = vector.load %arg8[%c0_30, %c0_31, %c0_32, %c0_33] : memref<1x16x16x128xf32, #tpu.memory_space<vmem>>, vector<1x16x16x128xf32>
    %82 = vector.shape_cast %81 : vector<1x16x16x128xf32> to vector<16x16x128xf32>
    %83 = vector.shape_cast %80 : vector<16x16x128xf32> to vector<1x16x16x128xf32>
    tpu.vector_store %arg8[%c0_30, %c0_31, %c0_32, %c0_33], %83 {strides = array<i32>} : memref<1x16x16x128xf32, #tpu.memory_space<vmem>>, vector<1x16x16x128xf32>,
    return
  }
  func.func @transform_0(%arg0: i32) -> (i32, i32, i32, i32) {
    %c0_i32 = arith.constant 0 : i32
    %c0_i32_0 = arith.constant 0 : i32
    %c0_i32_1 = arith.constant 0 : i32
    %c0_i32_2 = arith.constant 0 : i32
    return %arg0, %c0_i32, %c0_i32_0, %c0_i32_1 : i32, i32, i32, i32
  }
  func.func @transform_1(%arg0: i32) -> (i32, i32, i32, i32) {
    %c0_i32 = arith.constant 0 : i32
    %c0_i32_0 = arith.constant 0 : i32
    %c0_i32_1 = arith.constant 0 : i32
    %c0_i32_2 = arith.constant 0 : i32
    return %arg0, %c0_i32, %c0_i32_0, %c0_i32_1 : i32, i32, i32, i32
  }
  func.func @transform_2(%arg0: i32) -> (i32, i32, i32, i32) {
    %c0_i32 = arith.constant 0 : i32
    %c0_i32_0 = arith.constant 0 : i32
    %c0_i32_1 = arith.constant 0 : i32
    %c0_i32_2 = arith.constant 0 : i32
    return %arg0, %c0_i32, %c0_i32_0, %c0_i32_1 : i32, i32, i32, i32
  }
  func.func @transform_3(%arg0: i32) -> (i32, i32, i32, i32) {
    %c0_i32 = arith.constant 0 : i32
    %c0_i32_0 = arith.constant 0 : i32
    %c0_i32_1 = arith.constant 0 : i32
    %c0_i32_2 = arith.constant 0 : i32
    return %arg0, %c0_i32, %c0_i32_0, %c0_i32_1 : i32, i32, i32, i32
  }
  func.func @transform_4(%arg0: i32) -> (i32, i32) {
    %c0_i32 = arith.constant 0 : i32
    %c0_i32_0 = arith.constant 0 : i32
    %c0_i32_1 = arith.constant 0 : i32
    return %c0_i32, %c0_i32_0 : i32, i32
  }
  func.func @transform_5(%arg0: i32) -> (i32, i32) {
    %c0_i32 = arith.constant 0 : i32
    %c0_i32_0 = arith.constant 0 : i32
    %c0_i32_1 = arith.constant 0 : i32
    return %c0_i32, %c0_i32_0 : i32, i32
  }
  func.func @transform_6(%arg0: i32) -> (i32, i32) {
    %c0_i32 = arith.constant 0 : i32
    %c0_i32_0 = arith.constant 0 : i32
    %c0_i32_1 = arith.constant 0 : i32
    return %c0_i32, %c0_i32_0 : i32, i32
  }
  func.func @transform_7(%arg0: i32) -> (i32, i32, i32, i32) {
    %c0_i32 = arith.constant 0 : i32
    %c0_i32_0 = arith.constant 0 : i32
    %c0_i32_1 = arith.constant 0 : i32
    %c0_i32_2 = arith.constant 0 : i32
    return %arg0, %c0_i32, %c0_i32_0, %c0_i32_1 : i32, i32, i32, i32
  }
}

module attributes {stable_mosaic.version = 11 : i64} {
  func.func @_semantic_kernel(%arg0: i32, %arg1: memref<1x4x4x128xf32, #tpu.memory_space<vmem>>, %arg2: memref<1152x128xbf16, #tpu.memory_space<vmem>>, %arg3: memref<1x128xf32, #tpu.memory_space<vmem>>, %arg4: memref<1x128xf32, #tpu.memory_space<vmem>>, %arg5: memref<9x128xf32, #tpu.memory_space<vmem>>, %arg6: memref<1x128xf32, #tpu.memory_space<vmem>>, %arg7: memref<1x128xf32, #tpu.memory_space<vmem>>, %arg8: memref<128x128xbf16, #tpu.memory_space<vmem>>, %arg9: memref<1x4x4x128xf32, #tpu.memory_space<vmem>>, %arg10: memref<1x4x4x128xf32, #tpu.memory_space<vmem>>) attributes {dimension_semantics = [#tpu.dimension_semantics<parallel>], iteration_bounds = array<i64: 2>, scalar_prefetch = 0 : i64, scratch_operands = 0 : i64, tpu.core_type = #tpu.core_type<tc>, window_params = [{transform_indices = @transform_0, window_bounds = array<i64: 1, 4, 4, 128>}, {pipeline_mode = #tpu.pipeline_mode<synchronous>, transform_indices = @transform_1, window_bounds = array<i64: 1152, 128>}, {pipeline_mode = #tpu.pipeline_mode<synchronous>, transform_indices = @transform_2, window_bounds = array<i64: 1, 128>}, {pipeline_mode = #tpu.pipeline_mode<synchronous>, transform_indices = @transform_3, window_bounds = array<i64: 1, 128>}, {pipeline_mode = #tpu.pipeline_mode<synchronous>, transform_indices = @transform_4, window_bounds = array<i64: 9, 128>}, {pipeline_mode = #tpu.pipeline_mode<synchronous>, transform_indices = @transform_5, window_bounds = array<i64: 1, 128>}, {pipeline_mode = #tpu.pipeline_mode<synchronous>, transform_indices = @transform_6, window_bounds = array<i64: 1, 128>}, {pipeline_mode = #tpu.pipeline_mode<synchronous>, transform_indices = @transform_7, window_bounds = array<i64: 128, 128>}, {transform_indices = @transform_8, window_bounds = array<i64: 1, 4, 4, 128>}, {transform_indices = @transform_9, window_bounds = array<i64: 1, 4, 4, 128>}]} {
    %c0 = arith.constant 0 : index
    %c0_0 = arith.constant 0 : index
    %c0_1 = arith.constant 0 : index
    %c0_2 = arith.constant 0 : index
    %0 = vector.load %arg1[%c0, %c0_0, %c0_1, %c0_2] : memref<1x4x4x128xf32, #tpu.memory_space<vmem>>, vector<1x4x4x128xf32>
    %1 = vector.shape_cast %0 : vector<1x4x4x128xf32> to vector<4x4x128xf32>
    %cst = arith.constant 0.000000e+00 : f32
    %2 = vector.broadcast %cst : f32 to vector<4x1x128xf32>
    %cst_3 = arith.constant 0.000000e+00 : f32
    %3 = vector.broadcast %cst_3 : f32 to vector<1x6x128xf32>
    %4 = tpu.concatenate %2, %1, %2 in 1 : vector<4x1x128xf32>, vector<4x4x128xf32>, vector<4x1x128xf32> -> vector<4x6x128xf32>
    %5 = tpu.concatenate %3, %4, %3 in 0 : vector<1x6x128xf32>, vector<4x6x128xf32>, vector<1x6x128xf32> -> vector<6x6x128xf32>
    %6 = vector.extract_strided_slice %5 {offsets = [0, 0, 0], sizes = [4, 4, 128], strides = [1, 1, 1]} : vector<6x6x128xf32> to vector<4x4x128xf32>
    %7 = vector.shape_cast %6 : vector<4x4x128xf32> to vector<16x128xf32>
    %8 = vector.extract_strided_slice %5 {offsets = [0, 1, 0], sizes = [4, 4, 128], strides = [1, 1, 1]} : vector<6x6x128xf32> to vector<4x4x128xf32>
    %9 = vector.shape_cast %8 : vector<4x4x128xf32> to vector<16x128xf32>
    %10 = vector.extract_strided_slice %5 {offsets = [0, 2, 0], sizes = [4, 4, 128], strides = [1, 1, 1]} : vector<6x6x128xf32> to vector<4x4x128xf32>
    %11 = vector.shape_cast %10 : vector<4x4x128xf32> to vector<16x128xf32>
    %12 = vector.extract_strided_slice %5 {offsets = [1, 0, 0], sizes = [4, 4, 128], strides = [1, 1, 1]} : vector<6x6x128xf32> to vector<4x4x128xf32>
    %13 = vector.shape_cast %12 : vector<4x4x128xf32> to vector<16x128xf32>
    %14 = vector.extract_strided_slice %5 {offsets = [1, 1, 0], sizes = [4, 4, 128], strides = [1, 1, 1]} : vector<6x6x128xf32> to vector<4x4x128xf32>
    %15 = vector.shape_cast %14 : vector<4x4x128xf32> to vector<16x128xf32>
    %16 = vector.extract_strided_slice %5 {offsets = [1, 2, 0], sizes = [4, 4, 128], strides = [1, 1, 1]} : vector<6x6x128xf32> to vector<4x4x128xf32>
    %17 = vector.shape_cast %16 : vector<4x4x128xf32> to vector<16x128xf32>
    %18 = vector.extract_strided_slice %5 {offsets = [2, 0, 0], sizes = [4, 4, 128], strides = [1, 1, 1]} : vector<6x6x128xf32> to vector<4x4x128xf32>
    %19 = vector.shape_cast %18 : vector<4x4x128xf32> to vector<16x128xf32>
    %20 = vector.extract_strided_slice %5 {offsets = [2, 1, 0], sizes = [4, 4, 128], strides = [1, 1, 1]} : vector<6x6x128xf32> to vector<4x4x128xf32>
    %21 = vector.shape_cast %20 : vector<4x4x128xf32> to vector<16x128xf32>
    %22 = vector.extract_strided_slice %5 {offsets = [2, 2, 0], sizes = [4, 4, 128], strides = [1, 1, 1]} : vector<6x6x128xf32> to vector<4x4x128xf32>
    %23 = vector.shape_cast %22 : vector<4x4x128xf32> to vector<16x128xf32>
    %24 = tpu.concatenate %7, %9, %11, %13, %15, %17, %19, %21, %23 in 1 : vector<16x128xf32>, vector<16x128xf32>, vector<16x128xf32>, vector<16x128xf32>, vector<16x128xf32>, vector<16x128xf32>, vector<16x128xf32>, vector<16x128xf32>, vector<16x128xf32> -> vector<16x1152xf32>
    %25 = arith.truncf %24 : vector<16x1152xf32> to vector<16x1152xbf16>
    %c0_4 = arith.constant 0 : index
    %c0_5 = arith.constant 0 : index
    %26 = vector.load %arg2[%c0_4, %c0_5] : memref<1152x128xbf16, #tpu.memory_space<vmem>>, vector<1152x128xbf16>
    %cst_6 = arith.constant dense<0.000000e+00> : vector<16x128xf32>
    %27 = tpu.matmul %25, %26, %cst_6 {dimension_numbers = #tpu.dot_dimension_numbers<[1], [0], [0], [1], [0, 0, 1, 1], [], []>} : vector<16x1152xbf16>, vector<1152x128xbf16>, vector<16x128xf32> -> vector<16x128xf32>
    %c0_7 = arith.constant 0 : index
    %c0_8 = arith.constant 0 : index
    %28 = vector.load %arg3[%c0_7, %c0_8] : memref<1x128xf32, #tpu.memory_space<vmem>>, vector<1x128xf32>
    %29 = vector.shape_cast %28 : vector<1x128xf32> to vector<128xf32>
    %30 = vector.shape_cast %29 : vector<128xf32> to vector<1x128xf32>
    %31 = vector.broadcast %30 : vector<1x128xf32> to vector<16x128xf32>
    %32 = arith.mulf %27, %31 : vector<16x128xf32>
    %c0_9 = arith.constant 0 : index
    %c0_10 = arith.constant 0 : index
    %33 = vector.load %arg4[%c0_9, %c0_10] : memref<1x128xf32, #tpu.memory_space<vmem>>, vector<1x128xf32>
    %34 = vector.shape_cast %33 : vector<1x128xf32> to vector<128xf32>
    %35 = vector.shape_cast %34 : vector<128xf32> to vector<1x128xf32>
    %36 = vector.broadcast %35 : vector<1x128xf32> to vector<16x128xf32>
    %37 = arith.addf %32, %36 : vector<16x128xf32>
    %38 = vector.shape_cast %37 : vector<16x128xf32> to vector<4x4x128xf32>
    %c0_11 = arith.constant 0 : index
    %c0_12 = arith.constant 0 : index
    %c0_13 = arith.constant 0 : index
    %c0_14 = arith.constant 0 : index
    %39 = vector.load %arg9[%c0_11, %c0_12, %c0_13, %c0_14] : memref<1x4x4x128xf32, #tpu.memory_space<vmem>>, vector<1x4x4x128xf32>
    %40 = vector.shape_cast %39 : vector<1x4x4x128xf32> to vector<4x4x128xf32>
    %41 = vector.shape_cast %38 : vector<4x4x128xf32> to vector<1x4x4x128xf32>
    tpu.vector_store %arg9[%c0_11, %c0_12, %c0_13, %c0_14], %41 {strides = array<i32>} : memref<1x4x4x128xf32, #tpu.memory_space<vmem>>, vector<1x4x4x128xf32>,
    %c0_15 = arith.constant 0 : index
    %c0_16 = arith.constant 0 : index
    %42 = vector.load %arg6[%c0_15, %c0_16] : memref<1x128xf32, #tpu.memory_space<vmem>>, vector<1x128xf32>
    %43 = vector.shape_cast %42 : vector<1x128xf32> to vector<128xf32>
    %c0_17 = arith.constant 0 : index
    %c0_18 = arith.constant 0 : index
    %44 = vector.load %arg7[%c0_17, %c0_18] : memref<1x128xf32, #tpu.memory_space<vmem>>, vector<1x128xf32>
    %45 = vector.shape_cast %44 : vector<1x128xf32> to vector<128xf32>
    %cst_19 = arith.constant 0.000000e+00 : f32
    %46 = vector.broadcast %cst_19 : f32 to vector<4x4x128xf32>
    %47 = vector.extract_strided_slice %5 {offsets = [0, 0, 0], sizes = [4, 4, 128], strides = [1, 1, 1]} : vector<6x6x128xf32> to vector<4x4x128xf32>
    %c0_20 = arith.constant 0 : index
    %c0_21 = arith.constant 0 : index
    %48 = vector.load %arg5[%c0_20, %c0_21] : memref<9x128xf32, #tpu.memory_space<vmem>>, vector<1x128xf32>
    %49 = vector.shape_cast %48 : vector<1x128xf32> to vector<128xf32>
    %50 = vector.shape_cast %49 : vector<128xf32> to vector<1x1x128xf32>
    %51 = vector.broadcast %50 : vector<1x1x128xf32> to vector<4x4x128xf32>
    %52 = arith.mulf %47, %51 : vector<4x4x128xf32>
    %53 = arith.addf %46, %52 : vector<4x4x128xf32>
    %54 = vector.extract_strided_slice %5 {offsets = [0, 1, 0], sizes = [4, 4, 128], strides = [1, 1, 1]} : vector<6x6x128xf32> to vector<4x4x128xf32>
    %c1 = arith.constant 1 : index
    %c0_22 = arith.constant 0 : index
    %55 = vector.load %arg5[%c1, %c0_22] : memref<9x128xf32, #tpu.memory_space<vmem>>, vector<1x128xf32>
    %56 = vector.shape_cast %55 : vector<1x128xf32> to vector<128xf32>
    %57 = vector.shape_cast %56 : vector<128xf32> to vector<1x1x128xf32>
    %58 = vector.broadcast %57 : vector<1x1x128xf32> to vector<4x4x128xf32>
    %59 = arith.mulf %54, %58 : vector<4x4x128xf32>
    %60 = arith.addf %53, %59 : vector<4x4x128xf32>
    %61 = vector.extract_strided_slice %5 {offsets = [0, 2, 0], sizes = [4, 4, 128], strides = [1, 1, 1]} : vector<6x6x128xf32> to vector<4x4x128xf32>
    %c2 = arith.constant 2 : index
    %c0_23 = arith.constant 0 : index
    %62 = vector.load %arg5[%c2, %c0_23] : memref<9x128xf32, #tpu.memory_space<vmem>>, vector<1x128xf32>
    %63 = vector.shape_cast %62 : vector<1x128xf32> to vector<128xf32>
    %64 = vector.shape_cast %63 : vector<128xf32> to vector<1x1x128xf32>
    %65 = vector.broadcast %64 : vector<1x1x128xf32> to vector<4x4x128xf32>
    %66 = arith.mulf %61, %65 : vector<4x4x128xf32>
    %67 = arith.addf %60, %66 : vector<4x4x128xf32>
    %68 = vector.extract_strided_slice %5 {offsets = [1, 0, 0], sizes = [4, 4, 128], strides = [1, 1, 1]} : vector<6x6x128xf32> to vector<4x4x128xf32>
    %c3 = arith.constant 3 : index
    %c0_24 = arith.constant 0 : index
    %69 = vector.load %arg5[%c3, %c0_24] : memref<9x128xf32, #tpu.memory_space<vmem>>, vector<1x128xf32>
    %70 = vector.shape_cast %69 : vector<1x128xf32> to vector<128xf32>
    %71 = vector.shape_cast %70 : vector<128xf32> to vector<1x1x128xf32>
    %72 = vector.broadcast %71 : vector<1x1x128xf32> to vector<4x4x128xf32>
    %73 = arith.mulf %68, %72 : vector<4x4x128xf32>
    %74 = arith.addf %67, %73 : vector<4x4x128xf32>
    %75 = vector.extract_strided_slice %5 {offsets = [1, 1, 0], sizes = [4, 4, 128], strides = [1, 1, 1]} : vector<6x6x128xf32> to vector<4x4x128xf32>
    %c4 = arith.constant 4 : index
    %c0_25 = arith.constant 0 : index
    %76 = vector.load %arg5[%c4, %c0_25] : memref<9x128xf32, #tpu.memory_space<vmem>>, vector<1x128xf32>
    %77 = vector.shape_cast %76 : vector<1x128xf32> to vector<128xf32>
    %78 = vector.shape_cast %77 : vector<128xf32> to vector<1x1x128xf32>
    %79 = vector.broadcast %78 : vector<1x1x128xf32> to vector<4x4x128xf32>
    %80 = arith.mulf %75, %79 : vector<4x4x128xf32>
    %81 = arith.addf %74, %80 : vector<4x4x128xf32>
    %82 = vector.extract_strided_slice %5 {offsets = [1, 2, 0], sizes = [4, 4, 128], strides = [1, 1, 1]} : vector<6x6x128xf32> to vector<4x4x128xf32>
    %c5 = arith.constant 5 : index
    %c0_26 = arith.constant 0 : index
    %83 = vector.load %arg5[%c5, %c0_26] : memref<9x128xf32, #tpu.memory_space<vmem>>, vector<1x128xf32>
    %84 = vector.shape_cast %83 : vector<1x128xf32> to vector<128xf32>
    %85 = vector.shape_cast %84 : vector<128xf32> to vector<1x1x128xf32>
    %86 = vector.broadcast %85 : vector<1x1x128xf32> to vector<4x4x128xf32>
    %87 = arith.mulf %82, %86 : vector<4x4x128xf32>
    %88 = arith.addf %81, %87 : vector<4x4x128xf32>
    %89 = vector.extract_strided_slice %5 {offsets = [2, 0, 0], sizes = [4, 4, 128], strides = [1, 1, 1]} : vector<6x6x128xf32> to vector<4x4x128xf32>
    %c6 = arith.constant 6 : index
    %c0_27 = arith.constant 0 : index
    %90 = vector.load %arg5[%c6, %c0_27] : memref<9x128xf32, #tpu.memory_space<vmem>>, vector<1x128xf32>
    %91 = vector.shape_cast %90 : vector<1x128xf32> to vector<128xf32>
    %92 = vector.shape_cast %91 : vector<128xf32> to vector<1x1x128xf32>
    %93 = vector.broadcast %92 : vector<1x1x128xf32> to vector<4x4x128xf32>
    %94 = arith.mulf %89, %93 : vector<4x4x128xf32>
    %95 = arith.addf %88, %94 : vector<4x4x128xf32>
    %96 = vector.extract_strided_slice %5 {offsets = [2, 1, 0], sizes = [4, 4, 128], strides = [1, 1, 1]} : vector<6x6x128xf32> to vector<4x4x128xf32>
    %c7 = arith.constant 7 : index
    %c0_28 = arith.constant 0 : index
    %97 = vector.load %arg5[%c7, %c0_28] : memref<9x128xf32, #tpu.memory_space<vmem>>, vector<1x128xf32>
    %98 = vector.shape_cast %97 : vector<1x128xf32> to vector<128xf32>
    %99 = vector.shape_cast %98 : vector<128xf32> to vector<1x1x128xf32>
    %100 = vector.broadcast %99 : vector<1x1x128xf32> to vector<4x4x128xf32>
    %101 = arith.mulf %96, %100 : vector<4x4x128xf32>
    %102 = arith.addf %95, %101 : vector<4x4x128xf32>
    %103 = vector.extract_strided_slice %5 {offsets = [2, 2, 0], sizes = [4, 4, 128], strides = [1, 1, 1]} : vector<6x6x128xf32> to vector<4x4x128xf32>
    %c8 = arith.constant 8 : index
    %c0_29 = arith.constant 0 : index
    %104 = vector.load %arg5[%c8, %c0_29] : memref<9x128xf32, #tpu.memory_space<vmem>>, vector<1x128xf32>
    %105 = vector.shape_cast %104 : vector<1x128xf32> to vector<128xf32>
    %106 = vector.shape_cast %105 : vector<128xf32> to vector<1x1x128xf32>
    %107 = vector.broadcast %106 : vector<1x1x128xf32> to vector<4x4x128xf32>
    %108 = arith.mulf %103, %107 : vector<4x4x128xf32>
    %109 = arith.addf %102, %108 : vector<4x4x128xf32>
    %110 = vector.shape_cast %43 : vector<128xf32> to vector<1x1x128xf32>
    %111 = vector.broadcast %110 : vector<1x1x128xf32> to vector<4x4x128xf32>
    %112 = arith.mulf %109, %111 : vector<4x4x128xf32>
    %113 = vector.shape_cast %45 : vector<128xf32> to vector<1x1x128xf32>
    %114 = vector.broadcast %113 : vector<1x1x128xf32> to vector<4x4x128xf32>
    %115 = arith.addf %112, %114 : vector<4x4x128xf32>
    %116 = vector.shape_cast %115 : vector<4x4x128xf32> to vector<16x128xf32>
    %117 = arith.truncf %116 : vector<16x128xf32> to vector<16x128xbf16>
    %c0_30 = arith.constant 0 : index
    %c0_31 = arith.constant 0 : index
    %118 = vector.load %arg8[%c0_30, %c0_31] : memref<128x128xbf16, #tpu.memory_space<vmem>>, vector<128x128xbf16>
    %cst_32 = arith.constant dense<0.000000e+00> : vector<16x128xf32>
    %119 = tpu.matmul %117, %118, %cst_32 {dimension_numbers = #tpu.dot_dimension_numbers<[1], [0], [0], [1], [0, 0, 1, 1], [], []>} : vector<16x128xbf16>, vector<128x128xbf16>, vector<16x128xf32> -> vector<16x128xf32>
    %120 = vector.shape_cast %119 : vector<16x128xf32> to vector<4x4x128xf32>
    %c0_33 = arith.constant 0 : index
    %c0_34 = arith.constant 0 : index
    %c0_35 = arith.constant 0 : index
    %c0_36 = arith.constant 0 : index
    %121 = vector.load %arg10[%c0_33, %c0_34, %c0_35, %c0_36] : memref<1x4x4x128xf32, #tpu.memory_space<vmem>>, vector<1x4x4x128xf32>
    %122 = vector.shape_cast %121 : vector<1x4x4x128xf32> to vector<4x4x128xf32>
    %123 = vector.shape_cast %120 : vector<4x4x128xf32> to vector<1x4x4x128xf32>
    tpu.vector_store %arg10[%c0_33, %c0_34, %c0_35, %c0_36], %123 {strides = array<i32>} : memref<1x4x4x128xf32, #tpu.memory_space<vmem>>, vector<1x4x4x128xf32>,
    return
  }
  func.func @transform_0(%arg0: i32) -> (i32, i32, i32, i32) {
    %c0_i32 = arith.constant 0 : i32
    %c0_i32_0 = arith.constant 0 : i32
    %c0_i32_1 = arith.constant 0 : i32
    %c0_i32_2 = arith.constant 0 : i32
    return %arg0, %c0_i32, %c0_i32_0, %c0_i32_1 : i32, i32, i32, i32
  }
  func.func @transform_1(%arg0: i32) -> (i32, i32) {
    %c0_i32 = arith.constant 0 : i32
    %c0_i32_0 = arith.constant 0 : i32
    %c0_i32_1 = arith.constant 0 : i32
    return %c0_i32, %c0_i32_0 : i32, i32
  }
  func.func @transform_2(%arg0: i32) -> (i32, i32) {
    %c0_i32 = arith.constant 0 : i32
    %c0_i32_0 = arith.constant 0 : i32
    %c0_i32_1 = arith.constant 0 : i32
    return %c0_i32, %c0_i32_0 : i32, i32
  }
  func.func @transform_3(%arg0: i32) -> (i32, i32) {
    %c0_i32 = arith.constant 0 : i32
    %c0_i32_0 = arith.constant 0 : i32
    %c0_i32_1 = arith.constant 0 : i32
    return %c0_i32, %c0_i32_0 : i32, i32
  }
  func.func @transform_4(%arg0: i32) -> (i32, i32) {
    %c0_i32 = arith.constant 0 : i32
    %c0_i32_0 = arith.constant 0 : i32
    %c0_i32_1 = arith.constant 0 : i32
    return %c0_i32, %c0_i32_0 : i32, i32
  }
  func.func @transform_5(%arg0: i32) -> (i32, i32) {
    %c0_i32 = arith.constant 0 : i32
    %c0_i32_0 = arith.constant 0 : i32
    %c0_i32_1 = arith.constant 0 : i32
    return %c0_i32, %c0_i32_0 : i32, i32
  }
  func.func @transform_6(%arg0: i32) -> (i32, i32) {
    %c0_i32 = arith.constant 0 : i32
    %c0_i32_0 = arith.constant 0 : i32
    %c0_i32_1 = arith.constant 0 : i32
    return %c0_i32, %c0_i32_0 : i32, i32
  }
  func.func @transform_7(%arg0: i32) -> (i32, i32) {
    %c0_i32 = arith.constant 0 : i32
    %c0_i32_0 = arith.constant 0 : i32
    %c0_i32_1 = arith.constant 0 : i32
    return %c0_i32, %c0_i32_0 : i32, i32
  }
  func.func @transform_8(%arg0: i32) -> (i32, i32, i32, i32) {
    %c0_i32 = arith.constant 0 : i32
    %c0_i32_0 = arith.constant 0 : i32
    %c0_i32_1 = arith.constant 0 : i32
    %c0_i32_2 = arith.constant 0 : i32
    return %arg0, %c0_i32, %c0_i32_0, %c0_i32_1 : i32, i32, i32, i32
  }
  func.func @transform_9(%arg0: i32) -> (i32, i32, i32, i32) {
    %c0_i32 = arith.constant 0 : i32
    %c0_i32_0 = arith.constant 0 : i32
    %c0_i32_1 = arith.constant 0 : i32
    %c0_i32_2 = arith.constant 0 : i32
    return %arg0, %c0_i32, %c0_i32_0, %c0_i32_1 : i32, i32, i32, i32
  }
}

</mosaic_0001>

<llo_original>
// kernel: bga_forward.4
$region0: #{bga_forward.4}
  #allocation0 [shape = 'u32[]', space=smem, size = 0x4, offset = 0x4, fixed_abs, tag = 'smem constant byte address 0x4 - core index']
  #allocation1 [shape = 'u32[144,128]{1,0:T(1,128)}', space=vmem, size = 0x12000, scoped, tag = 'internal scratch']
  %s0 = inlined_call_operand.vmem [shape: f32[2,4,4,128], index: 0, kind: input, shape index: {}]
  %s1 = inlined_call_operand.vmem [shape: bf16[1152,128], index: 1, kind: input, shape index: {}]
  %s2 = inlined_call_operand.vmem [shape: f32[1,128], index: 2, kind: input, shape index: {}]
  %s3 = inlined_call_operand.vmem [shape: f32[1,128], index: 3, kind: input, shape index: {}]
  %s4 = inlined_call_operand.vmem [shape: f32[9,128], index: 4, kind: input, shape index: {}]
  %s5 = inlined_call_operand.vmem [shape: f32[1,128], index: 5, kind: input, shape index: {}]
  %s6 = inlined_call_operand.vmem [shape: f32[1,128], index: 6, kind: input, shape index: {}]
  %s7 = inlined_call_operand.vmem [shape: bf16[128,128], index: 7, kind: input, shape index: {}]
  %s8 = inlined_call_operand.vmem [shape: f32[2,4,4,128], index: 8, kind: output, shape index: {0}]
  %s9 = inlined_call_operand.vmem [shape: f32[2,4,4,128], index: 9, kind: output, shape index: {1}]
  %10 = xla_tuple %s8, %s9
  %s11 = sld [smem:[#allocation0]]
  $region73: #{bga_forward.4} parent=0
    _
  %s13 = ssub.s32 1, %s11
  %s14 = scalar_select 0, %s13, %s11
  loop: start=0, step=1, limit=4
  $region2: #{bga_forward.4} parent=0 // loop_pre_header
    _
  $region3: #{bga_forward.4} parent=0 // loop_header
    %s16 = sphi 0, %s20
    %p17 = scmp.ge.s32.totalorder %s16, 4
    %s26 = sphi 0, %s28
    %s29 = sphi 0, %s26
    %s30 = sphi 0, %s29
    %s46 = sphi 0, %s30
    %s50 = sphi 0, %s50
    %s52 = sphi 0, %s50
    %s53 = sphi 0, %s52
    %s67 = sphi 0, %s53
    %s71 = sphi 0, %s71
    %s73 = sphi 0, %s71
    %s74 = sphi 0, %s73
    %s88 = sphi 0, %s74
    %s92 = sphi 0, %s92
    %s94 = sphi 0, %s92
    %s95 = sphi 0, %s94
    %s109 = sphi 0, %s95
    %s113 = sphi 0, %s113
    %s115 = sphi 0, %s113
    %s116 = sphi 0, %s115
    %s130 = sphi 0, %s116
    %s134 = sphi 0, %s134
    %s136 = sphi 0, %s134
    %s137 = sphi 0, %s136
    %s151 = sphi 0, %s137
    %s155 = sphi 0, %s155
    %s157 = sphi 0, %s155
    %s158 = sphi 0, %s157
    %s172 = sphi 0, %s158
    %s176 = sphi 0, %s176
    %s178 = sphi 0, %s176
    %s179 = sphi 0, %s178
    %s193 = sphi 0, %s179
    %s199 = sphi 0, %s201
    %s202 = sphi 0, %s199
    %s203 = sphi 0, %s202
    %s219 = sphi 0, %s203
    %s225 = sphi 0, %s227
    %s228 = sphi 0, %s225
    %s229 = sphi 0, %s228
    %s245 = sphi 0, %s229
  $region4: #{bga_forward.4} parent=0 // loop_header_branch
    %19 = sbr.rel (%p17) target = $region8
  $region5: #{bga_forward.4} parent=0 // loop_body
    %s21 = ssub.s32 %s16, 1
    %s22 = ssub.s32 %s16, 2
    %s23 = sadd.s32 %s16, 1
    %s24 = ssub.s32 %s16, %s23
    %p25 = scmp.eq.s32.totalorder %s24, 0
    %s27 = sadd.s32 %s26, 1
    %s28 = scalar_select %p25, %s26, %s27
    %p31 = pneg %p25
    %p32 = scmp.eq.s32.totalorder %s16, 1
    %p33 = por %p31, %p32
    %p34 = scmp.ne.s32.totalorder %s26, %s29
    %p35 = scmp.eq.s32.totalorder %s16, 0
    %p36 = por %p34, %p35
    %p37 = scmp.ne.s32.totalorder %s26, %s29
    %p38 = scmp.eq.s32.totalorder %s21, 1
    %p39 = por %p37, %p38
    %p40 = scmp.ne.s32.totalorder %s29, %s30
    %p41 = scmp.eq.s32.totalorder %s21, 0
    %p42 = por %p40, %p41
    %p43 = scmp.ne.s32.totalorder %s29, %s30
    %p44 = scmp.eq.s32.totalorder %s22, 1
    %p45 = por %p43, %p44
    %p47 = scmp.ne.s32.totalorder %s30, %s46
    %p48 = scmp.eq.s32.totalorder %s22, 0
    %p49 = por %p47, %p48
    %s51 = sadd.s32 %s50, 1
    %p54 = scmp.eq.s32.totalorder %s16, 1
    %p55 = scmp.ne.s32.totalorder %s50, %s52
    %p56 = scmp.eq.s32.totalorder %s16, 0
    %p57 = por %p55, %p56
    %p58 = scmp.ne.s32.totalorder %s50, %s52
    %p59 = scmp.eq.s32.totalorder %s21, 1
    %p60 = por %p58, %p59
    %p61 = scmp.ne.s32.totalorder %s52, %s53
    %p62 = scmp.eq.s32.totalorder %s21, 0
    %p63 = por %p61, %p62
    %p64 = scmp.ne.s32.totalorder %s52, %s53
    %p65 = scmp.eq.s32.totalorder %s22, 1
    %p66 = por %p64, %p65
    %p68 = scmp.ne.s32.totalorder %s53, %s67
    %p69 = scmp.eq.s32.totalorder %s22, 0
    %p70 = por %p68, %p69
    %s72 = sadd.s32 %s71, 1
    %p75 = scmp.eq.s32.totalorder %s16, 1
    %p76 = scmp.ne.s32.totalorder %s71, %s73
    %p77 = scmp.eq.s32.totalorder %s16, 0
    %p78 = por %p76, %p77
    %p79 = scmp.ne.s32.totalorder %s71, %s73
    %p80 = scmp.eq.s32.totalorder %s21, 1
    %p81 = por %p79, %p80
    %p82 = scmp.ne.s32.totalorder %s73, %s74
    %p83 = scmp.eq.s32.totalorder %s21, 0
    %p84 = por %p82, %p83
    %p85 = scmp.ne.s32.totalorder %s73, %s74
    %p86 = scmp.eq.s32.totalorder %s22, 1
    %p87 = por %p85, %p86
    %p89 = scmp.ne.s32.totalorder %s74, %s88
    %p90 = scmp.eq.s32.totalorder %s22, 0
    %p91 = por %p89, %p90
    %s93 = sadd.s32 %s92, 1
    %p96 = scmp.eq.s32.totalorder %s16, 1
    %p97 = scmp.ne.s32.totalorder %s92, %s94
    %p98 = scmp.eq.s32.totalorder %s16, 0
    %p99 = por %p97, %p98
    %p100 = scmp.ne.s32.totalorder %s92, %s94
    %p101 = scmp.eq.s32.totalorder %s21, 1
    %p102 = por %p100, %p101
    %p103 = scmp.ne.s32.totalorder %s94, %s95
    %p104 = scmp.eq.s32.totalorder %s21, 0
    %p105 = por %p103, %p104
    %p106 = scmp.ne.s32.totalorder %s94, %s95
    %p107 = scmp.eq.s32.totalorder %s22, 1
    %p108 = por %p106, %p107
    %p110 = scmp.ne.s32.totalorder %s95, %s109
    %p111 = scmp.eq.s32.totalorder %s22, 0
    %p112 = por %p110, %p111
    %s114 = sadd.s32 %s113, 1
    %p117 = scmp.eq.s32.totalorder %s16, 1
    %p118 = scmp.ne.s32.totalorder %s113, %s115
    %p119 = scmp.eq.s32.totalorder %s16, 0
    %p120 = por %p118, %p119
    %p121 = scmp.ne.s32.totalorder %s113, %s115
    %p122 = scmp.eq.s32.totalorder %s21, 1
    %p123 = por %p121, %p122
    %p124 = scmp.ne.s32.totalorder %s115, %s116
    %p125 = scmp.eq.s32.totalorder %s21, 0
    %p126 = por %p124, %p125
    %p127 = scmp.ne.s32.totalorder %s115, %s116
    %p128 = scmp.eq.s32.totalorder %s22, 1
    %p129 = por %p127, %p128
    %p131 = scmp.ne.s32.totalorder %s116, %s130
    %p132 = scmp.eq.s32.totalorder %s22, 0
    %p133 = por %p131, %p132
    %s135 = sadd.s32 %s134, 1
    %p138 = scmp.eq.s32.totalorder %s16, 1
    %p139 = scmp.ne.s32.totalorder %s134, %s136
    %p140 = scmp.eq.s32.totalorder %s16, 0
    %p141 = por %p139, %p140
    %p142 = scmp.ne.s32.totalorder %s134, %s136
    %p143 = scmp.eq.s32.totalorder %s21, 1
    %p144 = por %p142, %p143
    %p145 = scmp.ne.s32.totalorder %s136, %s137
    %p146 = scmp.eq.s32.totalorder %s21, 0
    %p147 = por %p145, %p146
    %p148 = scmp.ne.s32.totalorder %s136, %s137
    %p149 = scmp.eq.s32.totalorder %s22, 1
    %p150 = por %p148, %p149
    %p152 = scmp.ne.s32.totalorder %s137, %s151
    %p153 = scmp.eq.s32.totalorder %s22, 0
    %p154 = por %p152, %p153
    %s156 = sadd.s32 %s155, 1
    %p159 = scmp.eq.s32.totalorder %s16, 1
    %p160 = scmp.ne.s32.totalorder %s155, %s157
    %p161 = scmp.eq.s32.totalorder %s16, 0
    %p162 = por %p160, %p161
    %p163 = scmp.ne.s32.totalorder %s155, %s157
    %p164 = scmp.eq.s32.totalorder %s21, 1
    %p165 = por %p163, %p164
    %p166 = scmp.ne.s32.totalorder %s157, %s158
    %p167 = scmp.eq.s32.totalorder %s21, 0
    %p168 = por %p166, %p167
    %p169 = scmp.ne.s32.totalorder %s157, %s158
    %p170 = scmp.eq.s32.totalorder %s22, 1
    %p171 = por %p169, %p170
    %p173 = scmp.ne.s32.totalorder %s158, %s172
    %p174 = scmp.eq.s32.totalorder %s22, 0
    %p175 = por %p173, %p174
    %s177 = sadd.s32 %s176, 1
    %p180 = scmp.eq.s32.totalorder %s16, 1
    %p181 = scmp.ne.s32.totalorder %s176, %s178
    %p182 = scmp.eq.s32.totalorder %s16, 0
    %p183 = por %p181, %p182
    %p184 = scmp.ne.s32.totalorder %s176, %s178
    %p185 = scmp.eq.s32.totalorder %s21, 1
    %p186 = por %p184, %p185
    %p187 = scmp.ne.s32.totalorder %s178, %s179
    %p188 = scmp.eq.s32.totalorder %s21, 0
    %p189 = por %p187, %p188
    %p190 = scmp.ne.s32.totalorder %s178, %s179
    %p191 = scmp.eq.s32.totalorder %s22, 1
    %p192 = por %p190, %p191
    %p194 = scmp.ne.s32.totalorder %s179, %s193
    %p195 = scmp.eq.s32.totalorder %s22, 0
    %p196 = por %p194, %p195
    %s197 = ssub.s32 %s16, %s23
    %p198 = scmp.eq.s32.totalorder %s197, 0
    %s200 = sadd.s32 %s199, 1
    %s201 = scalar_select %p198, %s199, %s200
    %p204 = pneg %p198
    %p205 = scmp.eq.s32.totalorder %s16, 1
    %p206 = por %p204, %p205
    %p207 = scmp.ne.s32.totalorder %s199, %s202
    %p208 = scmp.eq.s32.totalorder %s16, 0
    %p209 = por %p207, %p208
    %p210 = scmp.ne.s32.totalorder %s199, %s202
    %p211 = scmp.eq.s32.totalorder %s21, 1
    %p212 = por %p210, %p211
    %p213 = scmp.ne.s32.totalorder %s202, %s203
    %p214 = scmp.eq.s32.totalorder %s21, 0
    %p215 = por %p213, %p214
    %p216 = scmp.ne.s32.totalorder %s202, %s203
    %p217 = scmp.eq.s32.totalorder %s22, 1
    %p218 = por %p216, %p217
    %p220 = scmp.ne.s32.totalorder %s203, %s219
    %p221 = scmp.eq.s32.totalorder %s22, 0
    %p222 = por %p220, %p221
    %s223 = ssub.s32 %s16, %s23
    %p224 = scmp.eq.s32.totalorder %s223, 0
    %s226 = sadd.s32 %s225, 1
    %s227 = scalar_select %p224, %s225, %s226
    %p230 = pneg %p224
    %p231 = scmp.eq.s32.totalorder %s16, 1
    %p232 = por %p230, %p231
    %p233 = scmp.ne.s32.totalorder %s225, %s228
    %p234 = scmp.eq.s32.totalorder %s16, 0
    %p235 = por %p233, %p234
    %p236 = scmp.ne.s32.totalorder %s225, %s228
    %p237 = scmp.eq.s32.totalorder %s21, 1
    %p238 = por %p236, %p237
    %p239 = scmp.ne.s32.totalorder %s228, %s229
    %p240 = scmp.eq.s32.totalorder %s21, 0
    %p241 = por %p239, %p240
    %p242 = scmp.ne.s32.totalorder %s228, %s229
    %p243 = scmp.eq.s32.totalorder %s22, 1
    %p244 = por %p242, %p243
    %p246 = scmp.ne.s32.totalorder %s229, %s245
    %p247 = scmp.eq.s32.totalorder %s22, 0
    %p248 = por %p246, %p247
    %p249 = scmp.le.s32.totalorder 1, %s16
    %p250 = scmp.lt.s32.totalorder %s16, 3
    %p251 = pnand %p249, %p250
    %p252 = pneg %p251
    // Predicated region
    $region9: #{bga_forward.4} parent=5 // pred_check
      _
    $region10: #{bga_forward.4} parent=5 // pred_check_branch
      %254 = sbr.rel (%p251) target = $region12
    $region11: #{bga_forward.4} parent=5 // pred_region
      %s255 = ssub.s32 %s16, 1
      // Predicated region
      $region13: #{bga_forward.4} parent=11 // pred_check
        %p256 = pneg %p63
      $region14: #{bga_forward.4} parent=11 // pred_check_branch
        %258 = sbr.rel (%p256) target = $region16
      $region15: #{bga_forward.4} parent=11 // pred_region
        _
      $region16: #{bga_forward.4} parent=11 // pred_fallthru
        _
      // Predicated region
      $region17: #{bga_forward.4} parent=11 // pred_check
        %p259 = pneg %p84
      $region18: #{bga_forward.4} parent=11 // pred_check_branch
        %261 = sbr.rel (%p259) target = $region20
      $region19: #{bga_forward.4} parent=11 // pred_region
        _
      $region20: #{bga_forward.4} parent=11 // pred_fallthru
        _
      // Predicated region
      $region21: #{bga_forward.4} parent=11 // pred_check
        %p262 = pneg %p105
      $region22: #{bga_forward.4} parent=11 // pred_check_branch
        %264 = sbr.rel (%p262) target = $region24
      $region23: #{bga_forward.4} parent=11 // pred_region
        _
      $region24: #{bga_forward.4} parent=11 // pred_fallthru
        _
      // Predicated region
      $region25: #{bga_forward.4} parent=11 // pred_check
        %p265 = pneg %p126
      $region26: #{bga_forward.4} parent=11 // pred_check_branch
        %267 = sbr.rel (%p265) target = $region28
      $region27: #{bga_forward.4} parent=11 // pred_region
        _
      $region28: #{bga_forward.4} parent=11 // pred_fallthru
        _
      // Predicated region
      $region29: #{bga_forward.4} parent=11 // pred_check
        %p268 = pneg %p147
      $region30: #{bga_forward.4} parent=11 // pred_check_branch
        %270 = sbr.rel (%p268) target = $region32
      $region31: #{bga_forward.4} parent=11 // pred_region
        _
      $region32: #{bga_forward.4} parent=11 // pred_fallthru
        _
      // Predicated region
      $region33: #{bga_forward.4} parent=11 // pred_check
        %p271 = pneg %p168
      $region34: #{bga_forward.4} parent=11 // pred_check_branch
        %273 = sbr.rel (%p271) target = $region36
      $region35: #{bga_forward.4} parent=11 // pred_region
        _
      $region36: #{bga_forward.4} parent=11 // pred_fallthru
        _
      // Predicated region
      $region37: #{bga_forward.4} parent=11 // pred_check
        %p274 = pneg %p189
      $region38: #{bga_forward.4} parent=11 // pred_check_branch
        %276 = sbr.rel (%p274) target = $region40
      $region39: #{bga_forward.4} parent=11 // pred_region
        _
      $region40: #{bga_forward.4} parent=11 // pred_fallthru
        _
    $region12: #{bga_forward.4} parent=5 // pred_fallthru
      _
    %p277 = scmp.lt.s32.totalorder %s16, 2
    // Predicated region
    $region41: #{bga_forward.4} parent=5 // pred_check
      %p278 = pneg %p277
    $region42: #{bga_forward.4} parent=5 // pred_check_branch
      %280 = sbr.rel (%p278) target = $region44
    $region43: #{bga_forward.4} parent=5 // pred_region
      // Predicated region
      $region45: #{bga_forward.4} parent=43 // pred_check
        %p281 = pneg %p36
      $region46: #{bga_forward.4} parent=43 // pred_check_branch
        %283 = sbr.rel (%p281) target = $region48
      $region47: #{bga_forward.4} parent=43 // pred_region
        %p284 = scmp.lt.s32.totalorder %s16, 1
        %s285 = scalar_select %p284, %s16, 1
        %s286 = smul.addr %s285, 4
        %s287 = smul.addr %s286, 4
        %s288 = scalar_lea.vmem %s0, %s287
      $region48: #{bga_forward.4} parent=43 // pred_fallthru
        _
    $region44: #{bga_forward.4} parent=5 // pred_fallthru
      _
    %p289 = scmp.le.s32.totalorder 1, %s16
    %p290 = scmp.lt.s32.totalorder %s16, 3
    %p291 = pnand %p289, %p290
    %p292 = pneg %p291
    // Predicated region
    $region49: #{bga_forward.4} parent=5 // pred_check
      _
    $region50: #{bga_forward.4} parent=5 // pred_check_branch
      %294 = sbr.rel (%p291) target = $region52
    $region51: #{bga_forward.4} parent=5 // pred_region
      %s295 = ssub.s32 %s16, 1
      %p296 = scmp.lt.s32.totalorder %s21, 1
      %s297 = scalar_select %p296, %s21, 1
      %s298 = smul.addr %s297, 4
      %s299 = smul.addr %s298, 4
      %s300 = scalar_lea.vmem %s0, %s299
      %p301 = pneg %p42
      %p302 = pneg %p39
      %p303 = pneg %p63
      %p304 = pneg %p60
      %p305 = pneg %p84
      %p306 = pneg %p81
      %p307 = pneg %p105
      %p308 = pneg %p102
      %p309 = pneg %p126
      %p310 = pneg %p123
      %p311 = pneg %p147
      %p312 = pneg %p144
      %p313 = pneg %p168
      %p314 = pneg %p165
      %p315 = pneg %p189
      %p316 = pneg %p186
      %p317 = pneg %p215
      %p318 = pneg %p212
      %p319 = scmp.lt.s32.totalorder %s21, 1
      %s320 = scalar_select %p319, %s21, 1
      %s321 = smul.addr %s320, 4
      %s322 = smul.addr %s321, 4
      %s323 = scalar_lea.vmem %s8, %s322
      %p324 = pneg %p241
      %p325 = pneg %p238
      %p326 = scmp.lt.s32.totalorder %s21, 1
      %s327 = scalar_select %p326, %s21, 1
      %s328 = smul.addr %s327, 4
      %s329 = smul.addr %s328, 4
      %s330 = scalar_lea.vmem %s9, %s329
      %p331 = scmp.lt.s32.totalorder %s21, 1
      %s332 = scalar_select %p331, %s21, 1
      %s333 = smul.addr %s332, 4
      %s334 = smul.addr %s333, 4
      %s335 = scalar_lea.vmem %s0, %s334
      %p336 = scmp.lt.s32.totalorder %s21, 1
      %s337 = scalar_select %p336, %s21, 1
      %s338 = smul.addr %s337, 4
      %s339 = smul.addr %s338, 4
      %s340 = scalar_lea.vmem %s8, %s339
      %p341 = scmp.lt.s32.totalorder %s21, 1
      %s342 = scalar_select %p341, %s21, 1
      %s343 = smul.addr %s342, 4
      %s344 = smul.addr %s343, 4
      %s345 = scalar_lea.vmem %s9, %s344
      %v347 = vld [vmem:[%s335] sm:$0xf]
      %v348 = vld [vmem:[%s335 + $0x4] sm:$0xf]
      %v349 = vld [vmem:[%s335 + $0x8] sm:$0xf]
      %v350 = vld [vmem:[%s335 + $0xc] sm:$0xf]
      %v355 = vrot.slane %v347, 7
      %v356 = vrot.slane %v348, 7
      %v357 = vrot.slane %v349, 7
      %v358 = vrot.slane %v350, 7
      %vm363 = vcmask 1040384
      %v364 = vsel %vm363, 0.0, %v355
      %v365 = vsel %vm363, 0.0, %v356
      %v366 = vsel %vm363, 0.0, %v357
      %v367 = vsel %vm363, 0.0, %v358
      %vm368 = vcmask 1044480
      %v369 = vsel %vm368, %v364, 0.0
      %v370 = vsel %vm368, %v365, 0.0
      %v371 = vsel %vm368, %v366, 0.0
      %v372 = vsel %vm368, %v367, 0.0
      %v377 = vcombine.high 0.0, 0.0
      %v378 = vcombine.high %v369, %v369
      %v379 = vcombine.high %v370, %v370
      %v380 = vcombine.high %v371, %v371
      %vm381 = vcmask 1042432
      %vm382 = vcmask 1046532
      %vm383 = vmor %vm381, %vm382
      %v384 = vrot.slane 0.0, 5
      %v385 = vrot.slane %v384, 4
      %v386 = vrot.slane %v377, 5
      %v387 = vsel %vm383, %v385, %v386
      %v388 = vrot.slane %v369, 5
      %v389 = vrot.slane %v388, 4
      %v390 = vrot.slane %v378, 5
      %v391 = vsel %vm383, %v389, %v390
      %v392 = vrot.slane %v370, 5
      %v393 = vrot.slane %v392, 4
      %v394 = vrot.slane %v379, 5
      %v395 = vsel %vm383, %v393, %v394
      %v396 = vrot.slane %v371, 5
      %v397 = vrot.slane %v396, 4
      %v398 = vrot.slane %v380, 5
      %v399 = vsel %vm383, %v397, %v398
      %vm400 = vcmask 1041408
      %vm401 = vcmask 1045508
      %vm402 = vmor %vm400, %vm401
      %v403 = vrot.slane 0.0, 6
      %v404 = vrot.slane %v403, 4
      %v405 = vrot.slane %v377, 6
      %v406 = vsel %vm402, %v404, %v405
      %v407 = vrot.slane %v369, 6
      %v408 = vrot.slane %v407, 4
      %v409 = vrot.slane %v378, 6
      %v410 = vsel %vm402, %v408, %v409
      %v411 = vrot.slane %v370, 6
      %v412 = vrot.slane %v411, 4
      %v413 = vrot.slane %v379, 6
      %v414 = vsel %vm402, %v412, %v413
      %v415 = vrot.slane %v371, 6
      %v416 = vrot.slane %v415, 4
      %v417 = vrot.slane %v380, 6
      %v418 = vsel %vm402, %v416, %v417
      %v420 = vcombine.high %v372, %v372
      %v421 = vrot.slane %v372, 5
      %v422 = vrot.slane %v421, 4
      %v423 = vrot.slane %v420, 5
      %v424 = vsel %vm383, %v422, %v423
      %v425 = vrot.slane %v372, 6
      %v426 = vrot.slane %v425, 4
      %v427 = vrot.slane %v420, 6
      %v428 = vsel %vm402, %v426, %v427
      %v429 = vcombine.low 0.0, %v369
      %v430 = vcombine.low %v370, %v371
      %v433 = vcombine.low %v387, %v391
      %v434 = vcombine.low %v395, %v399
      %v437 = vcombine.low %v406, %v410
      %v438 = vcombine.low %v414, %v418
      %v441 = vcombine.low %v369, %v370
      %v442 = vcombine.low %v371, %v372
      %v445 = vcombine.low %v391, %v395
      %v446 = vcombine.low %v399, %v424
      %v449 = vcombine.low %v410, %v414
      %v450 = vcombine.low %v418, %v428
      %v453 = vcombine.low %v372, 0.0
      %v455 = vcombine.low %v424, %v387
      %v457 = vcombine.low %v428, %v406
      %v459 = vpack.c.bf16 %v430, %v429
      %v460 = vpack.c.bf16 %v434, %v433
      %v461 = vpack.c.bf16 %v438, %v437
      %v462 = vpack.c.bf16 %v442, %v441
      %v463 = vpack.c.bf16 %v446, %v445
      %v464 = vpack.c.bf16 %v450, %v449
      %v465 = vpack.c.bf16 %v453, %v430
      %v466 = vpack.c.bf16 %v455, %v434
      %v467 = vpack.c.bf16 %v457, %v438
      %v468 = vld [vmem:[%s1] sm:$0xf]
      %v469 = vld [vmem:[%s1 + $0x4] sm:$0xf]
      %v470 = vld [vmem:[%s1 + $0x8] sm:$0xf]
      %v471 = vld [vmem:[%s1 + $0xc] sm:$0xf]
      %v472 = vld [vmem:[%s1 + $0x10] sm:$0xf]
      %v473 = vld [vmem:[%s1 + $0x14] sm:$0xf]
      %v474 = vld [vmem:[%s1 + $0x18] sm:$0xf]
      %v475 = vld [vmem:[%s1 + $0x1c] sm:$0xf]
      %v476 = vld [vmem:[%s1 + $0x20] sm:$0xf]
      %v477 = vld [vmem:[%s1 + $0x24] sm:$0xf]
      %v478 = vld [vmem:[%s1 + $0x28] sm:$0xf]
      %v479 = vld [vmem:[%s1 + $0x2c] sm:$0xf]
      %v480 = vld [vmem:[%s1 + $0x30] sm:$0xf]
      %v481 = vld [vmem:[%s1 + $0x34] sm:$0xf]
      %v482 = vld [vmem:[%s1 + $0x38] sm:$0xf]
      %v483 = vld [vmem:[%s1 + $0x3c] sm:$0xf]
      %v484 = vld [vmem:[%s1 + $0x40] sm:$0xf]
      %v485 = vld [vmem:[%s1 + $0x44] sm:$0xf]
      %v486 = vld [vmem:[%s1 + $0x48] sm:$0xf]
      %v487 = vld [vmem:[%s1 + $0x4c] sm:$0xf]
      %v488 = vld [vmem:[%s1 + $0x50] sm:$0xf]
      %v489 = vld [vmem:[%s1 + $0x54] sm:$0xf]
      %v490 = vld [vmem:[%s1 + $0x58] sm:$0xf]
      %v491 = vld [vmem:[%s1 + $0x5c] sm:$0xf]
      %v492 = vld [vmem:[%s1 + $0x60] sm:$0xf]
      %v493 = vld [vmem:[%s1 + $0x64] sm:$0xf]
      %v494 = vld [vmem:[%s1 + $0x68] sm:$0xf]
      %v495 = vld [vmem:[%s1 + $0x6c] sm:$0xf]
      %v496 = vld [vmem:[%s1 + $0x70] sm:$0xf]
      %v497 = vld [vmem:[%s1 + $0x74] sm:$0xf]
      %v498 = vld [vmem:[%s1 + $0x78] sm:$0xf]
      %v499 = vld [vmem:[%s1 + $0x7c] sm:$0xf]
      %v500 = vld [vmem:[%s1 + $0x80] sm:$0xf]
      %v501 = vld [vmem:[%s1 + $0x84] sm:$0xf]
      %v502 = vld [vmem:[%s1 + $0x88] sm:$0xf]
      %v503 = vld [vmem:[%s1 + $0x8c] sm:$0xf]
      %v504 = vld [vmem:[%s1 + $0x90] sm:$0xf]
      %v505 = vld [vmem:[%s1 + $0x94] sm:$0xf]
      %v506 = vld [vmem:[%s1 + $0x98] sm:$0xf]
      %v507 = vld [vmem:[%s1 + $0x9c] sm:$0xf]
      %v508 = vld [vmem:[%s1 + $0xa0] sm:$0xf]
      %v509 = vld [vmem:[%s1 + $0xa4] sm:$0xf]
      %v510 = vld [vmem:[%s1 + $0xa8] sm:$0xf]
      %v511 = vld [vmem:[%s1 + $0xac] sm:$0xf]
      %v512 = vld [vmem:[%s1 + $0xb0] sm:$0xf]
      %v513 = vld [vmem:[%s1 + $0xb4] sm:$0xf]
      %v514 = vld [vmem:[%s1 + $0xb8] sm:$0xf]
      %v515 = vld [vmem:[%s1 + $0xbc] sm:$0xf]
      %v516 = vld [vmem:[%s1 + $0xc0] sm:$0xf]
      %v517 = vld [vmem:[%s1 + $0xc4] sm:$0xf]
      %v518 = vld [vmem:[%s1 + $0xc8] sm:$0xf]
      %v519 = vld [vmem:[%s1 + $0xcc] sm:$0xf]
      %v520 = vld [vmem:[%s1 + $0xd0] sm:$0xf]
      %v521 = vld [vmem:[%s1 + $0xd4] sm:$0xf]
      %v522 = vld [vmem:[%s1 + $0xd8] sm:$0xf]
      %v523 = vld [vmem:[%s1 + $0xdc] sm:$0xf]
      %v524 = vld [vmem:[%s1 + $0xe0] sm:$0xf]
      %v525 = vld [vmem:[%s1 + $0xe4] sm:$0xf]
      %v526 = vld [vmem:[%s1 + $0xe8] sm:$0xf]
      %v527 = vld [vmem:[%s1 + $0xec] sm:$0xf]
      %v528 = vld [vmem:[%s1 + $0xf0] sm:$0xf]
      %v529 = vld [vmem:[%s1 + $0xf4] sm:$0xf]
      %v530 = vld [vmem:[%s1 + $0xf8] sm:$0xf]
      %v531 = vld [vmem:[%s1 + $0xfc] sm:$0xf]
      %v532 = vld [vmem:[%s1 + $0x100] sm:$0xf]
      %v533 = vld [vmem:[%s1 + $0x104] sm:$0xf]
      %v534 = vld [vmem:[%s1 + $0x108] sm:$0xf]
      %v535 = vld [vmem:[%s1 + $0x10c] sm:$0xf]
      %v536 = vld [vmem:[%s1 + $0x110] sm:$0xf]
      %v537 = vld [vmem:[%s1 + $0x114] sm:$0xf]
      %v538 = vld [vmem:[%s1 + $0x118] sm:$0xf]
      %v539 = vld [vmem:[%s1 + $0x11c] sm:$0xf]
      %v540 = vld [vmem:[%s1 + $0x120] sm:$0xf]
      %v541 = vld [vmem:[%s1 + $0x124] sm:$0xf]
      %v542 = vld [vmem:[%s1 + $0x128] sm:$0xf]
      %v543 = vld [vmem:[%s1 + $0x12c] sm:$0xf]
      %v544 = vld [vmem:[%s1 + $0x130] sm:$0xf]
      %v545 = vld [vmem:[%s1 + $0x134] sm:$0xf]
      %v546 = vld [vmem:[%s1 + $0x138] sm:$0xf]
      %v547 = vld [vmem:[%s1 + $0x13c] sm:$0xf]
      %v548 = vld [vmem:[%s1 + $0x140] sm:$0xf]
      %v549 = vld [vmem:[%s1 + $0x144] sm:$0xf]
      %v550 = vld [vmem:[%s1 + $0x148] sm:$0xf]
      %v551 = vld [vmem:[%s1 + $0x14c] sm:$0xf]
      %v552 = vld [vmem:[%s1 + $0x150] sm:$0xf]
      %v553 = vld [vmem:[%s1 + $0x154] sm:$0xf]
      %v554 = vld [vmem:[%s1 + $0x158] sm:$0xf]
      %v555 = vld [vmem:[%s1 + $0x15c] sm:$0xf]
      %v556 = vld [vmem:[%s1 + $0x160] sm:$0xf]
      %v557 = vld [vmem:[%s1 + $0x164] sm:$0xf]
      %v558 = vld [vmem:[%s1 + $0x168] sm:$0xf]
      %v559 = vld [vmem:[%s1 + $0x16c] sm:$0xf]
      %v560 = vld [vmem:[%s1 + $0x170] sm:$0xf]
      %v561 = vld [vmem:[%s1 + $0x174] sm:$0xf]
      %v562 = vld [vmem:[%s1 + $0x178] sm:$0xf]
      %v563 = vld [vmem:[%s1 + $0x17c] sm:$0xf]
      %v564 = vld [vmem:[%s1 + $0x180] sm:$0xf]
      %v565 = vld [vmem:[%s1 + $0x184] sm:$0xf]
      %v566 = vld [vmem:[%s1 + $0x188] sm:$0xf]
      %v567 = vld [vmem:[%s1 + $0x18c] sm:$0xf]
      %v568 = vld [vmem:[%s1 + $0x190] sm:$0xf]
      %v569 = vld [vmem:[%s1 + $0x194] sm:$0xf]
      %v570 = vld [vmem:[%s1 + $0x198] sm:$0xf]
      %v571 = vld [vmem:[%s1 + $0x19c] sm:$0xf]
      %v572 = vld [vmem:[%s1 + $0x1a0] sm:$0xf]
      %v573 = vld [vmem:[%s1 + $0x1a4] sm:$0xf]
      %v574 = vld [vmem:[%s1 + $0x1a8] sm:$0xf]
      %v575 = vld [vmem:[%s1 + $0x1ac] sm:$0xf]
      %v576 = vld [vmem:[%s1 + $0x1b0] sm:$0xf]
      %v577 = vld [vmem:[%s1 + $0x1b4] sm:$0xf]
      %v578 = vld [vmem:[%s1 + $0x1b8] sm:$0xf]
      %v579 = vld [vmem:[%s1 + $0x1bc] sm:$0xf]
      %v580 = vld [vmem:[%s1 + $0x1c0] sm:$0xf]
      %v581 = vld [vmem:[%s1 + $0x1c4] sm:$0xf]
      %v582 = vld [vmem:[%s1 + $0x1c8] sm:$0xf]
      %v583 = vld [vmem:[%s1 + $0x1cc] sm:$0xf]
      %v584 = vld [vmem:[%s1 + $0x1d0] sm:$0xf]
      %v585 = vld [vmem:[%s1 + $0x1d4] sm:$0xf]
      %v586 = vld [vmem:[%s1 + $0x1d8] sm:$0xf]
      %v587 = vld [vmem:[%s1 + $0x1dc] sm:$0xf]
      %v588 = vld [vmem:[%s1 + $0x1e0] sm:$0xf]
      %v589 = vld [vmem:[%s1 + $0x1e4] sm:$0xf]
      %v590 = vld [vmem:[%s1 + $0x1e8] sm:$0xf]
      %v591 = vld [vmem:[%s1 + $0x1ec] sm:$0xf]
      %v592 = vld [vmem:[%s1 + $0x1f0] sm:$0xf]
      %v593 = vld [vmem:[%s1 + $0x1f4] sm:$0xf]
      %v594 = vld [vmem:[%s1 + $0x1f8] sm:$0xf]
      %v595 = vld [vmem:[%s1 + $0x1fc] sm:$0xf]
      %v596 = vld [vmem:[%s1 + $0x200] sm:$0xf]
      %v597 = vld [vmem:[%s1 + $0x204] sm:$0xf]
      %v598 = vld [vmem:[%s1 + $0x208] sm:$0xf]
      %v599 = vld [vmem:[%s1 + $0x20c] sm:$0xf]
      %v600 = vld [vmem:[%s1 + $0x210] sm:$0xf]
      %v601 = vld [vmem:[%s1 + $0x214] sm:$0xf]
      %v602 = vld [vmem:[%s1 + $0x218] sm:$0xf]
      %v603 = vld [vmem:[%s1 + $0x21c] sm:$0xf]
      %v604 = vld [vmem:[%s1 + $0x220] sm:$0xf]
      %v605 = vld [vmem:[%s1 + $0x224] sm:$0xf]
      %v606 = vld [vmem:[%s1 + $0x228] sm:$0xf]
      %v607 = vld [vmem:[%s1 + $0x22c] sm:$0xf]
      %v608 = vld [vmem:[%s1 + $0x230] sm:$0xf]
      %v609 = vld [vmem:[%s1 + $0x234] sm:$0xf]
      %v610 = vld [vmem:[%s1 + $0x238] sm:$0xf]
      %v611 = vld [vmem:[%s1 + $0x23c] sm:$0xf]
      %v756 = vunpack.c.l.b16 %v468
      %v757 = vunpack.c.l.b16 %v469
      %v758 = vunpack.c.l.b16 %v470
      %v759 = vunpack.c.l.b16 %v471
      %v760 = vunpack.c.l.b16 %v472
      %v761 = vunpack.c.l.b16 %v473
      %v762 = vunpack.c.l.b16 %v474
      %v763 = vunpack.c.l.b16 %v475
      %v764 = vunpack.c.l.b16 %v476
      %v765 = vunpack.c.l.b16 %v477
      %v766 = vunpack.c.l.b16 %v478
      %v767 = vunpack.c.l.b16 %v479
      %v768 = vunpack.c.l.b16 %v480
      %v769 = vunpack.c.l.b16 %v481
      %v770 = vunpack.c.l.b16 %v482
      %v771 = vunpack.c.l.b16 %v483
      %v772 = vunpack.c.l.b16 %v484
      %v773 = vunpack.c.l.b16 %v485
      %v774 = vunpack.c.l.b16 %v486
      %v775 = vunpack.c.l.b16 %v487
      %v776 = vunpack.c.l.b16 %v488
      %v777 = vunpack.c.l.b16 %v489
      %v778 = vunpack.c.l.b16 %v490
      %v779 = vunpack.c.l.b16 %v491
      %v780 = vunpack.c.l.b16 %v492
      %v781 = vunpack.c.l.b16 %v493
      %v782 = vunpack.c.l.b16 %v494
      %v783 = vunpack.c.l.b16 %v495
      %v784 = vunpack.c.l.b16 %v496
      %v785 = vunpack.c.l.b16 %v497
      %v786 = vunpack.c.l.b16 %v498
      %v787 = vunpack.c.l.b16 %v499
      %v788 = vunpack.c.l.b16 %v500
      %v789 = vunpack.c.l.b16 %v501
      %v790 = vunpack.c.l.b16 %v502
      %v791 = vunpack.c.l.b16 %v503
      %v792 = vunpack.c.l.b16 %v504
      %v793 = vunpack.c.l.b16 %v505
      %v794 = vunpack.c.l.b16 %v506
      %v795 = vunpack.c.l.b16 %v507
      %v796 = vunpack.c.l.b16 %v508
      %v797 = vunpack.c.l.b16 %v509
      %v798 = vunpack.c.l.b16 %v510
      %v799 = vunpack.c.l.b16 %v511
      %v800 = vunpack.c.l.b16 %v512
      %v801 = vunpack.c.l.b16 %v513
      %v802 = vunpack.c.l.b16 %v514
      %v803 = vunpack.c.l.b16 %v515
      %v804 = vunpack.c.l.b16 %v516
      %v805 = vunpack.c.l.b16 %v517
      %v806 = vunpack.c.l.b16 %v518
      %v807 = vunpack.c.l.b16 %v519
      %v808 = vunpack.c.l.b16 %v520
      %v809 = vunpack.c.l.b16 %v521
      %v810 = vunpack.c.l.b16 %v522
      %v811 = vunpack.c.l.b16 %v523
      %v812 = vunpack.c.l.b16 %v524
      %v813 = vunpack.c.l.b16 %v525
      %v814 = vunpack.c.l.b16 %v526
      %v815 = vunpack.c.l.b16 %v527
      %v816 = vunpack.c.l.b16 %v528
      %v817 = vunpack.c.l.b16 %v529
      %v818 = vunpack.c.l.b16 %v530
      %v819 = vunpack.c.l.b16 %v531
      %v820 = vunpack.c.l.b16 %v532
      %v821 = vunpack.c.l.b16 %v533
      %v822 = vunpack.c.l.b16 %v534
      %v823 = vunpack.c.l.b16 %v535
      %v824 = vunpack.c.l.b16 %v536
      %v825 = vunpack.c.l.b16 %v537
      %v826 = vunpack.c.l.b16 %v538
      %v827 = vunpack.c.l.b16 %v539
      %v828 = vunpack.c.l.b16 %v540
      %v829 = vunpack.c.l.b16 %v541
      %v830 = vunpack.c.l.b16 %v542
      %v831 = vunpack.c.l.b16 %v543
      %v832 = vunpack.c.l.b16 %v544
      %v833 = vunpack.c.l.b16 %v545
      %v834 = vunpack.c.l.b16 %v546
      %v835 = vunpack.c.l.b16 %v547
      %v836 = vunpack.c.l.b16 %v548
      %v837 = vunpack.c.l.b16 %v549
      %v838 = vunpack.c.l.b16 %v550
      %v839 = vunpack.c.l.b16 %v551
      %v840 = vunpack.c.l.b16 %v552
      %v841 = vunpack.c.l.b16 %v553
      %v842 = vunpack.c.l.b16 %v554
      %v843 = vunpack.c.l.b16 %v555
      %v844 = vunpack.c.l.b16 %v556
      %v845 = vunpack.c.l.b16 %v557
      %v846 = vunpack.c.l.b16 %v558
      %v847 = vunpack.c.l.b16 %v559
      %v848 = vunpack.c.l.b16 %v560
      %v849 = vunpack.c.l.b16 %v561
      %v850 = vunpack.c.l.b16 %v562
      %v851 = vunpack.c.l.b16 %v563
      %v852 = vunpack.c.l.b16 %v564
      %v853 = vunpack.c.l.b16 %v565
      %v854 = vunpack.c.l.b16 %v566
      %v855 = vunpack.c.l.b16 %v567
      %v856 = vunpack.c.l.b16 %v568
      %v857 = vunpack.c.l.b16 %v569
      %v858 = vunpack.c.l.b16 %v570
      %v859 = vunpack.c.l.b16 %v571
      %v860 = vunpack.c.l.b16 %v572
      %v861 = vunpack.c.l.b16 %v573
      %v862 = vunpack.c.l.b16 %v574
      %v863 = vunpack.c.l.b16 %v575
      %v864 = vunpack.c.l.b16 %v576
      %v865 = vunpack.c.l.b16 %v577
      %v866 = vunpack.c.l.b16 %v578
      %v867 = vunpack.c.l.b16 %v579
      %v868 = vunpack.c.l.b16 %v580
      %v869 = vunpack.c.l.b16 %v581
      %v870 = vunpack.c.l.b16 %v582
      %v871 = vunpack.c.l.b16 %v583
      %v872 = vunpack.c.l.b16 %v584
      %v873 = vunpack.c.l.b16 %v585
      %v874 = vunpack.c.l.b16 %v586
      %v875 = vunpack.c.l.b16 %v587
      %v876 = vunpack.c.l.b16 %v588
      %v877 = vunpack.c.l.b16 %v589
      %v878 = vunpack.c.l.b16 %v590
      %v879 = vunpack.c.l.b16 %v591
      %v880 = vunpack.c.l.b16 %v592
      %v881 = vunpack.c.l.b16 %v593
      %v882 = vunpack.c.l.b16 %v594
      %v883 = vunpack.c.l.b16 %v595
      %v884 = vunpack.c.l.b16 %v596
      %v885 = vunpack.c.l.b16 %v597
      %v886 = vunpack.c.l.b16 %v598
      %v887 = vunpack.c.l.b16 %v599
      %v888 = vunpack.c.l.b16 %v600
      %v889 = vunpack.c.l.b16 %v601
      %v890 = vunpack.c.l.b16 %v602
      %v891 = vunpack.c.l.b16 %v603
      %v892 = vunpack.c.l.b16 %v604
      %v893 = vunpack.c.l.b16 %v605
      %v894 = vunpack.c.l.b16 %v606
      %v895 = vunpack.c.l.b16 %v607
      %v896 = vunpack.c.l.b16 %v608
      %v897 = vunpack.c.l.b16 %v609
      %v898 = vunpack.c.l.b16 %v610
      %v899 = vunpack.c.l.b16 %v611
      %v900 = vpack.c.b16 %v757, %v756
      %v901 = vpack.c.b16 %v759, %v758
      %v902 = vpack.c.b16 %v761, %v760
      %v903 = vpack.c.b16 %v763, %v762
      %v904 = vpack.c.b16 %v765, %v764
      %v905 = vpack.c.b16 %v767, %v766
      %v906 = vpack.c.b16 %v769, %v768
      %v907 = vpack.c.b16 %v771, %v770
      %v908 = vpack.c.b16 %v773, %v772
      %v909 = vpack.c.b16 %v775, %v774
      %v910 = vpack.c.b16 %v777, %v776
      %v911 = vpack.c.b16 %v779, %v778
      %v912 = vpack.c.b16 %v781, %v780
      %v913 = vpack.c.b16 %v783, %v782
      %v914 = vpack.c.b16 %v785, %v784
      %v915 = vpack.c.b16 %v787, %v786
      %v916 = vpack.c.b16 %v789, %v788
      %v917 = vpack.c.b16 %v791, %v790
      %v918 = vpack.c.b16 %v793, %v792
      %v919 = vpack.c.b16 %v795, %v794
      %v920 = vpack.c.b16 %v797, %v796
      %v921 = vpack.c.b16 %v799, %v798
      %v922 = vpack.c.b16 %v801, %v800
      %v923 = vpack.c.b16 %v803, %v802
      %v924 = vpack.c.b16 %v805, %v804
      %v925 = vpack.c.b16 %v807, %v806
      %v926 = vpack.c.b16 %v809, %v808
      %v927 = vpack.c.b16 %v811, %v810
      %v928 = vpack.c.b16 %v813, %v812
      %v929 = vpack.c.b16 %v815, %v814
      %v930 = vpack.c.b16 %v817, %v816
      %v931 = vpack.c.b16 %v819, %v818
      %v932 = vpack.c.b16 %v821, %v820
      %v933 = vpack.c.b16 %v823, %v822
      %v934 = vpack.c.b16 %v825, %v824
      %v935 = vpack.c.b16 %v827, %v826
      %v936 = vpack.c.b16 %v829, %v828
      %v937 = vpack.c.b16 %v831, %v830
      %v938 = vpack.c.b16 %v833, %v832
      %v939 = vpack.c.b16 %v835, %v834
      %v940 = vpack.c.b16 %v837, %v836
      %v941 = vpack.c.b16 %v839, %v838
      %v942 = vpack.c.b16 %v841, %v840
      %v943 = vpack.c.b16 %v843, %v842
      %v944 = vpack.c.b16 %v845, %v844
      %v945 = vpack.c.b16 %v847, %v846
      %v946 = vpack.c.b16 %v849, %v848
      %v947 = vpack.c.b16 %v851, %v850
      %v948 = vpack.c.b16 %v853, %v852
      %v949 = vpack.c.b16 %v855, %v854
      %v950 = vpack.c.b16 %v857, %v856
      %v951 = vpack.c.b16 %v859, %v858
      %v952 = vpack.c.b16 %v861, %v860
      %v953 = vpack.c.b16 %v863, %v862
      %v954 = vpack.c.b16 %v865, %v864
      %v955 = vpack.c.b16 %v867, %v866
      %v956 = vpack.c.b16 %v869, %v868
      %v957 = vpack.c.b16 %v871, %v870
      %v958 = vpack.c.b16 %v873, %v872
      %v959 = vpack.c.b16 %v875, %v874
      %v960 = vpack.c.b16 %v877, %v876
      %v961 = vpack.c.b16 %v879, %v878
      %v962 = vpack.c.b16 %v881, %v880
      %v963 = vpack.c.b16 %v883, %v882
      %v964 = vpack.c.b16 %v885, %v884
      %v965 = vpack.c.b16 %v887, %v886
      %v966 = vpack.c.b16 %v889, %v888
      %v967 = vpack.c.b16 %v891, %v890
      %v968 = vpack.c.b16 %v893, %v892
      %v969 = vpack.c.b16 %v895, %v894
      %v970 = vpack.c.b16 %v897, %v896
      %v971 = vpack.c.b16 %v899, %v898
      %1044 = vmatprep.subr.bf16.mxu0 0
      %1045 = vmatpush1.bf16.msra.mxu0 %v900
      %1046 = vmatprep.subr.bf16.mxu0 0
      %1047 = vmatpush1.bf16.msra.mxu0 %v901
      %1048 = vmatprep.subr.bf16.mxu0 0
      %1049 = vmatpush1.bf16.msra.mxu0 %v902
      %1050 = vmatprep.subr.bf16.mxu0 0
      %1051 = vmatpush1.bf16.msra.mxu0 %v903
      %1052 = vmatprep.subr.bf16.mxu0 0
      %1053 = vmatpush1.bf16.msra.mxu0 %v904
      %1054 = vmatprep.subr.bf16.mxu0 0
      %1055 = vmatpush1.bf16.msra.mxu0 %v905
      %1056 = vmatprep.subr.bf16.mxu0 0
      %1057 = vmatpush1.bf16.msra.mxu0 %v906
      %1058 = vmatprep.subr.bf16.mxu0 0
      %1059 = vmatpush1.bf16.msra.mxu0 %v907
      %1060 = vmatprep.subr.bf16.mxu0 0
      %1061 = vmatpush1.bf16.msra.mxu0 %v908
      %1062 = vmatprep.subr.bf16.mxu0 0
      %1063 = vmatpush1.bf16.msra.mxu0 %v909
      %1064 = vmatprep.subr.bf16.mxu0 0
      %1065 = vmatpush1.bf16.msra.mxu0 %v910
      %1066 = vmatprep.subr.bf16.mxu0 0
      %1067 = vmatpush1.bf16.msra.mxu0 %v911
      %1068 = vmatprep.subr.bf16.mxu0 0
      %1069 = vmatpush1.bf16.msra.mxu0 %v912
      %1070 = vmatprep.subr.bf16.mxu0 0
      %1071 = vmatpush1.bf16.msra.mxu0 %v913
      %1072 = vmatprep.subr.bf16.mxu0 0
      %1073 = vmatpush1.bf16.msra.mxu0 %v914
      %1074 = vmatprep.subr.bf16.mxu0 0
      %1075 = vmatpush1.bf16.msra.mxu0 %v915
      %1076 = vmatprep.mubr.bf16.mxu0 %v460
      %1077 = vmatmul.mubr.bf16.gmra.mrb[0].mxu0 %v459
      %v1078 = vpop.f32.mrb[0].mxu0
      %v1079 = vadd.f32 0.0, %v1078
      %v1080 = vpop.f32.mrb[0].mxu0
      %v1081 = vpop.f32.mrb[0].mxu0
      %v1082 = vadd.f32 0.0, %v1081
      %v1083 = vpop.f32.mrb[0].mxu0
      %1084 = vdwg.mxu0
      %1085 = vmatprep.subr.bf16.mxu0 0
      %1086 = vmatpush1.bf16.msra.mxu0 %v916
      %1087 = vmatprep.subr.bf16.mxu0 0
      %1088 = vmatpush1.bf16.msra.mxu0 %v917
      %1089 = vmatprep.subr.bf16.mxu0 0
      %1090 = vmatpush1.bf16.msra.mxu0 %v918
      %1091 = vmatprep.subr.bf16.mxu0 0
      %1092 = vmatpush1.bf16.msra.mxu0 %v919
      %1093 = vmatprep.subr.bf16.mxu0 0
      %1094 = vmatpush1.bf16.msra.mxu0 %v920
      %1095 = vmatprep.subr.bf16.mxu0 0
      %1096 = vmatpush1.bf16.msra.mxu0 %v921
      %1097 = vmatprep.subr.bf16.mxu0 0
      %1098 = vmatpush1.bf16.msra.mxu0 %v922
      %1099 = vmatprep.subr.bf16.mxu0 0
      %1100 = vmatpush1.bf16.msra.mxu0 %v923
      %1101 = vmatprep.subr.bf16.mxu0 0
      %1102 = vmatpush1.bf16.msra.mxu0 %v924
      %1103 = vmatprep.subr.bf16.mxu0 0
      %1104 = vmatpush1.bf16.msra.mxu0 %v925
      %1105 = vmatprep.subr.bf16.mxu0 0
      %1106 = vmatpush1.bf16.msra.mxu0 %v926
      %1107 = vmatprep.subr.bf16.mxu0 0
      %1108 = vmatpush1.bf16.msra.mxu0 %v927
      %1109 = vmatprep.subr.bf16.mxu0 0
      %1110 = vmatpush1.bf16.msra.mxu0 %v928
      %1111 = vmatprep.subr.bf16.mxu0 0
      %1112 = vmatpush1.bf16.msra.mxu0 %v929
      %1113 = vmatprep.subr.bf16.mxu0 0
      %1114 = vmatpush1.bf16.msra.mxu0 %v930
      %1115 = vmatprep.subr.bf16.mxu0 0
      %1116 = vmatpush1.bf16.msra.mxu0 %v931
      %1117 = vmatprep.mubr.bf16.mxu0 %v462
      %1118 = vmatmul.mubr.bf16.gmra.mrb[0].mxu0 %v461
      %v1119 = vpop.f32.mrb[0].mxu0
      %v1120 = vadd.f32 %v1079, %v1119
      %v1121 = vpop.f32.mrb[0].mxu0
      %v1122 = vpop.f32.mrb[0].mxu0
      %v1123 = vadd.f32 %v1082, %v1122
      %v1124 = vpop.f32.mrb[0].mxu0
      %1125 = vdwg.mxu0
      %1126 = vmatprep.subr.bf16.mxu0 0
      %1127 = vmatpush1.bf16.msra.mxu0 %v932
      %1128 = vmatprep.subr.bf16.mxu0 0
      %1129 = vmatpush1.bf16.msra.mxu0 %v933
      %1130 = vmatprep.subr.bf16.mxu0 0
      %1131 = vmatpush1.bf16.msra.mxu0 %v934
      %1132 = vmatprep.subr.bf16.mxu0 0
      %1133 = vmatpush1.bf16.msra.mxu0 %v935
      %1134 = vmatprep.subr.bf16.mxu0 0
      %1135 = vmatpush1.bf16.msra.mxu0 %v936
      %1136 = vmatprep.subr.bf16.mxu0 0
      %1137 = vmatpush1.bf16.msra.mxu0 %v937
      %1138 = vmatprep.subr.bf16.mxu0 0
      %1139 = vmatpush1.bf16.msra.mxu0 %v938
      %1140 = vmatprep.subr.bf16.mxu0 0
      %1141 = vmatpush1.bf16.msra.mxu0 %v939
      %1142 = vmatprep.subr.bf16.mxu0 0
      %1143 = vmatpush1.bf16.msra.mxu0 %v940
      %1144 = vmatprep.subr.bf16.mxu0 0
      %1145 = vmatpush1.bf16.msra.mxu0 %v941
      %1146 = vmatprep.subr.bf16.mxu0 0
      %1147 = vmatpush1.bf16.msra.mxu0 %v942
      %1148 = vmatprep.subr.bf16.mxu0 0
      %1149 = vmatpush1.bf16.msra.mxu0 %v943
      %1150 = vmatprep.subr.bf16.mxu0 0
      %1151 = vmatpush1.bf16.msra.mxu0 %v944
      %1152 = vmatprep.subr.bf16.mxu0 0
      %1153 = vmatpush1.bf16.msra.mxu0 %v945
      %1154 = vmatprep.subr.bf16.mxu0 0
      %1155 = vmatpush1.bf16.msra.mxu0 %v946
      %1156 = vmatprep.subr.bf16.mxu0 0
      %1157 = vmatpush1.bf16.msra.mxu0 %v947
      %1158 = vmatprep.mubr.bf16.mxu0 %v464
      %1159 = vmatmul.mubr.bf16.gmra.mrb[0].mxu0 %v463
      %v1160 = vpop.f32.mrb[0].mxu0
      %v1161 = vadd.f32 %v1120, %v1160
      %v1162 = vpop.f32.mrb[0].mxu0
      %v1163 = vpop.f32.mrb[0].mxu0
      %v1164 = vadd.f32 %v1123, %v1163
      %v1165 = vpop.f32.mrb[0].mxu0
      %1166 = vdwg.mxu0
      %1167 = vmatprep.subr.bf16.mxu0 0
      %1168 = vmatpush1.bf16.msra.mxu0 %v948
      %1169 = vmatprep.subr.bf16.mxu0 0
      %1170 = vmatpush1.bf16.msra.mxu0 %v949
      %1171 = vmatprep.subr.bf16.mxu0 0
      %1172 = vmatpush1.bf16.msra.mxu0 %v950
      %1173 = vmatprep.subr.bf16.mxu0 0
      %1174 = vmatpush1.bf16.msra.mxu0 %v951
      %1175 = vmatprep.subr.bf16.mxu0 0
      %1176 = vmatpush1.bf16.msra.mxu0 %v952
      %1177 = vmatprep.subr.bf16.mxu0 0
      %1178 = vmatpush1.bf16.msra.mxu0 %v953
      %1179 = vmatprep.subr.bf16.mxu0 0
      %1180 = vmatpush1.bf16.msra.mxu0 %v954
      %1181 = vmatprep.subr.bf16.mxu0 0
      %1182 = vmatpush1.bf16.msra.mxu0 %v955
      %1183 = vmatprep.subr.bf16.mxu0 0
      %1184 = vmatpush1.bf16.msra.mxu0 %v956
      %1185 = vmatprep.subr.bf16.mxu0 0
      %1186 = vmatpush1.bf16.msra.mxu0 %v957
      %1187 = vmatprep.subr.bf16.mxu0 0
      %1188 = vmatpush1.bf16.msra.mxu0 %v958
      %1189 = vmatprep.subr.bf16.mxu0 0
      %1190 = vmatpush1.bf16.msra.mxu0 %v959
      %1191 = vmatprep.subr.bf16.mxu0 0
      %1192 = vmatpush1.bf16.msra.mxu0 %v960
      %1193 = vmatprep.subr.bf16.mxu0 0
      %1194 = vmatpush1.bf16.msra.mxu0 %v961
      %1195 = vmatprep.subr.bf16.mxu0 0
      %1196 = vmatpush1.bf16.msra.mxu0 %v962
      %1197 = vmatprep.subr.bf16.mxu0 0
      %1198 = vmatpush1.bf16.msra.mxu0 %v963
      %1199 = vmatprep.mubr.bf16.mxu0 %v466
      %1200 = vmatmul.mubr.bf16.gmra.mrb[0].mxu0 %v465
      %v1201 = vpop.f32.mrb[0].mxu0
      %v1202 = vadd.f32 %v1161, %v1201
      %v1203 = vpop.f32.mrb[0].mxu0
      %v1204 = vpop.f32.mrb[0].mxu0
      %v1205 = vadd.f32 %v1164, %v1204
      %v1206 = vpop.f32.mrb[0].mxu0
      %1207 = vdwg.mxu0
      %1208 = vmatprep.subr.bf16.mxu0 0
      %1209 = vmatpush1.bf16.msra.mxu0 %v964
      %1210 = vmatprep.subr.bf16.mxu0 0
      %1211 = vmatpush1.bf16.msra.mxu0 %v965
      %1212 = vmatprep.subr.bf16.mxu0 0
      %1213 = vmatpush1.bf16.msra.mxu0 %v966
      %1214 = vmatprep.subr.bf16.mxu0 0
      %1215 = vmatpush1.bf16.msra.mxu0 %v967
      %1216 = vmatprep.subr.bf16.mxu0 0
      %1217 = vmatpush1.bf16.msra.mxu0 %v968
      %1218 = vmatprep.subr.bf16.mxu0 0
      %1219 = vmatpush1.bf16.msra.mxu0 %v969
      %1220 = vmatprep.subr.bf16.mxu0 0
      %1221 = vmatpush1.bf16.msra.mxu0 %v970
      %1222 = vmatprep.subr.bf16.mxu0 0
      %1223 = vmatpush1.bf16.msra.mxu0 %v971
      %1224 = vmatprep.subr.bf16.mxu0 0
      %1225 = vmatpush1.bf16.msra.mxu0 0
      %1226 = vmatprep.subr.bf16.mxu0 0
      %1227 = vmatpush1.bf16.msra.mxu0 0
      %1228 = vmatprep.subr.bf16.mxu0 0
      %1229 = vmatpush1.bf16.msra.mxu0 0
      %1230 = vmatprep.subr.bf16.mxu0 0
      %1231 = vmatpush1.bf16.msra.mxu0 0
      %1232 = vmatprep.subr.bf16.mxu0 0
      %1233 = vmatpush1.bf16.msra.mxu0 0
      %1234 = vmatprep.subr.bf16.mxu0 0
      %1235 = vmatpush1.bf16.msra.mxu0 0
      %1236 = vmatprep.subr.bf16.mxu0 0
      %1237 = vmatpush1.bf16.msra.mxu0 0
      %1238 = vmatprep.subr.bf16.mxu0 0
      %1239 = vmatpush1.bf16.msra.mxu0 0
      %1240 = vmatprep.mubr.bf16.mxu0 0
      %1241 = vmatmul.mubr.bf16.gmra.mrb[0].mxu0 %v467
      %v1242 = vpop.f32.mrb[0].mxu0
      %v1243 = vadd.f32 %v1202, %v1242
      %v1244 = vpop.f32.mrb[0].mxu0
      %v1245 = vpop.f32.mrb[0].mxu0
      %v1246 = vadd.f32 %v1205, %v1245
      %v1247 = vpop.f32.mrb[0].mxu0
      %1248 = vdwg.mxu0
      %v1249 = vld [vmem:[%s2] sm:$0x1]
      %v1251 = vlaneseq
      %v1252 = vshrl.u32 %v1251, 7
      %v1253 = vsub.s32 0, %v1252
      %v1254 = vrot.slane %v1249, %v1253
      %v1256 = vmul.f32 %v1243, %v1254
      %v1257 = vmul.f32 %v1246, %v1254
      %v1258 = vld [vmem:[%s3] sm:$0x1]
      %v1260 = vlaneseq
      %v1261 = vshrl.u32 %v1260, 7
      %v1262 = vsub.s32 0, %v1261
      %v1263 = vrot.slane %v1258, %v1262
      %v1265 = vadd.f32 %v1256, %v1263
      %v1266 = vadd.f32 %v1257, %v1263
      %v1269 = vcombine.high %v1265, %v1265
      %v1270 = vcombine.high %v1266, %v1266
      %1273 = vst [vmem:[%s340] sm:$0xf] %v1265
      %1274 = vst [vmem:[%s340 + $0x4] sm:$0xf] %v1269
      %1275 = vst [vmem:[%s340 + $0x8] sm:$0xf] %v1266
      %1276 = vst [vmem:[%s340 + $0xc] sm:$0xf] %v1270
      %v1277 = vld [vmem:[%s5] sm:$0x1]
      %v1278 = vld [vmem:[%s6] sm:$0x1]
      %v1279 = vld [vmem:[%s4] sm:$0x1]
      %v1280 = vlaneseq
      %v1281 = vshrl.u32 %v1280, 7
      %v1282 = vsub.s32 0, %v1281
      %v1283 = vrot.slane %v1279, %v1282
      %v1284 = vmul.f32 %v1283, 0.0
      %v1285 = vmul.f32 %v369, %v1283
      %v1286 = vmul.f32 %v370, %v1283
      %v1287 = vmul.f32 %v371, %v1283
      %v1288 = vadd.f32 %v1284, 0.0
      %v1289 = vadd.f32 %v1285, 0.0
      %v1290 = vadd.f32 %v1286, 0.0
      %v1291 = vadd.f32 %v1287, 0.0
      %v1292 = vld [vmem:[%s4 + $0x1] sm:$0x1]
      %v1293 = vlaneseq
      %v1294 = vshrl.u32 %v1293, 7
      %v1295 = vsub.s32 0, %v1294
      %v1296 = vrot.slane %v1292, %v1295
      %v1297 = vmul.f32 %v1296, 0.0
      %v1298 = vmul.f32 %v369, %v1296
      %v1299 = vmul.f32 %v370, %v1296
      %v1300 = vmul.f32 %v371, %v1296
      %v1305 = vrot.slane %v1297, 1
      %v1306 = vrot.slane %v1298, 1
      %v1307 = vrot.slane %v1299, 1
      %v1308 = vrot.slane %v1300, 1
      %v1313 = vadd.f32 %v1288, %v1305
      %v1314 = vadd.f32 %v1289, %v1306
      %v1315 = vadd.f32 %v1290, %v1307
      %v1316 = vadd.f32 %v1291, %v1308
      %v1317 = vld [vmem:[%s4 + $0x2] sm:$0x1]
      %v1318 = vlaneseq
      %v1319 = vshrl.u32 %v1318, 7
      %v1320 = vsub.s32 0, %v1319
      %v1321 = vrot.slane %v1317, %v1320
      %v1322 = vmul.f32 %v1321, 0.0
      %v1323 = vmul.f32 %v369, %v1321
      %v1324 = vmul.f32 %v370, %v1321
      %v1325 = vmul.f32 %v371, %v1321
      %v1330 = vrot.slane %v1322, 2
      %v1331 = vrot.slane %v1323, 2
      %v1332 = vrot.slane %v1324, 2
      %v1333 = vrot.slane %v1325, 2
      %v1338 = vadd.f32 %v1313, %v1330
      %v1339 = vadd.f32 %v1314, %v1331
      %v1340 = vadd.f32 %v1315, %v1332
      %v1341 = vadd.f32 %v1316, %v1333
      %v1342 = vld [vmem:[%s4 + $0x3] sm:$0x1]
      %v1343 = vlaneseq
      %v1344 = vshrl.u32 %v1343, 7
      %v1345 = vsub.s32 0, %v1344
      %v1346 = vrot.slane %v1342, %v1345
      %v1347 = vmul.f32 %v369, %v1346
      %v1348 = vmul.f32 %v370, %v1346
      %v1349 = vmul.f32 %v371, %v1346
      %v1350 = vmul.f32 %v372, %v1346
      %v1351 = vadd.f32 %v1338, %v1347
      %v1352 = vadd.f32 %v1339, %v1348
      %v1353 = vadd.f32 %v1340, %v1349
      %v1354 = vadd.f32 %v1341, %v1350
      %v1355 = vld [vmem:[%s4 + $0x4] sm:$0x1]
      %v1356 = vlaneseq
      %v1357 = vshrl.u32 %v1356, 7
      %v1358 = vsub.s32 0, %v1357
      %v1359 = vrot.slane %v1355, %v1358
      %v1360 = vmul.f32 %v369, %v1359
      %v1361 = vmul.f32 %v370, %v1359
      %v1362 = vmul.f32 %v371, %v1359
      %v1363 = vmul.f32 %v372, %v1359
      %v1368 = vrot.slane %v1360, 1
      %v1369 = vrot.slane %v1361, 1
      %v1370 = vrot.slane %v1362, 1
      %v1371 = vrot.slane %v1363, 1
      %v1376 = vadd.f32 %v1351, %v1368
      %v1377 = vadd.f32 %v1352, %v1369
      %v1378 = vadd.f32 %v1353, %v1370
      %v1379 = vadd.f32 %v1354, %v1371
      %v1380 = vld [vmem:[%s4 + $0x5] sm:$0x1]
      %v1381 = vlaneseq
      %v1382 = vshrl.u32 %v1381, 7
      %v1383 = vsub.s32 0, %v1382
      %v1384 = vrot.slane %v1380, %v1383
      %v1385 = vmul.f32 %v369, %v1384
      %v1386 = vmul.f32 %v370, %v1384
      %v1387 = vmul.f32 %v371, %v1384
      %v1388 = vmul.f32 %v372, %v1384
      %v1393 = vrot.slane %v1385, 2
      %v1394 = vrot.slane %v1386, 2
      %v1395 = vrot.slane %v1387, 2
      %v1396 = vrot.slane %v1388, 2
      %v1401 = vadd.f32 %v1376, %v1393
      %v1402 = vadd.f32 %v1377, %v1394
      %v1403 = vadd.f32 %v1378, %v1395
      %v1404 = vadd.f32 %v1379, %v1396
      %v1405 = vld [vmem:[%s4 + $0x6] sm:$0x1]
      %v1406 = vlaneseq
      %v1407 = vshrl.u32 %v1406, 7
      %v1408 = vsub.s32 0, %v1407
      %v1409 = vrot.slane %v1405, %v1408
      %v1410 = vmul.f32 %v370, %v1409
      %v1411 = vmul.f32 %v371, %v1409
      %v1412 = vmul.f32 %v372, %v1409
      %v1413 = vmul.f32 %v1409, 0.0
      %v1414 = vadd.f32 %v1401, %v1410
      %v1415 = vadd.f32 %v1402, %v1411
      %v1416 = vadd.f32 %v1403, %v1412
      %v1417 = vadd.f32 %v1404, %v1413
      %v1418 = vld [vmem:[%s4 + $0x7] sm:$0x1]
      %v1419 = vlaneseq
      %v1420 = vshrl.u32 %v1419, 7
      %v1421 = vsub.s32 0, %v1420
      %v1422 = vrot.slane %v1418, %v1421
      %v1423 = vmul.f32 %v370, %v1422
      %v1424 = vmul.f32 %v371, %v1422
      %v1425 = vmul.f32 %v372, %v1422
      %v1426 = vmul.f32 %v1422, 0.0
      %v1431 = vrot.slane %v1423, 1
      %v1432 = vrot.slane %v1424, 1
      %v1433 = vrot.slane %v1425, 1
      %v1434 = vrot.slane %v1426, 1
      %v1439 = vadd.f32 %v1414, %v1431
      %v1440 = vadd.f32 %v1415, %v1432
      %v1441 = vadd.f32 %v1416, %v1433
      %v1442 = vadd.f32 %v1417, %v1434
      %v1443 = vld [vmem:[%s4 + $0x8] sm:$0x1]
      %v1444 = vlaneseq
      %v1445 = vshrl.u32 %v1444, 7
      %v1446 = vsub.s32 0, %v1445
      %v1447 = vrot.slane %v1443, %v1446
      %v1448 = vmul.f32 %v370, %v1447
      %v1449 = vmul.f32 %v371, %v1447
      %v1450 = vmul.f32 %v372, %v1447
      %v1451 = vmul.f32 %v1447, 0.0
      %v1456 = vrot.slane %v1448, 2
      %v1457 = vrot.slane %v1449, 2
      %v1458 = vrot.slane %v1450, 2
      %v1459 = vrot.slane %v1451, 2
      %v1464 = vadd.f32 %v1439, %v1456
      %v1465 = vadd.f32 %v1440, %v1457
      %v1466 = vadd.f32 %v1441, %v1458
      %v1467 = vadd.f32 %v1442, %v1459
      %v1469 = vlaneseq
      %v1470 = vshrl.u32 %v1469, 7
      %v1471 = vsub.s32 0, %v1470
      %v1472 = vrot.slane %v1277, %v1471
      %v1474 = vmul.f32 %v1464, %v1472
      %v1475 = vmul.f32 %v1465, %v1472
      %v1476 = vmul.f32 %v1466, %v1472
      %v1477 = vmul.f32 %v1467, %v1472
      %v1479 = vlaneseq
      %v1480 = vshrl.u32 %v1479, 7
      %v1481 = vsub.s32 0, %v1480
      %v1482 = vrot.slane %v1278, %v1481
      %v1484 = vadd.f32 %v1474, %v1482
      %v1485 = vadd.f32 %v1475, %v1482
      %v1486 = vadd.f32 %v1476, %v1482
      %v1487 = vadd.f32 %v1477, %v1482
      %v1492 = vcombine.low %v1484, %v1485
      %v1493 = vcombine.low %v1486, %v1487
      %v1496 = vpack.c.bf16 %v1493, %v1492
      %v1497 = vld [vmem:[%s7] sm:$0xf]
      %v1498 = vld [vmem:[%s7 + $0x4] sm:$0xf]
      %v1499 = vld [vmem:[%s7 + $0x8] sm:$0xf]
      %v1500 = vld [vmem:[%s7 + $0xc] sm:$0xf]
      %v1501 = vld [vmem:[%s7 + $0x10] sm:$0xf]
      %v1502 = vld [vmem:[%s7 + $0x14] sm:$0xf]
      %v1503 = vld [vmem:[%s7 + $0x18] sm:$0xf]
      %v1504 = vld [vmem:[%s7 + $0x1c] sm:$0xf]
      %v1505 = vld [vmem:[%s7 + $0x20] sm:$0xf]
      %v1506 = vld [vmem:[%s7 + $0x24] sm:$0xf]
      %v1507 = vld [vmem:[%s7 + $0x28] sm:$0xf]
      %v1508 = vld [vmem:[%s7 + $0x2c] sm:$0xf]
      %v1509 = vld [vmem:[%s7 + $0x30] sm:$0xf]
      %v1510 = vld [vmem:[%s7 + $0x34] sm:$0xf]
      %v1511 = vld [vmem:[%s7 + $0x38] sm:$0xf]
      %v1512 = vld [vmem:[%s7 + $0x3c] sm:$0xf]
      %v1529 = vunpack.c.l.b16 %v1497
      %v1530 = vunpack.c.l.b16 %v1498
      %v1531 = vunpack.c.l.b16 %v1499
      %v1532 = vunpack.c.l.b16 %v1500
      %v1533 = vunpack.c.l.b16 %v1501
      %v1534 = vunpack.c.l.b16 %v1502
      %v1535 = vunpack.c.l.b16 %v1503
      %v1536 = vunpack.c.l.b16 %v1504
      %v1537 = vunpack.c.l.b16 %v1505
      %v1538 = vunpack.c.l.b16 %v1506
      %v1539 = vunpack.c.l.b16 %v1507
      %v1540 = vunpack.c.l.b16 %v1508
      %v1541 = vunpack.c.l.b16 %v1509
      %v1542 = vunpack.c.l.b16 %v1510
      %v1543 = vunpack.c.l.b16 %v1511
      %v1544 = vunpack.c.l.b16 %v1512
      %v1545 = vpack.c.b16 %v1530, %v1529
      %v1546 = vpack.c.b16 %v1532, %v1531
      %v1547 = vpack.c.b16 %v1534, %v1533
      %v1548 = vpack.c.b16 %v1536, %v1535
      %v1549 = vpack.c.b16 %v1538, %v1537
      %v1550 = vpack.c.b16 %v1540, %v1539
      %v1551 = vpack.c.b16 %v1542, %v1541
      %v1552 = vpack.c.b16 %v1544, %v1543
      %1561 = vmatprep.subr.bf16.mxu0 0
      %1562 = vmatpush1.bf16.msra.mxu0 %v1545
      %1563 = vmatprep.subr.bf16.mxu0 0
      %1564 = vmatpush1.bf16.msra.mxu0 %v1546
      %1565 = vmatprep.subr.bf16.mxu0 0
      %1566 = vmatpush1.bf16.msra.mxu0 %v1547
      %1567 = vmatprep.subr.bf16.mxu0 0
      %1568 = vmatpush1.bf16.msra.mxu0 %v1548
      %1569 = vmatprep.subr.bf16.mxu0 0
      %1570 = vmatpush1.bf16.msra.mxu0 %v1549
      %1571 = vmatprep.subr.bf16.mxu0 0
      %1572 = vmatpush1.bf16.msra.mxu0 %v1550
      %1573 = vmatprep.subr.bf16.mxu0 0
      %1574 = vmatpush1.bf16.msra.mxu0 %v1551
      %1575 = vmatprep.subr.bf16.mxu0 0
      %1576 = vmatpush1.bf16.msra.mxu0 %v1552
      %1577 = vmatprep.subr.bf16.mxu0 0
      %1578 = vmatpush1.bf16.msra.mxu0 0
      %1579 = vmatprep.subr.bf16.mxu0 0
      %1580 = vmatpush1.bf16.msra.mxu0 0
      %1581 = vmatprep.subr.bf16.mxu0 0
      %1582 = vmatpush1.bf16.msra.mxu0 0
      %1583 = vmatprep.subr.bf16.mxu0 0
      %1584 = vmatpush1.bf16.msra.mxu0 0
      %1585 = vmatprep.subr.bf16.mxu0 0
      %1586 = vmatpush1.bf16.msra.mxu0 0
      %1587 = vmatprep.subr.bf16.mxu0 0
      %1588 = vmatpush1.bf16.msra.mxu0 0
      %1589 = vmatprep.subr.bf16.mxu0 0
      %1590 = vmatpush1.bf16.msra.mxu0 0
      %1591 = vmatprep.subr.bf16.mxu0 0
      %1592 = vmatpush1.bf16.msra.mxu0 0
      %1593 = vmatprep.mubr.bf16.mxu0 0
      %1594 = vmatmul.mubr.bf16.gmra.mrb[0].mxu0 %v1496
      %v1595 = vpop.f32.mrb[0].mxu0
      %v1596 = vadd.f32 0.0, %v1595
      %v1597 = vpop.f32.mrb[0].mxu0
      %v1598 = vpop.f32.mrb[0].mxu0
      %v1599 = vadd.f32 0.0, %v1598
      %v1600 = vpop.f32.mrb[0].mxu0
      %1601 = vdwg.mxu0
      %v1604 = vcombine.high %v1596, %v1596
      %v1605 = vcombine.high %v1599, %v1599
      %1608 = vst [vmem:[%s345] sm:$0xf] %v1596
      %1609 = vst [vmem:[%s345 + $0x4] sm:$0xf] %v1604
      %1610 = vst [vmem:[%s345 + $0x8] sm:$0xf] %v1599
      %1611 = vst [vmem:[%s345 + $0xc] sm:$0xf] %v1605
      %p1612 = scmp.lt.s32.totalorder %s21, 1
      %s1613 = scalar_select %p1612, %s21, 1
      %s1614 = smul.addr %s1613, 4
      %s1615 = smul.addr %s1614, 4
      %s1616 = scalar_lea.vmem %s8, %s1615
      %p1617 = scmp.lt.s32.totalorder %s21, 1
      %s1618 = scalar_select %p1617, %s21, 1
      %s1619 = smul.addr %s1618, 4
      %s1620 = smul.addr %s1619, 4
      %s1621 = scalar_lea.vmem %s9, %s1620
      // Predicated region
      $region53: #{bga_forward.4} parent=51 // pred_check
        %p1622 = pneg %p212
      $region54: #{bga_forward.4} parent=51 // pred_check_branch
        %1624 = sbr.rel (%p1622) target = $region56
      $region55: #{bga_forward.4} parent=51 // pred_region
        _
      $region56: #{bga_forward.4} parent=51 // pred_fallthru
        _
      // Predicated region
      $region57: #{bga_forward.4} parent=51 // pred_check
        %p1625 = pneg %p238
      $region58: #{bga_forward.4} parent=51 // pred_check_branch
        %1627 = sbr.rel (%p1625) target = $region60
      $region59: #{bga_forward.4} parent=51 // pred_region
        _
      $region60: #{bga_forward.4} parent=51 // pred_fallthru
        _
    $region52: #{bga_forward.4} parent=5 // pred_fallthru
      _
    %p1628 = scmp.le.s32.totalorder 2, %s16
    // Predicated region
    $region61: #{bga_forward.4} parent=5 // pred_check
      %p1629 = pneg %p1628
    $region62: #{bga_forward.4} parent=5 // pred_check_branch
      %1631 = sbr.rel (%p1629) target = $region64
    $region63: #{bga_forward.4} parent=5 // pred_region
      %s1632 = ssub.s32 %s16, 2
      // Predicated region
      $region65: #{bga_forward.4} parent=63 // pred_check
        %p1633 = pneg %p218
      $region66: #{bga_forward.4} parent=63 // pred_check_branch
        %1635 = sbr.rel (%p1633) target = $region68
      $region67: #{bga_forward.4} parent=63 // pred_region
        %p1636 = scmp.lt.s32.totalorder %s22, 1
        %s1637 = scalar_select %p1636, %s22, 1
        %s1638 = smul.addr %s1637, 4
        %s1639 = smul.addr %s1638, 4
        %s1640 = scalar_lea.vmem %s8, %s1639
      $region68: #{bga_forward.4} parent=63 // pred_fallthru
        _
      // Predicated region
      $region69: #{bga_forward.4} parent=63 // pred_check
        %p1641 = pneg %p244
      $region70: #{bga_forward.4} parent=63 // pred_check_branch
        %1643 = sbr.rel (%p1641) target = $region72
      $region71: #{bga_forward.4} parent=63 // pred_region
        %p1644 = scmp.lt.s32.totalorder %s22, 1
        %s1645 = scalar_select %p1644, %s22, 1
        %s1646 = smul.addr %s1645, 4
        %s1647 = smul.addr %s1646, 4
        %s1648 = scalar_lea.vmem %s9, %s1647
      $region72: #{bga_forward.4} parent=63 // pred_fallthru
        _
    $region64: #{bga_forward.4} parent=5 // pred_fallthru
      _
  $region6: #{bga_forward.4} parent=0 // loop_footer
    %s20 = sadd.s32 1, %s16
  $region7: #{bga_forward.4} parent=0 // loop_footer_branch
    %15 = sbr.rel target = $region3
  $region8: #{bga_forward.4} parent=0 // loop_exit
    _

// kernel: bga_forward.5
$region0: #{bga_forward.5}
  #allocation0 [shape = 'u32[]', space=smem, size = 0x4, offset = 0x4, fixed_abs, tag = 'smem constant byte address 0x4 - core index']
  #allocation1 [shape = 'u32[144,128]{1,0:T(1,128)}', space=vmem, size = 0x12000, scoped, tag = 'internal scratch']
  %s0 = inlined_call_operand.vmem [shape: bf16[2,16,16,128], index: 0, kind: input, shape index: {}]
  %s1 = inlined_call_operand.vmem [shape: f32[2,4,4,128], index: 1, kind: input, shape index: {}]
  %s2 = inlined_call_operand.vmem [shape: f32[2,4,4,128], index: 2, kind: input, shape index: {}]
  %s3 = inlined_call_operand.vmem [shape: f32[2,4,4,128], index: 3, kind: input, shape index: {}]
  %s4 = inlined_call_operand.vmem [shape: bf16[1152,128], index: 4, kind: input, shape index: {}]
  %s5 = inlined_call_operand.vmem [shape: f32[1,128], index: 5, kind: input, shape index: {}]
  %s6 = inlined_call_operand.vmem [shape: f32[1,128], index: 6, kind: input, shape index: {}]
  %s7 = inlined_call_operand.hbm [shape: f32[2,16,16,128], index: 7, kind: output, shape index: {}]
  %s8 = sld [smem:[#allocation0]]
  $region61: #{bga_forward.5} parent=0
    _
  %s10 = ssub.s32 1, %s8
  %s11 = scalar_select 0, %s10, %s8
  $region1: #{bga_forward.5} parent=0
    #allocation2 [shape = 'u8[262144]{0}', space=vmem, size = 0x40000, scoped, tag = 'output window, operand 0']
    #allocation3 [shape = 's32[2]{0}', space=sflag, size = 0x8, scoped, tag = 'scoped memory for bga_forward.5']
    %12 = vsyncpa [#allocation3], 0
    %s13 = scalar_lea.sflag [#allocation3], 1
    %14 = vsyncpa %s13, 0
    loop: start=0, step=1, limit=4
    $region2: #{bga_forward.5} parent=1 // loop_pre_header
      _
    $region3: #{bga_forward.5} parent=1 // loop_header
      %s16 = sphi 0, %s20
      %p17 = scmp.ge.s32.totalorder %s16, 4
      %s26 = sphi 0, %s28
      %s29 = sphi 0, %s26
      %s30 = sphi 0, %s29
      %s46 = sphi 0, %s30
      %s52 = sphi 0, %s54
      %s55 = sphi 0, %s52
      %s56 = sphi 0, %s55
      %s72 = sphi 0, %s56
      %s78 = sphi 0, %s80
      %s81 = sphi 0, %s78
      %s82 = sphi 0, %s81
      %s98 = sphi 0, %s82
      %s104 = sphi 0, %s106
      %s107 = sphi 0, %s104
      %s108 = sphi 0, %s107
      %s124 = sphi 0, %s108
      %s128 = sphi 0, %s128
      %s130 = sphi 0, %s128
      %s131 = sphi 0, %s130
      %s145 = sphi 0, %s131
      %s149 = sphi 0, %s149
      %s151 = sphi 0, %s149
      %s152 = sphi 0, %s151
      %s166 = sphi 0, %s152
      %s170 = sphi 0, %s170
      %s172 = sphi 0, %s170
      %s173 = sphi 0, %s172
      %s187 = sphi 0, %s173
      %s193 = sphi 0, %s195
      %s196 = sphi 0, %s193
      %s197 = sphi 0, %s196
      %s213 = sphi 0, %s197
    $region4: #{bga_forward.5} parent=1 // loop_header_branch
      %19 = sbr.rel (%p17) target = $region8
    $region5: #{bga_forward.5} parent=1 // loop_body
      %s21 = ssub.s32 %s16, 1
      %s22 = ssub.s32 %s16, 2
      %s23 = sadd.s32 %s16, 1
      %s24 = ssub.s32 %s16, %s23
      %p25 = scmp.eq.s32.totalorder %s24, 0
      %s27 = sadd.s32 %s26, 1
      %s28 = scalar_select %p25, %s26, %s27
      %p31 = pneg %p25
      %p32 = scmp.eq.s32.totalorder %s16, 1
      %p33 = por %p31, %p32
      %p34 = scmp.ne.s32.totalorder %s26, %s29
      %p35 = scmp.eq.s32.totalorder %s16, 0
      %p36 = por %p34, %p35
      %p37 = scmp.ne.s32.totalorder %s26, %s29
      %p38 = scmp.eq.s32.totalorder %s21, 1
      %p39 = por %p37, %p38
      %p40 = scmp.ne.s32.totalorder %s29, %s30
      %p41 = scmp.eq.s32.totalorder %s21, 0
      %p42 = por %p40, %p41
      %p43 = scmp.ne.s32.totalorder %s29, %s30
      %p44 = scmp.eq.s32.totalorder %s22, 1
      %p45 = por %p43, %p44
      %p47 = scmp.ne.s32.totalorder %s30, %s46
      %p48 = scmp.eq.s32.totalorder %s22, 0
      %p49 = por %p47, %p48
      %s50 = ssub.s32 %s16, %s23
      %p51 = scmp.eq.s32.totalorder %s50, 0
      %s53 = sadd.s32 %s52, 1
      %s54 = scalar_select %p51, %s52, %s53
      %p57 = pneg %p51
      %p58 = scmp.eq.s32.totalorder %s16, 1
      %p59 = por %p57, %p58
      %p60 = scmp.ne.s32.totalorder %s52, %s55
      %p61 = scmp.eq.s32.totalorder %s16, 0
      %p62 = por %p60, %p61
      %p63 = scmp.ne.s32.totalorder %s52, %s55
      %p64 = scmp.eq.s32.totalorder %s21, 1
      %p65 = por %p63, %p64
      %p66 = scmp.ne.s32.totalorder %s55, %s56
      %p67 = scmp.eq.s32.totalorder %s21, 0
      %p68 = por %p66, %p67
      %p69 = scmp.ne.s32.totalorder %s55, %s56
      %p70 = scmp.eq.s32.totalorder %s22, 1
      %p71 = por %p69, %p70
      %p73 = scmp.ne.s32.totalorder %s56, %s72
      %p74 = scmp.eq.s32.totalorder %s22, 0
      %p75 = por %p73, %p74
      %s76 = ssub.s32 %s16, %s23
      %p77 = scmp.eq.s32.totalorder %s76, 0
      %s79 = sadd.s32 %s78, 1
      %s80 = scalar_select %p77, %s78, %s79
      %p83 = pneg %p77
      %p84 = scmp.eq.s32.totalorder %s16, 1
      %p85 = por %p83, %p84
      %p86 = scmp.ne.s32.totalorder %s78, %s81
      %p87 = scmp.eq.s32.totalorder %s16, 0
      %p88 = por %p86, %p87
      %p89 = scmp.ne.s32.totalorder %s78, %s81
      %p90 = scmp.eq.s32.totalorder %s21, 1
      %p91 = por %p89, %p90
      %p92 = scmp.ne.s32.totalorder %s81, %s82
      %p93 = scmp.eq.s32.totalorder %s21, 0
      %p94 = por %p92, %p93
      %p95 = scmp.ne.s32.totalorder %s81, %s82
      %p96 = scmp.eq.s32.totalorder %s22, 1
      %p97 = por %p95, %p96
      %p99 = scmp.ne.s32.totalorder %s82, %s98
      %p100 = scmp.eq.s32.totalorder %s22, 0
      %p101 = por %p99, %p100
      %s102 = ssub.s32 %s16, %s23
      %p103 = scmp.eq.s32.totalorder %s102, 0
      %s105 = sadd.s32 %s104, 1
      %s106 = scalar_select %p103, %s104, %s105
      %p109 = pneg %p103
      %p110 = scmp.eq.s32.totalorder %s16, 1
      %p111 = por %p109, %p110
      %p112 = scmp.ne.s32.totalorder %s104, %s107
      %p113 = scmp.eq.s32.totalorder %s16, 0
      %p114 = por %p112, %p113
      %p115 = scmp.ne.s32.totalorder %s104, %s107
      %p116 = scmp.eq.s32.totalorder %s21, 1
      %p117 = por %p115, %p116
      %p118 = scmp.ne.s32.totalorder %s107, %s108
      %p119 = scmp.eq.s32.totalorder %s21, 0
      %p120 = por %p118, %p119
      %p121 = scmp.ne.s32.totalorder %s107, %s108
      %p122 = scmp.eq.s32.totalorder %s22, 1
      %p123 = por %p121, %p122
      %p125 = scmp.ne.s32.totalorder %s108, %s124
      %p126 = scmp.eq.s32.totalorder %s22, 0
      %p127 = por %p125, %p126
      %s129 = sadd.s32 %s128, 1
      %p132 = scmp.eq.s32.totalorder %s16, 1
      %p133 = scmp.ne.s32.totalorder %s128, %s130
      %p134 = scmp.eq.s32.totalorder %s16, 0
      %p135 = por %p133, %p134
      %p136 = scmp.ne.s32.totalorder %s128, %s130
      %p137 = scmp.eq.s32.totalorder %s21, 1
      %p138 = por %p136, %p137
      %p139 = scmp.ne.s32.totalorder %s130, %s131
      %p140 = scmp.eq.s32.totalorder %s21, 0
      %p141 = por %p139, %p140
      %p142 = scmp.ne.s32.totalorder %s130, %s131
      %p143 = scmp.eq.s32.totalorder %s22, 1
      %p144 = por %p142, %p143
      %p146 = scmp.ne.s32.totalorder %s131, %s145
      %p147 = scmp.eq.s32.totalorder %s22, 0
      %p148 = por %p146, %p147
      %s150 = sadd.s32 %s149, 1
      %p153 = scmp.eq.s32.totalorder %s16, 1
      %p154 = scmp.ne.s32.totalorder %s149, %s151
      %p155 = scmp.eq.s32.totalorder %s16, 0
      %p156 = por %p154, %p155
      %p157 = scmp.ne.s32.totalorder %s149, %s151
      %p158 = scmp.eq.s32.totalorder %s21, 1
      %p159 = por %p157, %p158
      %p160 = scmp.ne.s32.totalorder %s151, %s152
      %p161 = scmp.eq.s32.totalorder %s21, 0
      %p162 = por %p160, %p161
      %p163 = scmp.ne.s32.totalorder %s151, %s152
      %p164 = scmp.eq.s32.totalorder %s22, 1
      %p165 = por %p163, %p164
      %p167 = scmp.ne.s32.totalorder %s152, %s166
      %p168 = scmp.eq.s32.totalorder %s22, 0
      %p169 = por %p167, %p168
      %s171 = sadd.s32 %s170, 1
      %p174 = scmp.eq.s32.totalorder %s16, 1
      %p175 = scmp.ne.s32.totalorder %s170, %s172
      %p176 = scmp.eq.s32.totalorder %s16, 0
      %p177 = por %p175, %p176
      %p178 = scmp.ne.s32.totalorder %s170, %s172
      %p179 = scmp.eq.s32.totalorder %s21, 1
      %p180 = por %p178, %p179
      %p181 = scmp.ne.s32.totalorder %s172, %s173
      %p182 = scmp.eq.s32.totalorder %s21, 0
      %p183 = por %p181, %p182
      %p184 = scmp.ne.s32.totalorder %s172, %s173
      %p185 = scmp.eq.s32.totalorder %s22, 1
      %p186 = por %p184, %p185
      %p188 = scmp.ne.s32.totalorder %s173, %s187
      %p189 = scmp.eq.s32.totalorder %s22, 0
      %p190 = por %p188, %p189
      %s191 = ssub.s32 %s16, %s23
      %p192 = scmp.eq.s32.totalorder %s191, 0
      %s194 = sadd.s32 %s193, 1
      %s195 = scalar_select %p192, %s193, %s194
      %p198 = pneg %p192
      %p199 = scmp.eq.s32.totalorder %s16, 1
      %p200 = por %p198, %p199
      %p201 = scmp.ne.s32.totalorder %s193, %s196
      %p202 = scmp.eq.s32.totalorder %s16, 0
      %p203 = por %p201, %p202
      %p204 = scmp.ne.s32.totalorder %s193, %s196
      %p205 = scmp.eq.s32.totalorder %s21, 1
      %p206 = por %p204, %p205
      %p207 = scmp.ne.s32.totalorder %s196, %s197
      %p208 = scmp.eq.s32.totalorder %s21, 0
      %p209 = por %p207, %p208
      %p210 = scmp.ne.s32.totalorder %s196, %s197
      %p211 = scmp.eq.s32.totalorder %s22, 1
      %p212 = por %p210, %p211
      %p214 = scmp.ne.s32.totalorder %s197, %s213
      %p215 = scmp.eq.s32.totalorder %s22, 0
      %p216 = por %p214, %p215
      %p217 = scmp.le.s32.totalorder 1, %s16
      %p218 = scmp.lt.s32.totalorder %s16, 3
      %p219 = pnand %p217, %p218
      %p220 = pneg %p219
      // Predicated region
      $region9: #{bga_forward.5} parent=5 // pred_check
        _
      $region10: #{bga_forward.5} parent=5 // pred_check_branch
        %222 = sbr.rel (%p219) target = $region12
      $region11: #{bga_forward.5} parent=5 // pred_region
        %s223 = ssub.s32 %s16, 1
        // Predicated region
        $region13: #{bga_forward.5} parent=11 // pred_check
          %p224 = pneg %p141
        $region14: #{bga_forward.5} parent=11 // pred_check_branch
          %226 = sbr.rel (%p224) target = $region16
        $region15: #{bga_forward.5} parent=11 // pred_region
          _
        $region16: #{bga_forward.5} parent=11 // pred_fallthru
          _
        // Predicated region
        $region17: #{bga_forward.5} parent=11 // pred_check
          %p227 = pneg %p162
        $region18: #{bga_forward.5} parent=11 // pred_check_branch
          %229 = sbr.rel (%p227) target = $region20
        $region19: #{bga_forward.5} parent=11 // pred_region
          _
        $region20: #{bga_forward.5} parent=11 // pred_fallthru
          _
        // Predicated region
        $region21: #{bga_forward.5} parent=11 // pred_check
          %p230 = pneg %p183
        $region22: #{bga_forward.5} parent=11 // pred_check_branch
          %232 = sbr.rel (%p230) target = $region24
        $region23: #{bga_forward.5} parent=11 // pred_region
          _
        $region24: #{bga_forward.5} parent=11 // pred_fallthru
          _
      $region12: #{bga_forward.5} parent=5 // pred_fallthru
        _
      %p233 = scmp.lt.s32.totalorder %s16, 2
      // Predicated region
      $region25: #{bga_forward.5} parent=5 // pred_check
        %p234 = pneg %p233
      $region26: #{bga_forward.5} parent=5 // pred_check_branch
        %236 = sbr.rel (%p234) target = $region28
      $region27: #{bga_forward.5} parent=5 // pred_region
        // Predicated region
        $region29: #{bga_forward.5} parent=27 // pred_check
          %p237 = pneg %p36
        $region30: #{bga_forward.5} parent=27 // pred_check_branch
          %239 = sbr.rel (%p237) target = $region32
        $region31: #{bga_forward.5} parent=27 // pred_region
          %p240 = scmp.lt.s32.totalorder %s16, 1
          %s241 = scalar_select %p240, %s16, 1
          %s242 = smul.addr %s241, 32
          %s243 = smul.addr %s242, 4
          %s244 = scalar_lea.vmem %s0, %s243
        $region32: #{bga_forward.5} parent=27 // pred_fallthru
          _
        // Predicated region
        $region33: #{bga_forward.5} parent=27 // pred_check
          %p245 = pneg %p62
        $region34: #{bga_forward.5} parent=27 // pred_check_branch
          %247 = sbr.rel (%p245) target = $region36
        $region35: #{bga_forward.5} parent=27 // pred_region
          %p248 = scmp.lt.s32.totalorder %s16, 1
          %s249 = scalar_select %p248, %s16, 1
          %s250 = smul.addr %s249, 4
          %s251 = smul.addr %s250, 4
          %s252 = scalar_lea.vmem %s1, %s251
        $region36: #{bga_forward.5} parent=27 // pred_fallthru
          _
        // Predicated region
        $region37: #{bga_forward.5} parent=27 // pred_check
          %p253 = pneg %p88
        $region38: #{bga_forward.5} parent=27 // pred_check_branch
          %255 = sbr.rel (%p253) target = $region40
        $region39: #{bga_forward.5} parent=27 // pred_region
          %p256 = scmp.lt.s32.totalorder %s16, 1
          %s257 = scalar_select %p256, %s16, 1
          %s258 = smul.addr %s257, 4
          %s259 = smul.addr %s258, 4
          %s260 = scalar_lea.vmem %s2, %s259
        $region40: #{bga_forward.5} parent=27 // pred_fallthru
          _
        // Predicated region
        $region41: #{bga_forward.5} parent=27 // pred_check
          %p261 = pneg %p114
        $region42: #{bga_forward.5} parent=27 // pred_check_branch
          %263 = sbr.rel (%p261) target = $region44
        $region43: #{bga_forward.5} parent=27 // pred_region
          %p264 = scmp.lt.s32.totalorder %s16, 1
          %s265 = scalar_select %p264, %s16, 1
          %s266 = smul.addr %s265, 4
          %s267 = smul.addr %s266, 4
          %s268 = scalar_lea.vmem %s3, %s267
        $region44: #{bga_forward.5} parent=27 // pred_fallthru
          _
      $region28: #{bga_forward.5} parent=5 // pred_fallthru
        _
      %p269 = scmp.le.s32.totalorder 1, %s16
      %p270 = scmp.lt.s32.totalorder %s16, 3
      %p271 = pnand %p269, %p270
      %p272 = pneg %p271
      // Predicated region
      $region45: #{bga_forward.5} parent=5 // pred_check
        _
      $region46: #{bga_forward.5} parent=5 // pred_check_branch
        %274 = sbr.rel (%p271) target = $region48
      $region47: #{bga_forward.5} parent=5 // pred_region
        %s275 = ssub.s32 %s16, 1
        %p276 = scmp.lt.s32.totalorder %s21, 1
        %s277 = scalar_select %p276, %s21, 1
        %s278 = smul.addr %s277, 32
        %s279 = smul.addr %s278, 4
        %s280 = scalar_lea.vmem %s0, %s279
        %p281 = pneg %p42
        %p282 = pneg %p39
        %p283 = scmp.lt.s32.totalorder %s21, 1
        %s284 = scalar_select %p283, %s21, 1
        %s285 = smul.addr %s284, 4
        %s286 = smul.addr %s285, 4
        %s287 = scalar_lea.vmem %s1, %s286
        %p288 = pneg %p68
        %p289 = pneg %p65
        %p290 = scmp.lt.s32.totalorder %s21, 1
        %s291 = scalar_select %p290, %s21, 1
        %s292 = smul.addr %s291, 4
        %s293 = smul.addr %s292, 4
        %s294 = scalar_lea.vmem %s2, %s293
        %p295 = pneg %p94
        %p296 = pneg %p91
        %p297 = scmp.lt.s32.totalorder %s21, 1
        %s298 = scalar_select %p297, %s21, 1
        %s299 = smul.addr %s298, 4
        %s300 = smul.addr %s299, 4
        %s301 = scalar_lea.vmem %s3, %s300
        %p302 = pneg %p120
        %p303 = pneg %p117
        %p304 = pneg %p141
        %p305 = pneg %p138
        %p306 = pneg %p162
        %p307 = pneg %p159
        %p308 = pneg %p183
        %p309 = pneg %p180
        %p310 = pneg %p209
        %p311 = pneg %p206
        %s312 = sand.u32 %s196, 1
        %s313 = scalar_lea.sflag [#allocation3], %s312
        %s314 = sand.u32 %s196, 1
        %s315 = smul.addr %s314, 256
        %s316 = scalar_lea.vmem [#allocation2], %s315
        %p317 = scmp.lt.s32.totalorder %s21, 1
        %s318 = scalar_select %p317, %s21, 1
        %s319 = smul.addr %s318, 32
        %s320 = smul.addr %s319, 4
        %s321 = scalar_lea.vmem %s0, %s320
        %p322 = scmp.lt.s32.totalorder %s21, 1
        %s323 = scalar_select %p322, %s21, 1
        %s324 = smul.addr %s323, 4
        %s325 = smul.addr %s324, 4
        %s326 = scalar_lea.vmem %s1, %s325
        %p327 = scmp.lt.s32.totalorder %s21, 1
        %s328 = scalar_select %p327, %s21, 1
        %s329 = smul.addr %s328, 4
        %s330 = smul.addr %s329, 4
        %s331 = scalar_lea.vmem %s2, %s330
        %p332 = scmp.lt.s32.totalorder %s21, 1
        %s333 = scalar_select %p332, %s21, 1
        %s334 = smul.addr %s333, 4
        %s335 = smul.addr %s334, 4
        %s336 = scalar_lea.vmem %s3, %s335
        %v338 = vld [vmem:[%s326] sm:$0xf]
        %v339 = vld [vmem:[%s326 + $0x4] sm:$0xf]
        %v340 = vld [vmem:[%s326 + $0x8] sm:$0xf]
        %v341 = vld [vmem:[%s326 + $0xc] sm:$0xf]
        %v342 = vsub.f32 0.0, %v338
        %v343 = vsub.f32 0.0, %v339
        %v344 = vsub.f32 0.0, %v340
        %v345 = vsub.f32 0.0, %v341
        %v346 = vmul.f32 %v342, 1.442695
        %v347 = vpow.pop %v346
        %v348 = vmul.f32 %v343, 1.442695
        %v349 = vpow.pop %v348
        %v350 = vmul.f32 %v344, 1.442695
        %v351 = vpow.pop %v350
        %v352 = vmul.f32 %v345, 1.442695
        %v353 = vpow.pop %v352
        %v354 = vadd.f32 %v347, 1.0
        %v355 = vadd.f32 %v349, 1.0
        %v356 = vadd.f32 %v351, 1.0
        %v357 = vadd.f32 %v353, 1.0
        %v358 = vrcp.pop %v354
        %v359 = vmul.f32 1.0, %v358
        %v360 = vrcp.pop %v355
        %v361 = vmul.f32 1.0, %v360
        %v362 = vrcp.pop %v356
        %v363 = vmul.f32 1.0, %v362
        %v364 = vrcp.pop %v357
        %v365 = vmul.f32 1.0, %v364
        %v366 = vld [vmem:[%s331] sm:$0xf]
        %v367 = vld [vmem:[%s331 + $0x4] sm:$0xf]
        %v368 = vld [vmem:[%s331 + $0x8] sm:$0xf]
        %v369 = vld [vmem:[%s331 + $0xc] sm:$0xf]
        %v370 = vld [vmem:[%s336] sm:$0xf]
        %v371 = vld [vmem:[%s336 + $0x4] sm:$0xf]
        %v372 = vld [vmem:[%s336 + $0x8] sm:$0xf]
        %v373 = vld [vmem:[%s336 + $0xc] sm:$0xf]
        %v374 = vsub.f32 0.0, %v370
        %v375 = vsub.f32 0.0, %v371
        %v376 = vsub.f32 0.0, %v372
        %v377 = vsub.f32 0.0, %v373
        %v378 = vmul.f32 %v374, 1.442695
        %v379 = vpow.pop %v378
        %v380 = vmul.f32 %v375, 1.442695
        %v381 = vpow.pop %v380
        %v382 = vmul.f32 %v376, 1.442695
        %v383 = vpow.pop %v382
        %v384 = vmul.f32 %v377, 1.442695
        %v385 = vpow.pop %v384
        %v386 = vadd.f32 %v379, 1.0
        %v387 = vadd.f32 %v381, 1.0
        %v388 = vadd.f32 %v383, 1.0
        %v389 = vadd.f32 %v385, 1.0
        %v390 = vrcp.pop %v386
        %v391 = vmul.f32 1.0, %v390
        %v392 = vrcp.pop %v387
        %v393 = vmul.f32 1.0, %v392
        %v394 = vrcp.pop %v388
        %v395 = vmul.f32 1.0, %v394
        %v396 = vrcp.pop %v389
        %v397 = vmul.f32 1.0, %v396
        %v398 = vmul.f32 %v366, %v391
        %v399 = vmul.f32 %v367, %v393
        %v400 = vmul.f32 %v368, %v395
        %v401 = vmul.f32 %v369, %v397
        %v402 = vld [vmem:[%s321] sm:$0xf]
        %v403 = vld [vmem:[%s321 + $0x4] sm:$0xf]
        %v404 = vld [vmem:[%s321 + $0x8] sm:$0xf]
        %v405 = vld [vmem:[%s321 + $0xc] sm:$0xf]
        %v406 = vld [vmem:[%s321 + $0x10] sm:$0xf]
        %v407 = vld [vmem:[%s321 + $0x14] sm:$0xf]
        %v408 = vld [vmem:[%s321 + $0x18] sm:$0xf]
        %v409 = vld [vmem:[%s321 + $0x1c] sm:$0xf]
        %v410 = vld [vmem:[%s321 + $0x20] sm:$0xf]
        %v411 = vld [vmem:[%s321 + $0x24] sm:$0xf]
        %v412 = vld [vmem:[%s321 + $0x28] sm:$0xf]
        %v413 = vld [vmem:[%s321 + $0x2c] sm:$0xf]
        %v414 = vld [vmem:[%s321 + $0x30] sm:$0xf]
        %v415 = vld [vmem:[%s321 + $0x34] sm:$0xf]
        %v416 = vld [vmem:[%s321 + $0x38] sm:$0xf]
        %v417 = vld [vmem:[%s321 + $0x3c] sm:$0xf]
        %v418 = vld [vmem:[%s321 + $0x40] sm:$0xf]
        %v419 = vld [vmem:[%s321 + $0x44] sm:$0xf]
        %v420 = vld [vmem:[%s321 + $0x48] sm:$0xf]
        %v421 = vld [vmem:[%s321 + $0x4c] sm:$0xf]
        %v422 = vld [vmem:[%s321 + $0x50] sm:$0xf]
        %v423 = vld [vmem:[%s321 + $0x54] sm:$0xf]
        %v424 = vld [vmem:[%s321 + $0x58] sm:$0xf]
        %v425 = vld [vmem:[%s321 + $0x5c] sm:$0xf]
        %v426 = vld [vmem:[%s321 + $0x60] sm:$0xf]
        %v427 = vld [vmem:[%s321 + $0x64] sm:$0xf]
        %v428 = vld [vmem:[%s321 + $0x68] sm:$0xf]
        %v429 = vld [vmem:[%s321 + $0x6c] sm:$0xf]
        %v430 = vld [vmem:[%s321 + $0x70] sm:$0xf]
        %v431 = vld [vmem:[%s321 + $0x74] sm:$0xf]
        %v432 = vld [vmem:[%s321 + $0x78] sm:$0xf]
        %v433 = vld [vmem:[%s321 + $0x7c] sm:$0xf]
        %v434 = vunpack.c.l.bf16 %v402
        %v435 = vunpack.c.l.bf16 %v403
        %v436 = vunpack.c.l.bf16 %v404
        %v437 = vunpack.c.l.bf16 %v405
        %v438 = vunpack.c.l.bf16 %v406
        %v439 = vunpack.c.l.bf16 %v407
        %v440 = vunpack.c.l.bf16 %v408
        %v441 = vunpack.c.l.bf16 %v409
        %v442 = vunpack.c.l.bf16 %v410
        %v443 = vunpack.c.l.bf16 %v411
        %v444 = vunpack.c.l.bf16 %v412
        %v445 = vunpack.c.l.bf16 %v413
        %v446 = vunpack.c.l.bf16 %v414
        %v447 = vunpack.c.l.bf16 %v415
        %v448 = vunpack.c.l.bf16 %v416
        %v449 = vunpack.c.l.bf16 %v417
        %v450 = vunpack.c.l.bf16 %v418
        %v451 = vunpack.c.l.bf16 %v419
        %v452 = vunpack.c.l.bf16 %v420
        %v453 = vunpack.c.l.bf16 %v421
        %v454 = vunpack.c.l.bf16 %v422
        %v455 = vunpack.c.l.bf16 %v423
        %v456 = vunpack.c.l.bf16 %v424
        %v457 = vunpack.c.l.bf16 %v425
        %v458 = vunpack.c.l.bf16 %v426
        %v459 = vunpack.c.l.bf16 %v427
        %v460 = vunpack.c.l.bf16 %v428
        %v461 = vunpack.c.l.bf16 %v429
        %v462 = vunpack.c.l.bf16 %v430
        %v463 = vunpack.c.l.bf16 %v431
        %v464 = vunpack.c.l.bf16 %v432
        %v465 = vunpack.c.l.bf16 %v433
        %v471 = vunpack.c.l.s4 1966171168
        %v472 = vunpack.c.0.s8 %v471
        %v473 = vlaneseq
        %v474 = vshrl.u32 %v473, 7
        %v475 = vsub.s32 %v472, %v474
        %v476 = vrot.slane %v359, %v475
        %v477 = vcombine.high %v476, %v476
        %v479 = vunpack.c.l.s4 1966171168
        %v480 = vunpack.c.0.s8 %v479
        %v481 = vlaneseq
        %v482 = vshrl.u32 %v481, 7
        %v483 = vsub.s32 %v480, %v482
        %v484 = vrot.slane %v476, %v483
        %v486 = vunpack.c.l.s4 1966171168
        %v487 = vunpack.c.0.s8 %v486
        %v488 = vlaneseq
        %v489 = vshrl.u32 %v488, 7
        %v490 = vsub.s32 %v487, %v489
        %v491 = vrot.slane %v477, %v490
        %v492 = vcombine.high %v484, %v484
        %v493 = vcombine.high %v491, %v491
        %v495 = vunpack.c.l.s4 1966171168
        %v496 = vunpack.c.0.s8 %v495
        %v497 = vlaneseq
        %v498 = vshrl.u32 %v497, 7
        %v499 = vsub.s32 %v496, %v498
        %v500 = vrot.slane %v361, %v499
        %v501 = vcombine.high %v500, %v500
        %v503 = vunpack.c.l.s4 1966171168
        %v504 = vunpack.c.0.s8 %v503
        %v505 = vlaneseq
        %v506 = vshrl.u32 %v505, 7
        %v507 = vsub.s32 %v504, %v506
        %v508 = vrot.slane %v500, %v507
        %v510 = vunpack.c.l.s4 1966171168
        %v511 = vunpack.c.0.s8 %v510
        %v512 = vlaneseq
        %v513 = vshrl.u32 %v512, 7
        %v514 = vsub.s32 %v511, %v513
        %v515 = vrot.slane %v501, %v514
        %v516 = vcombine.high %v508, %v508
        %v517 = vcombine.high %v515, %v515
        %v519 = vunpack.c.l.s4 1966171168
        %v520 = vunpack.c.0.s8 %v519
        %v521 = vlaneseq
        %v522 = vshrl.u32 %v521, 7
        %v523 = vsub.s32 %v520, %v522
        %v524 = vrot.slane %v363, %v523
        %v525 = vcombine.high %v524, %v524
        %v527 = vunpack.c.l.s4 1966171168
        %v528 = vunpack.c.0.s8 %v527
        %v529 = vlaneseq
        %v530 = vshrl.u32 %v529, 7
        %v531 = vsub.s32 %v528, %v530
        %v532 = vrot.slane %v524, %v531
        %v534 = vunpack.c.l.s4 1966171168
        %v535 = vunpack.c.0.s8 %v534
        %v536 = vlaneseq
        %v537 = vshrl.u32 %v536, 7
        %v538 = vsub.s32 %v535, %v537
        %v539 = vrot.slane %v525, %v538
        %v540 = vcombine.high %v532, %v532
        %v541 = vcombine.high %v539, %v539
        %v543 = vunpack.c.l.s4 1966171168
        %v544 = vunpack.c.0.s8 %v543
        %v545 = vlaneseq
        %v546 = vshrl.u32 %v545, 7
        %v547 = vsub.s32 %v544, %v546
        %v548 = vrot.slane %v365, %v547
        %v549 = vcombine.high %v548, %v548
        %v551 = vunpack.c.l.s4 1966171168
        %v552 = vunpack.c.0.s8 %v551
        %v553 = vlaneseq
        %v554 = vshrl.u32 %v553, 7
        %v555 = vsub.s32 %v552, %v554
        %v556 = vrot.slane %v548, %v555
        %v558 = vunpack.c.l.s4 1966171168
        %v559 = vunpack.c.0.s8 %v558
        %v560 = vlaneseq
        %v561 = vshrl.u32 %v560, 7
        %v562 = vsub.s32 %v559, %v561
        %v563 = vrot.slane %v549, %v562
        %v564 = vcombine.high %v556, %v556
        %v565 = vcombine.high %v563, %v563
        %v566 = vlaneseq
        %v567 = vshrl.u32 %v566, 7
        %v568 = vsub.s32 0, %v567
        %v569 = vrot.slane %v484, %v568
        %v570 = vlaneseq
        %v571 = vshrl.u32 %v570, 7
        %v572 = vsub.s32 0, %v571
        %v573 = vrot.slane %v491, %v572
        %v574 = vlaneseq
        %v575 = vshrl.u32 %v574, 7
        %v576 = vsub.s32 0, %v575
        %v577 = vrot.slane %v492, %v576
        %v578 = vlaneseq
        %v579 = vshrl.u32 %v578, 7
        %v580 = vsub.s32 0, %v579
        %v581 = vrot.slane %v493, %v580
        %v582 = vlaneseq
        %v583 = vshrl.u32 %v582, 7
        %v584 = vsub.s32 0, %v583
        %v585 = vrot.slane %v508, %v584
        %v586 = vlaneseq
        %v587 = vshrl.u32 %v586, 7
        %v588 = vsub.s32 0, %v587
        %v589 = vrot.slane %v515, %v588
        %v590 = vlaneseq
        %v591 = vshrl.u32 %v590, 7
        %v592 = vsub.s32 0, %v591
        %v593 = vrot.slane %v516, %v592
        %v594 = vlaneseq
        %v595 = vshrl.u32 %v594, 7
        %v596 = vsub.s32 0, %v595
        %v597 = vrot.slane %v517, %v596
        %v598 = vlaneseq
        %v599 = vshrl.u32 %v598, 7
        %v600 = vsub.s32 0, %v599
        %v601 = vrot.slane %v532, %v600
        %v602 = vlaneseq
        %v603 = vshrl.u32 %v602, 7
        %v604 = vsub.s32 0, %v603
        %v605 = vrot.slane %v539, %v604
        %v606 = vlaneseq
        %v607 = vshrl.u32 %v606, 7
        %v608 = vsub.s32 0, %v607
        %v609 = vrot.slane %v540, %v608
        %v610 = vlaneseq
        %v611 = vshrl.u32 %v610, 7
        %v612 = vsub.s32 0, %v611
        %v613 = vrot.slane %v541, %v612
        %v614 = vlaneseq
        %v615 = vshrl.u32 %v614, 7
        %v616 = vsub.s32 0, %v615
        %v617 = vrot.slane %v556, %v616
        %v618 = vlaneseq
        %v619 = vshrl.u32 %v618, 7
        %v620 = vsub.s32 0, %v619
        %v621 = vrot.slane %v563, %v620
        %v622 = vlaneseq
        %v623 = vshrl.u32 %v622, 7
        %v624 = vsub.s32 0, %v623
        %v625 = vrot.slane %v564, %v624
        %v626 = vlaneseq
        %v627 = vshrl.u32 %v626, 7
        %v628 = vsub.s32 0, %v627
        %v629 = vrot.slane %v565, %v628
        %v630 = vcombine.low %v569, %v573
        %v631 = vcombine.low %v577, %v581
        %v632 = vcombine.low %v585, %v589
        %v633 = vcombine.low %v593, %v597
        %v634 = vcombine.low %v601, %v605
        %v635 = vcombine.low %v609, %v613
        %v636 = vcombine.low %v617, %v621
        %v637 = vcombine.low %v625, %v629
        %v646 = vmul.f32 %v434, %v630
        %v647 = vmul.f32 %v435, %v631
        %v648 = vmul.f32 %v436, %v630
        %v649 = vmul.f32 %v437, %v631
        %v650 = vmul.f32 %v438, %v630
        %v651 = vmul.f32 %v439, %v631
        %v652 = vmul.f32 %v440, %v630
        %v653 = vmul.f32 %v441, %v631
        %v654 = vmul.f32 %v442, %v632
        %v655 = vmul.f32 %v443, %v633
        %v656 = vmul.f32 %v444, %v632
        %v657 = vmul.f32 %v445, %v633
        %v658 = vmul.f32 %v446, %v632
        %v659 = vmul.f32 %v447, %v633
        %v660 = vmul.f32 %v448, %v632
        %v661 = vmul.f32 %v449, %v633
        %v662 = vmul.f32 %v450, %v634
        %v663 = vmul.f32 %v451, %v635
        %v664 = vmul.f32 %v452, %v634
        %v665 = vmul.f32 %v453, %v635
        %v666 = vmul.f32 %v454, %v634
        %v667 = vmul.f32 %v455, %v635
        %v668 = vmul.f32 %v456, %v634
        %v669 = vmul.f32 %v457, %v635
        %v670 = vmul.f32 %v458, %v636
        %v671 = vmul.f32 %v459, %v637
        %v672 = vmul.f32 %v460, %v636
        %v673 = vmul.f32 %v461, %v637
        %v674 = vmul.f32 %v462, %v636
        %v675 = vmul.f32 %v463, %v637
        %v676 = vmul.f32 %v464, %v636
        %v677 = vmul.f32 %v465, %v637
        %v683 = vunpack.c.l.s4 1966171168
        %v684 = vunpack.c.0.s8 %v683
        %v685 = vlaneseq
        %v686 = vshrl.u32 %v685, 7
        %v687 = vsub.s32 %v684, %v686
        %v688 = vrot.slane %v398, %v687
        %v689 = vcombine.high %v688, %v688
        %v691 = vunpack.c.l.s4 1966171168
        %v692 = vunpack.c.0.s8 %v691
        %v693 = vlaneseq
        %v694 = vshrl.u32 %v693, 7
        %v695 = vsub.s32 %v692, %v694
        %v696 = vrot.slane %v688, %v695
        %v698 = vunpack.c.l.s4 1966171168
        %v699 = vunpack.c.0.s8 %v698
        %v700 = vlaneseq
        %v701 = vshrl.u32 %v700, 7
        %v702 = vsub.s32 %v699, %v701
        %v703 = vrot.slane %v689, %v702
        %v704 = vcombine.high %v696, %v696
        %v705 = vcombine.high %v703, %v703
        %v707 = vunpack.c.l.s4 1966171168
        %v708 = vunpack.c.0.s8 %v707
        %v709 = vlaneseq
        %v710 = vshrl.u32 %v709, 7
        %v711 = vsub.s32 %v708, %v710
        %v712 = vrot.slane %v399, %v711
        %v713 = vcombine.high %v712, %v712
        %v715 = vunpack.c.l.s4 1966171168
        %v716 = vunpack.c.0.s8 %v715
        %v717 = vlaneseq
        %v718 = vshrl.u32 %v717, 7
        %v719 = vsub.s32 %v716, %v718
        %v720 = vrot.slane %v712, %v719
        %v722 = vunpack.c.l.s4 1966171168
        %v723 = vunpack.c.0.s8 %v722
        %v724 = vlaneseq
        %v725 = vshrl.u32 %v724, 7
        %v726 = vsub.s32 %v723, %v725
        %v727 = vrot.slane %v713, %v726
        %v728 = vcombine.high %v720, %v720
        %v729 = vcombine.high %v727, %v727
        %v731 = vunpack.c.l.s4 1966171168
        %v732 = vunpack.c.0.s8 %v731
        %v733 = vlaneseq
        %v734 = vshrl.u32 %v733, 7
        %v735 = vsub.s32 %v732, %v734
        %v736 = vrot.slane %v400, %v735
        %v737 = vcombine.high %v736, %v736
        %v739 = vunpack.c.l.s4 1966171168
        %v740 = vunpack.c.0.s8 %v739
        %v741 = vlaneseq
        %v742 = vshrl.u32 %v741, 7
        %v743 = vsub.s32 %v740, %v742
        %v744 = vrot.slane %v736, %v743
        %v746 = vunpack.c.l.s4 1966171168
        %v747 = vunpack.c.0.s8 %v746
        %v748 = vlaneseq
        %v749 = vshrl.u32 %v748, 7
        %v750 = vsub.s32 %v747, %v749
        %v751 = vrot.slane %v737, %v750
        %v752 = vcombine.high %v744, %v744
        %v753 = vcombine.high %v751, %v751
        %v755 = vunpack.c.l.s4 1966171168
        %v756 = vunpack.c.0.s8 %v755
        %v757 = vlaneseq
        %v758 = vshrl.u32 %v757, 7
        %v759 = vsub.s32 %v756, %v758
        %v760 = vrot.slane %v401, %v759
        %v761 = vcombine.high %v760, %v760
        %v763 = vunpack.c.l.s4 1966171168
        %v764 = vunpack.c.0.s8 %v763
        %v765 = vlaneseq
        %v766 = vshrl.u32 %v765, 7
        %v767 = vsub.s32 %v764, %v766
        %v768 = vrot.slane %v760, %v767
        %v770 = vunpack.c.l.s4 1966171168
        %v771 = vunpack.c.0.s8 %v770
        %v772 = vlaneseq
        %v773 = vshrl.u32 %v772, 7
        %v774 = vsub.s32 %v771, %v773
        %v775 = vrot.slane %v761, %v774
        %v776 = vcombine.high %v768, %v768
        %v777 = vcombine.high %v775, %v775
        %v778 = vlaneseq
        %v779 = vshrl.u32 %v778, 7
        %v780 = vsub.s32 0, %v779
        %v781 = vrot.slane %v696, %v780
        %v782 = vlaneseq
        %v783 = vshrl.u32 %v782, 7
        %v784 = vsub.s32 0, %v783
        %v785 = vrot.slane %v703, %v784
        %v786 = vlaneseq
        %v787 = vshrl.u32 %v786, 7
        %v788 = vsub.s32 0, %v787
        %v789 = vrot.slane %v704, %v788
        %v790 = vlaneseq
        %v791 = vshrl.u32 %v790, 7
        %v792 = vsub.s32 0, %v791
        %v793 = vrot.slane %v705, %v792
        %v794 = vlaneseq
        %v795 = vshrl.u32 %v794, 7
        %v796 = vsub.s32 0, %v795
        %v797 = vrot.slane %v720, %v796
        %v798 = vlaneseq
        %v799 = vshrl.u32 %v798, 7
        %v800 = vsub.s32 0, %v799
        %v801 = vrot.slane %v727, %v800
        %v802 = vlaneseq
        %v803 = vshrl.u32 %v802, 7
        %v804 = vsub.s32 0, %v803
        %v805 = vrot.slane %v728, %v804
        %v806 = vlaneseq
        %v807 = vshrl.u32 %v806, 7
        %v808 = vsub.s32 0, %v807
        %v809 = vrot.slane %v729, %v808
        %v810 = vlaneseq
        %v811 = vshrl.u32 %v810, 7
        %v812 = vsub.s32 0, %v811
        %v813 = vrot.slane %v744, %v812
        %v814 = vlaneseq
        %v815 = vshrl.u32 %v814, 7
        %v816 = vsub.s32 0, %v815
        %v817 = vrot.slane %v751, %v816
        %v818 = vlaneseq
        %v819 = vshrl.u32 %v818, 7
        %v820 = vsub.s32 0, %v819
        %v821 = vrot.slane %v752, %v820
        %v822 = vlaneseq
        %v823 = vshrl.u32 %v822, 7
        %v824 = vsub.s32 0, %v823
        %v825 = vrot.slane %v753, %v824
        %v826 = vlaneseq
        %v827 = vshrl.u32 %v826, 7
        %v828 = vsub.s32 0, %v827
        %v829 = vrot.slane %v768, %v828
        %v830 = vlaneseq
        %v831 = vshrl.u32 %v830, 7
        %v832 = vsub.s32 0, %v831
        %v833 = vrot.slane %v775, %v832
        %v834 = vlaneseq
        %v835 = vshrl.u32 %v834, 7
        %v836 = vsub.s32 0, %v835
        %v837 = vrot.slane %v776, %v836
        %v838 = vlaneseq
        %v839 = vshrl.u32 %v838, 7
        %v840 = vsub.s32 0, %v839
        %v841 = vrot.slane %v777, %v840
        %v842 = vcombine.low %v781, %v785
        %v843 = vcombine.low %v789, %v793
        %v844 = vcombine.low %v797, %v801
        %v845 = vcombine.low %v805, %v809
        %v846 = vcombine.low %v813, %v817
        %v847 = vcombine.low %v821, %v825
        %v848 = vcombine.low %v829, %v833
        %v849 = vcombine.low %v837, %v841
        %v858 = vadd.f32 %v646, %v842
        %v859 = vadd.f32 %v647, %v843
        %v860 = vadd.f32 %v648, %v842
        %v861 = vadd.f32 %v649, %v843
        %v862 = vadd.f32 %v650, %v842
        %v863 = vadd.f32 %v651, %v843
        %v864 = vadd.f32 %v652, %v842
        %v865 = vadd.f32 %v653, %v843
        %v866 = vadd.f32 %v654, %v844
        %v867 = vadd.f32 %v655, %v845
        %v868 = vadd.f32 %v656, %v844
        %v869 = vadd.f32 %v657, %v845
        %v870 = vadd.f32 %v658, %v844
        %v871 = vadd.f32 %v659, %v845
        %v872 = vadd.f32 %v660, %v844
        %v873 = vadd.f32 %v661, %v845
        %v874 = vadd.f32 %v662, %v846
        %v875 = vadd.f32 %v663, %v847
        %v876 = vadd.f32 %v664, %v846
        %v877 = vadd.f32 %v665, %v847
        %v878 = vadd.f32 %v666, %v846
        %v879 = vadd.f32 %v667, %v847
        %v880 = vadd.f32 %v668, %v846
        %v881 = vadd.f32 %v669, %v847
        %v882 = vadd.f32 %v670, %v848
        %v883 = vadd.f32 %v671, %v849
        %v884 = vadd.f32 %v672, %v848
        %v885 = vadd.f32 %v673, %v849
        %v886 = vadd.f32 %v674, %v848
        %v887 = vadd.f32 %v675, %v849
        %v888 = vadd.f32 %v676, %v848
        %v889 = vadd.f32 %v677, %v849
        %vm922 = vcmask 1040384
        %v923 = vrot.slane %v858, 7
        %v924 = vrot.slane %v859, 7
        %v925 = vsel %vm922, %v923, %v924
        %v926 = vrot.slane %v860, 7
        %v927 = vrot.slane %v861, 7
        %v928 = vsel %vm922, %v926, %v927
        %v929 = vrot.slane %v862, 7
        %v930 = vrot.slane %v863, 7
        %v931 = vsel %vm922, %v929, %v930
        %v932 = vrot.slane %v864, 7
        %v933 = vrot.slane %v865, 7
        %v934 = vsel %vm922, %v932, %v933
        %v935 = vrot.slane %v866, 7
        %v936 = vrot.slane %v867, 7
        %v937 = vsel %vm922, %v935, %v936
        %v938 = vrot.slane %v868, 7
        %v939 = vrot.slane %v869, 7
        %v940 = vsel %vm922, %v938, %v939
        %v941 = vrot.slane %v870, 7
        %v942 = vrot.slane %v871, 7
        %v943 = vsel %vm922, %v941, %v942
        %v944 = vrot.slane %v872, 7
        %v945 = vrot.slane %v873, 7
        %v946 = vsel %vm922, %v944, %v945
        %v947 = vrot.slane %v874, 7
        %v948 = vrot.slane %v875, 7
        %v949 = vsel %vm922, %v947, %v948
        %v950 = vrot.slane %v876, 7
        %v951 = vrot.slane %v877, 7
        %v952 = vsel %vm922, %v950, %v951
        %v953 = vrot.slane %v878, 7
        %v954 = vrot.slane %v879, 7
        %v955 = vsel %vm922, %v953, %v954
        %v956 = vrot.slane %v880, 7
        %v957 = vrot.slane %v881, 7
        %v958 = vsel %vm922, %v956, %v957
        %v959 = vrot.slane %v882, 7
        %v960 = vrot.slane %v883, 7
        %v961 = vsel %vm922, %v959, %v960
        %v962 = vrot.slane %v884, 7
        %v963 = vrot.slane %v885, 7
        %v964 = vsel %vm922, %v962, %v963
        %v965 = vrot.slane %v886, 7
        %v966 = vrot.slane %v887, 7
        %v967 = vsel %vm922, %v965, %v966
        %v968 = vrot.slane %v888, 7
        %v969 = vrot.slane %v889, 7
        %v970 = vsel %vm922, %v968, %v969
        %v1019 = vsel %vm922, 0.0, %v923
        %v1020 = vsel %vm922, 0.0, %v926
        %v1021 = vsel %vm922, 0.0, %v929
        %v1022 = vsel %vm922, 0.0, %v932
        %v1023 = vsel %vm922, 0.0, %v935
        %v1024 = vsel %vm922, 0.0, %v938
        %v1025 = vsel %vm922, 0.0, %v941
        %v1026 = vsel %vm922, 0.0, %v944
        %v1027 = vsel %vm922, 0.0, %v947
        %v1028 = vsel %vm922, 0.0, %v950
        %v1029 = vsel %vm922, 0.0, %v953
        %v1030 = vsel %vm922, 0.0, %v956
        %v1031 = vsel %vm922, 0.0, %v959
        %v1032 = vsel %vm922, 0.0, %v962
        %v1033 = vsel %vm922, 0.0, %v965
        %v1034 = vsel %vm922, 0.0, %v968
        %v1035 = vsel %vm922, %v924, 0.0
        %v1036 = vsel %vm922, %v927, 0.0
        %v1037 = vsel %vm922, %v930, 0.0
        %v1038 = vsel %vm922, %v933, 0.0
        %v1039 = vsel %vm922, %v936, 0.0
        %v1040 = vsel %vm922, %v939, 0.0
        %v1041 = vsel %vm922, %v942, 0.0
        %v1042 = vsel %vm922, %v945, 0.0
        %v1043 = vsel %vm922, %v948, 0.0
        %v1044 = vsel %vm922, %v951, 0.0
        %v1045 = vsel %vm922, %v954, 0.0
        %v1046 = vsel %vm922, %v957, 0.0
        %v1047 = vsel %vm922, %v960, 0.0
        %v1048 = vsel %vm922, %v963, 0.0
        %v1049 = vsel %vm922, %v966, 0.0
        %v1050 = vsel %vm922, %v969, 0.0
        %vm1082 = vcmask 1046528
        %v1083 = vrot.slane 0.0, 1
        %v1084 = vsel %vm1082, %v1083, %v1083
        %v1085 = vrot.slane %v1019, 1
        %v1086 = vrot.slane %v925, 1
        %v1087 = vsel %vm1082, %v1085, %v1086
        %v1088 = vrot.slane %v1035, 1
        %v1089 = vsel %vm1082, %v1086, %v1088
        %v1090 = vrot.slane %v1020, 1
        %v1091 = vrot.slane %v928, 1
        %v1092 = vsel %vm1082, %v1090, %v1091
        %v1093 = vrot.slane %v1036, 1
        %v1094 = vsel %vm1082, %v1091, %v1093
        %v1095 = vrot.slane %v1021, 1
        %v1096 = vrot.slane %v931, 1
        %v1097 = vsel %vm1082, %v1095, %v1096
        %v1098 = vrot.slane %v1037, 1
        %v1099 = vsel %vm1082, %v1096, %v1098
        %v1100 = vrot.slane %v1022, 1
        %v1101 = vrot.slane %v934, 1
        %v1102 = vsel %vm1082, %v1100, %v1101
        %v1103 = vrot.slane %v1038, 1
        %v1104 = vsel %vm1082, %v1101, %v1103
        %v1105 = vrot.slane %v1023, 1
        %v1106 = vrot.slane %v937, 1
        %v1107 = vsel %vm1082, %v1105, %v1106
        %v1108 = vrot.slane %v1039, 1
        %v1109 = vsel %vm1082, %v1106, %v1108
        %v1110 = vrot.slane %v1024, 1
        %v1111 = vrot.slane %v940, 1
        %v1112 = vsel %vm1082, %v1110, %v1111
        %v1113 = vrot.slane %v1040, 1
        %v1114 = vsel %vm1082, %v1111, %v1113
        %v1115 = vrot.slane %v1025, 1
        %v1116 = vrot.slane %v943, 1
        %v1117 = vsel %vm1082, %v1115, %v1116
        %v1118 = vrot.slane %v1041, 1
        %v1119 = vsel %vm1082, %v1116, %v1118
        %v1120 = vrot.slane %v1026, 1
        %v1121 = vrot.slane %v946, 1
        %v1122 = vsel %vm1082, %v1120, %v1121
        %v1123 = vrot.slane %v1042, 1
        %v1124 = vsel %vm1082, %v1121, %v1123
        %v1125 = vrot.slane %v1027, 1
        %v1126 = vrot.slane %v949, 1
        %v1127 = vsel %vm1082, %v1125, %v1126
        %v1128 = vrot.slane %v1043, 1
        %v1129 = vsel %vm1082, %v1126, %v1128
        %v1130 = vrot.slane %v1028, 1
        %v1131 = vrot.slane %v952, 1
        %v1132 = vsel %vm1082, %v1130, %v1131
        %v1133 = vrot.slane %v1044, 1
        %v1134 = vsel %vm1082, %v1131, %v1133
        %v1135 = vrot.slane %v1029, 1
        %v1136 = vrot.slane %v955, 1
        %v1137 = vsel %vm1082, %v1135, %v1136
        %v1138 = vrot.slane %v1045, 1
        %v1139 = vsel %vm1082, %v1136, %v1138
        %v1140 = vrot.slane %v1030, 1
        %v1141 = vrot.slane %v958, 1
        %v1142 = vsel %vm1082, %v1140, %v1141
        %v1143 = vrot.slane %v1046, 1
        %v1144 = vsel %vm1082, %v1141, %v1143
        %v1145 = vrot.slane %v1031, 1
        %v1146 = vrot.slane %v961, 1
        %v1147 = vsel %vm1082, %v1145, %v1146
        %v1148 = vrot.slane %v1047, 1
        %v1149 = vsel %vm1082, %v1146, %v1148
        %v1150 = vrot.slane %v1032, 1
        %v1151 = vrot.slane %v964, 1
        %v1152 = vsel %vm1082, %v1150, %v1151
        %v1153 = vrot.slane %v1048, 1
        %v1154 = vsel %vm1082, %v1151, %v1153
        %v1155 = vrot.slane %v1033, 1
        %v1156 = vrot.slane %v967, 1
        %v1157 = vsel %vm1082, %v1155, %v1156
        %v1158 = vrot.slane %v1049, 1
        %v1159 = vsel %vm1082, %v1156, %v1158
        %vm1191 = vcmask 1045504
        %v1192 = vrot.slane 0.0, 2
        %v1193 = vsel %vm1191, %v1192, %v1192
        %v1194 = vrot.slane %v1019, 2
        %v1195 = vrot.slane %v925, 2
        %v1196 = vsel %vm1191, %v1194, %v1195
        %v1197 = vrot.slane %v1035, 2
        %v1198 = vsel %vm1191, %v1195, %v1197
        %v1199 = vrot.slane %v1020, 2
        %v1200 = vrot.slane %v928, 2
        %v1201 = vsel %vm1191, %v1199, %v1200
        %v1202 = vrot.slane %v1036, 2
        %v1203 = vsel %vm1191, %v1200, %v1202
        %v1204 = vrot.slane %v1021, 2
        %v1205 = vrot.slane %v931, 2
        %v1206 = vsel %vm1191, %v1204, %v1205
        %v1207 = vrot.slane %v1037, 2
        %v1208 = vsel %vm1191, %v1205, %v1207
        %v1209 = vrot.slane %v1022, 2
        %v1210 = vrot.slane %v934, 2
        %v1211 = vsel %vm1191, %v1209, %v1210
        %v1212 = vrot.slane %v1038, 2
        %v1213 = vsel %vm1191, %v1210, %v1212
        %v1214 = vrot.slane %v1023, 2
        %v1215 = vrot.slane %v937, 2
        %v1216 = vsel %vm1191, %v1214, %v1215
        %v1217 = vrot.slane %v1039, 2
        %v1218 = vsel %vm1191, %v1215, %v1217
        %v1219 = vrot.slane %v1024, 2
        %v1220 = vrot.slane %v940, 2
        %v1221 = vsel %vm1191, %v1219, %v1220
        %v1222 = vrot.slane %v1040, 2
        %v1223 = vsel %vm1191, %v1220, %v1222
        %v1224 = vrot.slane %v1025, 2
        %v1225 = vrot.slane %v943, 2
        %v1226 = vsel %vm1191, %v1224, %v1225
        %v1227 = vrot.slane %v1041, 2
        %v1228 = vsel %vm1191, %v1225, %v1227
        %v1229 = vrot.slane %v1026, 2
        %v1230 = vrot.slane %v946, 2
        %v1231 = vsel %vm1191, %v1229, %v1230
        %v1232 = vrot.slane %v1042, 2
        %v1233 = vsel %vm1191, %v1230, %v1232
        %v1234 = vrot.slane %v1027, 2
        %v1235 = vrot.slane %v949, 2
        %v1236 = vsel %vm1191, %v1234, %v1235
        %v1237 = vrot.slane %v1043, 2
        %v1238 = vsel %vm1191, %v1235, %v1237
        %v1239 = vrot.slane %v1028, 2
        %v1240 = vrot.slane %v952, 2
        %v1241 = vsel %vm1191, %v1239, %v1240
        %v1242 = vrot.slane %v1044, 2
        %v1243 = vsel %vm1191, %v1240, %v1242
        %v1244 = vrot.slane %v1029, 2
        %v1245 = vrot.slane %v955, 2
        %v1246 = vsel %vm1191, %v1244, %v1245
        %v1247 = vrot.slane %v1045, 2
        %v1248 = vsel %vm1191, %v1245, %v1247
        %v1249 = vrot.slane %v1030, 2
        %v1250 = vrot.slane %v958, 2
        %v1251 = vsel %vm1191, %v1249, %v1250
        %v1252 = vrot.slane %v1046, 2
        %v1253 = vsel %vm1191, %v1250, %v1252
        %v1254 = vrot.slane %v1031, 2
        %v1255 = vrot.slane %v961, 2
        %v1256 = vsel %vm1191, %v1254, %v1255
        %v1257 = vrot.slane %v1047, 2
        %v1258 = vsel %vm1191, %v1255, %v1257
        %v1259 = vrot.slane %v1032, 2
        %v1260 = vrot.slane %v964, 2
        %v1261 = vsel %vm1191, %v1259, %v1260
        %v1262 = vrot.slane %v1048, 2
        %v1263 = vsel %vm1191, %v1260, %v1262
        %v1264 = vrot.slane %v1033, 2
        %v1265 = vrot.slane %v967, 2
        %v1266 = vsel %vm1191, %v1264, %v1265
        %v1267 = vrot.slane %v1049, 2
        %v1268 = vsel %vm1191, %v1265, %v1267
        %v1302 = vrot.slane %v1034, 1
        %v1303 = vrot.slane %v970, 1
        %v1304 = vsel %vm1082, %v1302, %v1303
        %v1305 = vrot.slane %v1050, 1
        %v1306 = vsel %vm1082, %v1303, %v1305
        %v1309 = vrot.slane %v1034, 2
        %v1310 = vrot.slane %v970, 2
        %v1311 = vsel %vm1191, %v1309, %v1310
        %v1312 = vrot.slane %v1050, 2
        %v1313 = vsel %vm1191, %v1310, %v1312
        %v1316 = vpack.c.bf16 0.0, 0.0
        %v1317 = vpack.c.bf16 %v1084, %v1084
        %v1318 = vpack.c.bf16 %v1193, %v1193
        %v1319 = vpack.c.bf16 %v925, %v1019
        %v1320 = vpack.c.bf16 %v1089, %v1087
        %v1321 = vpack.c.bf16 %v1198, %v1196
        %v1322 = vpack.c.bf16 %v928, %v1020
        %v1323 = vpack.c.bf16 %v1094, %v1092
        %v1324 = vpack.c.bf16 %v1203, %v1201
        %v1325 = vpack.c.bf16 %v931, %v1021
        %v1326 = vpack.c.bf16 %v1099, %v1097
        %v1327 = vpack.c.bf16 %v1208, %v1206
        %v1328 = vpack.c.bf16 %v934, %v1022
        %v1329 = vpack.c.bf16 %v1104, %v1102
        %v1330 = vpack.c.bf16 %v1213, %v1211
        %v1331 = vpack.c.bf16 %v937, %v1023
        %v1332 = vpack.c.bf16 %v1109, %v1107
        %v1333 = vpack.c.bf16 %v1218, %v1216
        %v1334 = vpack.c.bf16 %v940, %v1024
        %v1335 = vpack.c.bf16 %v1114, %v1112
        %v1336 = vpack.c.bf16 %v1223, %v1221
        %v1337 = vpack.c.bf16 %v943, %v1025
        %v1338 = vpack.c.bf16 %v1119, %v1117
        %v1339 = vpack.c.bf16 %v1228, %v1226
        %v1340 = vpack.c.bf16 %v946, %v1026
        %v1341 = vpack.c.bf16 %v1124, %v1122
        %v1342 = vpack.c.bf16 %v1233, %v1231
        %v1343 = vpack.c.bf16 %v949, %v1027
        %v1344 = vpack.c.bf16 %v1129, %v1127
        %v1345 = vpack.c.bf16 %v1238, %v1236
        %v1346 = vpack.c.bf16 %v952, %v1028
        %v1347 = vpack.c.bf16 %v1134, %v1132
        %v1348 = vpack.c.bf16 %v1243, %v1241
        %v1349 = vpack.c.bf16 %v955, %v1029
        %v1350 = vpack.c.bf16 %v1139, %v1137
        %v1351 = vpack.c.bf16 %v1248, %v1246
        %v1352 = vpack.c.bf16 %v958, %v1030
        %v1353 = vpack.c.bf16 %v1144, %v1142
        %v1354 = vpack.c.bf16 %v1253, %v1251
        %v1355 = vpack.c.bf16 %v961, %v1031
        %v1356 = vpack.c.bf16 %v1149, %v1147
        %v1357 = vpack.c.bf16 %v1258, %v1256
        %v1358 = vpack.c.bf16 %v964, %v1032
        %v1359 = vpack.c.bf16 %v1154, %v1152
        %v1360 = vpack.c.bf16 %v1263, %v1261
        %v1361 = vpack.c.bf16 %v967, %v1033
        %v1362 = vpack.c.bf16 %v1159, %v1157
        %v1363 = vpack.c.bf16 %v1268, %v1266
        %v1364 = vpack.c.bf16 %v970, %v1034
        %v1365 = vpack.c.bf16 %v1306, %v1304
        %v1366 = vpack.c.bf16 %v1313, %v1311
        %v1367 = vld [vmem:[%s4] sm:$0xf]
        %v1368 = vld [vmem:[%s4 + $0x4] sm:$0xf]
        %v1369 = vld [vmem:[%s4 + $0x8] sm:$0xf]
        %v1370 = vld [vmem:[%s4 + $0xc] sm:$0xf]
        %v1371 = vld [vmem:[%s4 + $0x10] sm:$0xf]
        %v1372 = vld [vmem:[%s4 + $0x14] sm:$0xf]
        %v1373 = vld [vmem:[%s4 + $0x18] sm:$0xf]
        %v1374 = vld [vmem:[%s4 + $0x1c] sm:$0xf]
        %v1375 = vld [vmem:[%s4 + $0x20] sm:$0xf]
        %v1376 = vld [vmem:[%s4 + $0x24] sm:$0xf]
        %v1377 = vld [vmem:[%s4 + $0x28] sm:$0xf]
        %v1378 = vld [vmem:[%s4 + $0x2c] sm:$0xf]
        %v1379 = vld [vmem:[%s4 + $0x30] sm:$0xf]
        %v1380 = vld [vmem:[%s4 + $0x34] sm:$0xf]
        %v1381 = vld [vmem:[%s4 + $0x38] sm:$0xf]
        %v1382 = vld [vmem:[%s4 + $0x3c] sm:$0xf]
        %v1383 = vld [vmem:[%s4 + $0x40] sm:$0xf]
        %v1384 = vld [vmem:[%s4 + $0x44] sm:$0xf]
        %v1385 = vld [vmem:[%s4 + $0x48] sm:$0xf]
        %v1386 = vld [vmem:[%s4 + $0x4c] sm:$0xf]
        %v1387 = vld [vmem:[%s4 + $0x50] sm:$0xf]
        %v1388 = vld [vmem:[%s4 + $0x54] sm:$0xf]
        %v1389 = vld [vmem:[%s4 + $0x58] sm:$0xf]
        %v1390 = vld [vmem:[%s4 + $0x5c] sm:$0xf]
        %v1391 = vld [vmem:[%s4 + $0x60] sm:$0xf]
        %v1392 = vld [vmem:[%s4 + $0x64] sm:$0xf]
        %v1393 = vld [vmem:[%s4 + $0x68] sm:$0xf]
        %v1394 = vld [vmem:[%s4 + $0x6c] sm:$0xf]
        %v1395 = vld [vmem:[%s4 + $0x70] sm:$0xf]
        %v1396 = vld [vmem:[%s4 + $0x74] sm:$0xf]
        %v1397 = vld [vmem:[%s4 + $0x78] sm:$0xf]
        %v1398 = vld [vmem:[%s4 + $0x7c] sm:$0xf]
        %v1399 = vld [vmem:[%s4 + $0x80] sm:$0xf]
        %v1400 = vld [vmem:[%s4 + $0x84] sm:$0xf]
        %v1401 = vld [vmem:[%s4 + $0x88] sm:$0xf]
        %v1402 = vld [vmem:[%s4 + $0x8c] sm:$0xf]
        %v1403 = vld [vmem:[%s4 + $0x90] sm:$0xf]
        %v1404 = vld [vmem:[%s4 + $0x94] sm:$0xf]
        %v1405 = vld [vmem:[%s4 + $0x98] sm:$0xf]
        %v1406 = vld [vmem:[%s4 + $0x9c] sm:$0xf]
        %v1407 = vld [vmem:[%s4 + $0xa0] sm:$0xf]
        %v1408 = vld [vmem:[%s4 + $0xa4] sm:$0xf]
        %v1409 = vld [vmem:[%s4 + $0xa8] sm:$0xf]
        %v1410 = vld [vmem:[%s4 + $0xac] sm:$0xf]
        %v1411 = vld [vmem:[%s4 + $0xb0] sm:$0xf]
        %v1412 = vld [vmem:[%s4 + $0xb4] sm:$0xf]
        %v1413 = vld [vmem:[%s4 + $0xb8] sm:$0xf]
        %v1414 = vld [vmem:[%s4 + $0xbc] sm:$0xf]
        %v1415 = vld [vmem:[%s4 + $0xc0] sm:$0xf]
        %v1416 = vld [vmem:[%s4 + $0xc4] sm:$0xf]
        %v1417 = vld [vmem:[%s4 + $0xc8] sm:$0xf]
        %v1418 = vld [vmem:[%s4 + $0xcc] sm:$0xf]
        %v1419 = vld [vmem:[%s4 + $0xd0] sm:$0xf]
        %v1420 = vld [vmem:[%s4 + $0xd4] sm:$0xf]
        %v1421 = vld [vmem:[%s4 + $0xd8] sm:$0xf]
        %v1422 = vld [vmem:[%s4 + $0xdc] sm:$0xf]
        %v1423 = vld [vmem:[%s4 + $0xe0] sm:$0xf]
        %v1424 = vld [vmem:[%s4 + $0xe4] sm:$0xf]
        %v1425 = vld [vmem:[%s4 + $0xe8] sm:$0xf]
        %v1426 = vld [vmem:[%s4 + $0xec] sm:$0xf]
        %v1427 = vld [vmem:[%s4 + $0xf0] sm:$0xf]
        %v1428 = vld [vmem:[%s4 + $0xf4] sm:$0xf]
        %v1429 = vld [vmem:[%s4 + $0xf8] sm:$0xf]
        %v1430 = vld [vmem:[%s4 + $0xfc] sm:$0xf]
        %v1431 = vld [vmem:[%s4 + $0x100] sm:$0xf]
        %v1432 = vld [vmem:[%s4 + $0x104] sm:$0xf]
        %v1433 = vld [vmem:[%s4 + $0x108] sm:$0xf]
        %v1434 = vld [vmem:[%s4 + $0x10c] sm:$0xf]
        %v1435 = vld [vmem:[%s4 + $0x110] sm:$0xf]
        %v1436 = vld [vmem:[%s4 + $0x114] sm:$0xf]
        %v1437 = vld [vmem:[%s4 + $0x118] sm:$0xf]
        %v1438 = vld [vmem:[%s4 + $0x11c] sm:$0xf]
        %v1439 = vld [vmem:[%s4 + $0x120] sm:$0xf]
        %v1440 = vld [vmem:[%s4 + $0x124] sm:$0xf]
        %v1441 = vld [vmem:[%s4 + $0x128] sm:$0xf]
        %v1442 = vld [vmem:[%s4 + $0x12c] sm:$0xf]
        %v1443 = vld [vmem:[%s4 + $0x130] sm:$0xf]
        %v1444 = vld [vmem:[%s4 + $0x134] sm:$0xf]
        %v1445 = vld [vmem:[%s4 + $0x138] sm:$0xf]
        %v1446 = vld [vmem:[%s4 + $0x13c] sm:$0xf]
        %v1447 = vld [vmem:[%s4 + $0x140] sm:$0xf]
        %v1448 = vld [vmem:[%s4 + $0x144] sm:$0xf]
        %v1449 = vld [vmem:[%s4 + $0x148] sm:$0xf]
        %v1450 = vld [vmem:[%s4 + $0x14c] sm:$0xf]
        %v1451 = vld [vmem:[%s4 + $0x150] sm:$0xf]
        %v1452 = vld [vmem:[%s4 + $0x154] sm:$0xf]
        %v1453 = vld [vmem:[%s4 + $0x158] sm:$0xf]
        %v1454 = vld [vmem:[%s4 + $0x15c] sm:$0xf]
        %v1455 = vld [vmem:[%s4 + $0x160] sm:$0xf]
        %v1456 = vld [vmem:[%s4 + $0x164] sm:$0xf]
        %v1457 = vld [vmem:[%s4 + $0x168] sm:$0xf]
        %v1458 = vld [vmem:[%s4 + $0x16c] sm:$0xf]
        %v1459 = vld [vmem:[%s4 + $0x170] sm:$0xf]
        %v1460 = vld [vmem:[%s4 + $0x174] sm:$0xf]
        %v1461 = vld [vmem:[%s4 + $0x178] sm:$0xf]
        %v1462 = vld [vmem:[%s4 + $0x17c] sm:$0xf]
        %v1463 = vld [vmem:[%s4 + $0x180] sm:$0xf]
        %v1464 = vld [vmem:[%s4 + $0x184] sm:$0xf]
        %v1465 = vld [vmem:[%s4 + $0x188] sm:$0xf]
        %v1466 = vld [vmem:[%s4 + $0x18c] sm:$0xf]
        %v1467 = vld [vmem:[%s4 + $0x190] sm:$0xf]
        %v1468 = vld [vmem:[%s4 + $0x194] sm:$0xf]
        %v1469 = vld [vmem:[%s4 + $0x198] sm:$0xf]
        %v1470 = vld [vmem:[%s4 + $0x19c] sm:$0xf]
        %v1471 = vld [vmem:[%s4 + $0x1a0] sm:$0xf]
        %v1472 = vld [vmem:[%s4 + $0x1a4] sm:$0xf]
        %v1473 = vld [vmem:[%s4 + $0x1a8] sm:$0xf]
        %v1474 = vld [vmem:[%s4 + $0x1ac] sm:$0xf]
        %v1475 = vld [vmem:[%s4 + $0x1b0] sm:$0xf]
        %v1476 = vld [vmem:[%s4 + $0x1b4] sm:$0xf]
        %v1477 = vld [vmem:[%s4 + $0x1b8] sm:$0xf]
        %v1478 = vld [vmem:[%s4 + $0x1bc] sm:$0xf]
        %v1479 = vld [vmem:[%s4 + $0x1c0] sm:$0xf]
        %v1480 = vld [vmem:[%s4 + $0x1c4] sm:$0xf]
        %v1481 = vld [vmem:[%s4 + $0x1c8] sm:$0xf]
        %v1482 = vld [vmem:[%s4 + $0x1cc] sm:$0xf]
        %v1483 = vld [vmem:[%s4 + $0x1d0] sm:$0xf]
        %v1484 = vld [vmem:[%s4 + $0x1d4] sm:$0xf]
        %v1485 = vld [vmem:[%s4 + $0x1d8] sm:$0xf]
        %v1486 = vld [vmem:[%s4 + $0x1dc] sm:$0xf]
        %v1487 = vld [vmem:[%s4 + $0x1e0] sm:$0xf]
        %v1488 = vld [vmem:[%s4 + $0x1e4] sm:$0xf]
        %v1489 = vld [vmem:[%s4 + $0x1e8] sm:$0xf]
        %v1490 = vld [vmem:[%s4 + $0x1ec] sm:$0xf]
        %v1491 = vld [vmem:[%s4 + $0x1f0] sm:$0xf]
        %v1492 = vld [vmem:[%s4 + $0x1f4] sm:$0xf]
        %v1493 = vld [vmem:[%s4 + $0x1f8] sm:$0xf]
        %v1494 = vld [vmem:[%s4 + $0x1fc] sm:$0xf]
        %v1495 = vld [vmem:[%s4 + $0x200] sm:$0xf]
        %v1496 = vld [vmem:[%s4 + $0x204] sm:$0xf]
        %v1497 = vld [vmem:[%s4 + $0x208] sm:$0xf]
        %v1498 = vld [vmem:[%s4 + $0x20c] sm:$0xf]
        %v1499 = vld [vmem:[%s4 + $0x210] sm:$0xf]
        %v1500 = vld [vmem:[%s4 + $0x214] sm:$0xf]
        %v1501 = vld [vmem:[%s4 + $0x218] sm:$0xf]
        %v1502 = vld [vmem:[%s4 + $0x21c] sm:$0xf]
        %v1503 = vld [vmem:[%s4 + $0x220] sm:$0xf]
        %v1504 = vld [vmem:[%s4 + $0x224] sm:$0xf]
        %v1505 = vld [vmem:[%s4 + $0x228] sm:$0xf]
        %v1506 = vld [vmem:[%s4 + $0x22c] sm:$0xf]
        %v1507 = vld [vmem:[%s4 + $0x230] sm:$0xf]
        %v1508 = vld [vmem:[%s4 + $0x234] sm:$0xf]
        %v1509 = vld [vmem:[%s4 + $0x238] sm:$0xf]
        %v1510 = vld [vmem:[%s4 + $0x23c] sm:$0xf]
        %v1655 = vunpack.c.l.b16 %v1367
        %v1656 = vunpack.c.l.b16 %v1368
        %v1657 = vunpack.c.l.b16 %v1369
        %v1658 = vunpack.c.l.b16 %v1370
        %v1659 = vunpack.c.l.b16 %v1371
        %v1660 = vunpack.c.l.b16 %v1372
        %v1661 = vunpack.c.l.b16 %v1373
        %v1662 = vunpack.c.l.b16 %v1374
        %v1663 = vunpack.c.l.b16 %v1375
        %v1664 = vunpack.c.l.b16 %v1376
        %v1665 = vunpack.c.l.b16 %v1377
        %v1666 = vunpack.c.l.b16 %v1378
        %v1667 = vunpack.c.l.b16 %v1379
        %v1668 = vunpack.c.l.b16 %v1380
        %v1669 = vunpack.c.l.b16 %v1381
        %v1670 = vunpack.c.l.b16 %v1382
        %v1671 = vunpack.c.l.b16 %v1383
        %v1672 = vunpack.c.l.b16 %v1384
        %v1673 = vunpack.c.l.b16 %v1385
        %v1674 = vunpack.c.l.b16 %v1386
        %v1675 = vunpack.c.l.b16 %v1387
        %v1676 = vunpack.c.l.b16 %v1388
        %v1677 = vunpack.c.l.b16 %v1389
        %v1678 = vunpack.c.l.b16 %v1390
        %v1679 = vunpack.c.l.b16 %v1391
        %v1680 = vunpack.c.l.b16 %v1392
        %v1681 = vunpack.c.l.b16 %v1393
        %v1682 = vunpack.c.l.b16 %v1394
        %v1683 = vunpack.c.l.b16 %v1395
        %v1684 = vunpack.c.l.b16 %v1396
        %v1685 = vunpack.c.l.b16 %v1397
        %v1686 = vunpack.c.l.b16 %v1398
        %v1687 = vunpack.c.l.b16 %v1399
        %v1688 = vunpack.c.l.b16 %v1400
        %v1689 = vunpack.c.l.b16 %v1401
        %v1690 = vunpack.c.l.b16 %v1402
        %v1691 = vunpack.c.l.b16 %v1403
        %v1692 = vunpack.c.l.b16 %v1404
        %v1693 = vunpack.c.l.b16 %v1405
        %v1694 = vunpack.c.l.b16 %v1406
        %v1695 = vunpack.c.l.b16 %v1407
        %v1696 = vunpack.c.l.b16 %v1408
        %v1697 = vunpack.c.l.b16 %v1409
        %v1698 = vunpack.c.l.b16 %v1410
        %v1699 = vunpack.c.l.b16 %v1411
        %v1700 = vunpack.c.l.b16 %v1412
        %v1701 = vunpack.c.l.b16 %v1413
        %v1702 = vunpack.c.l.b16 %v1414
        %v1703 = vunpack.c.l.b16 %v1415
        %v1704 = vunpack.c.l.b16 %v1416
        %v1705 = vunpack.c.l.b16 %v1417
        %v1706 = vunpack.c.l.b16 %v1418
        %v1707 = vunpack.c.l.b16 %v1419
        %v1708 = vunpack.c.l.b16 %v1420
        %v1709 = vunpack.c.l.b16 %v1421
        %v1710 = vunpack.c.l.b16 %v1422
        %v1711 = vunpack.c.l.b16 %v1423
        %v1712 = vunpack.c.l.b16 %v1424
        %v1713 = vunpack.c.l.b16 %v1425
        %v1714 = vunpack.c.l.b16 %v1426
        %v1715 = vunpack.c.l.b16 %v1427
        %v1716 = vunpack.c.l.b16 %v1428
        %v1717 = vunpack.c.l.b16 %v1429
        %v1718 = vunpack.c.l.b16 %v1430
        %v1719 = vunpack.c.l.b16 %v1431
        %v1720 = vunpack.c.l.b16 %v1432
        %v1721 = vunpack.c.l.b16 %v1433
        %v1722 = vunpack.c.l.b16 %v1434
        %v1723 = vunpack.c.l.b16 %v1435
        %v1724 = vunpack.c.l.b16 %v1436
        %v1725 = vunpack.c.l.b16 %v1437
        %v1726 = vunpack.c.l.b16 %v1438
        %v1727 = vunpack.c.l.b16 %v1439
        %v1728 = vunpack.c.l.b16 %v1440
        %v1729 = vunpack.c.l.b16 %v1441
        %v1730 = vunpack.c.l.b16 %v1442
        %v1731 = vunpack.c.l.b16 %v1443
        %v1732 = vunpack.c.l.b16 %v1444
        %v1733 = vunpack.c.l.b16 %v1445
        %v1734 = vunpack.c.l.b16 %v1446
        %v1735 = vunpack.c.l.b16 %v1447
        %v1736 = vunpack.c.l.b16 %v1448
        %v1737 = vunpack.c.l.b16 %v1449
        %v1738 = vunpack.c.l.b16 %v1450
        %v1739 = vunpack.c.l.b16 %v1451
        %v1740 = vunpack.c.l.b16 %v1452
        %v1741 = vunpack.c.l.b16 %v1453
        %v1742 = vunpack.c.l.b16 %v1454
        %v1743 = vunpack.c.l.b16 %v1455
        %v1744 = vunpack.c.l.b16 %v1456
        %v1745 = vunpack.c.l.b16 %v1457
        %v1746 = vunpack.c.l.b16 %v1458
        %v1747 = vunpack.c.l.b16 %v1459
        %v1748 = vunpack.c.l.b16 %v1460
        %v1749 = vunpack.c.l.b16 %v1461
        %v1750 = vunpack.c.l.b16 %v1462
        %v1751 = vunpack.c.l.b16 %v1463
        %v1752 = vunpack.c.l.b16 %v1464
        %v1753 = vunpack.c.l.b16 %v1465
        %v1754 = vunpack.c.l.b16 %v1466
        %v1755 = vunpack.c.l.b16 %v1467
        %v1756 = vunpack.c.l.b16 %v1468
        %v1757 = vunpack.c.l.b16 %v1469
        %v1758 = vunpack.c.l.b16 %v1470
        %v1759 = vunpack.c.l.b16 %v1471
        %v1760 = vunpack.c.l.b16 %v1472
        %v1761 = vunpack.c.l.b16 %v1473
        %v1762 = vunpack.c.l.b16 %v1474
        %v1763 = vunpack.c.l.b16 %v1475
        %v1764 = vunpack.c.l.b16 %v1476
        %v1765 = vunpack.c.l.b16 %v1477
        %v1766 = vunpack.c.l.b16 %v1478
        %v1767 = vunpack.c.l.b16 %v1479
        %v1768 = vunpack.c.l.b16 %v1480
        %v1769 = vunpack.c.l.b16 %v1481
        %v1770 = vunpack.c.l.b16 %v1482
        %v1771 = vunpack.c.l.b16 %v1483
        %v1772 = vunpack.c.l.b16 %v1484
        %v1773 = vunpack.c.l.b16 %v1485
        %v1774 = vunpack.c.l.b16 %v1486
        %v1775 = vunpack.c.l.b16 %v1487
        %v1776 = vunpack.c.l.b16 %v1488
        %v1777 = vunpack.c.l.b16 %v1489
        %v1778 = vunpack.c.l.b16 %v1490
        %v1779 = vunpack.c.l.b16 %v1491
        %v1780 = vunpack.c.l.b16 %v1492
        %v1781 = vunpack.c.l.b16 %v1493
        %v1782 = vunpack.c.l.b16 %v1494
        %v1783 = vunpack.c.l.b16 %v1495
        %v1784 = vunpack.c.l.b16 %v1496
        %v1785 = vunpack.c.l.b16 %v1497
        %v1786 = vunpack.c.l.b16 %v1498
        %v1787 = vunpack.c.l.b16 %v1499
        %v1788 = vunpack.c.l.b16 %v1500
        %v1789 = vunpack.c.l.b16 %v1501
        %v1790 = vunpack.c.l.b16 %v1502
        %v1791 = vunpack.c.l.b16 %v1503
        %v1792 = vunpack.c.l.b16 %v1504
        %v1793 = vunpack.c.l.b16 %v1505
        %v1794 = vunpack.c.l.b16 %v1506
        %v1795 = vunpack.c.l.b16 %v1507
        %v1796 = vunpack.c.l.b16 %v1508
        %v1797 = vunpack.c.l.b16 %v1509
        %v1798 = vunpack.c.l.b16 %v1510
        %v1799 = vpack.c.b16 %v1656, %v1655
        %v1800 = vpack.c.b16 %v1658, %v1657
        %v1801 = vpack.c.b16 %v1660, %v1659
        %v1802 = vpack.c.b16 %v1662, %v1661
        %v1803 = vpack.c.b16 %v1664, %v1663
        %v1804 = vpack.c.b16 %v1666, %v1665
        %v1805 = vpack.c.b16 %v1668, %v1667
        %v1806 = vpack.c.b16 %v1670, %v1669
        %v1807 = vpack.c.b16 %v1672, %v1671
        %v1808 = vpack.c.b16 %v1674, %v1673
        %v1809 = vpack.c.b16 %v1676, %v1675
        %v1810 = vpack.c.b16 %v1678, %v1677
        %v1811 = vpack.c.b16 %v1680, %v1679
        %v1812 = vpack.c.b16 %v1682, %v1681
        %v1813 = vpack.c.b16 %v1684, %v1683
        %v1814 = vpack.c.b16 %v1686, %v1685
        %v1815 = vpack.c.b16 %v1688, %v1687
        %v1816 = vpack.c.b16 %v1690, %v1689
        %v1817 = vpack.c.b16 %v1692, %v1691
        %v1818 = vpack.c.b16 %v1694, %v1693
        %v1819 = vpack.c.b16 %v1696, %v1695
        %v1820 = vpack.c.b16 %v1698, %v1697
        %v1821 = vpack.c.b16 %v1700, %v1699
        %v1822 = vpack.c.b16 %v1702, %v1701
        %v1823 = vpack.c.b16 %v1704, %v1703
        %v1824 = vpack.c.b16 %v1706, %v1705
        %v1825 = vpack.c.b16 %v1708, %v1707
        %v1826 = vpack.c.b16 %v1710, %v1709
        %v1827 = vpack.c.b16 %v1712, %v1711
        %v1828 = vpack.c.b16 %v1714, %v1713
        %v1829 = vpack.c.b16 %v1716, %v1715
        %v1830 = vpack.c.b16 %v1718, %v1717
        %v1831 = vpack.c.b16 %v1720, %v1719
        %v1832 = vpack.c.b16 %v1722, %v1721
        %v1833 = vpack.c.b16 %v1724, %v1723
        %v1834 = vpack.c.b16 %v1726, %v1725
        %v1835 = vpack.c.b16 %v1728, %v1727
        %v1836 = vpack.c.b16 %v1730, %v1729
        %v1837 = vpack.c.b16 %v1732, %v1731
        %v1838 = vpack.c.b16 %v1734, %v1733
        %v1839 = vpack.c.b16 %v1736, %v1735
        %v1840 = vpack.c.b16 %v1738, %v1737
        %v1841 = vpack.c.b16 %v1740, %v1739
        %v1842 = vpack.c.b16 %v1742, %v1741
        %v1843 = vpack.c.b16 %v1744, %v1743
        %v1844 = vpack.c.b16 %v1746, %v1745
        %v1845 = vpack.c.b16 %v1748, %v1747
        %v1846 = vpack.c.b16 %v1750, %v1749
        %v1847 = vpack.c.b16 %v1752, %v1751
        %v1848 = vpack.c.b16 %v1754, %v1753
        %v1849 = vpack.c.b16 %v1756, %v1755
        %v1850 = vpack.c.b16 %v1758, %v1757
        %v1851 = vpack.c.b16 %v1760, %v1759
        %v1852 = vpack.c.b16 %v1762, %v1761
        %v1853 = vpack.c.b16 %v1764, %v1763
        %v1854 = vpack.c.b16 %v1766, %v1765
        %v1855 = vpack.c.b16 %v1768, %v1767
        %v1856 = vpack.c.b16 %v1770, %v1769
        %v1857 = vpack.c.b16 %v1772, %v1771
        %v1858 = vpack.c.b16 %v1774, %v1773
        %v1859 = vpack.c.b16 %v1776, %v1775
        %v1860 = vpack.c.b16 %v1778, %v1777
        %v1861 = vpack.c.b16 %v1780, %v1779
        %v1862 = vpack.c.b16 %v1782, %v1781
        %v1863 = vpack.c.b16 %v1784, %v1783
        %v1864 = vpack.c.b16 %v1786, %v1785
        %v1865 = vpack.c.b16 %v1788, %v1787
        %v1866 = vpack.c.b16 %v1790, %v1789
        %v1867 = vpack.c.b16 %v1792, %v1791
        %v1868 = vpack.c.b16 %v1794, %v1793
        %v1869 = vpack.c.b16 %v1796, %v1795
        %v1870 = vpack.c.b16 %v1798, %v1797
        %1943 = vmatprep.subr.bf16.mxu0 0
        %1944 = vmatpush1.bf16.msra.mxu0 %v1799
        %1945 = vmatprep.subr.bf16.mxu0 0
        %1946 = vmatpush1.bf16.msra.mxu0 %v1800
        %1947 = vmatprep.subr.bf16.mxu0 0
        %1948 = vmatpush1.bf16.msra.mxu0 %v1801
        %1949 = vmatprep.subr.bf16.mxu0 0
        %1950 = vmatpush1.bf16.msra.mxu0 %v1802
        %1951 = vmatprep.subr.bf16.mxu0 0
        %1952 = vmatpush1.bf16.msra.mxu0 %v1803
        %1953 = vmatprep.subr.bf16.mxu0 0
        %1954 = vmatpush1.bf16.msra.mxu0 %v1804
        %1955 = vmatprep.subr.bf16.mxu0 0
        %1956 = vmatpush1.bf16.msra.mxu0 %v1805
        %1957 = vmatprep.subr.bf16.mxu0 0
        %1958 = vmatpush1.bf16.msra.mxu0 %v1806
        %1959 = vmatprep.subr.bf16.mxu0 0
        %1960 = vmatpush1.bf16.msra.mxu0 %v1807
        %1961 = vmatprep.subr.bf16.mxu0 0
        %1962 = vmatpush1.bf16.msra.mxu0 %v1808
        %1963 = vmatprep.subr.bf16.mxu0 0
        %1964 = vmatpush1.bf16.msra.mxu0 %v1809
        %1965 = vmatprep.subr.bf16.mxu0 0
        %1966 = vmatpush1.bf16.msra.mxu0 %v1810
        %1967 = vmatprep.subr.bf16.mxu0 0
        %1968 = vmatpush1.bf16.msra.mxu0 %v1811
        %1969 = vmatprep.subr.bf16.mxu0 0
        %1970 = vmatpush1.bf16.msra.mxu0 %v1812
        %1971 = vmatprep.subr.bf16.mxu0 0
        %1972 = vmatpush1.bf16.msra.mxu0 %v1813
        %1973 = vmatprep.subr.bf16.mxu0 0
        %1974 = vmatpush1.bf16.msra.mxu0 %v1814
        %1975 = vmatprep.mubr.bf16.mxu0 %v1317
        %1976 = vmatmul.mubr.bf16.gmra.mrb[0].mxu0 %v1316
        %v1977 = vpop.f32.mrb[0].mxu0
        %v1978 = vadd.f32 0.0, %v1977
        %v1979 = vpop.f32.mrb[0].mxu0
        %v1980 = vpop.f32.mrb[0].mxu0
        %v1981 = vadd.f32 0.0, %v1980
        %v1982 = vpop.f32.mrb[0].mxu0
        %1983 = vmatprep.mubr.bf16.mxu0 %v1320
        %1984 = vmatmul.mubr.bf16.gmra.mrb[0].mxu0 %v1319
        %v1985 = vpop.f32.mrb[0].mxu0
        %v1986 = vadd.f32 0.0, %v1985
        %v1987 = vpop.f32.mrb[0].mxu0
        %v1988 = vpop.f32.mrb[0].mxu0
        %v1989 = vadd.f32 0.0, %v1988
        %v1990 = vpop.f32.mrb[0].mxu0
        %1991 = vmatprep.mubr.bf16.mxu0 %v1323
        %1992 = vmatmul.mubr.bf16.gmra.mrb[0].mxu0 %v1322
        %v1993 = vpop.f32.mrb[0].mxu0
        %v1994 = vadd.f32 0.0, %v1993
        %v1995 = vpop.f32.mrb[0].mxu0
        %v1996 = vpop.f32.mrb[0].mxu0
        %v1997 = vadd.f32 0.0, %v1996
        %v1998 = vpop.f32.mrb[0].mxu0
        %1999 = vmatprep.mubr.bf16.mxu0 %v1326
        %2000 = vmatmul.mubr.bf16.gmra.mrb[0].mxu0 %v1325
        %v2001 = vpop.f32.mrb[0].mxu0
        %v2002 = vadd.f32 0.0, %v2001
        %v2003 = vpop.f32.mrb[0].mxu0
        %v2004 = vpop.f32.mrb[0].mxu0
        %v2005 = vadd.f32 0.0, %v2004
        %v2006 = vpop.f32.mrb[0].mxu0
        %2007 = vmatprep.mubr.bf16.mxu0 %v1329
        %2008 = vmatmul.mubr.bf16.gmra.mrb[0].mxu0 %v1328
        %v2009 = vpop.f32.mrb[0].mxu0
        %v2010 = vadd.f32 0.0, %v2009
        %v2011 = vpop.f32.mrb[0].mxu0
        %v2012 = vpop.f32.mrb[0].mxu0
        %v2013 = vadd.f32 0.0, %v2012
        %v2014 = vpop.f32.mrb[0].mxu0
        %2015 = vmatprep.mubr.bf16.mxu0 %v1332
        %2016 = vmatmul.mubr.bf16.gmra.mrb[0].mxu0 %v1331
        %v2017 = vpop.f32.mrb[0].mxu0
        %v2018 = vadd.f32 0.0, %v2017
        %v2019 = vpop.f32.mrb[0].mxu0
        %v2020 = vpop.f32.mrb[0].mxu0
        %v2021 = vadd.f32 0.0, %v2020
        %v2022 = vpop.f32.mrb[0].mxu0
        %2023 = vmatprep.mubr.bf16.mxu0 %v1335
        %2024 = vmatmul.mubr.bf16.gmra.mrb[0].mxu0 %v1334
        %v2025 = vpop.f32.mrb[0].mxu0
        %v2026 = vadd.f32 0.0, %v2025
        %v2027 = vpop.f32.mrb[0].mxu0
        %v2028 = vpop.f32.mrb[0].mxu0
        %v2029 = vadd.f32 0.0, %v2028
        %v2030 = vpop.f32.mrb[0].mxu0
        %2031 = vmatprep.mubr.bf16.mxu0 %v1338
        %2032 = vmatmul.mubr.bf16.gmra.mrb[0].mxu0 %v1337
        %v2033 = vpop.f32.mrb[0].mxu0
        %v2034 = vadd.f32 0.0, %v2033
        %v2035 = vpop.f32.mrb[0].mxu0
        %v2036 = vpop.f32.mrb[0].mxu0
        %v2037 = vadd.f32 0.0, %v2036
        %v2038 = vpop.f32.mrb[0].mxu0
        %2039 = vmatprep.mubr.bf16.mxu0 %v1341
        %2040 = vmatmul.mubr.bf16.gmra.mrb[0].mxu0 %v1340
        %v2041 = vpop.f32.mrb[0].mxu0
        %v2042 = vadd.f32 0.0, %v2041
        %v2043 = vpop.f32.mrb[0].mxu0
        %v2044 = vpop.f32.mrb[0].mxu0
        %v2045 = vadd.f32 0.0, %v2044
        %v2046 = vpop.f32.mrb[0].mxu0
        %2047 = vmatprep.mubr.bf16.mxu0 %v1344
        %2048 = vmatmul.mubr.bf16.gmra.mrb[0].mxu0 %v1343
        %v2049 = vpop.f32.mrb[0].mxu0
        %v2050 = vadd.f32 0.0, %v2049
        %v2051 = vpop.f32.mrb[0].mxu0
        %v2052 = vpop.f32.mrb[0].mxu0
        %v2053 = vadd.f32 0.0, %v2052
        %v2054 = vpop.f32.mrb[0].mxu0
        %2055 = vmatprep.mubr.bf16.mxu0 %v1347
        %2056 = vmatmul.mubr.bf16.gmra.mrb[0].mxu0 %v1346
        %v2057 = vpop.f32.mrb[0].mxu0
        %v2058 = vadd.f32 0.0, %v2057
        %v2059 = vpop.f32.mrb[0].mxu0
        %v2060 = vpop.f32.mrb[0].mxu0
        %v2061 = vadd.f32 0.0, %v2060
        %v2062 = vpop.f32.mrb[0].mxu0
        %2063 = vmatprep.mubr.bf16.mxu0 %v1350
        %2064 = vmatmul.mubr.bf16.gmra.mrb[0].mxu0 %v1349
        %v2065 = vpop.f32.mrb[0].mxu0
        %v2066 = vadd.f32 0.0, %v2065
        %v2067 = vpop.f32.mrb[0].mxu0
        %v2068 = vpop.f32.mrb[0].mxu0
        %v2069 = vadd.f32 0.0, %v2068
        %v2070 = vpop.f32.mrb[0].mxu0
        %2071 = vmatprep.mubr.bf16.mxu0 %v1353
        %2072 = vmatmul.mubr.bf16.gmra.mrb[0].mxu0 %v1352
        %v2073 = vpop.f32.mrb[0].mxu0
        %v2074 = vadd.f32 0.0, %v2073
        %v2075 = vpop.f32.mrb[0].mxu0
        %v2076 = vpop.f32.mrb[0].mxu0
        %v2077 = vadd.f32 0.0, %v2076
        %v2078 = vpop.f32.mrb[0].mxu0
        %2079 = vmatprep.mubr.bf16.mxu0 %v1356
        %2080 = vmatmul.mubr.bf16.gmra.mrb[0].mxu0 %v1355
        %v2081 = vpop.f32.mrb[0].mxu0
        %v2082 = vadd.f32 0.0, %v2081
        %v2083 = vpop.f32.mrb[0].mxu0
        %v2084 = vpop.f32.mrb[0].mxu0
        %v2085 = vadd.f32 0.0, %v2084
        %v2086 = vpop.f32.mrb[0].mxu0
        %2087 = vmatprep.mubr.bf16.mxu0 %v1359
        %2088 = vmatmul.mubr.bf16.gmra.mrb[0].mxu0 %v1358
        %v2089 = vpop.f32.mrb[0].mxu0
        %v2090 = vadd.f32 0.0, %v2089
        %v2091 = vpop.f32.mrb[0].mxu0
        %v2092 = vpop.f32.mrb[0].mxu0
        %v2093 = vadd.f32 0.0, %v2092
        %v2094 = vpop.f32.mrb[0].mxu0
        %2095 = vmatprep.mubr.bf16.mxu0 %v1362
        %2096 = vmatmul.mubr.bf16.gmra.mrb[0].mxu0 %v1361
        %v2097 = vpop.f32.mrb[0].mxu0
        %v2098 = vadd.f32 0.0, %v2097
        %v2099 = vpop.f32.mrb[0].mxu0
        %v2100 = vpop.f32.mrb[0].mxu0
        %v2101 = vadd.f32 0.0, %v2100
        %v2102 = vpop.f32.mrb[0].mxu0
        %2103 = vdwg.mxu0
        %2104 = vmatprep.subr.bf16.mxu0 0
        %2105 = vmatpush1.bf16.msra.mxu0 %v1815
        %2106 = vmatprep.subr.bf16.mxu0 0
        %2107 = vmatpush1.bf16.msra.mxu0 %v1816
        %2108 = vmatprep.subr.bf16.mxu0 0
        %2109 = vmatpush1.bf16.msra.mxu0 %v1817
        %2110 = vmatprep.subr.bf16.mxu0 0
        %2111 = vmatpush1.bf16.msra.mxu0 %v1818
        %2112 = vmatprep.subr.bf16.mxu0 0
        %2113 = vmatpush1.bf16.msra.mxu0 %v1819
        %2114 = vmatprep.subr.bf16.mxu0 0
        %2115 = vmatpush1.bf16.msra.mxu0 %v1820
        %2116 = vmatprep.subr.bf16.mxu0 0
        %2117 = vmatpush1.bf16.msra.mxu0 %v1821
        %2118 = vmatprep.subr.bf16.mxu0 0
        %2119 = vmatpush1.bf16.msra.mxu0 %v1822
        %2120 = vmatprep.subr.bf16.mxu0 0
        %2121 = vmatpush1.bf16.msra.mxu0 %v1823
        %2122 = vmatprep.subr.bf16.mxu0 0
        %2123 = vmatpush1.bf16.msra.mxu0 %v1824
        %2124 = vmatprep.subr.bf16.mxu0 0
        %2125 = vmatpush1.bf16.msra.mxu0 %v1825
        %2126 = vmatprep.subr.bf16.mxu0 0
        %2127 = vmatpush1.bf16.msra.mxu0 %v1826
        %2128 = vmatprep.subr.bf16.mxu0 0
        %2129 = vmatpush1.bf16.msra.mxu0 %v1827
        %2130 = vmatprep.subr.bf16.mxu0 0
        %2131 = vmatpush1.bf16.msra.mxu0 %v1828
        %2132 = vmatprep.subr.bf16.mxu0 0
        %2133 = vmatpush1.bf16.msra.mxu0 %v1829
        %2134 = vmatprep.subr.bf16.mxu0 0
        %2135 = vmatpush1.bf16.msra.mxu0 %v1830
        %2136 = vmatprep.mubr.bf16.mxu0 %v1319
        %2137 = vmatmul.mubr.bf16.gmra.mrb[0].mxu0 %v1318
        %v2138 = vpop.f32.mrb[0].mxu0
        %v2139 = vadd.f32 %v1978, %v2138
        %v2140 = vpop.f32.mrb[0].mxu0
        %v2141 = vpop.f32.mrb[0].mxu0
        %v2142 = vadd.f32 %v1981, %v2141
        %v2143 = vpop.f32.mrb[0].mxu0
        %2144 = vmatprep.mubr.bf16.mxu0 %v1322
        %2145 = vmatmul.mubr.bf16.gmra.mrb[0].mxu0 %v1321
        %v2146 = vpop.f32.mrb[0].mxu0
        %v2147 = vadd.f32 %v1986, %v2146
        %v2148 = vpop.f32.mrb[0].mxu0
        %v2149 = vpop.f32.mrb[0].mxu0
        %v2150 = vadd.f32 %v1989, %v2149
        %v2151 = vpop.f32.mrb[0].mxu0
        %2152 = vmatprep.mubr.bf16.mxu0 %v1325
        %2153 = vmatmul.mubr.bf16.gmra.mrb[0].mxu0 %v1324
        %v2154 = vpop.f32.mrb[0].mxu0
        %v2155 = vadd.f32 %v1994, %v2154
        %v2156 = vpop.f32.mrb[0].mxu0
        %v2157 = vpop.f32.mrb[0].mxu0
        %v2158 = vadd.f32 %v1997, %v2157
        %v2159 = vpop.f32.mrb[0].mxu0
        %2160 = vmatprep.mubr.bf16.mxu0 %v1328
        %2161 = vmatmul.mubr.bf16.gmra.mrb[0].mxu0 %v1327
        %v2162 = vpop.f32.mrb[0].mxu0
        %v2163 = vadd.f32 %v2002, %v2162
        %v2164 = vpop.f32.mrb[0].mxu0
        %v2165 = vpop.f32.mrb[0].mxu0
        %v2166 = vadd.f32 %v2005, %v2165
        %v2167 = vpop.f32.mrb[0].mxu0
        %2168 = vmatprep.mubr.bf16.mxu0 %v1331
        %2169 = vmatmul.mubr.bf16.gmra.mrb[0].mxu0 %v1330
        %v2170 = vpop.f32.mrb[0].mxu0
        %v2171 = vadd.f32 %v2010, %v2170
        %v2172 = vpop.f32.mrb[0].mxu0
        %v2173 = vpop.f32.mrb[0].mxu0
        %v2174 = vadd.f32 %v2013, %v2173
        %v2175 = vpop.f32.mrb[0].mxu0
        %2176 = vmatprep.mubr.bf16.mxu0 %v1334
        %2177 = vmatmul.mubr.bf16.gmra.mrb[0].mxu0 %v1333
        %v2178 = vpop.f32.mrb[0].mxu0
        %v2179 = vadd.f32 %v2018, %v2178
        %v2180 = vpop.f32.mrb[0].mxu0
        %v2181 = vpop.f32.mrb[0].mxu0
        %v2182 = vadd.f32 %v2021, %v2181
        %v2183 = vpop.f32.mrb[0].mxu0
        %2184 = vmatprep.mubr.bf16.mxu0 %v1337
        %2185 = vmatmul.mubr.bf16.gmra.mrb[0].mxu0 %v1336
        %v2186 = vpop.f32.mrb[0].mxu0
        %v2187 = vadd.f32 %v2026, %v2186
        %v2188 = vpop.f32.mrb[0].mxu0
        %v2189 = vpop.f32.mrb[0].mxu0
        %v2190 = vadd.f32 %v2029, %v2189
        %v2191 = vpop.f32.mrb[0].mxu0
        %2192 = vmatprep.mubr.bf16.mxu0 %v1340
        %2193 = vmatmul.mubr.bf16.gmra.mrb[0].mxu0 %v1339
        %v2194 = vpop.f32.mrb[0].mxu0
        %v2195 = vadd.f32 %v2034, %v2194
        %v2196 = vpop.f32.mrb[0].mxu0
        %v2197 = vpop.f32.mrb[0].mxu0
        %v2198 = vadd.f32 %v2037, %v2197
        %v2199 = vpop.f32.mrb[0].mxu0
        %2200 = vmatprep.mubr.bf16.mxu0 %v1343
        %2201 = vmatmul.mubr.bf16.gmra.mrb[0].mxu0 %v1342
        %v2202 = vpop.f32.mrb[0].mxu0
        %v2203 = vadd.f32 %v2042, %v2202
        %v2204 = vpop.f32.mrb[0].mxu0
        %v2205 = vpop.f32.mrb[0].mxu0
        %v2206 = vadd.f32 %v2045, %v2205
        %v2207 = vpop.f32.mrb[0].mxu0
        %2208 = vmatprep.mubr.bf16.mxu0 %v1346
        %2209 = vmatmul.mubr.bf16.gmra.mrb[0].mxu0 %v1345
        %v2210 = vpop.f32.mrb[0].mxu0
        %v2211 = vadd.f32 %v2050, %v2210
        %v2212 = vpop.f32.mrb[0].mxu0
        %v2213 = vpop.f32.mrb[0].mxu0
        %v2214 = vadd.f32 %v2053, %v2213
        %v2215 = vpop.f32.mrb[0].mxu0
        %2216 = vmatprep.mubr.bf16.mxu0 %v1349
        %2217 = vmatmul.mubr.bf16.gmra.mrb[0].mxu0 %v1348
        %v2218 = vpop.f32.mrb[0].mxu0
        %v2219 = vadd.f32 %v2058, %v2218
        %v2220 = vpop.f32.mrb[0].mxu0
        %v2221 = vpop.f32.mrb[0].mxu0
        %v2222 = vadd.f32 %v2061, %v2221
        %v2223 = vpop.f32.mrb[0].mxu0
        %2224 = vmatprep.mubr.bf16.mxu0 %v1352
        %2225 = vmatmul.mubr.bf16.gmra.mrb[0].mxu0 %v1351
        %v2226 = vpop.f32.mrb[0].mxu0
        %v2227 = vadd.f32 %v2066, %v2226
        %v2228 = vpop.f32.mrb[0].mxu0
        %v2229 = vpop.f32.mrb[0].mxu0
        %v2230 = vadd.f32 %v2069, %v2229
        %v2231 = vpop.f32.mrb[0].mxu0
        %2232 = vmatprep.mubr.bf16.mxu0 %v1355
        %2233 = vmatmul.mubr.bf16.gmra.mrb[0].mxu0 %v1354
        %v2234 = vpop.f32.mrb[0].mxu0
        %v2235 = vadd.f32 %v2074, %v2234
        %v2236 = vpop.f32.mrb[0].mxu0
        %v2237 = vpop.f32.mrb[0].mxu0
        %v2238 = vadd.f32 %v2077, %v2237
        %v2239 = vpop.f32.mrb[0].mxu0
        %2240 = vmatprep.mubr.bf16.mxu0 %v1358
        %2241 = vmatmul.mubr.bf16.gmra.mrb[0].mxu0 %v1357
        %v2242 = vpop.f32.mrb[0].mxu0
        %v2243 = vadd.f32 %v2082, %v2242
        %v2244 = vpop.f32.mrb[0].mxu0
        %v2245 = vpop.f32.mrb[0].mxu0
        %v2246 = vadd.f32 %v2085, %v2245
        %v2247 = vpop.f32.mrb[0].mxu0
        %2248 = vmatprep.mubr.bf16.mxu0 %v1361
        %2249 = vmatmul.mubr.bf16.gmra.mrb[0].mxu0 %v1360
        %v2250 = vpop.f32.mrb[0].mxu0
        %v2251 = vadd.f32 %v2090, %v2250
        %v2252 = vpop.f32.mrb[0].mxu0
        %v2253 = vpop.f32.mrb[0].mxu0
        %v2254 = vadd.f32 %v2093, %v2253
        %v2255 = vpop.f32.mrb[0].mxu0
        %2256 = vmatprep.mubr.bf16.mxu0 %v1364
        %2257 = vmatmul.mubr.bf16.gmra.mrb[0].mxu0 %v1363
        %v2258 = vpop.f32.mrb[0].mxu0
        %v2259 = vadd.f32 %v2098, %v2258
        %v2260 = vpop.f32.mrb[0].mxu0
        %v2261 = vpop.f32.mrb[0].mxu0
        %v2262 = vadd.f32 %v2101, %v2261
        %v2263 = vpop.f32.mrb[0].mxu0
        %2264 = vdwg.mxu0
        %2265 = vmatprep.subr.bf16.mxu0 0
        %2266 = vmatpush1.bf16.msra.mxu0 %v1831
        %2267 = vmatprep.subr.bf16.mxu0 0
        %2268 = vmatpush1.bf16.msra.mxu0 %v1832
        %2269 = vmatprep.subr.bf16.mxu0 0
        %2270 = vmatpush1.bf16.msra.mxu0 %v1833
        %2271 = vmatprep.subr.bf16.mxu0 0
        %2272 = vmatpush1.bf16.msra.mxu0 %v1834
        %2273 = vmatprep.subr.bf16.mxu0 0
        %2274 = vmatpush1.bf16.msra.mxu0 %v1835
        %2275 = vmatprep.subr.bf16.mxu0 0
        %2276 = vmatpush1.bf16.msra.mxu0 %v1836
        %2277 = vmatprep.subr.bf16.mxu0 0
        %2278 = vmatpush1.bf16.msra.mxu0 %v1837
        %2279 = vmatprep.subr.bf16.mxu0 0
        %2280 = vmatpush1.bf16.msra.mxu0 %v1838
        %2281 = vmatprep.subr.bf16.mxu0 0
        %2282 = vmatpush1.bf16.msra.mxu0 %v1839
        %2283 = vmatprep.subr.bf16.mxu0 0
        %2284 = vmatpush1.bf16.msra.mxu0 %v1840
        %2285 = vmatprep.subr.bf16.mxu0 0
        %2286 = vmatpush1.bf16.msra.mxu0 %v1841
        %2287 = vmatprep.subr.bf16.mxu0 0
        %2288 = vmatpush1.bf16.msra.mxu0 %v1842
        %2289 = vmatprep.subr.bf16.mxu0 0
        %2290 = vmatpush1.bf16.msra.mxu0 %v1843
        %2291 = vmatprep.subr.bf16.mxu0 0
        %2292 = vmatpush1.bf16.msra.mxu0 %v1844
        %2293 = vmatprep.subr.bf16.mxu0 0
        %2294 = vmatpush1.bf16.msra.mxu0 %v1845
        %2295 = vmatprep.subr.bf16.mxu0 0
        %2296 = vmatpush1.bf16.msra.mxu0 %v1846
        %2297 = vmatprep.mubr.bf16.mxu0 %v1321
        %2298 = vmatmul.mubr.bf16.gmra.mrb[0].mxu0 %v1320
        %v2299 = vpop.f32.mrb[0].mxu0
        %v2300 = vadd.f32 %v2139, %v2299
        %v2301 = vpop.f32.mrb[0].mxu0
        %v2302 = vpop.f32.mrb[0].mxu0
        %v2303 = vadd.f32 %v2142, %v2302
        %v2304 = vpop.f32.mrb[0].mxu0
        %2305 = vmatprep.mubr.bf16.mxu0 %v1324
        %2306 = vmatmul.mubr.bf16.gmra.mrb[0].mxu0 %v1323
        %v2307 = vpop.f32.mrb[0].mxu0
        %v2308 = vadd.f32 %v2147, %v2307
        %v2309 = vpop.f32.mrb[0].mxu0
        %v2310 = vpop.f32.mrb[0].mxu0
        %v2311 = vadd.f32 %v2150, %v2310
        %v2312 = vpop.f32.mrb[0].mxu0
        %2313 = vmatprep.mubr.bf16.mxu0 %v1327
        %2314 = vmatmul.mubr.bf16.gmra.mrb[0].mxu0 %v1326
        %v2315 = vpop.f32.mrb[0].mxu0
        %v2316 = vadd.f32 %v2155, %v2315
        %v2317 = vpop.f32.mrb[0].mxu0
        %v2318 = vpop.f32.mrb[0].mxu0
        %v2319 = vadd.f32 %v2158, %v2318
        %v2320 = vpop.f32.mrb[0].mxu0
        %2321 = vmatprep.mubr.bf16.mxu0 %v1330
        %2322 = vmatmul.mubr.bf16.gmra.mrb[0].mxu0 %v1329
        %v2323 = vpop.f32.mrb[0].mxu0
        %v2324 = vadd.f32 %v2163, %v2323
        %v2325 = vpop.f32.mrb[0].mxu0
        %v2326 = vpop.f32.mrb[0].mxu0
        %v2327 = vadd.f32 %v2166, %v2326
        %v2328 = vpop.f32.mrb[0].mxu0
        %2329 = vmatprep.mubr.bf16.mxu0 %v1333
        %2330 = vmatmul.mubr.bf16.gmra.mrb[0].mxu0 %v1332
        %v2331 = vpop.f32.mrb[0].mxu0
        %v2332 = vadd.f32 %v2171, %v2331
        %v2333 = vpop.f32.mrb[0].mxu0
        %v2334 = vpop.f32.mrb[0].mxu0
        %v2335 = vadd.f32 %v2174, %v2334
        %v2336 = vpop.f32.mrb[0].mxu0
        %2337 = vmatprep.mubr.bf16.mxu0 %v1336
        %2338 = vmatmul.mubr.bf16.gmra.mrb[0].mxu0 %v1335
        %v2339 = vpop.f32.mrb[0].mxu0
        %v2340 = vadd.f32 %v2179, %v2339
        %v2341 = vpop.f32.mrb[0].mxu0
        %v2342 = vpop.f32.mrb[0].mxu0
        %v2343 = vadd.f32 %v2182, %v2342
        %v2344 = vpop.f32.mrb[0].mxu0
        %2345 = vmatprep.mubr.bf16.mxu0 %v1339
        %2346 = vmatmul.mubr.bf16.gmra.mrb[0].mxu0 %v1338
        %v2347 = vpop.f32.mrb[0].mxu0
        %v2348 = vadd.f32 %v2187, %v2347
        %v2349 = vpop.f32.mrb[0].mxu0
        %v2350 = vpop.f32.mrb[0].mxu0
        %v2351 = vadd.f32 %v2190, %v2350
        %v2352 = vpop.f32.mrb[0].mxu0
        %2353 = vmatprep.mubr.bf16.mxu0 %v1342
        %2354 = vmatmul.mubr.bf16.gmra.mrb[0].mxu0 %v1341
        %v2355 = vpop.f32.mrb[0].mxu0
        %v2356 = vadd.f32 %v2195, %v2355
        %v2357 = vpop.f32.mrb[0].mxu0
        %v2358 = vpop.f32.mrb[0].mxu0
        %v2359 = vadd.f32 %v2198, %v2358
        %v2360 = vpop.f32.mrb[0].mxu0
        %2361 = vmatprep.mubr.bf16.mxu0 %v1345
        %2362 = vmatmul.mubr.bf16.gmra.mrb[0].mxu0 %v1344
        %v2363 = vpop.f32.mrb[0].mxu0
        %v2364 = vadd.f32 %v2203, %v2363
        %v2365 = vpop.f32.mrb[0].mxu0
        %v2366 = vpop.f32.mrb[0].mxu0
        %v2367 = vadd.f32 %v2206, %v2366
        %v2368 = vpop.f32.mrb[0].mxu0
        %2369 = vmatprep.mubr.bf16.mxu0 %v1348
        %2370 = vmatmul.mubr.bf16.gmra.mrb[0].mxu0 %v1347
        %v2371 = vpop.f32.mrb[0].mxu0
        %v2372 = vadd.f32 %v2211, %v2371
        %v2373 = vpop.f32.mrb[0].mxu0
        %v2374 = vpop.f32.mrb[0].mxu0
        %v2375 = vadd.f32 %v2214, %v2374
        %v2376 = vpop.f32.mrb[0].mxu0
        %2377 = vmatprep.mubr.bf16.mxu0 %v1351
        %2378 = vmatmul.mubr.bf16.gmra.mrb[0].mxu0 %v1350
        %v2379 = vpop.f32.mrb[0].mxu0
        %v2380 = vadd.f32 %v2219, %v2379
        %v2381 = vpop.f32.mrb[0].mxu0
        %v2382 = vpop.f32.mrb[0].mxu0
        %v2383 = vadd.f32 %v2222, %v2382
        %v2384 = vpop.f32.mrb[0].mxu0
        %2385 = vmatprep.mubr.bf16.mxu0 %v1354
        %2386 = vmatmul.mubr.bf16.gmra.mrb[0].mxu0 %v1353
        %v2387 = vpop.f32.mrb[0].mxu0
        %v2388 = vadd.f32 %v2227, %v2387
        %v2389 = vpop.f32.mrb[0].mxu0
        %v2390 = vpop.f32.mrb[0].mxu0
        %v2391 = vadd.f32 %v2230, %v2390
        %v2392 = vpop.f32.mrb[0].mxu0
        %2393 = vmatprep.mubr.bf16.mxu0 %v1357
        %2394 = vmatmul.mubr.bf16.gmra.mrb[0].mxu0 %v1356
        %v2395 = vpop.f32.mrb[0].mxu0
        %v2396 = vadd.f32 %v2235, %v2395
        %v2397 = vpop.f32.mrb[0].mxu0
        %v2398 = vpop.f32.mrb[0].mxu0
        %v2399 = vadd.f32 %v2238, %v2398
        %v2400 = vpop.f32.mrb[0].mxu0
        %2401 = vmatprep.mubr.bf16.mxu0 %v1360
        %2402 = vmatmul.mubr.bf16.gmra.mrb[0].mxu0 %v1359
        %v2403 = vpop.f32.mrb[0].mxu0
        %v2404 = vadd.f32 %v2243, %v2403
        %v2405 = vpop.f32.mrb[0].mxu0
        %v2406 = vpop.f32.mrb[0].mxu0
        %v2407 = vadd.f32 %v2246, %v2406
        %v2408 = vpop.f32.mrb[0].mxu0
        %2409 = vmatprep.mubr.bf16.mxu0 %v1363
        %2410 = vmatmul.mubr.bf16.gmra.mrb[0].mxu0 %v1362
        %v2411 = vpop.f32.mrb[0].mxu0
        %v2412 = vadd.f32 %v2251, %v2411
        %v2413 = vpop.f32.mrb[0].mxu0
        %v2414 = vpop.f32.mrb[0].mxu0
        %v2415 = vadd.f32 %v2254, %v2414
        %v2416 = vpop.f32.mrb[0].mxu0
        %2417 = vmatprep.mubr.bf16.mxu0 %v1366
        %2418 = vmatmul.mubr.bf16.gmra.mrb[0].mxu0 %v1365
        %v2419 = vpop.f32.mrb[0].mxu0
        %v2420 = vadd.f32 %v2259, %v2419
        %v2421 = vpop.f32.mrb[0].mxu0
        %v2422 = vpop.f32.mrb[0].mxu0
        %v2423 = vadd.f32 %v2262, %v2422
        %v2424 = vpop.f32.mrb[0].mxu0
        %2425 = vdwg.mxu0
        %2426 = vmatprep.subr.bf16.mxu0 0
        %2427 = vmatpush1.bf16.msra.mxu0 %v1847
        %2428 = vmatprep.subr.bf16.mxu0 0
        %2429 = vmatpush1.bf16.msra.mxu0 %v1848
        %2430 = vmatprep.subr.bf16.mxu0 0
        %2431 = vmatpush1.bf16.msra.mxu0 %v1849
        %2432 = vmatprep.subr.bf16.mxu0 0
        %2433 = vmatpush1.bf16.msra.mxu0 %v1850
        %2434 = vmatprep.subr.bf16.mxu0 0
        %2435 = vmatpush1.bf16.msra.mxu0 %v1851
        %2436 = vmatprep.subr.bf16.mxu0 0
        %2437 = vmatpush1.bf16.msra.mxu0 %v1852
        %2438 = vmatprep.subr.bf16.mxu0 0
        %2439 = vmatpush1.bf16.msra.mxu0 %v1853
        %2440 = vmatprep.subr.bf16.mxu0 0
        %2441 = vmatpush1.bf16.msra.mxu0 %v1854
        %2442 = vmatprep.subr.bf16.mxu0 0
        %2443 = vmatpush1.bf16.msra.mxu0 %v1855
        %2444 = vmatprep.subr.bf16.mxu0 0
        %2445 = vmatpush1.bf16.msra.mxu0 %v1856
        %2446 = vmatprep.subr.bf16.mxu0 0
        %2447 = vmatpush1.bf16.msra.mxu0 %v1857
        %2448 = vmatprep.subr.bf16.mxu0 0
        %2449 = vmatpush1.bf16.msra.mxu0 %v1858
        %2450 = vmatprep.subr.bf16.mxu0 0
        %2451 = vmatpush1.bf16.msra.mxu0 %v1859
        %2452 = vmatprep.subr.bf16.mxu0 0
        %2453 = vmatpush1.bf16.msra.mxu0 %v1860
        %2454 = vmatprep.subr.bf16.mxu0 0
        %2455 = vmatpush1.bf16.msra.mxu0 %v1861
        %2456 = vmatprep.subr.bf16.mxu0 0
        %2457 = vmatpush1.bf16.msra.mxu0 %v1862
        %2458 = vmatprep.mubr.bf16.mxu0 %v1323
        %2459 = vmatmul.mubr.bf16.gmra.mrb[0].mxu0 %v1322
        %v2460 = vpop.f32.mrb[0].mxu0
        %v2461 = vadd.f32 %v2300, %v2460
        %v2462 = vpop.f32.mrb[0].mxu0
        %v2463 = vpop.f32.mrb[0].mxu0
        %v2464 = vadd.f32 %v2303, %v2463
        %v2465 = vpop.f32.mrb[0].mxu0
        %2466 = vmatprep.mubr.bf16.mxu0 %v1326
        %2467 = vmatmul.mubr.bf16.gmra.mrb[0].mxu0 %v1325
        %v2468 = vpop.f32.mrb[0].mxu0
        %v2469 = vadd.f32 %v2308, %v2468
        %v2470 = vpop.f32.mrb[0].mxu0
        %v2471 = vpop.f32.mrb[0].mxu0
        %v2472 = vadd.f32 %v2311, %v2471
        %v2473 = vpop.f32.mrb[0].mxu0
        %2474 = vmatprep.mubr.bf16.mxu0 %v1329
        %2475 = vmatmul.mubr.bf16.gmra.mrb[0].mxu0 %v1328
        %v2476 = vpop.f32.mrb[0].mxu0
        %v2477 = vadd.f32 %v2316, %v2476
        %v2478 = vpop.f32.mrb[0].mxu0
        %v2479 = vpop.f32.mrb[0].mxu0
        %v2480 = vadd.f32 %v2319, %v2479
        %v2481 = vpop.f32.mrb[0].mxu0
        %2482 = vmatprep.mubr.bf16.mxu0 %v1332
        %2483 = vmatmul.mubr.bf16.gmra.mrb[0].mxu0 %v1331
        %v2484 = vpop.f32.mrb[0].mxu0
        %v2485 = vadd.f32 %v2324, %v2484
        %v2486 = vpop.f32.mrb[0].mxu0
        %v2487 = vpop.f32.mrb[0].mxu0
        %v2488 = vadd.f32 %v2327, %v2487
        %v2489 = vpop.f32.mrb[0].mxu0
        %2490 = vmatprep.mubr.bf16.mxu0 %v1335
        %2491 = vmatmul.mubr.bf16.gmra.mrb[0].mxu0 %v1334
        %v2492 = vpop.f32.mrb[0].mxu0
        %v2493 = vadd.f32 %v2332, %v2492
        %v2494 = vpop.f32.mrb[0].mxu0
        %v2495 = vpop.f32.mrb[0].mxu0
        %v2496 = vadd.f32 %v2335, %v2495
        %v2497 = vpop.f32.mrb[0].mxu0
        %2498 = vmatprep.mubr.bf16.mxu0 %v1338
        %2499 = vmatmul.mubr.bf16.gmra.mrb[0].mxu0 %v1337
        %v2500 = vpop.f32.mrb[0].mxu0
        %v2501 = vadd.f32 %v2340, %v2500
        %v2502 = vpop.f32.mrb[0].mxu0
        %v2503 = vpop.f32.mrb[0].mxu0
        %v2504 = vadd.f32 %v2343, %v2503
        %v2505 = vpop.f32.mrb[0].mxu0
        %2506 = vmatprep.mubr.bf16.mxu0 %v1341
        %2507 = vmatmul.mubr.bf16.gmra.mrb[0].mxu0 %v1340
        %v2508 = vpop.f32.mrb[0].mxu0
        %v2509 = vadd.f32 %v2348, %v2508
        %v2510 = vpop.f32.mrb[0].mxu0
        %v2511 = vpop.f32.mrb[0].mxu0
        %v2512 = vadd.f32 %v2351, %v2511
        %v2513 = vpop.f32.mrb[0].mxu0
        %2514 = vmatprep.mubr.bf16.mxu0 %v1344
        %2515 = vmatmul.mubr.bf16.gmra.mrb[0].mxu0 %v1343
        %v2516 = vpop.f32.mrb[0].mxu0
        %v2517 = vadd.f32 %v2356, %v2516
        %v2518 = vpop.f32.mrb[0].mxu0
        %v2519 = vpop.f32.mrb[0].mxu0
        %v2520 = vadd.f32 %v2359, %v2519
        %v2521 = vpop.f32.mrb[0].mxu0
        %2522 = vmatprep.mubr.bf16.mxu0 %v1347
        %2523 = vmatmul.mubr.bf16.gmra.mrb[0].mxu0 %v1346
        %v2524 = vpop.f32.mrb[0].mxu0
        %v2525 = vadd.f32 %v2364, %v2524
        %v2526 = vpop.f32.mrb[0].mxu0
        %v2527 = vpop.f32.mrb[0].mxu0
        %v2528 = vadd.f32 %v2367, %v2527
        %v2529 = vpop.f32.mrb[0].mxu0
        %2530 = vmatprep.mubr.bf16.mxu0 %v1350
        %2531 = vmatmul.mubr.bf16.gmra.mrb[0].mxu0 %v1349
        %v2532 = vpop.f32.mrb[0].mxu0
        %v2533 = vadd.f32 %v2372, %v2532
        %v2534 = vpop.f32.mrb[0].mxu0
        %v2535 = vpop.f32.mrb[0].mxu0
        %v2536 = vadd.f32 %v2375, %v2535
        %v2537 = vpop.f32.mrb[0].mxu0
        %2538 = vmatprep.mubr.bf16.mxu0 %v1353
        %2539 = vmatmul.mubr.bf16.gmra.mrb[0].mxu0 %v1352
        %v2540 = vpop.f32.mrb[0].mxu0
        %v2541 = vadd.f32 %v2380, %v2540
        %v2542 = vpop.f32.mrb[0].mxu0
        %v2543 = vpop.f32.mrb[0].mxu0
        %v2544 = vadd.f32 %v2383, %v2543
        %v2545 = vpop.f32.mrb[0].mxu0
        %2546 = vmatprep.mubr.bf16.mxu0 %v1356
        %2547 = vmatmul.mubr.bf16.gmra.mrb[0].mxu0 %v1355
        %v2548 = vpop.f32.mrb[0].mxu0
        %v2549 = vadd.f32 %v2388, %v2548
        %v2550 = vpop.f32.mrb[0].mxu0
        %v2551 = vpop.f32.mrb[0].mxu0
        %v2552 = vadd.f32 %v2391, %v2551
        %v2553 = vpop.f32.mrb[0].mxu0
        %2554 = vmatprep.mubr.bf16.mxu0 %v1359
        %2555 = vmatmul.mubr.bf16.gmra.mrb[0].mxu0 %v1358
        %v2556 = vpop.f32.mrb[0].mxu0
        %v2557 = vadd.f32 %v2396, %v2556
        %v2558 = vpop.f32.mrb[0].mxu0
        %v2559 = vpop.f32.mrb[0].mxu0
        %v2560 = vadd.f32 %v2399, %v2559
        %v2561 = vpop.f32.mrb[0].mxu0
        %2562 = vmatprep.mubr.bf16.mxu0 %v1362
        %2563 = vmatmul.mubr.bf16.gmra.mrb[0].mxu0 %v1361
        %v2564 = vpop.f32.mrb[0].mxu0
        %v2565 = vadd.f32 %v2404, %v2564
        %v2566 = vpop.f32.mrb[0].mxu0
        %v2567 = vpop.f32.mrb[0].mxu0
        %v2568 = vadd.f32 %v2407, %v2567
        %v2569 = vpop.f32.mrb[0].mxu0
        %2570 = vmatprep.mubr.bf16.mxu0 %v1365
        %2571 = vmatmul.mubr.bf16.gmra.mrb[0].mxu0 %v1364
        %v2572 = vpop.f32.mrb[0].mxu0
        %v2573 = vadd.f32 %v2412, %v2572
        %v2574 = vpop.f32.mrb[0].mxu0
        %v2575 = vpop.f32.mrb[0].mxu0
        %v2576 = vadd.f32 %v2415, %v2575
        %v2577 = vpop.f32.mrb[0].mxu0
        %2578 = vmatprep.mubr.bf16.mxu0 %v1317
        %2579 = vmatmul.mubr.bf16.gmra.mrb[0].mxu0 %v1316
        %v2580 = vpop.f32.mrb[0].mxu0
        %v2581 = vadd.f32 %v2420, %v2580
        %v2582 = vpop.f32.mrb[0].mxu0
        %v2583 = vpop.f32.mrb[0].mxu0
        %v2584 = vadd.f32 %v2423, %v2583
        %v2585 = vpop.f32.mrb[0].mxu0
        %2586 = vdwg.mxu0
        %2587 = vmatprep.subr.bf16.mxu0 0
        %2588 = vmatpush1.bf16.msra.mxu0 %v1863
        %2589 = vmatprep.subr.bf16.mxu0 0
        %2590 = vmatpush1.bf16.msra.mxu0 %v1864
        %2591 = vmatprep.subr.bf16.mxu0 0
        %2592 = vmatpush1.bf16.msra.mxu0 %v1865
        %2593 = vmatprep.subr.bf16.mxu0 0
        %2594 = vmatpush1.bf16.msra.mxu0 %v1866
        %2595 = vmatprep.subr.bf16.mxu0 0
        %2596 = vmatpush1.bf16.msra.mxu0 %v1867
        %2597 = vmatprep.subr.bf16.mxu0 0
        %2598 = vmatpush1.bf16.msra.mxu0 %v1868
        %2599 = vmatprep.subr.bf16.mxu0 0
        %2600 = vmatpush1.bf16.msra.mxu0 %v1869
        %2601 = vmatprep.subr.bf16.mxu0 0
        %2602 = vmatpush1.bf16.msra.mxu0 %v1870
        %2603 = vmatprep.subr.bf16.mxu0 0
        %2604 = vmatpush1.bf16.msra.mxu0 0
        %2605 = vmatprep.subr.bf16.mxu0 0
        %2606 = vmatpush1.bf16.msra.mxu0 0
        %2607 = vmatprep.subr.bf16.mxu0 0
        %2608 = vmatpush1.bf16.msra.mxu0 0
        %2609 = vmatprep.subr.bf16.mxu0 0
        %2610 = vmatpush1.bf16.msra.mxu0 0
        %2611 = vmatprep.subr.bf16.mxu0 0
        %2612 = vmatpush1.bf16.msra.mxu0 0
        %2613 = vmatprep.subr.bf16.mxu0 0
        %2614 = vmatpush1.bf16.msra.mxu0 0
        %2615 = vmatprep.subr.bf16.mxu0 0
        %2616 = vmatpush1.bf16.msra.mxu0 0
        %2617 = vmatprep.subr.bf16.mxu0 0
        %2618 = vmatpush1.bf16.msra.mxu0 0
        %2619 = vmatprep.mubr.bf16.mxu0 0
        %2620 = vmatmul.mubr.bf16.gmra.mrb[0].mxu0 %v1324
        %v2621 = vpop.f32.mrb[0].mxu0
        %v2622 = vadd.f32 %v2461, %v2621
        %v2623 = vpop.f32.mrb[0].mxu0
        %v2624 = vpop.f32.mrb[0].mxu0
        %v2625 = vadd.f32 %v2464, %v2624
        %v2626 = vpop.f32.mrb[0].mxu0
        %2627 = vmatprep.mubr.bf16.mxu0 0
        %2628 = vmatmul.mubr.bf16.gmra.mrb[0].mxu0 %v1327
        %v2629 = vpop.f32.mrb[0].mxu0
        %v2630 = vadd.f32 %v2469, %v2629
        %v2631 = vpop.f32.mrb[0].mxu0
        %v2632 = vpop.f32.mrb[0].mxu0
        %v2633 = vadd.f32 %v2472, %v2632
        %v2634 = vpop.f32.mrb[0].mxu0
        %2635 = vmatprep.mubr.bf16.mxu0 0
        %2636 = vmatmul.mubr.bf16.gmra.mrb[0].mxu0 %v1330
        %v2637 = vpop.f32.mrb[0].mxu0
        %v2638 = vadd.f32 %v2477, %v2637
        %v2639 = vpop.f32.mrb[0].mxu0
        %v2640 = vpop.f32.mrb[0].mxu0
        %v2641 = vadd.f32 %v2480, %v2640
        %v2642 = vpop.f32.mrb[0].mxu0
        %2643 = vmatprep.mubr.bf16.mxu0 0
        %2644 = vmatmul.mubr.bf16.gmra.mrb[0].mxu0 %v1333
        %v2645 = vpop.f32.mrb[0].mxu0
        %v2646 = vadd.f32 %v2485, %v2645
        %v2647 = vpop.f32.mrb[0].mxu0
        %v2648 = vpop.f32.mrb[0].mxu0
        %v2649 = vadd.f32 %v2488, %v2648
        %v2650 = vpop.f32.mrb[0].mxu0
        %2651 = vmatprep.mubr.bf16.mxu0 0
        %2652 = vmatmul.mubr.bf16.gmra.mrb[0].mxu0 %v1336
        %v2653 = vpop.f32.mrb[0].mxu0
        %v2654 = vadd.f32 %v2493, %v2653
        %v2655 = vpop.f32.mrb[0].mxu0
        %v2656 = vpop.f32.mrb[0].mxu0
        %v2657 = vadd.f32 %v2496, %v2656
        %v2658 = vpop.f32.mrb[0].mxu0
        %2659 = vmatprep.mubr.bf16.mxu0 0
        %2660 = vmatmul.mubr.bf16.gmra.mrb[0].mxu0 %v1339
        %v2661 = vpop.f32.mrb[0].mxu0
        %v2662 = vadd.f32 %v2501, %v2661
        %v2663 = vpop.f32.mrb[0].mxu0
        %v2664 = vpop.f32.mrb[0].mxu0
        %v2665 = vadd.f32 %v2504, %v2664
        %v2666 = vpop.f32.mrb[0].mxu0
        %2667 = vmatprep.mubr.bf16.mxu0 0
        %2668 = vmatmul.mubr.bf16.gmra.mrb[0].mxu0 %v1342
        %v2669 = vpop.f32.mrb[0].mxu0
        %v2670 = vadd.f32 %v2509, %v2669
        %v2671 = vpop.f32.mrb[0].mxu0
        %v2672 = vpop.f32.mrb[0].mxu0
        %v2673 = vadd.f32 %v2512, %v2672
        %v2674 = vpop.f32.mrb[0].mxu0
        %2675 = vmatprep.mubr.bf16.mxu0 0
        %2676 = vmatmul.mubr.bf16.gmra.mrb[0].mxu0 %v1345
        %v2677 = vpop.f32.mrb[0].mxu0
        %v2678 = vadd.f32 %v2517, %v2677
        %v2679 = vpop.f32.mrb[0].mxu0
        %v2680 = vpop.f32.mrb[0].mxu0
        %v2681 = vadd.f32 %v2520, %v2680
        %v2682 = vpop.f32.mrb[0].mxu0
        %2683 = vmatprep.mubr.bf16.mxu0 0
        %2684 = vmatmul.mubr.bf16.gmra.mrb[0].mxu0 %v1348
        %v2685 = vpop.f32.mrb[0].mxu0
        %v2686 = vadd.f32 %v2525, %v2685
        %v2687 = vpop.f32.mrb[0].mxu0
        %v2688 = vpop.f32.mrb[0].mxu0
        %v2689 = vadd.f32 %v2528, %v2688
        %v2690 = vpop.f32.mrb[0].mxu0
        %2691 = vmatprep.mubr.bf16.mxu0 0
        %2692 = vmatmul.mubr.bf16.gmra.mrb[0].mxu0 %v1351
        %v2693 = vpop.f32.mrb[0].mxu0
        %v2694 = vadd.f32 %v2533, %v2693
        %v2695 = vpop.f32.mrb[0].mxu0
        %v2696 = vpop.f32.mrb[0].mxu0
        %v2697 = vadd.f32 %v2536, %v2696
        %v2698 = vpop.f32.mrb[0].mxu0
        %2699 = vmatprep.mubr.bf16.mxu0 0
        %2700 = vmatmul.mubr.bf16.gmra.mrb[0].mxu0 %v1354
        %v2701 = vpop.f32.mrb[0].mxu0
        %v2702 = vadd.f32 %v2541, %v2701
        %v2703 = vpop.f32.mrb[0].mxu0
        %v2704 = vpop.f32.mrb[0].mxu0
        %v2705 = vadd.f32 %v2544, %v2704
        %v2706 = vpop.f32.mrb[0].mxu0
        %2707 = vmatprep.mubr.bf16.mxu0 0
        %2708 = vmatmul.mubr.bf16.gmra.mrb[0].mxu0 %v1357
        %v2709 = vpop.f32.mrb[0].mxu0
        %v2710 = vadd.f32 %v2549, %v2709
        %v2711 = vpop.f32.mrb[0].mxu0
        %v2712 = vpop.f32.mrb[0].mxu0
        %v2713 = vadd.f32 %v2552, %v2712
        %v2714 = vpop.f32.mrb[0].mxu0
        %2715 = vmatprep.mubr.bf16.mxu0 0
        %2716 = vmatmul.mubr.bf16.gmra.mrb[0].mxu0 %v1360
        %v2717 = vpop.f32.mrb[0].mxu0
        %v2718 = vadd.f32 %v2557, %v2717
        %v2719 = vpop.f32.mrb[0].mxu0
        %v2720 = vpop.f32.mrb[0].mxu0
        %v2721 = vadd.f32 %v2560, %v2720
        %v2722 = vpop.f32.mrb[0].mxu0
        %2723 = vmatprep.mubr.bf16.mxu0 0
        %2724 = vmatmul.mubr.bf16.gmra.mrb[0].mxu0 %v1363
        %v2725 = vpop.f32.mrb[0].mxu0
        %v2726 = vadd.f32 %v2565, %v2725
        %v2727 = vpop.f32.mrb[0].mxu0
        %v2728 = vpop.f32.mrb[0].mxu0
        %v2729 = vadd.f32 %v2568, %v2728
        %v2730 = vpop.f32.mrb[0].mxu0
        %2731 = vmatprep.mubr.bf16.mxu0 0
        %2732 = vmatmul.mubr.bf16.gmra.mrb[0].mxu0 %v1366
        %v2733 = vpop.f32.mrb[0].mxu0
        %v2734 = vadd.f32 %v2573, %v2733
        %v2735 = vpop.f32.mrb[0].mxu0
        %v2736 = vpop.f32.mrb[0].mxu0
        %v2737 = vadd.f32 %v2576, %v2736
        %v2738 = vpop.f32.mrb[0].mxu0
        %2739 = vmatprep.mubr.bf16.mxu0 0
        %2740 = vmatmul.mubr.bf16.gmra.mrb[0].mxu0 %v1318
        %v2741 = vpop.f32.mrb[0].mxu0
        %v2742 = vadd.f32 %v2581, %v2741
        %v2743 = vpop.f32.mrb[0].mxu0
        %v2744 = vpop.f32.mrb[0].mxu0
        %v2745 = vadd.f32 %v2584, %v2744
        %v2746 = vpop.f32.mrb[0].mxu0
        %2747 = vdwg.mxu0
        %v2748 = vld [vmem:[%s5] sm:$0x1]
        %v2750 = vlaneseq
        %v2751 = vshrl.u32 %v2750, 7
        %v2752 = vsub.s32 0, %v2751
        %v2753 = vrot.slane %v2748, %v2752
        %v2755 = vmul.f32 %v2622, %v2753
        %v2756 = vmul.f32 %v2625, %v2753
        %v2757 = vmul.f32 %v2630, %v2753
        %v2758 = vmul.f32 %v2633, %v2753
        %v2759 = vmul.f32 %v2638, %v2753
        %v2760 = vmul.f32 %v2641, %v2753
        %v2761 = vmul.f32 %v2646, %v2753
        %v2762 = vmul.f32 %v2649, %v2753
        %v2763 = vmul.f32 %v2654, %v2753
        %v2764 = vmul.f32 %v2657, %v2753
        %v2765 = vmul.f32 %v2662, %v2753
        %v2766 = vmul.f32 %v2665, %v2753
        %v2767 = vmul.f32 %v2670, %v2753
        %v2768 = vmul.f32 %v2673, %v2753
        %v2769 = vmul.f32 %v2678, %v2753
        %v2770 = vmul.f32 %v2681, %v2753
        %v2771 = vmul.f32 %v2686, %v2753
        %v2772 = vmul.f32 %v2689, %v2753
        %v2773 = vmul.f32 %v2694, %v2753
        %v2774 = vmul.f32 %v2697, %v2753
        %v2775 = vmul.f32 %v2702, %v2753
        %v2776 = vmul.f32 %v2705, %v2753
        %v2777 = vmul.f32 %v2710, %v2753
        %v2778 = vmul.f32 %v2713, %v2753
        %v2779 = vmul.f32 %v2718, %v2753
        %v2780 = vmul.f32 %v2721, %v2753
        %v2781 = vmul.f32 %v2726, %v2753
        %v2782 = vmul.f32 %v2729, %v2753
        %v2783 = vmul.f32 %v2734, %v2753
        %v2784 = vmul.f32 %v2737, %v2753
        %v2785 = vmul.f32 %v2742, %v2753
        %v2786 = vmul.f32 %v2745, %v2753
        %v2787 = vld [vmem:[%s6] sm:$0x1]
        %v2789 = vlaneseq
        %v2790 = vshrl.u32 %v2789, 7
        %v2791 = vsub.s32 0, %v2790
        %v2792 = vrot.slane %v2787, %v2791
        %v2794 = vadd.f32 %v2755, %v2792
        %v2795 = vadd.f32 %v2756, %v2792
        %v2796 = vadd.f32 %v2757, %v2792
        %v2797 = vadd.f32 %v2758, %v2792
        %v2798 = vadd.f32 %v2759, %v2792
        %v2799 = vadd.f32 %v2760, %v2792
        %v2800 = vadd.f32 %v2761, %v2792
        %v2801 = vadd.f32 %v2762, %v2792
        %v2802 = vadd.f32 %v2763, %v2792
        %v2803 = vadd.f32 %v2764, %v2792
        %v2804 = vadd.f32 %v2765, %v2792
        %v2805 = vadd.f32 %v2766, %v2792
        %v2806 = vadd.f32 %v2767, %v2792
        %v2807 = vadd.f32 %v2768, %v2792
        %v2808 = vadd.f32 %v2769, %v2792
        %v2809 = vadd.f32 %v2770, %v2792
        %v2810 = vadd.f32 %v2771, %v2792
        %v2811 = vadd.f32 %v2772, %v2792
        %v2812 = vadd.f32 %v2773, %v2792
        %v2813 = vadd.f32 %v2774, %v2792
        %v2814 = vadd.f32 %v2775, %v2792
        %v2815 = vadd.f32 %v2776, %v2792
        %v2816 = vadd.f32 %v2777, %v2792
        %v2817 = vadd.f32 %v2778, %v2792
        %v2818 = vadd.f32 %v2779, %v2792
        %v2819 = vadd.f32 %v2780, %v2792
        %v2820 = vadd.f32 %v2781, %v2792
        %v2821 = vadd.f32 %v2782, %v2792
        %v2822 = vadd.f32 %v2783, %v2792
        %v2823 = vadd.f32 %v2784, %v2792
        %v2824 = vadd.f32 %v2785, %v2792
        %v2825 = vadd.f32 %v2786, %v2792
        %v2826 = vmax.f32 %v2794, 0.0
        %v2827 = vmax.f32 %v2795, 0.0
        %v2828 = vmax.f32 %v2796, 0.0
        %v2829 = vmax.f32 %v2797, 0.0
        %v2830 = vmax.f32 %v2798, 0.0
        %v2831 = vmax.f32 %v2799, 0.0
        %v2832 = vmax.f32 %v2800, 0.0
        %v2833 = vmax.f32 %v2801, 0.0
        %v2834 = vmax.f32 %v2802, 0.0
        %v2835 = vmax.f32 %v2803, 0.0
        %v2836 = vmax.f32 %v2804, 0.0
        %v2837 = vmax.f32 %v2805, 0.0
        %v2838 = vmax.f32 %v2806, 0.0
        %v2839 = vmax.f32 %v2807, 0.0
        %v2840 = vmax.f32 %v2808, 0.0
        %v2841 = vmax.f32 %v2809, 0.0
        %v2842 = vmax.f32 %v2810, 0.0
        %v2843 = vmax.f32 %v2811, 0.0
        %v2844 = vmax.f32 %v2812, 0.0
        %v2845 = vmax.f32 %v2813, 0.0
        %v2846 = vmax.f32 %v2814, 0.0
        %v2847 = vmax.f32 %v2815, 0.0
        %v2848 = vmax.f32 %v2816, 0.0
        %v2849 = vmax.f32 %v2817, 0.0
        %v2850 = vmax.f32 %v2818, 0.0
        %v2851 = vmax.f32 %v2819, 0.0
        %v2852 = vmax.f32 %v2820, 0.0
        %v2853 = vmax.f32 %v2821, 0.0
        %v2854 = vmax.f32 %v2822, 0.0
        %v2855 = vmax.f32 %v2823, 0.0
        %v2856 = vmax.f32 %v2824, 0.0
        %v2857 = vmax.f32 %v2825, 0.0
        %2858 = vst [vmem:[%s316] sm:$0xff] %v2826
        %2859 = vst [vmem:[%s316 + $0x8] sm:$0xff] %v2827
        %2860 = vst [vmem:[%s316 + $0x10] sm:$0xff] %v2828
        %2861 = vst [vmem:[%s316 + $0x18] sm:$0xff] %v2829
        %2862 = vst [vmem:[%s316 + $0x20] sm:$0xff] %v2830
        %2863 = vst [vmem:[%s316 + $0x28] sm:$0xff] %v2831
        %2864 = vst [vmem:[%s316 + $0x30] sm:$0xff] %v2832
        %2865 = vst [vmem:[%s316 + $0x38] sm:$0xff] %v2833
        %2866 = vst [vmem:[%s316 + $0x40] sm:$0xff] %v2834
        %2867 = vst [vmem:[%s316 + $0x48] sm:$0xff] %v2835
        %2868 = vst [vmem:[%s316 + $0x50] sm:$0xff] %v2836
        %2869 = vst [vmem:[%s316 + $0x58] sm:$0xff] %v2837
        %2870 = vst [vmem:[%s316 + $0x60] sm:$0xff] %v2838
        %2871 = vst [vmem:[%s316 + $0x68] sm:$0xff] %v2839
        %2872 = vst [vmem:[%s316 + $0x70] sm:$0xff] %v2840
        %2873 = vst [vmem:[%s316 + $0x78] sm:$0xff] %v2841
        %2874 = vst [vmem:[%s316 + $0x80] sm:$0xff] %v2842
        %2875 = vst [vmem:[%s316 + $0x88] sm:$0xff] %v2843
        %2876 = vst [vmem:[%s316 + $0x90] sm:$0xff] %v2844
        %2877 = vst [vmem:[%s316 + $0x98] sm:$0xff] %v2845
        %2878 = vst [vmem:[%s316 + $0xa0] sm:$0xff] %v2846
        %2879 = vst [vmem:[%s316 + $0xa8] sm:$0xff] %v2847
        %2880 = vst [vmem:[%s316 + $0xb0] sm:$0xff] %v2848
        %2881 = vst [vmem:[%s316 + $0xb8] sm:$0xff] %v2849
        %2882 = vst [vmem:[%s316 + $0xc0] sm:$0xff] %v2850
        %2883 = vst [vmem:[%s316 + $0xc8] sm:$0xff] %v2851
        %2884 = vst [vmem:[%s316 + $0xd0] sm:$0xff] %v2852
        %2885 = vst [vmem:[%s316 + $0xd8] sm:$0xff] %v2853
        %2886 = vst [vmem:[%s316 + $0xe0] sm:$0xff] %v2854
        %2887 = vst [vmem:[%s316 + $0xe8] sm:$0xff] %v2855
        %2888 = vst [vmem:[%s316 + $0xf0] sm:$0xff] %v2856
        %2889 = vst [vmem:[%s316 + $0xf8] sm:$0xff] %v2857
        %s2890 = sand.u32 %s196, 1
        %s2891 = scalar_lea.sflag [#allocation3], %s2890
        %s2892 = sand.u32 %s196, 1
        %s2893 = smul.addr %s2892, 256
        %s2894 = scalar_lea.vmem [#allocation2], %s2893
        // Predicated region
        $region49: #{bga_forward.5} parent=47 // pred_check
          %p2895 = pneg %p206
        $region50: #{bga_forward.5} parent=47 // pred_check_branch
          %2897 = sbr.rel (%p2895) target = $region52
        $region51: #{bga_forward.5} parent=47 // pred_region
          %s2899 = ssub.s32 4096, 4096
          %2900 = vsyncadd %s2891, %s2899
          %s2901 = smul.addr %s21, 32
          %s2902 = smul.addr %s2901, 128
          %s2903 = scalar_lea.hbm %s7, %s2902
          %s2904 = sshll.u32 %s2894, 4
          %s2905 = int_to_ptr.vmem [resolvable:$true] %s2904
          %2910 = dma.vmem_to_hbm [thread:$0]  %s2905, 4096, %s2903, %s2891, 128, 128, 8
        $region52: #{bga_forward.5} parent=47 // pred_fallthru
          _
      $region48: #{bga_forward.5} parent=5 // pred_fallthru
        _
      %p2911 = scmp.le.s32.totalorder 2, %s16
      // Predicated region
      $region53: #{bga_forward.5} parent=5 // pred_check
        %p2912 = pneg %p2911
      $region54: #{bga_forward.5} parent=5 // pred_check_branch
        %2914 = sbr.rel (%p2912) target = $region56
      $region55: #{bga_forward.5} parent=5 // pred_region
        %s2915 = ssub.s32 %s16, 2
        // Predicated region
        $region57: #{bga_forward.5} parent=55 // pred_check
          %p2916 = pneg %p212
        $region58: #{bga_forward.5} parent=55 // pred_check_branch
          %2918 = sbr.rel (%p2916) target = $region60
        $region59: #{bga_forward.5} parent=55 // pred_region
          %s2919 = sand.u32 %s197, 1
          %s2920 = scalar_lea.sflag [#allocation3], %s2919
          %s2921 = sand.u32 %s197, 1
          %s2922 = smul.addr %s2921, 256
          %s2923 = scalar_lea.vmem [#allocation2], %s2922
          %2924 = dma.done %s2920, 4096
        $region60: #{bga_forward.5} parent=55 // pred_fallthru
          _
      $region56: #{bga_forward.5} parent=5 // pred_fallthru
        _
    $region6: #{bga_forward.5} parent=1 // loop_footer
      %s20 = sadd.s32 1, %s16
    $region7: #{bga_forward.5} parent=1 // loop_footer_branch
      %15 = sbr.rel target = $region3
    $region8: #{bga_forward.5} parent=1 // loop_exit
      _
    %2925 = vsyncpa [#allocation3], 1
    %s2926 = scalar_lea.sflag [#allocation3], 1
    %2927 = vsyncpa %s2926, 1

// kernel: bga_forward.3
$region0: #{bga_forward.3}
  #allocation0 [shape = 'u32[]', space=smem, size = 0x4, offset = 0x4, fixed_abs, tag = 'smem constant byte address 0x4 - core index']
  #allocation1 [shape = 'u32[144,128]{1,0:T(1,128)}', space=vmem, size = 0x12000, scoped, tag = 'internal scratch']
  %s0 = inlined_call_operand.vmem [shape: f32[2,16,16,128], index: 0, kind: input, shape index: {}]
  %s1 = inlined_call_operand.vmem [shape: f32[9,128], index: 1, kind: input, shape index: {}]
  %s2 = inlined_call_operand.vmem [shape: f32[1,128], index: 2, kind: input, shape index: {}]
  %s3 = inlined_call_operand.vmem [shape: f32[1,128], index: 3, kind: input, shape index: {}]
  %s4 = inlined_call_operand.vmem [shape: bf16[128,128], index: 4, kind: input, shape index: {}]
  %s5 = inlined_call_operand.vmem [shape: bf16[1152,128], index: 5, kind: input, shape index: {}]
  %s6 = inlined_call_operand.vmem [shape: f32[1,128], index: 6, kind: input, shape index: {}]
  %s7 = inlined_call_operand.vmem [shape: f32[1,128], index: 7, kind: input, shape index: {}]
  %s8 = inlined_call_operand.vmem [shape: f32[4,16], index: 8, kind: input, shape index: {}]
  %s9 = inlined_call_operand.vmem [shape: bf16[2,16,16,128], index: 9, kind: output, shape index: {0}]
  %s10 = inlined_call_operand.vmem [shape: f32[2,4,4,128], index: 10, kind: output, shape index: {1}]
  %11 = xla_tuple %s9, %s10
  %s12 = sld [smem:[#allocation0]]
  $region77: #{bga_forward.3} parent=0
    _
  %s14 = ssub.s32 1, %s12
  %s15 = scalar_select 0, %s14, %s12
  loop: start=0, step=1, limit=4
  $region2: #{bga_forward.3} parent=0 // loop_pre_header
    _
  $region3: #{bga_forward.3} parent=0 // loop_header
    %s17 = sphi 0, %s21
    %p18 = scmp.ge.s32.totalorder %s17, 4
    %s27 = sphi 0, %s29
    %s30 = sphi 0, %s27
    %s31 = sphi 0, %s30
    %s47 = sphi 0, %s31
    %s51 = sphi 0, %s51
    %s53 = sphi 0, %s51
    %s54 = sphi 0, %s53
    %s68 = sphi 0, %s54
    %s72 = sphi 0, %s72
    %s74 = sphi 0, %s72
    %s75 = sphi 0, %s74
    %s89 = sphi 0, %s75
    %s93 = sphi 0, %s93
    %s95 = sphi 0, %s93
    %s96 = sphi 0, %s95
    %s110 = sphi 0, %s96
    %s114 = sphi 0, %s114
    %s116 = sphi 0, %s114
    %s117 = sphi 0, %s116
    %s131 = sphi 0, %s117
    %s135 = sphi 0, %s135
    %s137 = sphi 0, %s135
    %s138 = sphi 0, %s137
    %s152 = sphi 0, %s138
    %s156 = sphi 0, %s156
    %s158 = sphi 0, %s156
    %s159 = sphi 0, %s158
    %s173 = sphi 0, %s159
    %s177 = sphi 0, %s177
    %s179 = sphi 0, %s177
    %s180 = sphi 0, %s179
    %s194 = sphi 0, %s180
    %s198 = sphi 0, %s198
    %s200 = sphi 0, %s198
    %s201 = sphi 0, %s200
    %s215 = sphi 0, %s201
    %s221 = sphi 0, %s223
    %s224 = sphi 0, %s221
    %s225 = sphi 0, %s224
    %s241 = sphi 0, %s225
    %s247 = sphi 0, %s249
    %s250 = sphi 0, %s247
    %s251 = sphi 0, %s250
    %s267 = sphi 0, %s251
  $region4: #{bga_forward.3} parent=0 // loop_header_branch
    %20 = sbr.rel (%p18) target = $region8
  $region5: #{bga_forward.3} parent=0 // loop_body
    %s22 = ssub.s32 %s17, 1
    %s23 = ssub.s32 %s17, 2
    %s24 = sadd.s32 %s17, 1
    %s25 = ssub.s32 %s17, %s24
    %p26 = scmp.eq.s32.totalorder %s25, 0
    %s28 = sadd.s32 %s27, 1
    %s29 = scalar_select %p26, %s27, %s28
    %p32 = pneg %p26
    %p33 = scmp.eq.s32.totalorder %s17, 1
    %p34 = por %p32, %p33
    %p35 = scmp.ne.s32.totalorder %s27, %s30
    %p36 = scmp.eq.s32.totalorder %s17, 0
    %p37 = por %p35, %p36
    %p38 = scmp.ne.s32.totalorder %s27, %s30
    %p39 = scmp.eq.s32.totalorder %s22, 1
    %p40 = por %p38, %p39
    %p41 = scmp.ne.s32.totalorder %s30, %s31
    %p42 = scmp.eq.s32.totalorder %s22, 0
    %p43 = por %p41, %p42
    %p44 = scmp.ne.s32.totalorder %s30, %s31
    %p45 = scmp.eq.s32.totalorder %s23, 1
    %p46 = por %p44, %p45
    %p48 = scmp.ne.s32.totalorder %s31, %s47
    %p49 = scmp.eq.s32.totalorder %s23, 0
    %p50 = por %p48, %p49
    %s52 = sadd.s32 %s51, 1
    %p55 = scmp.eq.s32.totalorder %s17, 1
    %p56 = scmp.ne.s32.totalorder %s51, %s53
    %p57 = scmp.eq.s32.totalorder %s17, 0
    %p58 = por %p56, %p57
    %p59 = scmp.ne.s32.totalorder %s51, %s53
    %p60 = scmp.eq.s32.totalorder %s22, 1
    %p61 = por %p59, %p60
    %p62 = scmp.ne.s32.totalorder %s53, %s54
    %p63 = scmp.eq.s32.totalorder %s22, 0
    %p64 = por %p62, %p63
    %p65 = scmp.ne.s32.totalorder %s53, %s54
    %p66 = scmp.eq.s32.totalorder %s23, 1
    %p67 = por %p65, %p66
    %p69 = scmp.ne.s32.totalorder %s54, %s68
    %p70 = scmp.eq.s32.totalorder %s23, 0
    %p71 = por %p69, %p70
    %s73 = sadd.s32 %s72, 1
    %p76 = scmp.eq.s32.totalorder %s17, 1
    %p77 = scmp.ne.s32.totalorder %s72, %s74
    %p78 = scmp.eq.s32.totalorder %s17, 0
    %p79 = por %p77, %p78
    %p80 = scmp.ne.s32.totalorder %s72, %s74
    %p81 = scmp.eq.s32.totalorder %s22, 1
    %p82 = por %p80, %p81
    %p83 = scmp.ne.s32.totalorder %s74, %s75
    %p84 = scmp.eq.s32.totalorder %s22, 0
    %p85 = por %p83, %p84
    %p86 = scmp.ne.s32.totalorder %s74, %s75
    %p87 = scmp.eq.s32.totalorder %s23, 1
    %p88 = por %p86, %p87
    %p90 = scmp.ne.s32.totalorder %s75, %s89
    %p91 = scmp.eq.s32.totalorder %s23, 0
    %p92 = por %p90, %p91
    %s94 = sadd.s32 %s93, 1
    %p97 = scmp.eq.s32.totalorder %s17, 1
    %p98 = scmp.ne.s32.totalorder %s93, %s95
    %p99 = scmp.eq.s32.totalorder %s17, 0
    %p100 = por %p98, %p99
    %p101 = scmp.ne.s32.totalorder %s93, %s95
    %p102 = scmp.eq.s32.totalorder %s22, 1
    %p103 = por %p101, %p102
    %p104 = scmp.ne.s32.totalorder %s95, %s96
    %p105 = scmp.eq.s32.totalorder %s22, 0
    %p106 = por %p104, %p105
    %p107 = scmp.ne.s32.totalorder %s95, %s96
    %p108 = scmp.eq.s32.totalorder %s23, 1
    %p109 = por %p107, %p108
    %p111 = scmp.ne.s32.totalorder %s96, %s110
    %p112 = scmp.eq.s32.totalorder %s23, 0
    %p113 = por %p111, %p112
    %s115 = sadd.s32 %s114, 1
    %p118 = scmp.eq.s32.totalorder %s17, 1
    %p119 = scmp.ne.s32.totalorder %s114, %s116
    %p120 = scmp.eq.s32.totalorder %s17, 0
    %p121 = por %p119, %p120
    %p122 = scmp.ne.s32.totalorder %s114, %s116
    %p123 = scmp.eq.s32.totalorder %s22, 1
    %p124 = por %p122, %p123
    %p125 = scmp.ne.s32.totalorder %s116, %s117
    %p126 = scmp.eq.s32.totalorder %s22, 0
    %p127 = por %p125, %p126
    %p128 = scmp.ne.s32.totalorder %s116, %s117
    %p129 = scmp.eq.s32.totalorder %s23, 1
    %p130 = por %p128, %p129
    %p132 = scmp.ne.s32.totalorder %s117, %s131
    %p133 = scmp.eq.s32.totalorder %s23, 0
    %p134 = por %p132, %p133
    %s136 = sadd.s32 %s135, 1
    %p139 = scmp.eq.s32.totalorder %s17, 1
    %p140 = scmp.ne.s32.totalorder %s135, %s137
    %p141 = scmp.eq.s32.totalorder %s17, 0
    %p142 = por %p140, %p141
    %p143 = scmp.ne.s32.totalorder %s135, %s137
    %p144 = scmp.eq.s32.totalorder %s22, 1
    %p145 = por %p143, %p144
    %p146 = scmp.ne.s32.totalorder %s137, %s138
    %p147 = scmp.eq.s32.totalorder %s22, 0
    %p148 = por %p146, %p147
    %p149 = scmp.ne.s32.totalorder %s137, %s138
    %p150 = scmp.eq.s32.totalorder %s23, 1
    %p151 = por %p149, %p150
    %p153 = scmp.ne.s32.totalorder %s138, %s152
    %p154 = scmp.eq.s32.totalorder %s23, 0
    %p155 = por %p153, %p154
    %s157 = sadd.s32 %s156, 1
    %p160 = scmp.eq.s32.totalorder %s17, 1
    %p161 = scmp.ne.s32.totalorder %s156, %s158
    %p162 = scmp.eq.s32.totalorder %s17, 0
    %p163 = por %p161, %p162
    %p164 = scmp.ne.s32.totalorder %s156, %s158
    %p165 = scmp.eq.s32.totalorder %s22, 1
    %p166 = por %p164, %p165
    %p167 = scmp.ne.s32.totalorder %s158, %s159
    %p168 = scmp.eq.s32.totalorder %s22, 0
    %p169 = por %p167, %p168
    %p170 = scmp.ne.s32.totalorder %s158, %s159
    %p171 = scmp.eq.s32.totalorder %s23, 1
    %p172 = por %p170, %p171
    %p174 = scmp.ne.s32.totalorder %s159, %s173
    %p175 = scmp.eq.s32.totalorder %s23, 0
    %p176 = por %p174, %p175
    %s178 = sadd.s32 %s177, 1
    %p181 = scmp.eq.s32.totalorder %s17, 1
    %p182 = scmp.ne.s32.totalorder %s177, %s179
    %p183 = scmp.eq.s32.totalorder %s17, 0
    %p184 = por %p182, %p183
    %p185 = scmp.ne.s32.totalorder %s177, %s179
    %p186 = scmp.eq.s32.totalorder %s22, 1
    %p187 = por %p185, %p186
    %p188 = scmp.ne.s32.totalorder %s179, %s180
    %p189 = scmp.eq.s32.totalorder %s22, 0
    %p190 = por %p188, %p189
    %p191 = scmp.ne.s32.totalorder %s179, %s180
    %p192 = scmp.eq.s32.totalorder %s23, 1
    %p193 = por %p191, %p192
    %p195 = scmp.ne.s32.totalorder %s180, %s194
    %p196 = scmp.eq.s32.totalorder %s23, 0
    %p197 = por %p195, %p196
    %s199 = sadd.s32 %s198, 1
    %p202 = scmp.eq.s32.totalorder %s17, 1
    %p203 = scmp.ne.s32.totalorder %s198, %s200
    %p204 = scmp.eq.s32.totalorder %s17, 0
    %p205 = por %p203, %p204
    %p206 = scmp.ne.s32.totalorder %s198, %s200
    %p207 = scmp.eq.s32.totalorder %s22, 1
    %p208 = por %p206, %p207
    %p209 = scmp.ne.s32.totalorder %s200, %s201
    %p210 = scmp.eq.s32.totalorder %s22, 0
    %p211 = por %p209, %p210
    %p212 = scmp.ne.s32.totalorder %s200, %s201
    %p213 = scmp.eq.s32.totalorder %s23, 1
    %p214 = por %p212, %p213
    %p216 = scmp.ne.s32.totalorder %s201, %s215
    %p217 = scmp.eq.s32.totalorder %s23, 0
    %p218 = por %p216, %p217
    %s219 = ssub.s32 %s17, %s24
    %p220 = scmp.eq.s32.totalorder %s219, 0
    %s222 = sadd.s32 %s221, 1
    %s223 = scalar_select %p220, %s221, %s222
    %p226 = pneg %p220
    %p227 = scmp.eq.s32.totalorder %s17, 1
    %p228 = por %p226, %p227
    %p229 = scmp.ne.s32.totalorder %s221, %s224
    %p230 = scmp.eq.s32.totalorder %s17, 0
    %p231 = por %p229, %p230
    %p232 = scmp.ne.s32.totalorder %s221, %s224
    %p233 = scmp.eq.s32.totalorder %s22, 1
    %p234 = por %p232, %p233
    %p235 = scmp.ne.s32.totalorder %s224, %s225
    %p236 = scmp.eq.s32.totalorder %s22, 0
    %p237 = por %p235, %p236
    %p238 = scmp.ne.s32.totalorder %s224, %s225
    %p239 = scmp.eq.s32.totalorder %s23, 1
    %p240 = por %p238, %p239
    %p242 = scmp.ne.s32.totalorder %s225, %s241
    %p243 = scmp.eq.s32.totalorder %s23, 0
    %p244 = por %p242, %p243
    %s245 = ssub.s32 %s17, %s24
    %p246 = scmp.eq.s32.totalorder %s245, 0
    %s248 = sadd.s32 %s247, 1
    %s249 = scalar_select %p246, %s247, %s248
    %p252 = pneg %p246
    %p253 = scmp.eq.s32.totalorder %s17, 1
    %p254 = por %p252, %p253
    %p255 = scmp.ne.s32.totalorder %s247, %s250
    %p256 = scmp.eq.s32.totalorder %s17, 0
    %p257 = por %p255, %p256
    %p258 = scmp.ne.s32.totalorder %s247, %s250
    %p259 = scmp.eq.s32.totalorder %s22, 1
    %p260 = por %p258, %p259
    %p261 = scmp.ne.s32.totalorder %s250, %s251
    %p262 = scmp.eq.s32.totalorder %s22, 0
    %p263 = por %p261, %p262
    %p264 = scmp.ne.s32.totalorder %s250, %s251
    %p265 = scmp.eq.s32.totalorder %s23, 1
    %p266 = por %p264, %p265
    %p268 = scmp.ne.s32.totalorder %s251, %s267
    %p269 = scmp.eq.s32.totalorder %s23, 0
    %p270 = por %p268, %p269
    %p271 = scmp.le.s32.totalorder 1, %s17
    %p272 = scmp.lt.s32.totalorder %s17, 3
    %p273 = pnand %p271, %p272
    %p274 = pneg %p273
    // Predicated region
    $region9: #{bga_forward.3} parent=5 // pred_check
      _
    $region10: #{bga_forward.3} parent=5 // pred_check_branch
      %276 = sbr.rel (%p273) target = $region12
    $region11: #{bga_forward.3} parent=5 // pred_region
      %s277 = ssub.s32 %s17, 1
      // Predicated region
      $region13: #{bga_forward.3} parent=11 // pred_check
        %p278 = pneg %p64
      $region14: #{bga_forward.3} parent=11 // pred_check_branch
        %280 = sbr.rel (%p278) target = $region16
      $region15: #{bga_forward.3} parent=11 // pred_region
        _
      $region16: #{bga_forward.3} parent=11 // pred_fallthru
        _
      // Predicated region
      $region17: #{bga_forward.3} parent=11 // pred_check
        %p281 = pneg %p85
      $region18: #{bga_forward.3} parent=11 // pred_check_branch
        %283 = sbr.rel (%p281) target = $region20
      $region19: #{bga_forward.3} parent=11 // pred_region
        _
      $region20: #{bga_forward.3} parent=11 // pred_fallthru
        _
      // Predicated region
      $region21: #{bga_forward.3} parent=11 // pred_check
        %p284 = pneg %p106
      $region22: #{bga_forward.3} parent=11 // pred_check_branch
        %286 = sbr.rel (%p284) target = $region24
      $region23: #{bga_forward.3} parent=11 // pred_region
        _
      $region24: #{bga_forward.3} parent=11 // pred_fallthru
        _
      // Predicated region
      $region25: #{bga_forward.3} parent=11 // pred_check
        %p287 = pneg %p127
      $region26: #{bga_forward.3} parent=11 // pred_check_branch
        %289 = sbr.rel (%p287) target = $region28
      $region27: #{bga_forward.3} parent=11 // pred_region
        _
      $region28: #{bga_forward.3} parent=11 // pred_fallthru
        _
      // Predicated region
      $region29: #{bga_forward.3} parent=11 // pred_check
        %p290 = pneg %p148
      $region30: #{bga_forward.3} parent=11 // pred_check_branch
        %292 = sbr.rel (%p290) target = $region32
      $region31: #{bga_forward.3} parent=11 // pred_region
        _
      $region32: #{bga_forward.3} parent=11 // pred_fallthru
        _
      // Predicated region
      $region33: #{bga_forward.3} parent=11 // pred_check
        %p293 = pneg %p169
      $region34: #{bga_forward.3} parent=11 // pred_check_branch
        %295 = sbr.rel (%p293) target = $region36
      $region35: #{bga_forward.3} parent=11 // pred_region
        _
      $region36: #{bga_forward.3} parent=11 // pred_fallthru
        _
      // Predicated region
      $region37: #{bga_forward.3} parent=11 // pred_check
        %p296 = pneg %p190
      $region38: #{bga_forward.3} parent=11 // pred_check_branch
        %298 = sbr.rel (%p296) target = $region40
      $region39: #{bga_forward.3} parent=11 // pred_region
        _
      $region40: #{bga_forward.3} parent=11 // pred_fallthru
        _
      // Predicated region
      $region41: #{bga_forward.3} parent=11 // pred_check
        %p299 = pneg %p211
      $region42: #{bga_forward.3} parent=11 // pred_check_branch
        %301 = sbr.rel (%p299) target = $region44
      $region43: #{bga_forward.3} parent=11 // pred_region
        _
      $region44: #{bga_forward.3} parent=11 // pred_fallthru
        _
    $region12: #{bga_forward.3} parent=5 // pred_fallthru
      _
    %p302 = scmp.lt.s32.totalorder %s17, 2
    // Predicated region
    $region45: #{bga_forward.3} parent=5 // pred_check
      %p303 = pneg %p302
    $region46: #{bga_forward.3} parent=5 // pred_check_branch
      %305 = sbr.rel (%p303) target = $region48
    $region47: #{bga_forward.3} parent=5 // pred_region
      // Predicated region
      $region49: #{bga_forward.3} parent=47 // pred_check
        %p306 = pneg %p37
      $region50: #{bga_forward.3} parent=47 // pred_check_branch
        %308 = sbr.rel (%p306) target = $region52
      $region51: #{bga_forward.3} parent=47 // pred_region
        %p309 = scmp.lt.s32.totalorder %s17, 1
        %s310 = scalar_select %p309, %s17, 1
        %s311 = smul.addr %s310, 32
        %s312 = smul.addr %s311, 8
        %s313 = scalar_lea.vmem %s0, %s312
      $region52: #{bga_forward.3} parent=47 // pred_fallthru
        _
    $region48: #{bga_forward.3} parent=5 // pred_fallthru
      _
    %p314 = scmp.le.s32.totalorder 1, %s17
    %p315 = scmp.lt.s32.totalorder %s17, 3
    %p316 = pnand %p314, %p315
    %p317 = pneg %p316
    // Predicated region
    $region53: #{bga_forward.3} parent=5 // pred_check
      _
    $region54: #{bga_forward.3} parent=5 // pred_check_branch
      %319 = sbr.rel (%p316) target = $region56
    $region55: #{bga_forward.3} parent=5 // pred_region
      %s320 = ssub.s32 %s17, 1
      %p321 = scmp.lt.s32.totalorder %s22, 1
      %s322 = scalar_select %p321, %s22, 1
      %s323 = smul.addr %s322, 32
      %s324 = smul.addr %s323, 8
      %s325 = scalar_lea.vmem %s0, %s324
      %p326 = pneg %p43
      %p327 = pneg %p40
      %p328 = pneg %p64
      %p329 = pneg %p61
      %p330 = pneg %p85
      %p331 = pneg %p82
      %p332 = pneg %p106
      %p333 = pneg %p103
      %p334 = pneg %p127
      %p335 = pneg %p124
      %p336 = pneg %p148
      %p337 = pneg %p145
      %p338 = pneg %p169
      %p339 = pneg %p166
      %p340 = pneg %p190
      %p341 = pneg %p187
      %p342 = pneg %p211
      %p343 = pneg %p208
      %p344 = pneg %p237
      %p345 = pneg %p234
      %p346 = scmp.lt.s32.totalorder %s22, 1
      %s347 = scalar_select %p346, %s22, 1
      %s348 = smul.addr %s347, 32
      %s349 = smul.addr %s348, 4
      %s350 = scalar_lea.vmem %s9, %s349
      %p351 = pneg %p263
      %p352 = pneg %p260
      %p353 = scmp.lt.s32.totalorder %s22, 1
      %s354 = scalar_select %p353, %s22, 1
      %s355 = smul.addr %s354, 4
      %s356 = smul.addr %s355, 4
      %s357 = scalar_lea.vmem %s10, %s356
      %p358 = scmp.lt.s32.totalorder %s22, 1
      %s359 = scalar_select %p358, %s22, 1
      %s360 = smul.addr %s359, 32
      %s361 = smul.addr %s360, 8
      %s362 = scalar_lea.vmem %s0, %s361
      %p363 = scmp.lt.s32.totalorder %s22, 1
      %s364 = scalar_select %p363, %s22, 1
      %s365 = smul.addr %s364, 32
      %s366 = smul.addr %s365, 4
      %s367 = scalar_lea.vmem %s9, %s366
      %p368 = scmp.lt.s32.totalorder %s22, 1
      %s369 = scalar_select %p368, %s22, 1
      %s370 = smul.addr %s369, 4
      %s371 = smul.addr %s370, 4
      %s372 = scalar_lea.vmem %s10, %s371
      %v374 = vld [vmem:[%s362] sm:$0xff]
      %v375 = vld [vmem:[%s362 + $0x8] sm:$0xff]
      %v376 = vld [vmem:[%s362 + $0x10] sm:$0xff]
      %v377 = vld [vmem:[%s362 + $0x18] sm:$0xff]
      %v378 = vld [vmem:[%s362 + $0x20] sm:$0xff]
      %v379 = vld [vmem:[%s362 + $0x28] sm:$0xff]
      %v380 = vld [vmem:[%s362 + $0x30] sm:$0xff]
      %v381 = vld [vmem:[%s362 + $0x38] sm:$0xff]
      %v382 = vld [vmem:[%s362 + $0x40] sm:$0xff]
      %v383 = vld [vmem:[%s362 + $0x48] sm:$0xff]
      %v384 = vld [vmem:[%s362 + $0x50] sm:$0xff]
      %v385 = vld [vmem:[%s362 + $0x58] sm:$0xff]
      %v386 = vld [vmem:[%s362 + $0x60] sm:$0xff]
      %v387 = vld [vmem:[%s362 + $0x68] sm:$0xff]
      %v388 = vld [vmem:[%s362 + $0x70] sm:$0xff]
      %v389 = vld [vmem:[%s362 + $0x78] sm:$0xff]
      %v390 = vld [vmem:[%s362 + $0x80] sm:$0xff]
      %v391 = vld [vmem:[%s362 + $0x88] sm:$0xff]
      %v392 = vld [vmem:[%s362 + $0x90] sm:$0xff]
      %v393 = vld [vmem:[%s362 + $0x98] sm:$0xff]
      %v394 = vld [vmem:[%s362 + $0xa0] sm:$0xff]
      %v395 = vld [vmem:[%s362 + $0xa8] sm:$0xff]
      %v396 = vld [vmem:[%s362 + $0xb0] sm:$0xff]
      %v397 = vld [vmem:[%s362 + $0xb8] sm:$0xff]
      %v398 = vld [vmem:[%s362 + $0xc0] sm:$0xff]
      %v399 = vld [vmem:[%s362 + $0xc8] sm:$0xff]
      %v400 = vld [vmem:[%s362 + $0xd0] sm:$0xff]
      %v401 = vld [vmem:[%s362 + $0xd8] sm:$0xff]
      %v402 = vld [vmem:[%s362 + $0xe0] sm:$0xff]
      %v403 = vld [vmem:[%s362 + $0xe8] sm:$0xff]
      %v404 = vld [vmem:[%s362 + $0xf0] sm:$0xff]
      %v405 = vld [vmem:[%s362 + $0xf8] sm:$0xff]
      %vm438 = vcmask 1040384
      %v439 = vrot.slane %v374, 7
      %v440 = vrot.slane %v375, 7
      %v441 = vsel %vm438, %v439, %v440
      %v442 = vrot.slane %v376, 7
      %v443 = vrot.slane %v377, 7
      %v444 = vsel %vm438, %v442, %v443
      %v445 = vrot.slane %v378, 7
      %v446 = vrot.slane %v379, 7
      %v447 = vsel %vm438, %v445, %v446
      %v448 = vrot.slane %v380, 7
      %v449 = vrot.slane %v381, 7
      %v450 = vsel %vm438, %v448, %v449
      %v451 = vrot.slane %v382, 7
      %v452 = vrot.slane %v383, 7
      %v453 = vsel %vm438, %v451, %v452
      %v454 = vrot.slane %v384, 7
      %v455 = vrot.slane %v385, 7
      %v456 = vsel %vm438, %v454, %v455
      %v457 = vrot.slane %v386, 7
      %v458 = vrot.slane %v387, 7
      %v459 = vsel %vm438, %v457, %v458
      %v460 = vrot.slane %v388, 7
      %v461 = vrot.slane %v389, 7
      %v462 = vsel %vm438, %v460, %v461
      %v463 = vrot.slane %v390, 7
      %v464 = vrot.slane %v391, 7
      %v465 = vsel %vm438, %v463, %v464
      %v466 = vrot.slane %v392, 7
      %v467 = vrot.slane %v393, 7
      %v468 = vsel %vm438, %v466, %v467
      %v469 = vrot.slane %v394, 7
      %v470 = vrot.slane %v395, 7
      %v471 = vsel %vm438, %v469, %v470
      %v472 = vrot.slane %v396, 7
      %v473 = vrot.slane %v397, 7
      %v474 = vsel %vm438, %v472, %v473
      %v475 = vrot.slane %v398, 7
      %v476 = vrot.slane %v399, 7
      %v477 = vsel %vm438, %v475, %v476
      %v478 = vrot.slane %v400, 7
      %v479 = vrot.slane %v401, 7
      %v480 = vsel %vm438, %v478, %v479
      %v481 = vrot.slane %v402, 7
      %v482 = vrot.slane %v403, 7
      %v483 = vsel %vm438, %v481, %v482
      %v484 = vrot.slane %v404, 7
      %v485 = vrot.slane %v405, 7
      %v486 = vsel %vm438, %v484, %v485
      %v535 = vsel %vm438, 0.0, %v439
      %v536 = vsel %vm438, 0.0, %v442
      %v537 = vsel %vm438, 0.0, %v445
      %v538 = vsel %vm438, 0.0, %v448
      %v539 = vsel %vm438, 0.0, %v451
      %v540 = vsel %vm438, 0.0, %v454
      %v541 = vsel %vm438, 0.0, %v457
      %v542 = vsel %vm438, 0.0, %v460
      %v543 = vsel %vm438, 0.0, %v463
      %v544 = vsel %vm438, 0.0, %v466
      %v545 = vsel %vm438, 0.0, %v469
      %v546 = vsel %vm438, 0.0, %v472
      %v547 = vsel %vm438, 0.0, %v475
      %v548 = vsel %vm438, 0.0, %v478
      %v549 = vsel %vm438, 0.0, %v481
      %v550 = vsel %vm438, 0.0, %v484
      %v551 = vsel %vm438, %v440, 0.0
      %v552 = vsel %vm438, %v443, 0.0
      %v553 = vsel %vm438, %v446, 0.0
      %v554 = vsel %vm438, %v449, 0.0
      %v555 = vsel %vm438, %v452, 0.0
      %v556 = vsel %vm438, %v455, 0.0
      %v557 = vsel %vm438, %v458, 0.0
      %v558 = vsel %vm438, %v461, 0.0
      %v559 = vsel %vm438, %v464, 0.0
      %v560 = vsel %vm438, %v467, 0.0
      %v561 = vsel %vm438, %v470, 0.0
      %v562 = vsel %vm438, %v473, 0.0
      %v563 = vsel %vm438, %v476, 0.0
      %v564 = vsel %vm438, %v479, 0.0
      %v565 = vsel %vm438, %v482, 0.0
      %v566 = vsel %vm438, %v485, 0.0
      %v567 = vld [vmem:[%s2] sm:$0x1]
      %v568 = vld [vmem:[%s3] sm:$0x1]
      %v569 = vld [vmem:[%s1] sm:$0x1]
      %v570 = vlaneseq
      %v571 = vshrl.u32 %v570, 7
      %v572 = vsub.s32 0, %v571
      %v573 = vrot.slane %v569, %v572
      %v574 = vmul.f32 %v573, 0.0
      %v575 = vmul.f32 %v535, %v573
      %v576 = vmul.f32 %v441, %v573
      %v577 = vmul.f32 %v536, %v573
      %v578 = vmul.f32 %v444, %v573
      %v579 = vmul.f32 %v537, %v573
      %v580 = vmul.f32 %v447, %v573
      %v581 = vmul.f32 %v538, %v573
      %v582 = vmul.f32 %v450, %v573
      %v583 = vmul.f32 %v539, %v573
      %v584 = vmul.f32 %v453, %v573
      %v585 = vmul.f32 %v540, %v573
      %v586 = vmul.f32 %v456, %v573
      %v587 = vmul.f32 %v541, %v573
      %v588 = vmul.f32 %v459, %v573
      %v589 = vmul.f32 %v542, %v573
      %v590 = vmul.f32 %v462, %v573
      %v591 = vmul.f32 %v543, %v573
      %v592 = vmul.f32 %v465, %v573
      %v593 = vmul.f32 %v544, %v573
      %v594 = vmul.f32 %v468, %v573
      %v595 = vmul.f32 %v545, %v573
      %v596 = vmul.f32 %v471, %v573
      %v597 = vmul.f32 %v546, %v573
      %v598 = vmul.f32 %v474, %v573
      %v599 = vmul.f32 %v547, %v573
      %v600 = vmul.f32 %v477, %v573
      %v601 = vmul.f32 %v548, %v573
      %v602 = vmul.f32 %v480, %v573
      %v603 = vmul.f32 %v549, %v573
      %v604 = vmul.f32 %v483, %v573
      %v605 = vadd.f32 %v574, 0.0
      %v606 = vadd.f32 %v575, 0.0
      %v607 = vadd.f32 %v576, 0.0
      %v608 = vadd.f32 %v577, 0.0
      %v609 = vadd.f32 %v578, 0.0
      %v610 = vadd.f32 %v579, 0.0
      %v611 = vadd.f32 %v580, 0.0
      %v612 = vadd.f32 %v581, 0.0
      %v613 = vadd.f32 %v582, 0.0
      %v614 = vadd.f32 %v583, 0.0
      %v615 = vadd.f32 %v584, 0.0
      %v616 = vadd.f32 %v585, 0.0
      %v617 = vadd.f32 %v586, 0.0
      %v618 = vadd.f32 %v587, 0.0
      %v619 = vadd.f32 %v588, 0.0
      %v620 = vadd.f32 %v589, 0.0
      %v621 = vadd.f32 %v590, 0.0
      %v622 = vadd.f32 %v591, 0.0
      %v623 = vadd.f32 %v592, 0.0
      %v624 = vadd.f32 %v593, 0.0
      %v625 = vadd.f32 %v594, 0.0
      %v626 = vadd.f32 %v595, 0.0
      %v627 = vadd.f32 %v596, 0.0
      %v628 = vadd.f32 %v597, 0.0
      %v629 = vadd.f32 %v598, 0.0
      %v630 = vadd.f32 %v599, 0.0
      %v631 = vadd.f32 %v600, 0.0
      %v632 = vadd.f32 %v601, 0.0
      %v633 = vadd.f32 %v602, 0.0
      %v634 = vadd.f32 %v603, 0.0
      %v635 = vadd.f32 %v604, 0.0
      %v636 = vld [vmem:[%s1 + $0x1] sm:$0x1]
      %v637 = vlaneseq
      %v638 = vshrl.u32 %v637, 7
      %v639 = vsub.s32 0, %v638
      %v640 = vrot.slane %v636, %v639
      %v641 = vmul.f32 %v640, 0.0
      %v642 = vmul.f32 %v535, %v640
      %v643 = vmul.f32 %v441, %v640
      %v644 = vmul.f32 %v551, %v640
      %v645 = vmul.f32 %v536, %v640
      %v646 = vmul.f32 %v444, %v640
      %v647 = vmul.f32 %v552, %v640
      %v648 = vmul.f32 %v537, %v640
      %v649 = vmul.f32 %v447, %v640
      %v650 = vmul.f32 %v553, %v640
      %v651 = vmul.f32 %v538, %v640
      %v652 = vmul.f32 %v450, %v640
      %v653 = vmul.f32 %v554, %v640
      %v654 = vmul.f32 %v539, %v640
      %v655 = vmul.f32 %v453, %v640
      %v656 = vmul.f32 %v555, %v640
      %v657 = vmul.f32 %v540, %v640
      %v658 = vmul.f32 %v456, %v640
      %v659 = vmul.f32 %v556, %v640
      %v660 = vmul.f32 %v541, %v640
      %v661 = vmul.f32 %v459, %v640
      %v662 = vmul.f32 %v557, %v640
      %v663 = vmul.f32 %v542, %v640
      %v664 = vmul.f32 %v462, %v640
      %v665 = vmul.f32 %v558, %v640
      %v666 = vmul.f32 %v543, %v640
      %v667 = vmul.f32 %v465, %v640
      %v668 = vmul.f32 %v559, %v640
      %v669 = vmul.f32 %v544, %v640
      %v670 = vmul.f32 %v468, %v640
      %v671 = vmul.f32 %v560, %v640
      %v672 = vmul.f32 %v545, %v640
      %v673 = vmul.f32 %v471, %v640
      %v674 = vmul.f32 %v561, %v640
      %v675 = vmul.f32 %v546, %v640
      %v676 = vmul.f32 %v474, %v640
      %v677 = vmul.f32 %v562, %v640
      %v678 = vmul.f32 %v547, %v640
      %v679 = vmul.f32 %v477, %v640
      %v680 = vmul.f32 %v563, %v640
      %v681 = vmul.f32 %v548, %v640
      %v682 = vmul.f32 %v480, %v640
      %v683 = vmul.f32 %v564, %v640
      %v684 = vmul.f32 %v549, %v640
      %v685 = vmul.f32 %v483, %v640
      %v686 = vmul.f32 %v565, %v640
      %vm733 = vcmask 1046528
      %v734 = vrot.slane %v641, 1
      %v735 = vsel %vm733, %v734, %v734
      %v736 = vrot.slane %v642, 1
      %v737 = vrot.slane %v643, 1
      %v738 = vsel %vm733, %v736, %v737
      %v739 = vrot.slane %v644, 1
      %v740 = vsel %vm733, %v737, %v739
      %v741 = vrot.slane %v645, 1
      %v742 = vrot.slane %v646, 1
      %v743 = vsel %vm733, %v741, %v742
      %v744 = vrot.slane %v647, 1
      %v745 = vsel %vm733, %v742, %v744
      %v746 = vrot.slane %v648, 1
      %v747 = vrot.slane %v649, 1
      %v748 = vsel %vm733, %v746, %v747
      %v749 = vrot.slane %v650, 1
      %v750 = vsel %vm733, %v747, %v749
      %v751 = vrot.slane %v651, 1
      %v752 = vrot.slane %v652, 1
      %v753 = vsel %vm733, %v751, %v752
      %v754 = vrot.slane %v653, 1
      %v755 = vsel %vm733, %v752, %v754
      %v756 = vrot.slane %v654, 1
      %v757 = vrot.slane %v655, 1
      %v758 = vsel %vm733, %v756, %v757
      %v759 = vrot.slane %v656, 1
      %v760 = vsel %vm733, %v757, %v759
      %v761 = vrot.slane %v657, 1
      %v762 = vrot.slane %v658, 1
      %v763 = vsel %vm733, %v761, %v762
      %v764 = vrot.slane %v659, 1
      %v765 = vsel %vm733, %v762, %v764
      %v766 = vrot.slane %v660, 1
      %v767 = vrot.slane %v661, 1
      %v768 = vsel %vm733, %v766, %v767
      %v769 = vrot.slane %v662, 1
      %v770 = vsel %vm733, %v767, %v769
      %v771 = vrot.slane %v663, 1
      %v772 = vrot.slane %v664, 1
      %v773 = vsel %vm733, %v771, %v772
      %v774 = vrot.slane %v665, 1
      %v775 = vsel %vm733, %v772, %v774
      %v776 = vrot.slane %v666, 1
      %v777 = vrot.slane %v667, 1
      %v778 = vsel %vm733, %v776, %v777
      %v779 = vrot.slane %v668, 1
      %v780 = vsel %vm733, %v777, %v779
      %v781 = vrot.slane %v669, 1
      %v782 = vrot.slane %v670, 1
      %v783 = vsel %vm733, %v781, %v782
      %v784 = vrot.slane %v671, 1
      %v785 = vsel %vm733, %v782, %v784
      %v786 = vrot.slane %v672, 1
      %v787 = vrot.slane %v673, 1
      %v788 = vsel %vm733, %v786, %v787
      %v789 = vrot.slane %v674, 1
      %v790 = vsel %vm733, %v787, %v789
      %v791 = vrot.slane %v675, 1
      %v792 = vrot.slane %v676, 1
      %v793 = vsel %vm733, %v791, %v792
      %v794 = vrot.slane %v677, 1
      %v795 = vsel %vm733, %v792, %v794
      %v796 = vrot.slane %v678, 1
      %v797 = vrot.slane %v679, 1
      %v798 = vsel %vm733, %v796, %v797
      %v799 = vrot.slane %v680, 1
      %v800 = vsel %vm733, %v797, %v799
      %v801 = vrot.slane %v681, 1
      %v802 = vrot.slane %v682, 1
      %v803 = vsel %vm733, %v801, %v802
      %v804 = vrot.slane %v683, 1
      %v805 = vsel %vm733, %v802, %v804
      %v806 = vrot.slane %v684, 1
      %v807 = vrot.slane %v685, 1
      %v808 = vsel %vm733, %v806, %v807
      %v809 = vrot.slane %v686, 1
      %v810 = vsel %vm733, %v807, %v809
      %v842 = vadd.f32 %v605, %v735
      %v843 = vadd.f32 %v606, %v738
      %v844 = vadd.f32 %v607, %v740
      %v845 = vadd.f32 %v608, %v743
      %v846 = vadd.f32 %v609, %v745
      %v847 = vadd.f32 %v610, %v748
      %v848 = vadd.f32 %v611, %v750
      %v849 = vadd.f32 %v612, %v753
      %v850 = vadd.f32 %v613, %v755
      %v851 = vadd.f32 %v614, %v758
      %v852 = vadd.f32 %v615, %v760
      %v853 = vadd.f32 %v616, %v763
      %v854 = vadd.f32 %v617, %v765
      %v855 = vadd.f32 %v618, %v768
      %v856 = vadd.f32 %v619, %v770
      %v857 = vadd.f32 %v620, %v773
      %v858 = vadd.f32 %v621, %v775
      %v859 = vadd.f32 %v622, %v778
      %v860 = vadd.f32 %v623, %v780
      %v861 = vadd.f32 %v624, %v783
      %v862 = vadd.f32 %v625, %v785
      %v863 = vadd.f32 %v626, %v788
      %v864 = vadd.f32 %v627, %v790
      %v865 = vadd.f32 %v628, %v793
      %v866 = vadd.f32 %v629, %v795
      %v867 = vadd.f32 %v630, %v798
      %v868 = vadd.f32 %v631, %v800
      %v869 = vadd.f32 %v632, %v803
      %v870 = vadd.f32 %v633, %v805
      %v871 = vadd.f32 %v634, %v808
      %v872 = vadd.f32 %v635, %v810
      %v873 = vld [vmem:[%s1 + $0x2] sm:$0x1]
      %v874 = vlaneseq
      %v875 = vshrl.u32 %v874, 7
      %v876 = vsub.s32 0, %v875
      %v877 = vrot.slane %v873, %v876
      %v878 = vmul.f32 %v877, 0.0
      %v879 = vmul.f32 %v535, %v877
      %v880 = vmul.f32 %v441, %v877
      %v881 = vmul.f32 %v551, %v877
      %v882 = vmul.f32 %v536, %v877
      %v883 = vmul.f32 %v444, %v877
      %v884 = vmul.f32 %v552, %v877
      %v885 = vmul.f32 %v537, %v877
      %v886 = vmul.f32 %v447, %v877
      %v887 = vmul.f32 %v553, %v877
      %v888 = vmul.f32 %v538, %v877
      %v889 = vmul.f32 %v450, %v877
      %v890 = vmul.f32 %v554, %v877
      %v891 = vmul.f32 %v539, %v877
      %v892 = vmul.f32 %v453, %v877
      %v893 = vmul.f32 %v555, %v877
      %v894 = vmul.f32 %v540, %v877
      %v895 = vmul.f32 %v456, %v877
      %v896 = vmul.f32 %v556, %v877
      %v897 = vmul.f32 %v541, %v877
      %v898 = vmul.f32 %v459, %v877
      %v899 = vmul.f32 %v557, %v877
      %v900 = vmul.f32 %v542, %v877
      %v901 = vmul.f32 %v462, %v877
      %v902 = vmul.f32 %v558, %v877
      %v903 = vmul.f32 %v543, %v877
      %v904 = vmul.f32 %v465, %v877
      %v905 = vmul.f32 %v559, %v877
      %v906 = vmul.f32 %v544, %v877
      %v907 = vmul.f32 %v468, %v877
      %v908 = vmul.f32 %v560, %v877
      %v909 = vmul.f32 %v545, %v877
      %v910 = vmul.f32 %v471, %v877
      %v911 = vmul.f32 %v561, %v877
      %v912 = vmul.f32 %v546, %v877
      %v913 = vmul.f32 %v474, %v877
      %v914 = vmul.f32 %v562, %v877
      %v915 = vmul.f32 %v547, %v877
      %v916 = vmul.f32 %v477, %v877
      %v917 = vmul.f32 %v563, %v877
      %v918 = vmul.f32 %v548, %v877
      %v919 = vmul.f32 %v480, %v877
      %v920 = vmul.f32 %v564, %v877
      %v921 = vmul.f32 %v549, %v877
      %v922 = vmul.f32 %v483, %v877
      %v923 = vmul.f32 %v565, %v877
      %vm970 = vcmask 1045504
      %v971 = vrot.slane %v878, 2
      %v972 = vsel %vm970, %v971, %v971
      %v973 = vrot.slane %v879, 2
      %v974 = vrot.slane %v880, 2
      %v975 = vsel %vm970, %v973, %v974
      %v976 = vrot.slane %v881, 2
      %v977 = vsel %vm970, %v974, %v976
      %v978 = vrot.slane %v882, 2
      %v979 = vrot.slane %v883, 2
      %v980 = vsel %vm970, %v978, %v979
      %v981 = vrot.slane %v884, 2
      %v982 = vsel %vm970, %v979, %v981
      %v983 = vrot.slane %v885, 2
      %v984 = vrot.slane %v886, 2
      %v985 = vsel %vm970, %v983, %v984
      %v986 = vrot.slane %v887, 2
      %v987 = vsel %vm970, %v984, %v986
      %v988 = vrot.slane %v888, 2
      %v989 = vrot.slane %v889, 2
      %v990 = vsel %vm970, %v988, %v989
      %v991 = vrot.slane %v890, 2
      %v992 = vsel %vm970, %v989, %v991
      %v993 = vrot.slane %v891, 2
      %v994 = vrot.slane %v892, 2
      %v995 = vsel %vm970, %v993, %v994
      %v996 = vrot.slane %v893, 2
      %v997 = vsel %vm970, %v994, %v996
      %v998 = vrot.slane %v894, 2
      %v999 = vrot.slane %v895, 2
      %v1000 = vsel %vm970, %v998, %v999
      %v1001 = vrot.slane %v896, 2
      %v1002 = vsel %vm970, %v999, %v1001
      %v1003 = vrot.slane %v897, 2
      %v1004 = vrot.slane %v898, 2
      %v1005 = vsel %vm970, %v1003, %v1004
      %v1006 = vrot.slane %v899, 2
      %v1007 = vsel %vm970, %v1004, %v1006
      %v1008 = vrot.slane %v900, 2
      %v1009 = vrot.slane %v901, 2
      %v1010 = vsel %vm970, %v1008, %v1009
      %v1011 = vrot.slane %v902, 2
      %v1012 = vsel %vm970, %v1009, %v1011
      %v1013 = vrot.slane %v903, 2
      %v1014 = vrot.slane %v904, 2
      %v1015 = vsel %vm970, %v1013, %v1014
      %v1016 = vrot.slane %v905, 2
      %v1017 = vsel %vm970, %v1014, %v1016
      %v1018 = vrot.slane %v906, 2
      %v1019 = vrot.slane %v907, 2
      %v1020 = vsel %vm970, %v1018, %v1019
      %v1021 = vrot.slane %v908, 2
      %v1022 = vsel %vm970, %v1019, %v1021
      %v1023 = vrot.slane %v909, 2
      %v1024 = vrot.slane %v910, 2
      %v1025 = vsel %vm970, %v1023, %v1024
      %v1026 = vrot.slane %v911, 2
      %v1027 = vsel %vm970, %v1024, %v1026
      %v1028 = vrot.slane %v912, 2
      %v1029 = vrot.slane %v913, 2
      %v1030 = vsel %vm970, %v1028, %v1029
      %v1031 = vrot.slane %v914, 2
      %v1032 = vsel %vm970, %v1029, %v1031
      %v1033 = vrot.slane %v915, 2
      %v1034 = vrot.slane %v916, 2
      %v1035 = vsel %vm970, %v1033, %v1034
      %v1036 = vrot.slane %v917, 2
      %v1037 = vsel %vm970, %v1034, %v1036
      %v1038 = vrot.slane %v918, 2
      %v1039 = vrot.slane %v919, 2
      %v1040 = vsel %vm970, %v1038, %v1039
      %v1041 = vrot.slane %v920, 2
      %v1042 = vsel %vm970, %v1039, %v1041
      %v1043 = vrot.slane %v921, 2
      %v1044 = vrot.slane %v922, 2
      %v1045 = vsel %vm970, %v1043, %v1044
      %v1046 = vrot.slane %v923, 2
      %v1047 = vsel %vm970, %v1044, %v1046
      %v1079 = vadd.f32 %v842, %v972
      %v1080 = vadd.f32 %v843, %v975
      %v1081 = vadd.f32 %v844, %v977
      %v1082 = vadd.f32 %v845, %v980
      %v1083 = vadd.f32 %v846, %v982
      %v1084 = vadd.f32 %v847, %v985
      %v1085 = vadd.f32 %v848, %v987
      %v1086 = vadd.f32 %v849, %v990
      %v1087 = vadd.f32 %v850, %v992
      %v1088 = vadd.f32 %v851, %v995
      %v1089 = vadd.f32 %v852, %v997
      %v1090 = vadd.f32 %v853, %v1000
      %v1091 = vadd.f32 %v854, %v1002
      %v1092 = vadd.f32 %v855, %v1005
      %v1093 = vadd.f32 %v856, %v1007
      %v1094 = vadd.f32 %v857, %v1010
      %v1095 = vadd.f32 %v858, %v1012
      %v1096 = vadd.f32 %v859, %v1015
      %v1097 = vadd.f32 %v860, %v1017
      %v1098 = vadd.f32 %v861, %v1020
      %v1099 = vadd.f32 %v862, %v1022
      %v1100 = vadd.f32 %v863, %v1025
      %v1101 = vadd.f32 %v864, %v1027
      %v1102 = vadd.f32 %v865, %v1030
      %v1103 = vadd.f32 %v866, %v1032
      %v1104 = vadd.f32 %v867, %v1035
      %v1105 = vadd.f32 %v868, %v1037
      %v1106 = vadd.f32 %v869, %v1040
      %v1107 = vadd.f32 %v870, %v1042
      %v1108 = vadd.f32 %v871, %v1045
      %v1109 = vadd.f32 %v872, %v1047
      %v1110 = vld [vmem:[%s1 + $0x3] sm:$0x1]
      %v1111 = vlaneseq
      %v1112 = vshrl.u32 %v1111, 7
      %v1113 = vsub.s32 0, %v1112
      %v1114 = vrot.slane %v1110, %v1113
      %v1115 = vmul.f32 %v535, %v1114
      %v1116 = vmul.f32 %v441, %v1114
      %v1117 = vmul.f32 %v536, %v1114
      %v1118 = vmul.f32 %v444, %v1114
      %v1119 = vmul.f32 %v537, %v1114
      %v1120 = vmul.f32 %v447, %v1114
      %v1121 = vmul.f32 %v538, %v1114
      %v1122 = vmul.f32 %v450, %v1114
      %v1123 = vmul.f32 %v539, %v1114
      %v1124 = vmul.f32 %v453, %v1114
      %v1125 = vmul.f32 %v540, %v1114
      %v1126 = vmul.f32 %v456, %v1114
      %v1127 = vmul.f32 %v541, %v1114
      %v1128 = vmul.f32 %v459, %v1114
      %v1129 = vmul.f32 %v542, %v1114
      %v1130 = vmul.f32 %v462, %v1114
      %v1131 = vmul.f32 %v543, %v1114
      %v1132 = vmul.f32 %v465, %v1114
      %v1133 = vmul.f32 %v544, %v1114
      %v1134 = vmul.f32 %v468, %v1114
      %v1135 = vmul.f32 %v545, %v1114
      %v1136 = vmul.f32 %v471, %v1114
      %v1137 = vmul.f32 %v546, %v1114
      %v1138 = vmul.f32 %v474, %v1114
      %v1139 = vmul.f32 %v547, %v1114
      %v1140 = vmul.f32 %v477, %v1114
      %v1141 = vmul.f32 %v548, %v1114
      %v1142 = vmul.f32 %v480, %v1114
      %v1143 = vmul.f32 %v549, %v1114
      %v1144 = vmul.f32 %v483, %v1114
      %v1145 = vmul.f32 %v550, %v1114
      %v1146 = vmul.f32 %v486, %v1114
      %v1147 = vadd.f32 %v1079, %v1115
      %v1148 = vadd.f32 %v1079, %v1116
      %v1149 = vadd.f32 %v1080, %v1117
      %v1150 = vadd.f32 %v1081, %v1118
      %v1151 = vadd.f32 %v1082, %v1119
      %v1152 = vadd.f32 %v1083, %v1120
      %v1153 = vadd.f32 %v1084, %v1121
      %v1154 = vadd.f32 %v1085, %v1122
      %v1155 = vadd.f32 %v1086, %v1123
      %v1156 = vadd.f32 %v1087, %v1124
      %v1157 = vadd.f32 %v1088, %v1125
      %v1158 = vadd.f32 %v1089, %v1126
      %v1159 = vadd.f32 %v1090, %v1127
      %v1160 = vadd.f32 %v1091, %v1128
      %v1161 = vadd.f32 %v1092, %v1129
      %v1162 = vadd.f32 %v1093, %v1130
      %v1163 = vadd.f32 %v1094, %v1131
      %v1164 = vadd.f32 %v1095, %v1132
      %v1165 = vadd.f32 %v1096, %v1133
      %v1166 = vadd.f32 %v1097, %v1134
      %v1167 = vadd.f32 %v1098, %v1135
      %v1168 = vadd.f32 %v1099, %v1136
      %v1169 = vadd.f32 %v1100, %v1137
      %v1170 = vadd.f32 %v1101, %v1138
      %v1171 = vadd.f32 %v1102, %v1139
      %v1172 = vadd.f32 %v1103, %v1140
      %v1173 = vadd.f32 %v1104, %v1141
      %v1174 = vadd.f32 %v1105, %v1142
      %v1175 = vadd.f32 %v1106, %v1143
      %v1176 = vadd.f32 %v1107, %v1144
      %v1177 = vadd.f32 %v1108, %v1145
      %v1178 = vadd.f32 %v1109, %v1146
      %v1179 = vld [vmem:[%s1 + $0x4] sm:$0x1]
      %v1180 = vlaneseq
      %v1181 = vshrl.u32 %v1180, 7
      %v1182 = vsub.s32 0, %v1181
      %v1183 = vrot.slane %v1179, %v1182
      %v1184 = vmul.f32 %v535, %v1183
      %v1185 = vmul.f32 %v441, %v1183
      %v1186 = vmul.f32 %v551, %v1183
      %v1187 = vmul.f32 %v536, %v1183
      %v1188 = vmul.f32 %v444, %v1183
      %v1189 = vmul.f32 %v552, %v1183
      %v1190 = vmul.f32 %v537, %v1183
      %v1191 = vmul.f32 %v447, %v1183
      %v1192 = vmul.f32 %v553, %v1183
      %v1193 = vmul.f32 %v538, %v1183
      %v1194 = vmul.f32 %v450, %v1183
      %v1195 = vmul.f32 %v554, %v1183
      %v1196 = vmul.f32 %v539, %v1183
      %v1197 = vmul.f32 %v453, %v1183
      %v1198 = vmul.f32 %v555, %v1183
      %v1199 = vmul.f32 %v540, %v1183
      %v1200 = vmul.f32 %v456, %v1183
      %v1201 = vmul.f32 %v556, %v1183
      %v1202 = vmul.f32 %v541, %v1183
      %v1203 = vmul.f32 %v459, %v1183
      %v1204 = vmul.f32 %v557, %v1183
      %v1205 = vmul.f32 %v542, %v1183
      %v1206 = vmul.f32 %v462, %v1183
      %v1207 = vmul.f32 %v558, %v1183
      %v1208 = vmul.f32 %v543, %v1183
      %v1209 = vmul.f32 %v465, %v1183
      %v1210 = vmul.f32 %v559, %v1183
      %v1211 = vmul.f32 %v544, %v1183
      %v1212 = vmul.f32 %v468, %v1183
      %v1213 = vmul.f32 %v560, %v1183
      %v1214 = vmul.f32 %v545, %v1183
      %v1215 = vmul.f32 %v471, %v1183
      %v1216 = vmul.f32 %v561, %v1183
      %v1217 = vmul.f32 %v546, %v1183
      %v1218 = vmul.f32 %v474, %v1183
      %v1219 = vmul.f32 %v562, %v1183
      %v1220 = vmul.f32 %v547, %v1183
      %v1221 = vmul.f32 %v477, %v1183
      %v1222 = vmul.f32 %v563, %v1183
      %v1223 = vmul.f32 %v548, %v1183
      %v1224 = vmul.f32 %v480, %v1183
      %v1225 = vmul.f32 %v564, %v1183
      %v1226 = vmul.f32 %v549, %v1183
      %v1227 = vmul.f32 %v483, %v1183
      %v1228 = vmul.f32 %v565, %v1183
      %v1229 = vmul.f32 %v550, %v1183
      %v1230 = vmul.f32 %v486, %v1183
      %v1231 = vmul.f32 %v566, %v1183
      %v1280 = vrot.slane %v1184, 1
      %v1281 = vrot.slane %v1185, 1
      %v1282 = vsel %vm733, %v1280, %v1281
      %v1283 = vrot.slane %v1186, 1
      %v1284 = vsel %vm733, %v1281, %v1283
      %v1285 = vrot.slane %v1187, 1
      %v1286 = vrot.slane %v1188, 1
      %v1287 = vsel %vm733, %v1285, %v1286
      %v1288 = vrot.slane %v1189, 1
      %v1289 = vsel %vm733, %v1286, %v1288
      %v1290 = vrot.slane %v1190, 1
      %v1291 = vrot.slane %v1191, 1
      %v1292 = vsel %vm733, %v1290, %v1291
      %v1293 = vrot.slane %v1192, 1
      %v1294 = vsel %vm733, %v1291, %v1293
      %v1295 = vrot.slane %v1193, 1
      %v1296 = vrot.slane %v1194, 1
      %v1297 = vsel %vm733, %v1295, %v1296
      %v1298 = vrot.slane %v1195, 1
      %v1299 = vsel %vm733, %v1296, %v1298
      %v1300 = vrot.slane %v1196, 1
      %v1301 = vrot.slane %v1197, 1
      %v1302 = vsel %vm733, %v1300, %v1301
      %v1303 = vrot.slane %v1198, 1
      %v1304 = vsel %vm733, %v1301, %v1303
      %v1305 = vrot.slane %v1199, 1
      %v1306 = vrot.slane %v1200, 1
      %v1307 = vsel %vm733, %v1305, %v1306
      %v1308 = vrot.slane %v1201, 1
      %v1309 = vsel %vm733, %v1306, %v1308
      %v1310 = vrot.slane %v1202, 1
      %v1311 = vrot.slane %v1203, 1
      %v1312 = vsel %vm733, %v1310, %v1311
      %v1313 = vrot.slane %v1204, 1
      %v1314 = vsel %vm733, %v1311, %v1313
      %v1315 = vrot.slane %v1205, 1
      %v1316 = vrot.slane %v1206, 1
      %v1317 = vsel %vm733, %v1315, %v1316
      %v1318 = vrot.slane %v1207, 1
      %v1319 = vsel %vm733, %v1316, %v1318
      %v1320 = vrot.slane %v1208, 1
      %v1321 = vrot.slane %v1209, 1
      %v1322 = vsel %vm733, %v1320, %v1321
      %v1323 = vrot.slane %v1210, 1
      %v1324 = vsel %vm733, %v1321, %v1323
      %v1325 = vrot.slane %v1211, 1
      %v1326 = vrot.slane %v1212, 1
      %v1327 = vsel %vm733, %v1325, %v1326
      %v1328 = vrot.slane %v1213, 1
      %v1329 = vsel %vm733, %v1326, %v1328
      %v1330 = vrot.slane %v1214, 1
      %v1331 = vrot.slane %v1215, 1
      %v1332 = vsel %vm733, %v1330, %v1331
      %v1333 = vrot.slane %v1216, 1
      %v1334 = vsel %vm733, %v1331, %v1333
      %v1335 = vrot.slane %v1217, 1
      %v1336 = vrot.slane %v1218, 1
      %v1337 = vsel %vm733, %v1335, %v1336
      %v1338 = vrot.slane %v1219, 1
      %v1339 = vsel %vm733, %v1336, %v1338
      %v1340 = vrot.slane %v1220, 1
      %v1341 = vrot.slane %v1221, 1
      %v1342 = vsel %vm733, %v1340, %v1341
      %v1343 = vrot.slane %v1222, 1
      %v1344 = vsel %vm733, %v1341, %v1343
      %v1345 = vrot.slane %v1223, 1
      %v1346 = vrot.slane %v1224, 1
      %v1347 = vsel %vm733, %v1345, %v1346
      %v1348 = vrot.slane %v1225, 1
      %v1349 = vsel %vm733, %v1346, %v1348
      %v1350 = vrot.slane %v1226, 1
      %v1351 = vrot.slane %v1227, 1
      %v1352 = vsel %vm733, %v1350, %v1351
      %v1353 = vrot.slane %v1228, 1
      %v1354 = vsel %vm733, %v1351, %v1353
      %v1355 = vrot.slane %v1229, 1
      %v1356 = vrot.slane %v1230, 1
      %v1357 = vsel %vm733, %v1355, %v1356
      %v1358 = vrot.slane %v1231, 1
      %v1359 = vsel %vm733, %v1356, %v1358
      %v1392 = vadd.f32 %v1147, %v1282
      %v1393 = vadd.f32 %v1148, %v1284
      %v1394 = vadd.f32 %v1149, %v1287
      %v1395 = vadd.f32 %v1150, %v1289
      %v1396 = vadd.f32 %v1151, %v1292
      %v1397 = vadd.f32 %v1152, %v1294
      %v1398 = vadd.f32 %v1153, %v1297
      %v1399 = vadd.f32 %v1154, %v1299
      %v1400 = vadd.f32 %v1155, %v1302
      %v1401 = vadd.f32 %v1156, %v1304
      %v1402 = vadd.f32 %v1157, %v1307
      %v1403 = vadd.f32 %v1158, %v1309
      %v1404 = vadd.f32 %v1159, %v1312
      %v1405 = vadd.f32 %v1160, %v1314
      %v1406 = vadd.f32 %v1161, %v1317
      %v1407 = vadd.f32 %v1162, %v1319
      %v1408 = vadd.f32 %v1163, %v1322
      %v1409 = vadd.f32 %v1164, %v1324
      %v1410 = vadd.f32 %v1165, %v1327
      %v1411 = vadd.f32 %v1166, %v1329
      %v1412 = vadd.f32 %v1167, %v1332
      %v1413 = vadd.f32 %v1168, %v1334
      %v1414 = vadd.f32 %v1169, %v1337
      %v1415 = vadd.f32 %v1170, %v1339
      %v1416 = vadd.f32 %v1171, %v1342
      %v1417 = vadd.f32 %v1172, %v1344
      %v1418 = vadd.f32 %v1173, %v1347
      %v1419 = vadd.f32 %v1174, %v1349
      %v1420 = vadd.f32 %v1175, %v1352
      %v1421 = vadd.f32 %v1176, %v1354
      %v1422 = vadd.f32 %v1177, %v1357
      %v1423 = vadd.f32 %v1178, %v1359
      %v1424 = vld [vmem:[%s1 + $0x5] sm:$0x1]
      %v1425 = vlaneseq
      %v1426 = vshrl.u32 %v1425, 7
      %v1427 = vsub.s32 0, %v1426
      %v1428 = vrot.slane %v1424, %v1427
      %v1429 = vmul.f32 %v535, %v1428
      %v1430 = vmul.f32 %v441, %v1428
      %v1431 = vmul.f32 %v551, %v1428
      %v1432 = vmul.f32 %v536, %v1428
      %v1433 = vmul.f32 %v444, %v1428
      %v1434 = vmul.f32 %v552, %v1428
      %v1435 = vmul.f32 %v537, %v1428
      %v1436 = vmul.f32 %v447, %v1428
      %v1437 = vmul.f32 %v553, %v1428
      %v1438 = vmul.f32 %v538, %v1428
      %v1439 = vmul.f32 %v450, %v1428
      %v1440 = vmul.f32 %v554, %v1428
      %v1441 = vmul.f32 %v539, %v1428
      %v1442 = vmul.f32 %v453, %v1428
      %v1443 = vmul.f32 %v555, %v1428
      %v1444 = vmul.f32 %v540, %v1428
      %v1445 = vmul.f32 %v456, %v1428
      %v1446 = vmul.f32 %v556, %v1428
      %v1447 = vmul.f32 %v541, %v1428
      %v1448 = vmul.f32 %v459, %v1428
      %v1449 = vmul.f32 %v557, %v1428
      %v1450 = vmul.f32 %v542, %v1428
      %v1451 = vmul.f32 %v462, %v1428
      %v1452 = vmul.f32 %v558, %v1428
      %v1453 = vmul.f32 %v543, %v1428
      %v1454 = vmul.f32 %v465, %v1428
      %v1455 = vmul.f32 %v559, %v1428
      %v1456 = vmul.f32 %v544, %v1428
      %v1457 = vmul.f32 %v468, %v1428
      %v1458 = vmul.f32 %v560, %v1428
      %v1459 = vmul.f32 %v545, %v1428
      %v1460 = vmul.f32 %v471, %v1428
      %v1461 = vmul.f32 %v561, %v1428
      %v1462 = vmul.f32 %v546, %v1428
      %v1463 = vmul.f32 %v474, %v1428
      %v1464 = vmul.f32 %v562, %v1428
      %v1465 = vmul.f32 %v547, %v1428
      %v1466 = vmul.f32 %v477, %v1428
      %v1467 = vmul.f32 %v563, %v1428
      %v1468 = vmul.f32 %v548, %v1428
      %v1469 = vmul.f32 %v480, %v1428
      %v1470 = vmul.f32 %v564, %v1428
      %v1471 = vmul.f32 %v549, %v1428
      %v1472 = vmul.f32 %v483, %v1428
      %v1473 = vmul.f32 %v565, %v1428
      %v1474 = vmul.f32 %v550, %v1428
      %v1475 = vmul.f32 %v486, %v1428
      %v1476 = vmul.f32 %v566, %v1428
      %v1525 = vrot.slane %v1429, 2
      %v1526 = vrot.slane %v1430, 2
      %v1527 = vsel %vm970, %v1525, %v1526
      %v1528 = vrot.slane %v1431, 2
      %v1529 = vsel %vm970, %v1526, %v1528
      %v1530 = vrot.slane %v1432, 2
      %v1531 = vrot.slane %v1433, 2
      %v1532 = vsel %vm970, %v1530, %v1531
      %v1533 = vrot.slane %v1434, 2
      %v1534 = vsel %vm970, %v1531, %v1533
      %v1535 = vrot.slane %v1435, 2
      %v1536 = vrot.slane %v1436, 2
      %v1537 = vsel %vm970, %v1535, %v1536
      %v1538 = vrot.slane %v1437, 2
      %v1539 = vsel %vm970, %v1536, %v1538
      %v1540 = vrot.slane %v1438, 2
      %v1541 = vrot.slane %v1439, 2
      %v1542 = vsel %vm970, %v1540, %v1541
      %v1543 = vrot.slane %v1440, 2
      %v1544 = vsel %vm970, %v1541, %v1543
      %v1545 = vrot.slane %v1441, 2
      %v1546 = vrot.slane %v1442, 2
      %v1547 = vsel %vm970, %v1545, %v1546
      %v1548 = vrot.slane %v1443, 2
      %v1549 = vsel %vm970, %v1546, %v1548
      %v1550 = vrot.slane %v1444, 2
      %v1551 = vrot.slane %v1445, 2
      %v1552 = vsel %vm970, %v1550, %v1551
      %v1553 = vrot.slane %v1446, 2
      %v1554 = vsel %vm970, %v1551, %v1553
      %v1555 = vrot.slane %v1447, 2
      %v1556 = vrot.slane %v1448, 2
      %v1557 = vsel %vm970, %v1555, %v1556
      %v1558 = vrot.slane %v1449, 2
      %v1559 = vsel %vm970, %v1556, %v1558
      %v1560 = vrot.slane %v1450, 2
      %v1561 = vrot.slane %v1451, 2
      %v1562 = vsel %vm970, %v1560, %v1561
      %v1563 = vrot.slane %v1452, 2
      %v1564 = vsel %vm970, %v1561, %v1563
      %v1565 = vrot.slane %v1453, 2
      %v1566 = vrot.slane %v1454, 2
      %v1567 = vsel %vm970, %v1565, %v1566
      %v1568 = vrot.slane %v1455, 2
      %v1569 = vsel %vm970, %v1566, %v1568
      %v1570 = vrot.slane %v1456, 2
      %v1571 = vrot.slane %v1457, 2
      %v1572 = vsel %vm970, %v1570, %v1571
      %v1573 = vrot.slane %v1458, 2
      %v1574 = vsel %vm970, %v1571, %v1573
      %v1575 = vrot.slane %v1459, 2
      %v1576 = vrot.slane %v1460, 2
      %v1577 = vsel %vm970, %v1575, %v1576
      %v1578 = vrot.slane %v1461, 2
      %v1579 = vsel %vm970, %v1576, %v1578
      %v1580 = vrot.slane %v1462, 2
      %v1581 = vrot.slane %v1463, 2
      %v1582 = vsel %vm970, %v1580, %v1581
      %v1583 = vrot.slane %v1464, 2
      %v1584 = vsel %vm970, %v1581, %v1583
      %v1585 = vrot.slane %v1465, 2
      %v1586 = vrot.slane %v1466, 2
      %v1587 = vsel %vm970, %v1585, %v1586
      %v1588 = vrot.slane %v1467, 2
      %v1589 = vsel %vm970, %v1586, %v1588
      %v1590 = vrot.slane %v1468, 2
      %v1591 = vrot.slane %v1469, 2
      %v1592 = vsel %vm970, %v1590, %v1591
      %v1593 = vrot.slane %v1470, 2
      %v1594 = vsel %vm970, %v1591, %v1593
      %v1595 = vrot.slane %v1471, 2
      %v1596 = vrot.slane %v1472, 2
      %v1597 = vsel %vm970, %v1595, %v1596
      %v1598 = vrot.slane %v1473, 2
      %v1599 = vsel %vm970, %v1596, %v1598
      %v1600 = vrot.slane %v1474, 2
      %v1601 = vrot.slane %v1475, 2
      %v1602 = vsel %vm970, %v1600, %v1601
      %v1603 = vrot.slane %v1476, 2
      %v1604 = vsel %vm970, %v1601, %v1603
      %v1637 = vadd.f32 %v1392, %v1527
      %v1638 = vadd.f32 %v1393, %v1529
      %v1639 = vadd.f32 %v1394, %v1532
      %v1640 = vadd.f32 %v1395, %v1534
      %v1641 = vadd.f32 %v1396, %v1537
      %v1642 = vadd.f32 %v1397, %v1539
      %v1643 = vadd.f32 %v1398, %v1542
      %v1644 = vadd.f32 %v1399, %v1544
      %v1645 = vadd.f32 %v1400, %v1547
      %v1646 = vadd.f32 %v1401, %v1549
      %v1647 = vadd.f32 %v1402, %v1552
      %v1648 = vadd.f32 %v1403, %v1554
      %v1649 = vadd.f32 %v1404, %v1557
      %v1650 = vadd.f32 %v1405, %v1559
      %v1651 = vadd.f32 %v1406, %v1562
      %v1652 = vadd.f32 %v1407, %v1564
      %v1653 = vadd.f32 %v1408, %v1567
      %v1654 = vadd.f32 %v1409, %v1569
      %v1655 = vadd.f32 %v1410, %v1572
      %v1656 = vadd.f32 %v1411, %v1574
      %v1657 = vadd.f32 %v1412, %v1577
      %v1658 = vadd.f32 %v1413, %v1579
      %v1659 = vadd.f32 %v1414, %v1582
      %v1660 = vadd.f32 %v1415, %v1584
      %v1661 = vadd.f32 %v1416, %v1587
      %v1662 = vadd.f32 %v1417, %v1589
      %v1663 = vadd.f32 %v1418, %v1592
      %v1664 = vadd.f32 %v1419, %v1594
      %v1665 = vadd.f32 %v1420, %v1597
      %v1666 = vadd.f32 %v1421, %v1599
      %v1667 = vadd.f32 %v1422, %v1602
      %v1668 = vadd.f32 %v1423, %v1604
      %v1669 = vld [vmem:[%s1 + $0x6] sm:$0x1]
      %v1670 = vlaneseq
      %v1671 = vshrl.u32 %v1670, 7
      %v1672 = vsub.s32 0, %v1671
      %v1673 = vrot.slane %v1669, %v1672
      %v1674 = vmul.f32 %v536, %v1673
      %v1675 = vmul.f32 %v444, %v1673
      %v1676 = vmul.f32 %v537, %v1673
      %v1677 = vmul.f32 %v447, %v1673
      %v1678 = vmul.f32 %v538, %v1673
      %v1679 = vmul.f32 %v450, %v1673
      %v1680 = vmul.f32 %v539, %v1673
      %v1681 = vmul.f32 %v453, %v1673
      %v1682 = vmul.f32 %v540, %v1673
      %v1683 = vmul.f32 %v456, %v1673
      %v1684 = vmul.f32 %v541, %v1673
      %v1685 = vmul.f32 %v459, %v1673
      %v1686 = vmul.f32 %v542, %v1673
      %v1687 = vmul.f32 %v462, %v1673
      %v1688 = vmul.f32 %v543, %v1673
      %v1689 = vmul.f32 %v465, %v1673
      %v1690 = vmul.f32 %v544, %v1673
      %v1691 = vmul.f32 %v468, %v1673
      %v1692 = vmul.f32 %v545, %v1673
      %v1693 = vmul.f32 %v471, %v1673
      %v1694 = vmul.f32 %v546, %v1673
      %v1695 = vmul.f32 %v474, %v1673
      %v1696 = vmul.f32 %v547, %v1673
      %v1697 = vmul.f32 %v477, %v1673
      %v1698 = vmul.f32 %v548, %v1673
      %v1699 = vmul.f32 %v480, %v1673
      %v1700 = vmul.f32 %v549, %v1673
      %v1701 = vmul.f32 %v483, %v1673
      %v1702 = vmul.f32 %v550, %v1673
      %v1703 = vmul.f32 %v486, %v1673
      %v1704 = vmul.f32 %v1673, 0.0
      %v1705 = vadd.f32 %v1637, %v1674
      %v1706 = vadd.f32 %v1638, %v1675
      %v1707 = vadd.f32 %v1639, %v1676
      %v1708 = vadd.f32 %v1640, %v1677
      %v1709 = vadd.f32 %v1641, %v1678
      %v1710 = vadd.f32 %v1642, %v1679
      %v1711 = vadd.f32 %v1643, %v1680
      %v1712 = vadd.f32 %v1644, %v1681
      %v1713 = vadd.f32 %v1645, %v1682
      %v1714 = vadd.f32 %v1646, %v1683
      %v1715 = vadd.f32 %v1647, %v1684
      %v1716 = vadd.f32 %v1648, %v1685
      %v1717 = vadd.f32 %v1649, %v1686
      %v1718 = vadd.f32 %v1650, %v1687
      %v1719 = vadd.f32 %v1651, %v1688
      %v1720 = vadd.f32 %v1652, %v1689
      %v1721 = vadd.f32 %v1653, %v1690
      %v1722 = vadd.f32 %v1654, %v1691
      %v1723 = vadd.f32 %v1655, %v1692
      %v1724 = vadd.f32 %v1656, %v1693
      %v1725 = vadd.f32 %v1657, %v1694
      %v1726 = vadd.f32 %v1658, %v1695
      %v1727 = vadd.f32 %v1659, %v1696
      %v1728 = vadd.f32 %v1660, %v1697
      %v1729 = vadd.f32 %v1661, %v1698
      %v1730 = vadd.f32 %v1662, %v1699
      %v1731 = vadd.f32 %v1663, %v1700
      %v1732 = vadd.f32 %v1664, %v1701
      %v1733 = vadd.f32 %v1665, %v1702
      %v1734 = vadd.f32 %v1666, %v1703
      %v1735 = vadd.f32 %v1667, %v1704
      %v1736 = vadd.f32 %v1668, %v1704
      %v1737 = vld [vmem:[%s1 + $0x7] sm:$0x1]
      %v1738 = vlaneseq
      %v1739 = vshrl.u32 %v1738, 7
      %v1740 = vsub.s32 0, %v1739
      %v1741 = vrot.slane %v1737, %v1740
      %v1742 = vmul.f32 %v536, %v1741
      %v1743 = vmul.f32 %v444, %v1741
      %v1744 = vmul.f32 %v552, %v1741
      %v1745 = vmul.f32 %v537, %v1741
      %v1746 = vmul.f32 %v447, %v1741
      %v1747 = vmul.f32 %v553, %v1741
      %v1748 = vmul.f32 %v538, %v1741
      %v1749 = vmul.f32 %v450, %v1741
      %v1750 = vmul.f32 %v554, %v1741
      %v1751 = vmul.f32 %v539, %v1741
      %v1752 = vmul.f32 %v453, %v1741
      %v1753 = vmul.f32 %v555, %v1741
      %v1754 = vmul.f32 %v540, %v1741
      %v1755 = vmul.f32 %v456, %v1741
      %v1756 = vmul.f32 %v556, %v1741
      %v1757 = vmul.f32 %v541, %v1741
      %v1758 = vmul.f32 %v459, %v1741
      %v1759 = vmul.f32 %v557, %v1741
      %v1760 = vmul.f32 %v542, %v1741
      %v1761 = vmul.f32 %v462, %v1741
      %v1762 = vmul.f32 %v558, %v1741
      %v1763 = vmul.f32 %v543, %v1741
      %v1764 = vmul.f32 %v465, %v1741
      %v1765 = vmul.f32 %v559, %v1741
      %v1766 = vmul.f32 %v544, %v1741
      %v1767 = vmul.f32 %v468, %v1741
      %v1768 = vmul.f32 %v560, %v1741
      %v1769 = vmul.f32 %v545, %v1741
      %v1770 = vmul.f32 %v471, %v1741
      %v1771 = vmul.f32 %v561, %v1741
      %v1772 = vmul.f32 %v546, %v1741
      %v1773 = vmul.f32 %v474, %v1741
      %v1774 = vmul.f32 %v562, %v1741
      %v1775 = vmul.f32 %v547, %v1741
      %v1776 = vmul.f32 %v477, %v1741
      %v1777 = vmul.f32 %v563, %v1741
      %v1778 = vmul.f32 %v548, %v1741
      %v1779 = vmul.f32 %v480, %v1741
      %v1780 = vmul.f32 %v564, %v1741
      %v1781 = vmul.f32 %v549, %v1741
      %v1782 = vmul.f32 %v483, %v1741
      %v1783 = vmul.f32 %v565, %v1741
      %v1784 = vmul.f32 %v550, %v1741
      %v1785 = vmul.f32 %v486, %v1741
      %v1786 = vmul.f32 %v566, %v1741
      %v1787 = vmul.f32 %v1741, 0.0
      %v1834 = vrot.slane %v1742, 1
      %v1835 = vrot.slane %v1743, 1
      %v1836 = vsel %vm733, %v1834, %v1835
      %v1837 = vrot.slane %v1744, 1
      %v1838 = vsel %vm733, %v1835, %v1837
      %v1839 = vrot.slane %v1745, 1
      %v1840 = vrot.slane %v1746, 1
      %v1841 = vsel %vm733, %v1839, %v1840
      %v1842 = vrot.slane %v1747, 1
      %v1843 = vsel %vm733, %v1840, %v1842
      %v1844 = vrot.slane %v1748, 1
      %v1845 = vrot.slane %v1749, 1
      %v1846 = vsel %vm733, %v1844, %v1845
      %v1847 = vrot.slane %v1750, 1
      %v1848 = vsel %vm733, %v1845, %v1847
      %v1849 = vrot.slane %v1751, 1
      %v1850 = vrot.slane %v1752, 1
      %v1851 = vsel %vm733, %v1849, %v1850
      %v1852 = vrot.slane %v1753, 1
      %v1853 = vsel %vm733, %v1850, %v1852
      %v1854 = vrot.slane %v1754, 1
      %v1855 = vrot.slane %v1755, 1
      %v1856 = vsel %vm733, %v1854, %v1855
      %v1857 = vrot.slane %v1756, 1
      %v1858 = vsel %vm733, %v1855, %v1857
      %v1859 = vrot.slane %v1757, 1
      %v1860 = vrot.slane %v1758, 1
      %v1861 = vsel %vm733, %v1859, %v1860
      %v1862 = vrot.slane %v1759, 1
      %v1863 = vsel %vm733, %v1860, %v1862
      %v1864 = vrot.slane %v1760, 1
      %v1865 = vrot.slane %v1761, 1
      %v1866 = vsel %vm733, %v1864, %v1865
      %v1867 = vrot.slane %v1762, 1
      %v1868 = vsel %vm733, %v1865, %v1867
      %v1869 = vrot.slane %v1763, 1
      %v1870 = vrot.slane %v1764, 1
      %v1871 = vsel %vm733, %v1869, %v1870
      %v1872 = vrot.slane %v1765, 1
      %v1873 = vsel %vm733, %v1870, %v1872
      %v1874 = vrot.slane %v1766, 1
      %v1875 = vrot.slane %v1767, 1
      %v1876 = vsel %vm733, %v1874, %v1875
      %v1877 = vrot.slane %v1768, 1
      %v1878 = vsel %vm733, %v1875, %v1877
      %v1879 = vrot.slane %v1769, 1
      %v1880 = vrot.slane %v1770, 1
      %v1881 = vsel %vm733, %v1879, %v1880
      %v1882 = vrot.slane %v1771, 1
      %v1883 = vsel %vm733, %v1880, %v1882
      %v1884 = vrot.slane %v1772, 1
      %v1885 = vrot.slane %v1773, 1
      %v1886 = vsel %vm733, %v1884, %v1885
      %v1887 = vrot.slane %v1774, 1
      %v1888 = vsel %vm733, %v1885, %v1887
      %v1889 = vrot.slane %v1775, 1
      %v1890 = vrot.slane %v1776, 1
      %v1891 = vsel %vm733, %v1889, %v1890
      %v1892 = vrot.slane %v1777, 1
      %v1893 = vsel %vm733, %v1890, %v1892
      %v1894 = vrot.slane %v1778, 1
      %v1895 = vrot.slane %v1779, 1
      %v1896 = vsel %vm733, %v1894, %v1895
      %v1897 = vrot.slane %v1780, 1
      %v1898 = vsel %vm733, %v1895, %v1897
      %v1899 = vrot.slane %v1781, 1
      %v1900 = vrot.slane %v1782, 1
      %v1901 = vsel %vm733, %v1899, %v1900
      %v1902 = vrot.slane %v1783, 1
      %v1903 = vsel %vm733, %v1900, %v1902
      %v1904 = vrot.slane %v1784, 1
      %v1905 = vrot.slane %v1785, 1
      %v1906 = vsel %vm733, %v1904, %v1905
      %v1907 = vrot.slane %v1786, 1
      %v1908 = vsel %vm733, %v1905, %v1907
      %v1909 = vrot.slane %v1787, 1
      %v1910 = vsel %vm733, %v1909, %v1909
      %v1942 = vadd.f32 %v1705, %v1836
      %v1943 = vadd.f32 %v1706, %v1838
      %v1944 = vadd.f32 %v1707, %v1841
      %v1945 = vadd.f32 %v1708, %v1843
      %v1946 = vadd.f32 %v1709, %v1846
      %v1947 = vadd.f32 %v1710, %v1848
      %v1948 = vadd.f32 %v1711, %v1851
      %v1949 = vadd.f32 %v1712, %v1853
      %v1950 = vadd.f32 %v1713, %v1856
      %v1951 = vadd.f32 %v1714, %v1858
      %v1952 = vadd.f32 %v1715, %v1861
      %v1953 = vadd.f32 %v1716, %v1863
      %v1954 = vadd.f32 %v1717, %v1866
      %v1955 = vadd.f32 %v1718, %v1868
      %v1956 = vadd.f32 %v1719, %v1871
      %v1957 = vadd.f32 %v1720, %v1873
      %v1958 = vadd.f32 %v1721, %v1876
      %v1959 = vadd.f32 %v1722, %v1878
      %v1960 = vadd.f32 %v1723, %v1881
      %v1961 = vadd.f32 %v1724, %v1883
      %v1962 = vadd.f32 %v1725, %v1886
      %v1963 = vadd.f32 %v1726, %v1888
      %v1964 = vadd.f32 %v1727, %v1891
      %v1965 = vadd.f32 %v1728, %v1893
      %v1966 = vadd.f32 %v1729, %v1896
      %v1967 = vadd.f32 %v1730, %v1898
      %v1968 = vadd.f32 %v1731, %v1901
      %v1969 = vadd.f32 %v1732, %v1903
      %v1970 = vadd.f32 %v1733, %v1906
      %v1971 = vadd.f32 %v1734, %v1908
      %v1972 = vadd.f32 %v1735, %v1910
      %v1973 = vadd.f32 %v1736, %v1910
      %v1974 = vld [vmem:[%s1 + $0x8] sm:$0x1]
      %v1975 = vlaneseq
      %v1976 = vshrl.u32 %v1975, 7
      %v1977 = vsub.s32 0, %v1976
      %v1978 = vrot.slane %v1974, %v1977
      %v1979 = vmul.f32 %v536, %v1978
      %v1980 = vmul.f32 %v444, %v1978
      %v1981 = vmul.f32 %v552, %v1978
      %v1982 = vmul.f32 %v537, %v1978
      %v1983 = vmul.f32 %v447, %v1978
      %v1984 = vmul.f32 %v553, %v1978
      %v1985 = vmul.f32 %v538, %v1978
      %v1986 = vmul.f32 %v450, %v1978
      %v1987 = vmul.f32 %v554, %v1978
      %v1988 = vmul.f32 %v539, %v1978
      %v1989 = vmul.f32 %v453, %v1978
      %v1990 = vmul.f32 %v555, %v1978
      %v1991 = vmul.f32 %v540, %v1978
      %v1992 = vmul.f32 %v456, %v1978
      %v1993 = vmul.f32 %v556, %v1978
      %v1994 = vmul.f32 %v541, %v1978
      %v1995 = vmul.f32 %v459, %v1978
      %v1996 = vmul.f32 %v557, %v1978
      %v1997 = vmul.f32 %v542, %v1978
      %v1998 = vmul.f32 %v462, %v1978
      %v1999 = vmul.f32 %v558, %v1978
      %v2000 = vmul.f32 %v543, %v1978
      %v2001 = vmul.f32 %v465, %v1978
      %v2002 = vmul.f32 %v559, %v1978
      %v2003 = vmul.f32 %v544, %v1978
      %v2004 = vmul.f32 %v468, %v1978
      %v2005 = vmul.f32 %v560, %v1978
      %v2006 = vmul.f32 %v545, %v1978
      %v2007 = vmul.f32 %v471, %v1978
      %v2008 = vmul.f32 %v561, %v1978
      %v2009 = vmul.f32 %v546, %v1978
      %v2010 = vmul.f32 %v474, %v1978
      %v2011 = vmul.f32 %v562, %v1978
      %v2012 = vmul.f32 %v547, %v1978
      %v2013 = vmul.f32 %v477, %v1978
      %v2014 = vmul.f32 %v563, %v1978
      %v2015 = vmul.f32 %v548, %v1978
      %v2016 = vmul.f32 %v480, %v1978
      %v2017 = vmul.f32 %v564, %v1978
      %v2018 = vmul.f32 %v549, %v1978
      %v2019 = vmul.f32 %v483, %v1978
      %v2020 = vmul.f32 %v565, %v1978
      %v2021 = vmul.f32 %v550, %v1978
      %v2022 = vmul.f32 %v486, %v1978
      %v2023 = vmul.f32 %v566, %v1978
      %v2024 = vmul.f32 %v1978, 0.0
      %v2071 = vrot.slane %v1979, 2
      %v2072 = vrot.slane %v1980, 2
      %v2073 = vsel %vm970, %v2071, %v2072
      %v2074 = vrot.slane %v1981, 2
      %v2075 = vsel %vm970, %v2072, %v2074
      %v2076 = vrot.slane %v1982, 2
      %v2077 = vrot.slane %v1983, 2
      %v2078 = vsel %vm970, %v2076, %v2077
      %v2079 = vrot.slane %v1984, 2
      %v2080 = vsel %vm970, %v2077, %v2079
      %v2081 = vrot.slane %v1985, 2
      %v2082 = vrot.slane %v1986, 2
      %v2083 = vsel %vm970, %v2081, %v2082
      %v2084 = vrot.slane %v1987, 2
      %v2085 = vsel %vm970, %v2082, %v2084
      %v2086 = vrot.slane %v1988, 2
      %v2087 = vrot.slane %v1989, 2
      %v2088 = vsel %vm970, %v2086, %v2087
      %v2089 = vrot.slane %v1990, 2
      %v2090 = vsel %vm970, %v2087, %v2089
      %v2091 = vrot.slane %v1991, 2
      %v2092 = vrot.slane %v1992, 2
      %v2093 = vsel %vm970, %v2091, %v2092
      %v2094 = vrot.slane %v1993, 2
      %v2095 = vsel %vm970, %v2092, %v2094
      %v2096 = vrot.slane %v1994, 2
      %v2097 = vrot.slane %v1995, 2
      %v2098 = vsel %vm970, %v2096, %v2097
      %v2099 = vrot.slane %v1996, 2
      %v2100 = vsel %vm970, %v2097, %v2099
      %v2101 = vrot.slane %v1997, 2
      %v2102 = vrot.slane %v1998, 2
      %v2103 = vsel %vm970, %v2101, %v2102
      %v2104 = vrot.slane %v1999, 2
      %v2105 = vsel %vm970, %v2102, %v2104
      %v2106 = vrot.slane %v2000, 2
      %v2107 = vrot.slane %v2001, 2
      %v2108 = vsel %vm970, %v2106, %v2107
      %v2109 = vrot.slane %v2002, 2
      %v2110 = vsel %vm970, %v2107, %v2109
      %v2111 = vrot.slane %v2003, 2
      %v2112 = vrot.slane %v2004, 2
      %v2113 = vsel %vm970, %v2111, %v2112
      %v2114 = vrot.slane %v2005, 2
      %v2115 = vsel %vm970, %v2112, %v2114
      %v2116 = vrot.slane %v2006, 2
      %v2117 = vrot.slane %v2007, 2
      %v2118 = vsel %vm970, %v2116, %v2117
      %v2119 = vrot.slane %v2008, 2
      %v2120 = vsel %vm970, %v2117, %v2119
      %v2121 = vrot.slane %v2009, 2
      %v2122 = vrot.slane %v2010, 2
      %v2123 = vsel %vm970, %v2121, %v2122
      %v2124 = vrot.slane %v2011, 2
      %v2125 = vsel %vm970, %v2122, %v2124
      %v2126 = vrot.slane %v2012, 2
      %v2127 = vrot.slane %v2013, 2
      %v2128 = vsel %vm970, %v2126, %v2127
      %v2129 = vrot.slane %v2014, 2
      %v2130 = vsel %vm970, %v2127, %v2129
      %v2131 = vrot.slane %v2015, 2
      %v2132 = vrot.slane %v2016, 2
      %v2133 = vsel %vm970, %v2131, %v2132
      %v2134 = vrot.slane %v2017, 2
      %v2135 = vsel %vm970, %v2132, %v2134
      %v2136 = vrot.slane %v2018, 2
      %v2137 = vrot.slane %v2019, 2
      %v2138 = vsel %vm970, %v2136, %v2137
      %v2139 = vrot.slane %v2020, 2
      %v2140 = vsel %vm970, %v2137, %v2139
      %v2141 = vrot.slane %v2021, 2
      %v2142 = vrot.slane %v2022, 2
      %v2143 = vsel %vm970, %v2141, %v2142
      %v2144 = vrot.slane %v2023, 2
      %v2145 = vsel %vm970, %v2142, %v2144
      %v2146 = vrot.slane %v2024, 2
      %v2147 = vsel %vm970, %v2146, %v2146
      %v2179 = vadd.f32 %v1942, %v2073
      %v2180 = vadd.f32 %v1943, %v2075
      %v2181 = vadd.f32 %v1944, %v2078
      %v2182 = vadd.f32 %v1945, %v2080
      %v2183 = vadd.f32 %v1946, %v2083
      %v2184 = vadd.f32 %v1947, %v2085
      %v2185 = vadd.f32 %v1948, %v2088
      %v2186 = vadd.f32 %v1949, %v2090
      %v2187 = vadd.f32 %v1950, %v2093
      %v2188 = vadd.f32 %v1951, %v2095
      %v2189 = vadd.f32 %v1952, %v2098
      %v2190 = vadd.f32 %v1953, %v2100
      %v2191 = vadd.f32 %v1954, %v2103
      %v2192 = vadd.f32 %v1955, %v2105
      %v2193 = vadd.f32 %v1956, %v2108
      %v2194 = vadd.f32 %v1957, %v2110
      %v2195 = vadd.f32 %v1958, %v2113
      %v2196 = vadd.f32 %v1959, %v2115
      %v2197 = vadd.f32 %v1960, %v2118
      %v2198 = vadd.f32 %v1961, %v2120
      %v2199 = vadd.f32 %v1962, %v2123
      %v2200 = vadd.f32 %v1963, %v2125
      %v2201 = vadd.f32 %v1964, %v2128
      %v2202 = vadd.f32 %v1965, %v2130
      %v2203 = vadd.f32 %v1966, %v2133
      %v2204 = vadd.f32 %v1967, %v2135
      %v2205 = vadd.f32 %v1968, %v2138
      %v2206 = vadd.f32 %v1969, %v2140
      %v2207 = vadd.f32 %v1970, %v2143
      %v2208 = vadd.f32 %v1971, %v2145
      %v2209 = vadd.f32 %v1972, %v2147
      %v2210 = vadd.f32 %v1973, %v2147
      %v2212 = vlaneseq
      %v2213 = vshrl.u32 %v2212, 7
      %v2214 = vsub.s32 0, %v2213
      %v2215 = vrot.slane %v567, %v2214
      %v2217 = vmul.f32 %v2179, %v2215
      %v2218 = vmul.f32 %v2180, %v2215
      %v2219 = vmul.f32 %v2181, %v2215
      %v2220 = vmul.f32 %v2182, %v2215
      %v2221 = vmul.f32 %v2183, %v2215
      %v2222 = vmul.f32 %v2184, %v2215
      %v2223 = vmul.f32 %v2185, %v2215
      %v2224 = vmul.f32 %v2186, %v2215
      %v2225 = vmul.f32 %v2187, %v2215
      %v2226 = vmul.f32 %v2188, %v2215
      %v2227 = vmul.f32 %v2189, %v2215
      %v2228 = vmul.f32 %v2190, %v2215
      %v2229 = vmul.f32 %v2191, %v2215
      %v2230 = vmul.f32 %v2192, %v2215
      %v2231 = vmul.f32 %v2193, %v2215
      %v2232 = vmul.f32 %v2194, %v2215
      %v2233 = vmul.f32 %v2195, %v2215
      %v2234 = vmul.f32 %v2196, %v2215
      %v2235 = vmul.f32 %v2197, %v2215
      %v2236 = vmul.f32 %v2198, %v2215
      %v2237 = vmul.f32 %v2199, %v2215
      %v2238 = vmul.f32 %v2200, %v2215
      %v2239 = vmul.f32 %v2201, %v2215
      %v2240 = vmul.f32 %v2202, %v2215
      %v2241 = vmul.f32 %v2203, %v2215
      %v2242 = vmul.f32 %v2204, %v2215
      %v2243 = vmul.f32 %v2205, %v2215
      %v2244 = vmul.f32 %v2206, %v2215
      %v2245 = vmul.f32 %v2207, %v2215
      %v2246 = vmul.f32 %v2208, %v2215
      %v2247 = vmul.f32 %v2209, %v2215
      %v2248 = vmul.f32 %v2210, %v2215
      %v2250 = vlaneseq
      %v2251 = vshrl.u32 %v2250, 7
      %v2252 = vsub.s32 0, %v2251
      %v2253 = vrot.slane %v568, %v2252
      %v2255 = vadd.f32 %v2217, %v2253
      %v2256 = vadd.f32 %v2218, %v2253
      %v2257 = vadd.f32 %v2219, %v2253
      %v2258 = vadd.f32 %v2220, %v2253
      %v2259 = vadd.f32 %v2221, %v2253
      %v2260 = vadd.f32 %v2222, %v2253
      %v2261 = vadd.f32 %v2223, %v2253
      %v2262 = vadd.f32 %v2224, %v2253
      %v2263 = vadd.f32 %v2225, %v2253
      %v2264 = vadd.f32 %v2226, %v2253
      %v2265 = vadd.f32 %v2227, %v2253
      %v2266 = vadd.f32 %v2228, %v2253
      %v2267 = vadd.f32 %v2229, %v2253
      %v2268 = vadd.f32 %v2230, %v2253
      %v2269 = vadd.f32 %v2231, %v2253
      %v2270 = vadd.f32 %v2232, %v2253
      %v2271 = vadd.f32 %v2233, %v2253
      %v2272 = vadd.f32 %v2234, %v2253
      %v2273 = vadd.f32 %v2235, %v2253
      %v2274 = vadd.f32 %v2236, %v2253
      %v2275 = vadd.f32 %v2237, %v2253
      %v2276 = vadd.f32 %v2238, %v2253
      %v2277 = vadd.f32 %v2239, %v2253
      %v2278 = vadd.f32 %v2240, %v2253
      %v2279 = vadd.f32 %v2241, %v2253
      %v2280 = vadd.f32 %v2242, %v2253
      %v2281 = vadd.f32 %v2243, %v2253
      %v2282 = vadd.f32 %v2244, %v2253
      %v2283 = vadd.f32 %v2245, %v2253
      %v2284 = vadd.f32 %v2246, %v2253
      %v2285 = vadd.f32 %v2247, %v2253
      %v2286 = vadd.f32 %v2248, %v2253
      %v2287 = vpack.c.bf16 %v2256, %v2255
      %v2288 = vpack.c.bf16 %v2258, %v2257
      %v2289 = vpack.c.bf16 %v2260, %v2259
      %v2290 = vpack.c.bf16 %v2262, %v2261
      %v2291 = vpack.c.bf16 %v2264, %v2263
      %v2292 = vpack.c.bf16 %v2266, %v2265
      %v2293 = vpack.c.bf16 %v2268, %v2267
      %v2294 = vpack.c.bf16 %v2270, %v2269
      %v2295 = vpack.c.bf16 %v2272, %v2271
      %v2296 = vpack.c.bf16 %v2274, %v2273
      %v2297 = vpack.c.bf16 %v2276, %v2275
      %v2298 = vpack.c.bf16 %v2278, %v2277
      %v2299 = vpack.c.bf16 %v2280, %v2279
      %v2300 = vpack.c.bf16 %v2282, %v2281
      %v2301 = vpack.c.bf16 %v2284, %v2283
      %v2302 = vpack.c.bf16 %v2286, %v2285
      %v2303 = vld [vmem:[%s4] sm:$0xf]
      %v2304 = vld [vmem:[%s4 + $0x4] sm:$0xf]
      %v2305 = vld [vmem:[%s4 + $0x8] sm:$0xf]
      %v2306 = vld [vmem:[%s4 + $0xc] sm:$0xf]
      %v2307 = vld [vmem:[%s4 + $0x10] sm:$0xf]
      %v2308 = vld [vmem:[%s4 + $0x14] sm:$0xf]
      %v2309 = vld [vmem:[%s4 + $0x18] sm:$0xf]
      %v2310 = vld [vmem:[%s4 + $0x1c] sm:$0xf]
      %v2311 = vld [vmem:[%s4 + $0x20] sm:$0xf]
      %v2312 = vld [vmem:[%s4 + $0x24] sm:$0xf]
      %v2313 = vld [vmem:[%s4 + $0x28] sm:$0xf]
      %v2314 = vld [vmem:[%s4 + $0x2c] sm:$0xf]
      %v2315 = vld [vmem:[%s4 + $0x30] sm:$0xf]
      %v2316 = vld [vmem:[%s4 + $0x34] sm:$0xf]
      %v2317 = vld [vmem:[%s4 + $0x38] sm:$0xf]
      %v2318 = vld [vmem:[%s4 + $0x3c] sm:$0xf]
      %v2335 = vunpack.c.l.b16 %v2303
      %v2336 = vunpack.c.l.b16 %v2304
      %v2337 = vunpack.c.l.b16 %v2305
      %v2338 = vunpack.c.l.b16 %v2306
      %v2339 = vunpack.c.l.b16 %v2307
      %v2340 = vunpack.c.l.b16 %v2308
      %v2341 = vunpack.c.l.b16 %v2309
      %v2342 = vunpack.c.l.b16 %v2310
      %v2343 = vunpack.c.l.b16 %v2311
      %v2344 = vunpack.c.l.b16 %v2312
      %v2345 = vunpack.c.l.b16 %v2313
      %v2346 = vunpack.c.l.b16 %v2314
      %v2347 = vunpack.c.l.b16 %v2315
      %v2348 = vunpack.c.l.b16 %v2316
      %v2349 = vunpack.c.l.b16 %v2317
      %v2350 = vunpack.c.l.b16 %v2318
      %v2351 = vpack.c.b16 %v2336, %v2335
      %v2352 = vpack.c.b16 %v2338, %v2337
      %v2353 = vpack.c.b16 %v2340, %v2339
      %v2354 = vpack.c.b16 %v2342, %v2341
      %v2355 = vpack.c.b16 %v2344, %v2343
      %v2356 = vpack.c.b16 %v2346, %v2345
      %v2357 = vpack.c.b16 %v2348, %v2347
      %v2358 = vpack.c.b16 %v2350, %v2349
      %2367 = vmatprep.subr.bf16.mxu0 0
      %2368 = vmatpush1.bf16.msra.mxu0 %v2351
      %2369 = vmatprep.subr.bf16.mxu0 0
      %2370 = vmatpush1.bf16.msra.mxu0 %v2352
      %2371 = vmatprep.subr.bf16.mxu0 0
      %2372 = vmatpush1.bf16.msra.mxu0 %v2353
      %2373 = vmatprep.subr.bf16.mxu0 0
      %2374 = vmatpush1.bf16.msra.mxu0 %v2354
      %2375 = vmatprep.subr.bf16.mxu0 0
      %2376 = vmatpush1.bf16.msra.mxu0 %v2355
      %2377 = vmatprep.subr.bf16.mxu0 0
      %2378 = vmatpush1.bf16.msra.mxu0 %v2356
      %2379 = vmatprep.subr.bf16.mxu0 0
      %2380 = vmatpush1.bf16.msra.mxu0 %v2357
      %2381 = vmatprep.subr.bf16.mxu0 0
      %2382 = vmatpush1.bf16.msra.mxu0 %v2358
      %2383 = vmatprep.subr.bf16.mxu0 0
      %2384 = vmatpush1.bf16.msra.mxu0 0
      %2385 = vmatprep.subr.bf16.mxu0 0
      %2386 = vmatpush1.bf16.msra.mxu0 0
      %2387 = vmatprep.subr.bf16.mxu0 0
      %2388 = vmatpush1.bf16.msra.mxu0 0
      %2389 = vmatprep.subr.bf16.mxu0 0
      %2390 = vmatpush1.bf16.msra.mxu0 0
      %2391 = vmatprep.subr.bf16.mxu0 0
      %2392 = vmatpush1.bf16.msra.mxu0 0
      %2393 = vmatprep.subr.bf16.mxu0 0
      %2394 = vmatpush1.bf16.msra.mxu0 0
      %2395 = vmatprep.subr.bf16.mxu0 0
      %2396 = vmatpush1.bf16.msra.mxu0 0
      %2397 = vmatprep.subr.bf16.mxu0 0
      %2398 = vmatpush1.bf16.msra.mxu0 0
      %2399 = vmatprep.mubr.bf16.mxu0 0
      %2400 = vmatmul.mubr.bf16.gmra.mrb[0].mxu0 %v2287
      %v2401 = vpop.f32.mrb[0].mxu0
      %v2402 = vadd.f32 0.0, %v2401
      %v2403 = vpop.f32.mrb[0].mxu0
      %v2404 = vpop.f32.mrb[0].mxu0
      %v2405 = vadd.f32 0.0, %v2404
      %v2406 = vpop.f32.mrb[0].mxu0
      %2407 = vmatprep.mubr.bf16.mxu0 0
      %2408 = vmatmul.mubr.bf16.gmra.mrb[0].mxu0 %v2288
      %v2409 = vpop.f32.mrb[0].mxu0
      %v2410 = vadd.f32 0.0, %v2409
      %v2411 = vpop.f32.mrb[0].mxu0
      %v2412 = vpop.f32.mrb[0].mxu0
      %v2413 = vadd.f32 0.0, %v2412
      %v2414 = vpop.f32.mrb[0].mxu0
      %2415 = vmatprep.mubr.bf16.mxu0 0
      %2416 = vmatmul.mubr.bf16.gmra.mrb[0].mxu0 %v2289
      %v2417 = vpop.f32.mrb[0].mxu0
      %v2418 = vadd.f32 0.0, %v2417
      %v2419 = vpop.f32.mrb[0].mxu0
      %v2420 = vpop.f32.mrb[0].mxu0
      %v2421 = vadd.f32 0.0, %v2420
      %v2422 = vpop.f32.mrb[0].mxu0
      %2423 = vmatprep.mubr.bf16.mxu0 0
      %2424 = vmatmul.mubr.bf16.gmra.mrb[0].mxu0 %v2290
      %v2425 = vpop.f32.mrb[0].mxu0
      %v2426 = vadd.f32 0.0, %v2425
      %v2427 = vpop.f32.mrb[0].mxu0
      %v2428 = vpop.f32.mrb[0].mxu0
      %v2429 = vadd.f32 0.0, %v2428
      %v2430 = vpop.f32.mrb[0].mxu0
      %2431 = vmatprep.mubr.bf16.mxu0 0
      %2432 = vmatmul.mubr.bf16.gmra.mrb[0].mxu0 %v2291
      %v2433 = vpop.f32.mrb[0].mxu0
      %v2434 = vadd.f32 0.0, %v2433
      %v2435 = vpop.f32.mrb[0].mxu0
      %v2436 = vpop.f32.mrb[0].mxu0
      %v2437 = vadd.f32 0.0, %v2436
      %v2438 = vpop.f32.mrb[0].mxu0
      %2439 = vmatprep.mubr.bf16.mxu0 0
      %2440 = vmatmul.mubr.bf16.gmra.mrb[0].mxu0 %v2292
      %v2441 = vpop.f32.mrb[0].mxu0
      %v2442 = vadd.f32 0.0, %v2441
      %v2443 = vpop.f32.mrb[0].mxu0
      %v2444 = vpop.f32.mrb[0].mxu0
      %v2445 = vadd.f32 0.0, %v2444
      %v2446 = vpop.f32.mrb[0].mxu0
      %2447 = vmatprep.mubr.bf16.mxu0 0
      %2448 = vmatmul.mubr.bf16.gmra.mrb[0].mxu0 %v2293
      %v2449 = vpop.f32.mrb[0].mxu0
      %v2450 = vadd.f32 0.0, %v2449
      %v2451 = vpop.f32.mrb[0].mxu0
      %v2452 = vpop.f32.mrb[0].mxu0
      %v2453 = vadd.f32 0.0, %v2452
      %v2454 = vpop.f32.mrb[0].mxu0
      %2455 = vmatprep.mubr.bf16.mxu0 0
      %2456 = vmatmul.mubr.bf16.gmra.mrb[0].mxu0 %v2294
      %v2457 = vpop.f32.mrb[0].mxu0
      %v2458 = vadd.f32 0.0, %v2457
      %v2459 = vpop.f32.mrb[0].mxu0
      %v2460 = vpop.f32.mrb[0].mxu0
      %v2461 = vadd.f32 0.0, %v2460
      %v2462 = vpop.f32.mrb[0].mxu0
      %2463 = vmatprep.mubr.bf16.mxu0 0
      %2464 = vmatmul.mubr.bf16.gmra.mrb[0].mxu0 %v2295
      %v2465 = vpop.f32.mrb[0].mxu0
      %v2466 = vadd.f32 0.0, %v2465
      %v2467 = vpop.f32.mrb[0].mxu0
      %v2468 = vpop.f32.mrb[0].mxu0
      %v2469 = vadd.f32 0.0, %v2468
      %v2470 = vpop.f32.mrb[0].mxu0
      %2471 = vmatprep.mubr.bf16.mxu0 0
      %2472 = vmatmul.mubr.bf16.gmra.mrb[0].mxu0 %v2296
      %v2473 = vpop.f32.mrb[0].mxu0
      %v2474 = vadd.f32 0.0, %v2473
      %v2475 = vpop.f32.mrb[0].mxu0
      %v2476 = vpop.f32.mrb[0].mxu0
      %v2477 = vadd.f32 0.0, %v2476
      %v2478 = vpop.f32.mrb[0].mxu0
      %2479 = vmatprep.mubr.bf16.mxu0 0
      %2480 = vmatmul.mubr.bf16.gmra.mrb[0].mxu0 %v2297
      %v2481 = vpop.f32.mrb[0].mxu0
      %v2482 = vadd.f32 0.0, %v2481
      %v2483 = vpop.f32.mrb[0].mxu0
      %v2484 = vpop.f32.mrb[0].mxu0
      %v2485 = vadd.f32 0.0, %v2484
      %v2486 = vpop.f32.mrb[0].mxu0
      %2487 = vmatprep.mubr.bf16.mxu0 0
      %2488 = vmatmul.mubr.bf16.gmra.mrb[0].mxu0 %v2298
      %v2489 = vpop.f32.mrb[0].mxu0
      %v2490 = vadd.f32 0.0, %v2489
      %v2491 = vpop.f32.mrb[0].mxu0
      %v2492 = vpop.f32.mrb[0].mxu0
      %v2493 = vadd.f32 0.0, %v2492
      %v2494 = vpop.f32.mrb[0].mxu0
      %2495 = vmatprep.mubr.bf16.mxu0 0
      %2496 = vmatmul.mubr.bf16.gmra.mrb[0].mxu0 %v2299
      %v2497 = vpop.f32.mrb[0].mxu0
      %v2498 = vadd.f32 0.0, %v2497
      %v2499 = vpop.f32.mrb[0].mxu0
      %v2500 = vpop.f32.mrb[0].mxu0
      %v2501 = vadd.f32 0.0, %v2500
      %v2502 = vpop.f32.mrb[0].mxu0
      %2503 = vmatprep.mubr.bf16.mxu0 0
      %2504 = vmatmul.mubr.bf16.gmra.mrb[0].mxu0 %v2300
      %v2505 = vpop.f32.mrb[0].mxu0
      %v2506 = vadd.f32 0.0, %v2505
      %v2507 = vpop.f32.mrb[0].mxu0
      %v2508 = vpop.f32.mrb[0].mxu0
      %v2509 = vadd.f32 0.0, %v2508
      %v2510 = vpop.f32.mrb[0].mxu0
      %2511 = vmatprep.mubr.bf16.mxu0 0
      %2512 = vmatmul.mubr.bf16.gmra.mrb[0].mxu0 %v2301
      %v2513 = vpop.f32.mrb[0].mxu0
      %v2514 = vadd.f32 0.0, %v2513
      %v2515 = vpop.f32.mrb[0].mxu0
      %v2516 = vpop.f32.mrb[0].mxu0
      %v2517 = vadd.f32 0.0, %v2516
      %v2518 = vpop.f32.mrb[0].mxu0
      %2519 = vmatprep.mubr.bf16.mxu0 0
      %2520 = vmatmul.mubr.bf16.gmra.mrb[0].mxu0 %v2302
      %v2521 = vpop.f32.mrb[0].mxu0
      %v2522 = vadd.f32 0.0, %v2521
      %v2523 = vpop.f32.mrb[0].mxu0
      %v2524 = vpop.f32.mrb[0].mxu0
      %v2525 = vadd.f32 0.0, %v2524
      %v2526 = vpop.f32.mrb[0].mxu0
      %2527 = vdwg.mxu0
      %v2528 = vpack.c.bf16 %v2405, %v2402
      %v2529 = vpack.c.bf16 %v2413, %v2410
      %v2530 = vpack.c.bf16 %v2421, %v2418
      %v2531 = vpack.c.bf16 %v2429, %v2426
      %v2532 = vpack.c.bf16 %v2437, %v2434
      %v2533 = vpack.c.bf16 %v2445, %v2442
      %v2534 = vpack.c.bf16 %v2453, %v2450
      %v2535 = vpack.c.bf16 %v2461, %v2458
      %v2536 = vpack.c.bf16 %v2469, %v2466
      %v2537 = vpack.c.bf16 %v2477, %v2474
      %v2538 = vpack.c.bf16 %v2485, %v2482
      %v2539 = vpack.c.bf16 %v2493, %v2490
      %v2540 = vpack.c.bf16 %v2501, %v2498
      %v2541 = vpack.c.bf16 %v2509, %v2506
      %v2542 = vpack.c.bf16 %v2517, %v2514
      %v2543 = vpack.c.bf16 %v2525, %v2522
      %v2560 = vunpack.c.l.b16 %v2528
      %v2561 = vunpack.c.h.b16 %v2528
      %v2562 = vunpack.c.l.b16 %v2529
      %v2563 = vunpack.c.h.b16 %v2529
      %v2564 = vunpack.c.l.b16 %v2530
      %v2565 = vunpack.c.h.b16 %v2530
      %v2566 = vunpack.c.l.b16 %v2531
      %v2567 = vunpack.c.h.b16 %v2531
      %v2568 = vunpack.c.l.b16 %v2532
      %v2569 = vunpack.c.h.b16 %v2532
      %v2570 = vunpack.c.l.b16 %v2533
      %v2571 = vunpack.c.h.b16 %v2533
      %v2572 = vunpack.c.l.b16 %v2534
      %v2573 = vunpack.c.h.b16 %v2534
      %v2574 = vunpack.c.l.b16 %v2535
      %v2575 = vunpack.c.h.b16 %v2535
      %v2576 = vunpack.c.l.b16 %v2536
      %v2577 = vunpack.c.h.b16 %v2536
      %v2578 = vunpack.c.l.b16 %v2537
      %v2579 = vunpack.c.h.b16 %v2537
      %v2580 = vunpack.c.l.b16 %v2538
      %v2581 = vunpack.c.h.b16 %v2538
      %v2582 = vunpack.c.l.b16 %v2539
      %v2583 = vunpack.c.h.b16 %v2539
      %v2584 = vunpack.c.l.b16 %v2540
      %v2585 = vunpack.c.h.b16 %v2540
      %v2586 = vunpack.c.l.b16 %v2541
      %v2587 = vunpack.c.h.b16 %v2541
      %v2588 = vunpack.c.l.b16 %v2542
      %v2589 = vunpack.c.h.b16 %v2542
      %v2590 = vunpack.c.l.b16 %v2543
      %v2591 = vunpack.c.h.b16 %v2543
      %v2592 = vpack.c.b16 %v2560, %v2560
      %v2593 = vpack.c.b16 %v2561, %v2561
      %v2594 = vpack.c.b16 %v2562, %v2562
      %v2595 = vpack.c.b16 %v2563, %v2563
      %v2596 = vpack.c.b16 %v2564, %v2564
      %v2597 = vpack.c.b16 %v2565, %v2565
      %v2598 = vpack.c.b16 %v2566, %v2566
      %v2599 = vpack.c.b16 %v2567, %v2567
      %v2600 = vpack.c.b16 %v2568, %v2568
      %v2601 = vpack.c.b16 %v2569, %v2569
      %v2602 = vpack.c.b16 %v2570, %v2570
      %v2603 = vpack.c.b16 %v2571, %v2571
      %v2604 = vpack.c.b16 %v2572, %v2572
      %v2605 = vpack.c.b16 %v2573, %v2573
      %v2606 = vpack.c.b16 %v2574, %v2574
      %v2607 = vpack.c.b16 %v2575, %v2575
      %v2608 = vpack.c.b16 %v2576, %v2576
      %v2609 = vpack.c.b16 %v2577, %v2577
      %v2610 = vpack.c.b16 %v2578, %v2578
      %v2611 = vpack.c.b16 %v2579, %v2579
      %v2612 = vpack.c.b16 %v2580, %v2580
      %v2613 = vpack.c.b16 %v2581, %v2581
      %v2614 = vpack.c.b16 %v2582, %v2582
      %v2615 = vpack.c.b16 %v2583, %v2583
      %v2616 = vpack.c.b16 %v2584, %v2584
      %v2617 = vpack.c.b16 %v2585, %v2585
      %v2618 = vpack.c.b16 %v2586, %v2586
      %v2619 = vpack.c.b16 %v2587, %v2587
      %v2620 = vpack.c.b16 %v2588, %v2588
      %v2621 = vpack.c.b16 %v2589, %v2589
      %v2622 = vpack.c.b16 %v2590, %v2590
      %v2623 = vpack.c.b16 %v2591, %v2591
      %2656 = vst [vmem:[%s367] sm:$0xf] %v2592
      %2657 = vst [vmem:[%s367 + $0x4] sm:$0xf] %v2593
      %2658 = vst [vmem:[%s367 + $0x8] sm:$0xf] %v2594
      %2659 = vst [vmem:[%s367 + $0xc] sm:$0xf] %v2595
      %2660 = vst [vmem:[%s367 + $0x10] sm:$0xf] %v2596
      %2661 = vst [vmem:[%s367 + $0x14] sm:$0xf] %v2597
      %2662 = vst [vmem:[%s367 + $0x18] sm:$0xf] %v2598
      %2663 = vst [vmem:[%s367 + $0x1c] sm:$0xf] %v2599
      %2664 = vst [vmem:[%s367 + $0x20] sm:$0xf] %v2600
      %2665 = vst [vmem:[%s367 + $0x24] sm:$0xf] %v2601
      %2666 = vst [vmem:[%s367 + $0x28] sm:$0xf] %v2602
      %2667 = vst [vmem:[%s367 + $0x2c] sm:$0xf] %v2603
      %2668 = vst [vmem:[%s367 + $0x30] sm:$0xf] %v2604
      %2669 = vst [vmem:[%s367 + $0x34] sm:$0xf] %v2605
      %2670 = vst [vmem:[%s367 + $0x38] sm:$0xf] %v2606
      %2671 = vst [vmem:[%s367 + $0x3c] sm:$0xf] %v2607
      %2672 = vst [vmem:[%s367 + $0x40] sm:$0xf] %v2608
      %2673 = vst [vmem:[%s367 + $0x44] sm:$0xf] %v2609
      %2674 = vst [vmem:[%s367 + $0x48] sm:$0xf] %v2610
      %2675 = vst [vmem:[%s367 + $0x4c] sm:$0xf] %v2611
      %2676 = vst [vmem:[%s367 + $0x50] sm:$0xf] %v2612
      %2677 = vst [vmem:[%s367 + $0x54] sm:$0xf] %v2613
      %2678 = vst [vmem:[%s367 + $0x58] sm:$0xf] %v2614
      %2679 = vst [vmem:[%s367 + $0x5c] sm:$0xf] %v2615
      %2680 = vst [vmem:[%s367 + $0x60] sm:$0xf] %v2616
      %2681 = vst [vmem:[%s367 + $0x64] sm:$0xf] %v2617
      %2682 = vst [vmem:[%s367 + $0x68] sm:$0xf] %v2618
      %2683 = vst [vmem:[%s367 + $0x6c] sm:$0xf] %v2619
      %2684 = vst [vmem:[%s367 + $0x70] sm:$0xf] %v2620
      %2685 = vst [vmem:[%s367 + $0x74] sm:$0xf] %v2621
      %2686 = vst [vmem:[%s367 + $0x78] sm:$0xf] %v2622
      %2687 = vst [vmem:[%s367 + $0x7c] sm:$0xf] %v2623
      %v2689 = vrot.slane 0.0, 7
      %v2690 = vsel %vm438, %v2689, %v2689
      %v2693 = vsel %vm438, 0.0, %v2689
      %v2694 = vsel %vm438, %v2689, 0.0
      %v2711 = vrot.slane %v2693, 1
      %v2712 = vrot.slane %v2690, 1
      %v2713 = vsel %vm733, %v2711, %v2712
      %v2714 = vrot.slane %v2694, 1
      %v2715 = vsel %vm733, %v2712, %v2714
      %v2716 = vrot.slane %v536, 1
      %v2717 = vrot.slane %v444, 1
      %v2718 = vsel %vm733, %v2716, %v2717
      %v2719 = vrot.slane %v552, 1
      %v2720 = vsel %vm733, %v2717, %v2719
      %v2721 = vrot.slane %v538, 1
      %v2722 = vrot.slane %v450, 1
      %v2723 = vsel %vm733, %v2721, %v2722
      %v2724 = vrot.slane %v554, 1
      %v2725 = vsel %vm733, %v2722, %v2724
      %v2726 = vrot.slane %v540, 1
      %v2727 = vrot.slane %v456, 1
      %v2728 = vsel %vm733, %v2726, %v2727
      %v2729 = vrot.slane %v556, 1
      %v2730 = vsel %vm733, %v2727, %v2729
      %v2731 = vrot.slane %v542, 1
      %v2732 = vrot.slane %v462, 1
      %v2733 = vsel %vm733, %v2731, %v2732
      %v2734 = vrot.slane %v558, 1
      %v2735 = vsel %vm733, %v2732, %v2734
      %v2736 = vrot.slane %v544, 1
      %v2737 = vrot.slane %v468, 1
      %v2738 = vsel %vm733, %v2736, %v2737
      %v2739 = vrot.slane %v560, 1
      %v2740 = vsel %vm733, %v2737, %v2739
      %v2741 = vrot.slane %v546, 1
      %v2742 = vrot.slane %v474, 1
      %v2743 = vsel %vm733, %v2741, %v2742
      %v2744 = vrot.slane %v562, 1
      %v2745 = vsel %vm733, %v2742, %v2744
      %v2746 = vrot.slane %v548, 1
      %v2747 = vrot.slane %v480, 1
      %v2748 = vsel %vm733, %v2746, %v2747
      %v2749 = vrot.slane %v564, 1
      %v2750 = vsel %vm733, %v2747, %v2749
      %v2767 = vrot.slane %v2693, 2
      %v2768 = vrot.slane %v2690, 2
      %v2769 = vsel %vm970, %v2767, %v2768
      %v2770 = vrot.slane %v2694, 2
      %v2771 = vsel %vm970, %v2768, %v2770
      %v2772 = vrot.slane %v536, 2
      %v2773 = vrot.slane %v444, 2
      %v2774 = vsel %vm970, %v2772, %v2773
      %v2775 = vrot.slane %v552, 2
      %v2776 = vsel %vm970, %v2773, %v2775
      %v2777 = vrot.slane %v538, 2
      %v2778 = vrot.slane %v450, 2
      %v2779 = vsel %vm970, %v2777, %v2778
      %v2780 = vrot.slane %v554, 2
      %v2781 = vsel %vm970, %v2778, %v2780
      %v2782 = vrot.slane %v540, 2
      %v2783 = vrot.slane %v456, 2
      %v2784 = vsel %vm970, %v2782, %v2783
      %v2785 = vrot.slane %v556, 2
      %v2786 = vsel %vm970, %v2783, %v2785
      %v2787 = vrot.slane %v542, 2
      %v2788 = vrot.slane %v462, 2
      %v2789 = vsel %vm970, %v2787, %v2788
      %v2790 = vrot.slane %v558, 2
      %v2791 = vsel %vm970, %v2788, %v2790
      %v2792 = vrot.slane %v544, 2
      %v2793 = vrot.slane %v468, 2
      %v2794 = vsel %vm970, %v2792, %v2793
      %v2795 = vrot.slane %v560, 2
      %v2796 = vsel %vm970, %v2793, %v2795
      %v2797 = vrot.slane %v546, 2
      %v2798 = vrot.slane %v474, 2
      %v2799 = vsel %vm970, %v2797, %v2798
      %v2800 = vrot.slane %v562, 2
      %v2801 = vsel %vm970, %v2798, %v2800
      %v2802 = vrot.slane %v548, 2
      %v2803 = vrot.slane %v480, 2
      %v2804 = vsel %vm970, %v2802, %v2803
      %v2805 = vrot.slane %v564, 2
      %v2806 = vsel %vm970, %v2803, %v2805
      %v2839 = vrot.slane %v535, 1
      %v2840 = vrot.slane %v441, 1
      %v2841 = vsel %vm733, %v2839, %v2840
      %v2842 = vrot.slane %v551, 1
      %v2843 = vsel %vm733, %v2840, %v2842
      %v2844 = vrot.slane %v537, 1
      %v2845 = vrot.slane %v447, 1
      %v2846 = vsel %vm733, %v2844, %v2845
      %v2847 = vrot.slane %v553, 1
      %v2848 = vsel %vm733, %v2845, %v2847
      %v2849 = vrot.slane %v539, 1
      %v2850 = vrot.slane %v453, 1
      %v2851 = vsel %vm733, %v2849, %v2850
      %v2852 = vrot.slane %v555, 1
      %v2853 = vsel %vm733, %v2850, %v2852
      %v2854 = vrot.slane %v541, 1
      %v2855 = vrot.slane %v459, 1
      %v2856 = vsel %vm733, %v2854, %v2855
      %v2857 = vrot.slane %v557, 1
      %v2858 = vsel %vm733, %v2855, %v2857
      %v2859 = vrot.slane %v543, 1
      %v2860 = vrot.slane %v465, 1
      %v2861 = vsel %vm733, %v2859, %v2860
      %v2862 = vrot.slane %v559, 1
      %v2863 = vsel %vm733, %v2860, %v2862
      %v2864 = vrot.slane %v545, 1
      %v2865 = vrot.slane %v471, 1
      %v2866 = vsel %vm733, %v2864, %v2865
      %v2867 = vrot.slane %v561, 1
      %v2868 = vsel %vm733, %v2865, %v2867
      %v2869 = vrot.slane %v547, 1
      %v2870 = vrot.slane %v477, 1
      %v2871 = vsel %vm733, %v2869, %v2870
      %v2872 = vrot.slane %v563, 1
      %v2873 = vsel %vm733, %v2870, %v2872
      %v2874 = vrot.slane %v549, 1
      %v2875 = vrot.slane %v483, 1
      %v2876 = vsel %vm733, %v2874, %v2875
      %v2877 = vrot.slane %v565, 1
      %v2878 = vsel %vm733, %v2875, %v2877
      %v2895 = vrot.slane %v535, 2
      %v2896 = vrot.slane %v441, 2
      %v2897 = vsel %vm970, %v2895, %v2896
      %v2898 = vrot.slane %v551, 2
      %v2899 = vsel %vm970, %v2896, %v2898
      %v2900 = vrot.slane %v537, 2
      %v2901 = vrot.slane %v447, 2
      %v2902 = vsel %vm970, %v2900, %v2901
      %v2903 = vrot.slane %v553, 2
      %v2904 = vsel %vm970, %v2901, %v2903
      %v2905 = vrot.slane %v539, 2
      %v2906 = vrot.slane %v453, 2
      %v2907 = vsel %vm970, %v2905, %v2906
      %v2908 = vrot.slane %v555, 2
      %v2909 = vsel %vm970, %v2906, %v2908
      %v2910 = vrot.slane %v541, 2
      %v2911 = vrot.slane %v459, 2
      %v2912 = vsel %vm970, %v2910, %v2911
      %v2913 = vrot.slane %v557, 2
      %v2914 = vsel %vm970, %v2911, %v2913
      %v2915 = vrot.slane %v543, 2
      %v2916 = vrot.slane %v465, 2
      %v2917 = vsel %vm970, %v2915, %v2916
      %v2918 = vrot.slane %v559, 2
      %v2919 = vsel %vm970, %v2916, %v2918
      %v2920 = vrot.slane %v545, 2
      %v2921 = vrot.slane %v471, 2
      %v2922 = vsel %vm970, %v2920, %v2921
      %v2923 = vrot.slane %v561, 2
      %v2924 = vsel %vm970, %v2921, %v2923
      %v2925 = vrot.slane %v547, 2
      %v2926 = vrot.slane %v477, 2
      %v2927 = vsel %vm970, %v2925, %v2926
      %v2928 = vrot.slane %v563, 2
      %v2929 = vsel %vm970, %v2926, %v2928
      %v2930 = vrot.slane %v549, 2
      %v2931 = vrot.slane %v483, 2
      %v2932 = vsel %vm970, %v2930, %v2931
      %v2933 = vrot.slane %v565, 2
      %v2934 = vsel %vm970, %v2931, %v2933
      %v2953 = vrot.slane %v550, 1
      %v2954 = vrot.slane %v486, 1
      %v2955 = vsel %vm733, %v2953, %v2954
      %v2956 = vrot.slane %v566, 1
      %v2957 = vsel %vm733, %v2954, %v2956
      %v2960 = vrot.slane %v550, 2
      %v2961 = vrot.slane %v486, 2
      %v2962 = vsel %vm970, %v2960, %v2961
      %v2963 = vrot.slane %v566, 2
      %v2964 = vsel %vm970, %v2961, %v2963
      %v2967 = vpack.c.bf16 %v2690, %v2693
      %v2968 = vpack.c.bf16 %v2715, %v2713
      %v2969 = vpack.c.bf16 %v2771, %v2769
      %v2970 = vpack.c.bf16 %v441, %v535
      %v2971 = vpack.c.bf16 %v2843, %v2841
      %v2972 = vpack.c.bf16 %v2899, %v2897
      %v2973 = vpack.c.bf16 %v444, %v536
      %v2974 = vpack.c.bf16 %v2720, %v2718
      %v2975 = vpack.c.bf16 %v2776, %v2774
      %v2976 = vpack.c.bf16 %v447, %v537
      %v2977 = vpack.c.bf16 %v2848, %v2846
      %v2978 = vpack.c.bf16 %v2904, %v2902
      %v2979 = vpack.c.bf16 %v450, %v538
      %v2980 = vpack.c.bf16 %v2725, %v2723
      %v2981 = vpack.c.bf16 %v2781, %v2779
      %v2982 = vpack.c.bf16 %v453, %v539
      %v2983 = vpack.c.bf16 %v2853, %v2851
      %v2984 = vpack.c.bf16 %v2909, %v2907
      %v2985 = vpack.c.bf16 %v456, %v540
      %v2986 = vpack.c.bf16 %v2730, %v2728
      %v2987 = vpack.c.bf16 %v2786, %v2784
      %v2988 = vpack.c.bf16 %v459, %v541
      %v2989 = vpack.c.bf16 %v2858, %v2856
      %v2990 = vpack.c.bf16 %v2914, %v2912
      %v2991 = vpack.c.bf16 %v462, %v542
      %v2992 = vpack.c.bf16 %v2735, %v2733
      %v2993 = vpack.c.bf16 %v2791, %v2789
      %v2994 = vpack.c.bf16 %v465, %v543
      %v2995 = vpack.c.bf16 %v2863, %v2861
      %v2996 = vpack.c.bf16 %v2919, %v2917
      %v2997 = vpack.c.bf16 %v468, %v544
      %v2998 = vpack.c.bf16 %v2740, %v2738
      %v2999 = vpack.c.bf16 %v2796, %v2794
      %v3000 = vpack.c.bf16 %v471, %v545
      %v3001 = vpack.c.bf16 %v2868, %v2866
      %v3002 = vpack.c.bf16 %v2924, %v2922
      %v3003 = vpack.c.bf16 %v474, %v546
      %v3004 = vpack.c.bf16 %v2745, %v2743
      %v3005 = vpack.c.bf16 %v2801, %v2799
      %v3006 = vpack.c.bf16 %v477, %v547
      %v3007 = vpack.c.bf16 %v2873, %v2871
      %v3008 = vpack.c.bf16 %v2929, %v2927
      %v3009 = vpack.c.bf16 %v480, %v548
      %v3010 = vpack.c.bf16 %v2750, %v2748
      %v3011 = vpack.c.bf16 %v2806, %v2804
      %v3012 = vpack.c.bf16 %v483, %v549
      %v3013 = vpack.c.bf16 %v2878, %v2876
      %v3014 = vpack.c.bf16 %v2934, %v2932
      %v3015 = vpack.c.bf16 %v486, %v550
      %v3016 = vpack.c.bf16 %v2957, %v2955
      %v3017 = vpack.c.bf16 %v2964, %v2962
      %v3018 = vld [vmem:[%s5] sm:$0xf]
      %v3019 = vld [vmem:[%s5 + $0x4] sm:$0xf]
      %v3020 = vld [vmem:[%s5 + $0x8] sm:$0xf]
      %v3021 = vld [vmem:[%s5 + $0xc] sm:$0xf]
      %v3022 = vld [vmem:[%s5 + $0x10] sm:$0xf]
      %v3023 = vld [vmem:[%s5 + $0x14] sm:$0xf]
      %v3024 = vld [vmem:[%s5 + $0x18] sm:$0xf]
      %v3025 = vld [vmem:[%s5 + $0x1c] sm:$0xf]
      %v3026 = vld [vmem:[%s5 + $0x20] sm:$0xf]
      %v3027 = vld [vmem:[%s5 + $0x24] sm:$0xf]
      %v3028 = vld [vmem:[%s5 + $0x28] sm:$0xf]
      %v3029 = vld [vmem:[%s5 + $0x2c] sm:$0xf]
      %v3030 = vld [vmem:[%s5 + $0x30] sm:$0xf]
      %v3031 = vld [vmem:[%s5 + $0x34] sm:$0xf]
      %v3032 = vld [vmem:[%s5 + $0x38] sm:$0xf]
      %v3033 = vld [vmem:[%s5 + $0x3c] sm:$0xf]
      %v3034 = vld [vmem:[%s5 + $0x40] sm:$0xf]
      %v3035 = vld [vmem:[%s5 + $0x44] sm:$0xf]
      %v3036 = vld [vmem:[%s5 + $0x48] sm:$0xf]
      %v3037 = vld [vmem:[%s5 + $0x4c] sm:$0xf]
      %v3038 = vld [vmem:[%s5 + $0x50] sm:$0xf]
      %v3039 = vld [vmem:[%s5 + $0x54] sm:$0xf]
      %v3040 = vld [vmem:[%s5 + $0x58] sm:$0xf]
      %v3041 = vld [vmem:[%s5 + $0x5c] sm:$0xf]
      %v3042 = vld [vmem:[%s5 + $0x60] sm:$0xf]
      %v3043 = vld [vmem:[%s5 + $0x64] sm:$0xf]
      %v3044 = vld [vmem:[%s5 + $0x68] sm:$0xf]
      %v3045 = vld [vmem:[%s5 + $0x6c] sm:$0xf]
      %v3046 = vld [vmem:[%s5 + $0x70] sm:$0xf]
      %v3047 = vld [vmem:[%s5 + $0x74] sm:$0xf]
      %v3048 = vld [vmem:[%s5 + $0x78] sm:$0xf]
      %v3049 = vld [vmem:[%s5 + $0x7c] sm:$0xf]
      %v3050 = vld [vmem:[%s5 + $0x80] sm:$0xf]
      %v3051 = vld [vmem:[%s5 + $0x84] sm:$0xf]
      %v3052 = vld [vmem:[%s5 + $0x88] sm:$0xf]
      %v3053 = vld [vmem:[%s5 + $0x8c] sm:$0xf]
      %v3054 = vld [vmem:[%s5 + $0x90] sm:$0xf]
      %v3055 = vld [vmem:[%s5 + $0x94] sm:$0xf]
      %v3056 = vld [vmem:[%s5 + $0x98] sm:$0xf]
      %v3057 = vld [vmem:[%s5 + $0x9c] sm:$0xf]
      %v3058 = vld [vmem:[%s5 + $0xa0] sm:$0xf]
      %v3059 = vld [vmem:[%s5 + $0xa4] sm:$0xf]
      %v3060 = vld [vmem:[%s5 + $0xa8] sm:$0xf]
      %v3061 = vld [vmem:[%s5 + $0xac] sm:$0xf]
      %v3062 = vld [vmem:[%s5 + $0xb0] sm:$0xf]
      %v3063 = vld [vmem:[%s5 + $0xb4] sm:$0xf]
      %v3064 = vld [vmem:[%s5 + $0xb8] sm:$0xf]
      %v3065 = vld [vmem:[%s5 + $0xbc] sm:$0xf]
      %v3066 = vld [vmem:[%s5 + $0xc0] sm:$0xf]
      %v3067 = vld [vmem:[%s5 + $0xc4] sm:$0xf]
      %v3068 = vld [vmem:[%s5 + $0xc8] sm:$0xf]
      %v3069 = vld [vmem:[%s5 + $0xcc] sm:$0xf]
      %v3070 = vld [vmem:[%s5 + $0xd0] sm:$0xf]
      %v3071 = vld [vmem:[%s5 + $0xd4] sm:$0xf]
      %v3072 = vld [vmem:[%s5 + $0xd8] sm:$0xf]
      %v3073 = vld [vmem:[%s5 + $0xdc] sm:$0xf]
      %v3074 = vld [vmem:[%s5 + $0xe0] sm:$0xf]
      %v3075 = vld [vmem:[%s5 + $0xe4] sm:$0xf]
      %v3076 = vld [vmem:[%s5 + $0xe8] sm:$0xf]
      %v3077 = vld [vmem:[%s5 + $0xec] sm:$0xf]
      %v3078 = vld [vmem:[%s5 + $0xf0] sm:$0xf]
      %v3079 = vld [vmem:[%s5 + $0xf4] sm:$0xf]
      %v3080 = vld [vmem:[%s5 + $0xf8] sm:$0xf]
      %v3081 = vld [vmem:[%s5 + $0xfc] sm:$0xf]
      %v3082 = vld [vmem:[%s5 + $0x100] sm:$0xf]
      %v3083 = vld [vmem:[%s5 + $0x104] sm:$0xf]
      %v3084 = vld [vmem:[%s5 + $0x108] sm:$0xf]
      %v3085 = vld [vmem:[%s5 + $0x10c] sm:$0xf]
      %v3086 = vld [vmem:[%s5 + $0x110] sm:$0xf]
      %v3087 = vld [vmem:[%s5 + $0x114] sm:$0xf]
      %v3088 = vld [vmem:[%s5 + $0x118] sm:$0xf]
      %v3089 = vld [vmem:[%s5 + $0x11c] sm:$0xf]
      %v3090 = vld [vmem:[%s5 + $0x120] sm:$0xf]
      %v3091 = vld [vmem:[%s5 + $0x124] sm:$0xf]
      %v3092 = vld [vmem:[%s5 + $0x128] sm:$0xf]
      %v3093 = vld [vmem:[%s5 + $0x12c] sm:$0xf]
      %v3094 = vld [vmem:[%s5 + $0x130] sm:$0xf]
      %v3095 = vld [vmem:[%s5 + $0x134] sm:$0xf]
      %v3096 = vld [vmem:[%s5 + $0x138] sm:$0xf]
      %v3097 = vld [vmem:[%s5 + $0x13c] sm:$0xf]
      %v3098 = vld [vmem:[%s5 + $0x140] sm:$0xf]
      %v3099 = vld [vmem:[%s5 + $0x144] sm:$0xf]
      %v3100 = vld [vmem:[%s5 + $0x148] sm:$0xf]
      %v3101 = vld [vmem:[%s5 + $0x14c] sm:$0xf]
      %v3102 = vld [vmem:[%s5 + $0x150] sm:$0xf]
      %v3103 = vld [vmem:[%s5 + $0x154] sm:$0xf]
      %v3104 = vld [vmem:[%s5 + $0x158] sm:$0xf]
      %v3105 = vld [vmem:[%s5 + $0x15c] sm:$0xf]
      %v3106 = vld [vmem:[%s5 + $0x160] sm:$0xf]
      %v3107 = vld [vmem:[%s5 + $0x164] sm:$0xf]
      %v3108 = vld [vmem:[%s5 + $0x168] sm:$0xf]
      %v3109 = vld [vmem:[%s5 + $0x16c] sm:$0xf]
      %v3110 = vld [vmem:[%s5 + $0x170] sm:$0xf]
      %v3111 = vld [vmem:[%s5 + $0x174] sm:$0xf]
      %v3112 = vld [vmem:[%s5 + $0x178] sm:$0xf]
      %v3113 = vld [vmem:[%s5 + $0x17c] sm:$0xf]
      %v3114 = vld [vmem:[%s5 + $0x180] sm:$0xf]
      %v3115 = vld [vmem:[%s5 + $0x184] sm:$0xf]
      %v3116 = vld [vmem:[%s5 + $0x188] sm:$0xf]
      %v3117 = vld [vmem:[%s5 + $0x18c] sm:$0xf]
      %v3118 = vld [vmem:[%s5 + $0x190] sm:$0xf]
      %v3119 = vld [vmem:[%s5 + $0x194] sm:$0xf]
      %v3120 = vld [vmem:[%s5 + $0x198] sm:$0xf]
      %v3121 = vld [vmem:[%s5 + $0x19c] sm:$0xf]
      %v3122 = vld [vmem:[%s5 + $0x1a0] sm:$0xf]
      %v3123 = vld [vmem:[%s5 + $0x1a4] sm:$0xf]
      %v3124 = vld [vmem:[%s5 + $0x1a8] sm:$0xf]
      %v3125 = vld [vmem:[%s5 + $0x1ac] sm:$0xf]
      %v3126 = vld [vmem:[%s5 + $0x1b0] sm:$0xf]
      %v3127 = vld [vmem:[%s5 + $0x1b4] sm:$0xf]
      %v3128 = vld [vmem:[%s5 + $0x1b8] sm:$0xf]
      %v3129 = vld [vmem:[%s5 + $0x1bc] sm:$0xf]
      %v3130 = vld [vmem:[%s5 + $0x1c0] sm:$0xf]
      %v3131 = vld [vmem:[%s5 + $0x1c4] sm:$0xf]
      %v3132 = vld [vmem:[%s5 + $0x1c8] sm:$0xf]
      %v3133 = vld [vmem:[%s5 + $0x1cc] sm:$0xf]
      %v3134 = vld [vmem:[%s5 + $0x1d0] sm:$0xf]
      %v3135 = vld [vmem:[%s5 + $0x1d4] sm:$0xf]
      %v3136 = vld [vmem:[%s5 + $0x1d8] sm:$0xf]
      %v3137 = vld [vmem:[%s5 + $0x1dc] sm:$0xf]
      %v3138 = vld [vmem:[%s5 + $0x1e0] sm:$0xf]
      %v3139 = vld [vmem:[%s5 + $0x1e4] sm:$0xf]
      %v3140 = vld [vmem:[%s5 + $0x1e8] sm:$0xf]
      %v3141 = vld [vmem:[%s5 + $0x1ec] sm:$0xf]
      %v3142 = vld [vmem:[%s5 + $0x1f0] sm:$0xf]
      %v3143 = vld [vmem:[%s5 + $0x1f4] sm:$0xf]
      %v3144 = vld [vmem:[%s5 + $0x1f8] sm:$0xf]
      %v3145 = vld [vmem:[%s5 + $0x1fc] sm:$0xf]
      %v3146 = vld [vmem:[%s5 + $0x200] sm:$0xf]
      %v3147 = vld [vmem:[%s5 + $0x204] sm:$0xf]
      %v3148 = vld [vmem:[%s5 + $0x208] sm:$0xf]
      %v3149 = vld [vmem:[%s5 + $0x20c] sm:$0xf]
      %v3150 = vld [vmem:[%s5 + $0x210] sm:$0xf]
      %v3151 = vld [vmem:[%s5 + $0x214] sm:$0xf]
      %v3152 = vld [vmem:[%s5 + $0x218] sm:$0xf]
      %v3153 = vld [vmem:[%s5 + $0x21c] sm:$0xf]
      %v3154 = vld [vmem:[%s5 + $0x220] sm:$0xf]
      %v3155 = vld [vmem:[%s5 + $0x224] sm:$0xf]
      %v3156 = vld [vmem:[%s5 + $0x228] sm:$0xf]
      %v3157 = vld [vmem:[%s5 + $0x22c] sm:$0xf]
      %v3158 = vld [vmem:[%s5 + $0x230] sm:$0xf]
      %v3159 = vld [vmem:[%s5 + $0x234] sm:$0xf]
      %v3160 = vld [vmem:[%s5 + $0x238] sm:$0xf]
      %v3161 = vld [vmem:[%s5 + $0x23c] sm:$0xf]
      %v3306 = vunpack.c.l.b16 %v3018
      %v3307 = vunpack.c.l.b16 %v3019
      %v3308 = vunpack.c.l.b16 %v3020
      %v3309 = vunpack.c.l.b16 %v3021
      %v3310 = vunpack.c.l.b16 %v3022
      %v3311 = vunpack.c.l.b16 %v3023
      %v3312 = vunpack.c.l.b16 %v3024
      %v3313 = vunpack.c.l.b16 %v3025
      %v3314 = vunpack.c.l.b16 %v3026
      %v3315 = vunpack.c.l.b16 %v3027
      %v3316 = vunpack.c.l.b16 %v3028
      %v3317 = vunpack.c.l.b16 %v3029
      %v3318 = vunpack.c.l.b16 %v3030
      %v3319 = vunpack.c.l.b16 %v3031
      %v3320 = vunpack.c.l.b16 %v3032
      %v3321 = vunpack.c.l.b16 %v3033
      %v3322 = vunpack.c.l.b16 %v3034
      %v3323 = vunpack.c.l.b16 %v3035
      %v3324 = vunpack.c.l.b16 %v3036
      %v3325 = vunpack.c.l.b16 %v3037
      %v3326 = vunpack.c.l.b16 %v3038
      %v3327 = vunpack.c.l.b16 %v3039
      %v3328 = vunpack.c.l.b16 %v3040
      %v3329 = vunpack.c.l.b16 %v3041
      %v3330 = vunpack.c.l.b16 %v3042
      %v3331 = vunpack.c.l.b16 %v3043
      %v3332 = vunpack.c.l.b16 %v3044
      %v3333 = vunpack.c.l.b16 %v3045
      %v3334 = vunpack.c.l.b16 %v3046
      %v3335 = vunpack.c.l.b16 %v3047
      %v3336 = vunpack.c.l.b16 %v3048
      %v3337 = vunpack.c.l.b16 %v3049
      %v3338 = vunpack.c.l.b16 %v3050
      %v3339 = vunpack.c.l.b16 %v3051
      %v3340 = vunpack.c.l.b16 %v3052
      %v3341 = vunpack.c.l.b16 %v3053
      %v3342 = vunpack.c.l.b16 %v3054
      %v3343 = vunpack.c.l.b16 %v3055
      %v3344 = vunpack.c.l.b16 %v3056
      %v3345 = vunpack.c.l.b16 %v3057
      %v3346 = vunpack.c.l.b16 %v3058
      %v3347 = vunpack.c.l.b16 %v3059
      %v3348 = vunpack.c.l.b16 %v3060
      %v3349 = vunpack.c.l.b16 %v3061
      %v3350 = vunpack.c.l.b16 %v3062
      %v3351 = vunpack.c.l.b16 %v3063
      %v3352 = vunpack.c.l.b16 %v3064
      %v3353 = vunpack.c.l.b16 %v3065
      %v3354 = vunpack.c.l.b16 %v3066
      %v3355 = vunpack.c.l.b16 %v3067
      %v3356 = vunpack.c.l.b16 %v3068
      %v3357 = vunpack.c.l.b16 %v3069
      %v3358 = vunpack.c.l.b16 %v3070
      %v3359 = vunpack.c.l.b16 %v3071
      %v3360 = vunpack.c.l.b16 %v3072
      %v3361 = vunpack.c.l.b16 %v3073
      %v3362 = vunpack.c.l.b16 %v3074
      %v3363 = vunpack.c.l.b16 %v3075
      %v3364 = vunpack.c.l.b16 %v3076
      %v3365 = vunpack.c.l.b16 %v3077
      %v3366 = vunpack.c.l.b16 %v3078
      %v3367 = vunpack.c.l.b16 %v3079
      %v3368 = vunpack.c.l.b16 %v3080
      %v3369 = vunpack.c.l.b16 %v3081
      %v3370 = vunpack.c.l.b16 %v3082
      %v3371 = vunpack.c.l.b16 %v3083
      %v3372 = vunpack.c.l.b16 %v3084
      %v3373 = vunpack.c.l.b16 %v3085
      %v3374 = vunpack.c.l.b16 %v3086
      %v3375 = vunpack.c.l.b16 %v3087
      %v3376 = vunpack.c.l.b16 %v3088
      %v3377 = vunpack.c.l.b16 %v3089
      %v3378 = vunpack.c.l.b16 %v3090
      %v3379 = vunpack.c.l.b16 %v3091
      %v3380 = vunpack.c.l.b16 %v3092
      %v3381 = vunpack.c.l.b16 %v3093
      %v3382 = vunpack.c.l.b16 %v3094
      %v3383 = vunpack.c.l.b16 %v3095
      %v3384 = vunpack.c.l.b16 %v3096
      %v3385 = vunpack.c.l.b16 %v3097
      %v3386 = vunpack.c.l.b16 %v3098
      %v3387 = vunpack.c.l.b16 %v3099
      %v3388 = vunpack.c.l.b16 %v3100
      %v3389 = vunpack.c.l.b16 %v3101
      %v3390 = vunpack.c.l.b16 %v3102
      %v3391 = vunpack.c.l.b16 %v3103
      %v3392 = vunpack.c.l.b16 %v3104
      %v3393 = vunpack.c.l.b16 %v3105
      %v3394 = vunpack.c.l.b16 %v3106
      %v3395 = vunpack.c.l.b16 %v3107
      %v3396 = vunpack.c.l.b16 %v3108
      %v3397 = vunpack.c.l.b16 %v3109
      %v3398 = vunpack.c.l.b16 %v3110
      %v3399 = vunpack.c.l.b16 %v3111
      %v3400 = vunpack.c.l.b16 %v3112
      %v3401 = vunpack.c.l.b16 %v3113
      %v3402 = vunpack.c.l.b16 %v3114
      %v3403 = vunpack.c.l.b16 %v3115
      %v3404 = vunpack.c.l.b16 %v3116
      %v3405 = vunpack.c.l.b16 %v3117
      %v3406 = vunpack.c.l.b16 %v3118
      %v3407 = vunpack.c.l.b16 %v3119
      %v3408 = vunpack.c.l.b16 %v3120
      %v3409 = vunpack.c.l.b16 %v3121
      %v3410 = vunpack.c.l.b16 %v3122
      %v3411 = vunpack.c.l.b16 %v3123
      %v3412 = vunpack.c.l.b16 %v3124
      %v3413 = vunpack.c.l.b16 %v3125
      %v3414 = vunpack.c.l.b16 %v3126
      %v3415 = vunpack.c.l.b16 %v3127
      %v3416 = vunpack.c.l.b16 %v3128
      %v3417 = vunpack.c.l.b16 %v3129
      %v3418 = vunpack.c.l.b16 %v3130
      %v3419 = vunpack.c.l.b16 %v3131
      %v3420 = vunpack.c.l.b16 %v3132
      %v3421 = vunpack.c.l.b16 %v3133
      %v3422 = vunpack.c.l.b16 %v3134
      %v3423 = vunpack.c.l.b16 %v3135
      %v3424 = vunpack.c.l.b16 %v3136
      %v3425 = vunpack.c.l.b16 %v3137
      %v3426 = vunpack.c.l.b16 %v3138
      %v3427 = vunpack.c.l.b16 %v3139
      %v3428 = vunpack.c.l.b16 %v3140
      %v3429 = vunpack.c.l.b16 %v3141
      %v3430 = vunpack.c.l.b16 %v3142
      %v3431 = vunpack.c.l.b16 %v3143
      %v3432 = vunpack.c.l.b16 %v3144
      %v3433 = vunpack.c.l.b16 %v3145
      %v3434 = vunpack.c.l.b16 %v3146
      %v3435 = vunpack.c.l.b16 %v3147
      %v3436 = vunpack.c.l.b16 %v3148
      %v3437 = vunpack.c.l.b16 %v3149
      %v3438 = vunpack.c.l.b16 %v3150
      %v3439 = vunpack.c.l.b16 %v3151
      %v3440 = vunpack.c.l.b16 %v3152
      %v3441 = vunpack.c.l.b16 %v3153
      %v3442 = vunpack.c.l.b16 %v3154
      %v3443 = vunpack.c.l.b16 %v3155
      %v3444 = vunpack.c.l.b16 %v3156
      %v3445 = vunpack.c.l.b16 %v3157
      %v3446 = vunpack.c.l.b16 %v3158
      %v3447 = vunpack.c.l.b16 %v3159
      %v3448 = vunpack.c.l.b16 %v3160
      %v3449 = vunpack.c.l.b16 %v3161
      %v3450 = vpack.c.b16 %v3307, %v3306
      %v3451 = vpack.c.b16 %v3309, %v3308
      %v3452 = vpack.c.b16 %v3311, %v3310
      %v3453 = vpack.c.b16 %v3313, %v3312
      %v3454 = vpack.c.b16 %v3315, %v3314
      %v3455 = vpack.c.b16 %v3317, %v3316
      %v3456 = vpack.c.b16 %v3319, %v3318
      %v3457 = vpack.c.b16 %v3321, %v3320
      %v3458 = vpack.c.b16 %v3323, %v3322
      %v3459 = vpack.c.b16 %v3325, %v3324
      %v3460 = vpack.c.b16 %v3327, %v3326
      %v3461 = vpack.c.b16 %v3329, %v3328
      %v3462 = vpack.c.b16 %v3331, %v3330
      %v3463 = vpack.c.b16 %v3333, %v3332
      %v3464 = vpack.c.b16 %v3335, %v3334
      %v3465 = vpack.c.b16 %v3337, %v3336
      %v3466 = vpack.c.b16 %v3339, %v3338
      %v3467 = vpack.c.b16 %v3341, %v3340
      %v3468 = vpack.c.b16 %v3343, %v3342
      %v3469 = vpack.c.b16 %v3345, %v3344
      %v3470 = vpack.c.b16 %v3347, %v3346
      %v3471 = vpack.c.b16 %v3349, %v3348
      %v3472 = vpack.c.b16 %v3351, %v3350
      %v3473 = vpack.c.b16 %v3353, %v3352
      %v3474 = vpack.c.b16 %v3355, %v3354
      %v3475 = vpack.c.b16 %v3357, %v3356
      %v3476 = vpack.c.b16 %v3359, %v3358
      %v3477 = vpack.c.b16 %v3361, %v3360
      %v3478 = vpack.c.b16 %v3363, %v3362
      %v3479 = vpack.c.b16 %v3365, %v3364
      %v3480 = vpack.c.b16 %v3367, %v3366
      %v3481 = vpack.c.b16 %v3369, %v3368
      %v3482 = vpack.c.b16 %v3371, %v3370
      %v3483 = vpack.c.b16 %v3373, %v3372
      %v3484 = vpack.c.b16 %v3375, %v3374
      %v3485 = vpack.c.b16 %v3377, %v3376
      %v3486 = vpack.c.b16 %v3379, %v3378
      %v3487 = vpack.c.b16 %v3381, %v3380
      %v3488 = vpack.c.b16 %v3383, %v3382
      %v3489 = vpack.c.b16 %v3385, %v3384
      %v3490 = vpack.c.b16 %v3387, %v3386
      %v3491 = vpack.c.b16 %v3389, %v3388
      %v3492 = vpack.c.b16 %v3391, %v3390
      %v3493 = vpack.c.b16 %v3393, %v3392
      %v3494 = vpack.c.b16 %v3395, %v3394
      %v3495 = vpack.c.b16 %v3397, %v3396
      %v3496 = vpack.c.b16 %v3399, %v3398
      %v3497 = vpack.c.b16 %v3401, %v3400
      %v3498 = vpack.c.b16 %v3403, %v3402
      %v3499 = vpack.c.b16 %v3405, %v3404
      %v3500 = vpack.c.b16 %v3407, %v3406
      %v3501 = vpack.c.b16 %v3409, %v3408
      %v3502 = vpack.c.b16 %v3411, %v3410
      %v3503 = vpack.c.b16 %v3413, %v3412
      %v3504 = vpack.c.b16 %v3415, %v3414
      %v3505 = vpack.c.b16 %v3417, %v3416
      %v3506 = vpack.c.b16 %v3419, %v3418
      %v3507 = vpack.c.b16 %v3421, %v3420
      %v3508 = vpack.c.b16 %v3423, %v3422
      %v3509 = vpack.c.b16 %v3425, %v3424
      %v3510 = vpack.c.b16 %v3427, %v3426
      %v3511 = vpack.c.b16 %v3429, %v3428
      %v3512 = vpack.c.b16 %v3431, %v3430
      %v3513 = vpack.c.b16 %v3433, %v3432
      %v3514 = vpack.c.b16 %v3435, %v3434
      %v3515 = vpack.c.b16 %v3437, %v3436
      %v3516 = vpack.c.b16 %v3439, %v3438
      %v3517 = vpack.c.b16 %v3441, %v3440
      %v3518 = vpack.c.b16 %v3443, %v3442
      %v3519 = vpack.c.b16 %v3445, %v3444
      %v3520 = vpack.c.b16 %v3447, %v3446
      %v3521 = vpack.c.b16 %v3449, %v3448
      %3594 = vmatprep.subr.bf16.mxu0 0
      %3595 = vmatpush1.bf16.msra.mxu0 %v3450
      %3596 = vmatprep.subr.bf16.mxu0 0
      %3597 = vmatpush1.bf16.msra.mxu0 %v3451
      %3598 = vmatprep.subr.bf16.mxu0 0
      %3599 = vmatpush1.bf16.msra.mxu0 %v3452
      %3600 = vmatprep.subr.bf16.mxu0 0
      %3601 = vmatpush1.bf16.msra.mxu0 %v3453
      %3602 = vmatprep.subr.bf16.mxu0 0
      %3603 = vmatpush1.bf16.msra.mxu0 %v3454
      %3604 = vmatprep.subr.bf16.mxu0 0
      %3605 = vmatpush1.bf16.msra.mxu0 %v3455
      %3606 = vmatprep.subr.bf16.mxu0 0
      %3607 = vmatpush1.bf16.msra.mxu0 %v3456
      %3608 = vmatprep.subr.bf16.mxu0 0
      %3609 = vmatpush1.bf16.msra.mxu0 %v3457
      %3610 = vmatprep.subr.bf16.mxu0 0
      %3611 = vmatpush1.bf16.msra.mxu0 %v3458
      %3612 = vmatprep.subr.bf16.mxu0 0
      %3613 = vmatpush1.bf16.msra.mxu0 %v3459
      %3614 = vmatprep.subr.bf16.mxu0 0
      %3615 = vmatpush1.bf16.msra.mxu0 %v3460
      %3616 = vmatprep.subr.bf16.mxu0 0
      %3617 = vmatpush1.bf16.msra.mxu0 %v3461
      %3618 = vmatprep.subr.bf16.mxu0 0
      %3619 = vmatpush1.bf16.msra.mxu0 %v3462
      %3620 = vmatprep.subr.bf16.mxu0 0
      %3621 = vmatpush1.bf16.msra.mxu0 %v3463
      %3622 = vmatprep.subr.bf16.mxu0 0
      %3623 = vmatpush1.bf16.msra.mxu0 %v3464
      %3624 = vmatprep.subr.bf16.mxu0 0
      %3625 = vmatpush1.bf16.msra.mxu0 %v3465
      %3626 = vmatprep.mubr.bf16.mxu0 %v2968
      %3627 = vmatmul.mubr.bf16.gmra.mrb[0].mxu0 %v2967
      %v3628 = vpop.f32.mrb[0].mxu0
      %v3629 = vadd.f32 0.0, %v3628
      %v3630 = vpop.f32.mrb[0].mxu0
      %v3631 = vpop.f32.mrb[0].mxu0
      %v3632 = vadd.f32 0.0, %v3631
      %v3633 = vpop.f32.mrb[0].mxu0
      %3634 = vmatprep.mubr.bf16.mxu0 %v2974
      %3635 = vmatmul.mubr.bf16.gmra.mrb[0].mxu0 %v2973
      %v3636 = vpop.f32.mrb[0].mxu0
      %v3637 = vadd.f32 0.0, %v3636
      %v3638 = vpop.f32.mrb[0].mxu0
      %v3639 = vpop.f32.mrb[0].mxu0
      %v3640 = vadd.f32 0.0, %v3639
      %v3641 = vpop.f32.mrb[0].mxu0
      %3642 = vmatprep.mubr.bf16.mxu0 %v2980
      %3643 = vmatmul.mubr.bf16.gmra.mrb[0].mxu0 %v2979
      %v3644 = vpop.f32.mrb[0].mxu0
      %v3645 = vadd.f32 0.0, %v3644
      %v3646 = vpop.f32.mrb[0].mxu0
      %v3647 = vpop.f32.mrb[0].mxu0
      %v3648 = vadd.f32 0.0, %v3647
      %v3649 = vpop.f32.mrb[0].mxu0
      %3650 = vmatprep.mubr.bf16.mxu0 %v2986
      %3651 = vmatmul.mubr.bf16.gmra.mrb[0].mxu0 %v2985
      %v3652 = vpop.f32.mrb[0].mxu0
      %v3653 = vadd.f32 0.0, %v3652
      %v3654 = vpop.f32.mrb[0].mxu0
      %v3655 = vpop.f32.mrb[0].mxu0
      %v3656 = vadd.f32 0.0, %v3655
      %v3657 = vpop.f32.mrb[0].mxu0
      %3658 = vmatprep.mubr.bf16.mxu0 %v2992
      %3659 = vmatmul.mubr.bf16.gmra.mrb[0].mxu0 %v2991
      %v3660 = vpop.f32.mrb[0].mxu0
      %v3661 = vadd.f32 0.0, %v3660
      %v3662 = vpop.f32.mrb[0].mxu0
      %v3663 = vpop.f32.mrb[0].mxu0
      %v3664 = vadd.f32 0.0, %v3663
      %v3665 = vpop.f32.mrb[0].mxu0
      %3666 = vmatprep.mubr.bf16.mxu0 %v2998
      %3667 = vmatmul.mubr.bf16.gmra.mrb[0].mxu0 %v2997
      %v3668 = vpop.f32.mrb[0].mxu0
      %v3669 = vadd.f32 0.0, %v3668
      %v3670 = vpop.f32.mrb[0].mxu0
      %v3671 = vpop.f32.mrb[0].mxu0
      %v3672 = vadd.f32 0.0, %v3671
      %v3673 = vpop.f32.mrb[0].mxu0
      %3674 = vmatprep.mubr.bf16.mxu0 %v3004
      %3675 = vmatmul.mubr.bf16.gmra.mrb[0].mxu0 %v3003
      %v3676 = vpop.f32.mrb[0].mxu0
      %v3677 = vadd.f32 0.0, %v3676
      %v3678 = vpop.f32.mrb[0].mxu0
      %v3679 = vpop.f32.mrb[0].mxu0
      %v3680 = vadd.f32 0.0, %v3679
      %v3681 = vpop.f32.mrb[0].mxu0
      %3682 = vmatprep.mubr.bf16.mxu0 %v3010
      %3683 = vmatmul.mubr.bf16.gmra.mrb[0].mxu0 %v3009
      %v3684 = vpop.f32.mrb[0].mxu0
      %v3685 = vadd.f32 0.0, %v3684
      %v3686 = vpop.f32.mrb[0].mxu0
      %v3687 = vpop.f32.mrb[0].mxu0
      %v3688 = vadd.f32 0.0, %v3687
      %v3689 = vpop.f32.mrb[0].mxu0
      %3690 = vdwg.mxu0
      %3691 = vmatprep.subr.bf16.mxu0 0
      %3692 = vmatpush1.bf16.msra.mxu0 %v3466
      %3693 = vmatprep.subr.bf16.mxu0 0
      %3694 = vmatpush1.bf16.msra.mxu0 %v3467
      %3695 = vmatprep.subr.bf16.mxu0 0
      %3696 = vmatpush1.bf16.msra.mxu0 %v3468
      %3697 = vmatprep.subr.bf16.mxu0 0
      %3698 = vmatpush1.bf16.msra.mxu0 %v3469
      %3699 = vmatprep.subr.bf16.mxu0 0
      %3700 = vmatpush1.bf16.msra.mxu0 %v3470
      %3701 = vmatprep.subr.bf16.mxu0 0
      %3702 = vmatpush1.bf16.msra.mxu0 %v3471
      %3703 = vmatprep.subr.bf16.mxu0 0
      %3704 = vmatpush1.bf16.msra.mxu0 %v3472
      %3705 = vmatprep.subr.bf16.mxu0 0
      %3706 = vmatpush1.bf16.msra.mxu0 %v3473
      %3707 = vmatprep.subr.bf16.mxu0 0
      %3708 = vmatpush1.bf16.msra.mxu0 %v3474
      %3709 = vmatprep.subr.bf16.mxu0 0
      %3710 = vmatpush1.bf16.msra.mxu0 %v3475
      %3711 = vmatprep.subr.bf16.mxu0 0
      %3712 = vmatpush1.bf16.msra.mxu0 %v3476
      %3713 = vmatprep.subr.bf16.mxu0 0
      %3714 = vmatpush1.bf16.msra.mxu0 %v3477
      %3715 = vmatprep.subr.bf16.mxu0 0
      %3716 = vmatpush1.bf16.msra.mxu0 %v3478
      %3717 = vmatprep.subr.bf16.mxu0 0
      %3718 = vmatpush1.bf16.msra.mxu0 %v3479
      %3719 = vmatprep.subr.bf16.mxu0 0
      %3720 = vmatpush1.bf16.msra.mxu0 %v3480
      %3721 = vmatprep.subr.bf16.mxu0 0
      %3722 = vmatpush1.bf16.msra.mxu0 %v3481
      %3723 = vmatprep.mubr.bf16.mxu0 %v2970
      %3724 = vmatmul.mubr.bf16.gmra.mrb[0].mxu0 %v2969
      %v3725 = vpop.f32.mrb[0].mxu0
      %v3726 = vadd.f32 %v3629, %v3725
      %v3727 = vpop.f32.mrb[0].mxu0
      %v3728 = vpop.f32.mrb[0].mxu0
      %v3729 = vadd.f32 %v3632, %v3728
      %v3730 = vpop.f32.mrb[0].mxu0
      %3731 = vmatprep.mubr.bf16.mxu0 %v2976
      %3732 = vmatmul.mubr.bf16.gmra.mrb[0].mxu0 %v2975
      %v3733 = vpop.f32.mrb[0].mxu0
      %v3734 = vadd.f32 %v3637, %v3733
      %v3735 = vpop.f32.mrb[0].mxu0
      %v3736 = vpop.f32.mrb[0].mxu0
      %v3737 = vadd.f32 %v3640, %v3736
      %v3738 = vpop.f32.mrb[0].mxu0
      %3739 = vmatprep.mubr.bf16.mxu0 %v2982
      %3740 = vmatmul.mubr.bf16.gmra.mrb[0].mxu0 %v2981
      %v3741 = vpop.f32.mrb[0].mxu0
      %v3742 = vadd.f32 %v3645, %v3741
      %v3743 = vpop.f32.mrb[0].mxu0
      %v3744 = vpop.f32.mrb[0].mxu0
      %v3745 = vadd.f32 %v3648, %v3744
      %v3746 = vpop.f32.mrb[0].mxu0
      %3747 = vmatprep.mubr.bf16.mxu0 %v2988
      %3748 = vmatmul.mubr.bf16.gmra.mrb[0].mxu0 %v2987
      %v3749 = vpop.f32.mrb[0].mxu0
      %v3750 = vadd.f32 %v3653, %v3749
      %v3751 = vpop.f32.mrb[0].mxu0
      %v3752 = vpop.f32.mrb[0].mxu0
      %v3753 = vadd.f32 %v3656, %v3752
      %v3754 = vpop.f32.mrb[0].mxu0
      %3755 = vmatprep.mubr.bf16.mxu0 %v2994
      %3756 = vmatmul.mubr.bf16.gmra.mrb[0].mxu0 %v2993
      %v3757 = vpop.f32.mrb[0].mxu0
      %v3758 = vadd.f32 %v3661, %v3757
      %v3759 = vpop.f32.mrb[0].mxu0
      %v3760 = vpop.f32.mrb[0].mxu0
      %v3761 = vadd.f32 %v3664, %v3760
      %v3762 = vpop.f32.mrb[0].mxu0
      %3763 = vmatprep.mubr.bf16.mxu0 %v3000
      %3764 = vmatmul.mubr.bf16.gmra.mrb[0].mxu0 %v2999
      %v3765 = vpop.f32.mrb[0].mxu0
      %v3766 = vadd.f32 %v3669, %v3765
      %v3767 = vpop.f32.mrb[0].mxu0
      %v3768 = vpop.f32.mrb[0].mxu0
      %v3769 = vadd.f32 %v3672, %v3768
      %v3770 = vpop.f32.mrb[0].mxu0
      %3771 = vmatprep.mubr.bf16.mxu0 %v3006
      %3772 = vmatmul.mubr.bf16.gmra.mrb[0].mxu0 %v3005
      %v3773 = vpop.f32.mrb[0].mxu0
      %v3774 = vadd.f32 %v3677, %v3773
      %v3775 = vpop.f32.mrb[0].mxu0
      %v3776 = vpop.f32.mrb[0].mxu0
      %v3777 = vadd.f32 %v3680, %v3776
      %v3778 = vpop.f32.mrb[0].mxu0
      %3779 = vmatprep.mubr.bf16.mxu0 %v3012
      %3780 = vmatmul.mubr.bf16.gmra.mrb[0].mxu0 %v3011
      %v3781 = vpop.f32.mrb[0].mxu0
      %v3782 = vadd.f32 %v3685, %v3781
      %v3783 = vpop.f32.mrb[0].mxu0
      %v3784 = vpop.f32.mrb[0].mxu0
      %v3785 = vadd.f32 %v3688, %v3784
      %v3786 = vpop.f32.mrb[0].mxu0
      %3787 = vdwg.mxu0
      %3788 = vmatprep.subr.bf16.mxu0 0
      %3789 = vmatpush1.bf16.msra.mxu0 %v3482
      %3790 = vmatprep.subr.bf16.mxu0 0
      %3791 = vmatpush1.bf16.msra.mxu0 %v3483
      %3792 = vmatprep.subr.bf16.mxu0 0
      %3793 = vmatpush1.bf16.msra.mxu0 %v3484
      %3794 = vmatprep.subr.bf16.mxu0 0
      %3795 = vmatpush1.bf16.msra.mxu0 %v3485
      %3796 = vmatprep.subr.bf16.mxu0 0
      %3797 = vmatpush1.bf16.msra.mxu0 %v3486
      %3798 = vmatprep.subr.bf16.mxu0 0
      %3799 = vmatpush1.bf16.msra.mxu0 %v3487
      %3800 = vmatprep.subr.bf16.mxu0 0
      %3801 = vmatpush1.bf16.msra.mxu0 %v3488
      %3802 = vmatprep.subr.bf16.mxu0 0
      %3803 = vmatpush1.bf16.msra.mxu0 %v3489
      %3804 = vmatprep.subr.bf16.mxu0 0
      %3805 = vmatpush1.bf16.msra.mxu0 %v3490
      %3806 = vmatprep.subr.bf16.mxu0 0
      %3807 = vmatpush1.bf16.msra.mxu0 %v3491
      %3808 = vmatprep.subr.bf16.mxu0 0
      %3809 = vmatpush1.bf16.msra.mxu0 %v3492
      %3810 = vmatprep.subr.bf16.mxu0 0
      %3811 = vmatpush1.bf16.msra.mxu0 %v3493
      %3812 = vmatprep.subr.bf16.mxu0 0
      %3813 = vmatpush1.bf16.msra.mxu0 %v3494
      %3814 = vmatprep.subr.bf16.mxu0 0
      %3815 = vmatpush1.bf16.msra.mxu0 %v3495
      %3816 = vmatprep.subr.bf16.mxu0 0
      %3817 = vmatpush1.bf16.msra.mxu0 %v3496
      %3818 = vmatprep.subr.bf16.mxu0 0
      %3819 = vmatpush1.bf16.msra.mxu0 %v3497
      %3820 = vmatprep.mubr.bf16.mxu0 %v2972
      %3821 = vmatmul.mubr.bf16.gmra.mrb[0].mxu0 %v2971
      %v3822 = vpop.f32.mrb[0].mxu0
      %v3823 = vadd.f32 %v3726, %v3822
      %v3824 = vpop.f32.mrb[0].mxu0
      %v3825 = vpop.f32.mrb[0].mxu0
      %v3826 = vadd.f32 %v3729, %v3825
      %v3827 = vpop.f32.mrb[0].mxu0
      %3828 = vmatprep.mubr.bf16.mxu0 %v2978
      %3829 = vmatmul.mubr.bf16.gmra.mrb[0].mxu0 %v2977
      %v3830 = vpop.f32.mrb[0].mxu0
      %v3831 = vadd.f32 %v3734, %v3830
      %v3832 = vpop.f32.mrb[0].mxu0
      %v3833 = vpop.f32.mrb[0].mxu0
      %v3834 = vadd.f32 %v3737, %v3833
      %v3835 = vpop.f32.mrb[0].mxu0
      %3836 = vmatprep.mubr.bf16.mxu0 %v2984
      %3837 = vmatmul.mubr.bf16.gmra.mrb[0].mxu0 %v2983
      %v3838 = vpop.f32.mrb[0].mxu0
      %v3839 = vadd.f32 %v3742, %v3838
      %v3840 = vpop.f32.mrb[0].mxu0
      %v3841 = vpop.f32.mrb[0].mxu0
      %v3842 = vadd.f32 %v3745, %v3841
      %v3843 = vpop.f32.mrb[0].mxu0
      %3844 = vmatprep.mubr.bf16.mxu0 %v2990
      %3845 = vmatmul.mubr.bf16.gmra.mrb[0].mxu0 %v2989
      %v3846 = vpop.f32.mrb[0].mxu0
      %v3847 = vadd.f32 %v3750, %v3846
      %v3848 = vpop.f32.mrb[0].mxu0
      %v3849 = vpop.f32.mrb[0].mxu0
      %v3850 = vadd.f32 %v3753, %v3849
      %v3851 = vpop.f32.mrb[0].mxu0
      %3852 = vmatprep.mubr.bf16.mxu0 %v2996
      %3853 = vmatmul.mubr.bf16.gmra.mrb[0].mxu0 %v2995
      %v3854 = vpop.f32.mrb[0].mxu0
      %v3855 = vadd.f32 %v3758, %v3854
      %v3856 = vpop.f32.mrb[0].mxu0
      %v3857 = vpop.f32.mrb[0].mxu0
      %v3858 = vadd.f32 %v3761, %v3857
      %v3859 = vpop.f32.mrb[0].mxu0
      %3860 = vmatprep.mubr.bf16.mxu0 %v3002
      %3861 = vmatmul.mubr.bf16.gmra.mrb[0].mxu0 %v3001
      %v3862 = vpop.f32.mrb[0].mxu0
      %v3863 = vadd.f32 %v3766, %v3862
      %v3864 = vpop.f32.mrb[0].mxu0
      %v3865 = vpop.f32.mrb[0].mxu0
      %v3866 = vadd.f32 %v3769, %v3865
      %v3867 = vpop.f32.mrb[0].mxu0
      %3868 = vmatprep.mubr.bf16.mxu0 %v3008
      %3869 = vmatmul.mubr.bf16.gmra.mrb[0].mxu0 %v3007
      %v3870 = vpop.f32.mrb[0].mxu0
      %v3871 = vadd.f32 %v3774, %v3870
      %v3872 = vpop.f32.mrb[0].mxu0
      %v3873 = vpop.f32.mrb[0].mxu0
      %v3874 = vadd.f32 %v3777, %v3873
      %v3875 = vpop.f32.mrb[0].mxu0
      %3876 = vmatprep.mubr.bf16.mxu0 %v3014
      %3877 = vmatmul.mubr.bf16.gmra.mrb[0].mxu0 %v3013
      %v3878 = vpop.f32.mrb[0].mxu0
      %v3879 = vadd.f32 %v3782, %v3878
      %v3880 = vpop.f32.mrb[0].mxu0
      %v3881 = vpop.f32.mrb[0].mxu0
      %v3882 = vadd.f32 %v3785, %v3881
      %v3883 = vpop.f32.mrb[0].mxu0
      %3884 = vdwg.mxu0
      %3885 = vmatprep.subr.bf16.mxu0 0
      %3886 = vmatpush1.bf16.msra.mxu0 %v3498
      %3887 = vmatprep.subr.bf16.mxu0 0
      %3888 = vmatpush1.bf16.msra.mxu0 %v3499
      %3889 = vmatprep.subr.bf16.mxu0 0
      %3890 = vmatpush1.bf16.msra.mxu0 %v3500
      %3891 = vmatprep.subr.bf16.mxu0 0
      %3892 = vmatpush1.bf16.msra.mxu0 %v3501
      %3893 = vmatprep.subr.bf16.mxu0 0
      %3894 = vmatpush1.bf16.msra.mxu0 %v3502
      %3895 = vmatprep.subr.bf16.mxu0 0
      %3896 = vmatpush1.bf16.msra.mxu0 %v3503
      %3897 = vmatprep.subr.bf16.mxu0 0
      %3898 = vmatpush1.bf16.msra.mxu0 %v3504
      %3899 = vmatprep.subr.bf16.mxu0 0
      %3900 = vmatpush1.bf16.msra.mxu0 %v3505
      %3901 = vmatprep.subr.bf16.mxu0 0
      %3902 = vmatpush1.bf16.msra.mxu0 %v3506
      %3903 = vmatprep.subr.bf16.mxu0 0
      %3904 = vmatpush1.bf16.msra.mxu0 %v3507
      %3905 = vmatprep.subr.bf16.mxu0 0
      %3906 = vmatpush1.bf16.msra.mxu0 %v3508
      %3907 = vmatprep.subr.bf16.mxu0 0
      %3908 = vmatpush1.bf16.msra.mxu0 %v3509
      %3909 = vmatprep.subr.bf16.mxu0 0
      %3910 = vmatpush1.bf16.msra.mxu0 %v3510
      %3911 = vmatprep.subr.bf16.mxu0 0
      %3912 = vmatpush1.bf16.msra.mxu0 %v3511
      %3913 = vmatprep.subr.bf16.mxu0 0
      %3914 = vmatpush1.bf16.msra.mxu0 %v3512
      %3915 = vmatprep.subr.bf16.mxu0 0
      %3916 = vmatpush1.bf16.msra.mxu0 %v3513
      %3917 = vmatprep.mubr.bf16.mxu0 %v2974
      %3918 = vmatmul.mubr.bf16.gmra.mrb[0].mxu0 %v2973
      %v3919 = vpop.f32.mrb[0].mxu0
      %v3920 = vadd.f32 %v3823, %v3919
      %v3921 = vpop.f32.mrb[0].mxu0
      %v3922 = vpop.f32.mrb[0].mxu0
      %v3923 = vadd.f32 %v3826, %v3922
      %v3924 = vpop.f32.mrb[0].mxu0
      %3925 = vmatprep.mubr.bf16.mxu0 %v2980
      %3926 = vmatmul.mubr.bf16.gmra.mrb[0].mxu0 %v2979
      %v3927 = vpop.f32.mrb[0].mxu0
      %v3928 = vadd.f32 %v3831, %v3927
      %v3929 = vpop.f32.mrb[0].mxu0
      %v3930 = vpop.f32.mrb[0].mxu0
      %v3931 = vadd.f32 %v3834, %v3930
      %v3932 = vpop.f32.mrb[0].mxu0
      %3933 = vmatprep.mubr.bf16.mxu0 %v2986
      %3934 = vmatmul.mubr.bf16.gmra.mrb[0].mxu0 %v2985
      %v3935 = vpop.f32.mrb[0].mxu0
      %v3936 = vadd.f32 %v3839, %v3935
      %v3937 = vpop.f32.mrb[0].mxu0
      %v3938 = vpop.f32.mrb[0].mxu0
      %v3939 = vadd.f32 %v3842, %v3938
      %v3940 = vpop.f32.mrb[0].mxu0
      %3941 = vmatprep.mubr.bf16.mxu0 %v2992
      %3942 = vmatmul.mubr.bf16.gmra.mrb[0].mxu0 %v2991
      %v3943 = vpop.f32.mrb[0].mxu0
      %v3944 = vadd.f32 %v3847, %v3943
      %v3945 = vpop.f32.mrb[0].mxu0
      %v3946 = vpop.f32.mrb[0].mxu0
      %v3947 = vadd.f32 %v3850, %v3946
      %v3948 = vpop.f32.mrb[0].mxu0
      %3949 = vmatprep.mubr.bf16.mxu0 %v2998
      %3950 = vmatmul.mubr.bf16.gmra.mrb[0].mxu0 %v2997
      %v3951 = vpop.f32.mrb[0].mxu0
      %v3952 = vadd.f32 %v3855, %v3951
      %v3953 = vpop.f32.mrb[0].mxu0
      %v3954 = vpop.f32.mrb[0].mxu0
      %v3955 = vadd.f32 %v3858, %v3954
      %v3956 = vpop.f32.mrb[0].mxu0
      %3957 = vmatprep.mubr.bf16.mxu0 %v3004
      %3958 = vmatmul.mubr.bf16.gmra.mrb[0].mxu0 %v3003
      %v3959 = vpop.f32.mrb[0].mxu0
      %v3960 = vadd.f32 %v3863, %v3959
      %v3961 = vpop.f32.mrb[0].mxu0
      %v3962 = vpop.f32.mrb[0].mxu0
      %v3963 = vadd.f32 %v3866, %v3962
      %v3964 = vpop.f32.mrb[0].mxu0
      %3965 = vmatprep.mubr.bf16.mxu0 %v3010
      %3966 = vmatmul.mubr.bf16.gmra.mrb[0].mxu0 %v3009
      %v3967 = vpop.f32.mrb[0].mxu0
      %v3968 = vadd.f32 %v3871, %v3967
      %v3969 = vpop.f32.mrb[0].mxu0
      %v3970 = vpop.f32.mrb[0].mxu0
      %v3971 = vadd.f32 %v3874, %v3970
      %v3972 = vpop.f32.mrb[0].mxu0
      %3973 = vmatprep.mubr.bf16.mxu0 %v3016
      %3974 = vmatmul.mubr.bf16.gmra.mrb[0].mxu0 %v3015
      %v3975 = vpop.f32.mrb[0].mxu0
      %v3976 = vadd.f32 %v3879, %v3975
      %v3977 = vpop.f32.mrb[0].mxu0
      %v3978 = vpop.f32.mrb[0].mxu0
      %v3979 = vadd.f32 %v3882, %v3978
      %v3980 = vpop.f32.mrb[0].mxu0
      %3981 = vdwg.mxu0
      %3982 = vmatprep.subr.bf16.mxu0 0
      %3983 = vmatpush1.bf16.msra.mxu0 %v3514
      %3984 = vmatprep.subr.bf16.mxu0 0
      %3985 = vmatpush1.bf16.msra.mxu0 %v3515
      %3986 = vmatprep.subr.bf16.mxu0 0
      %3987 = vmatpush1.bf16.msra.mxu0 %v3516
      %3988 = vmatprep.subr.bf16.mxu0 0
      %3989 = vmatpush1.bf16.msra.mxu0 %v3517
      %3990 = vmatprep.subr.bf16.mxu0 0
      %3991 = vmatpush1.bf16.msra.mxu0 %v3518
      %3992 = vmatprep.subr.bf16.mxu0 0
      %3993 = vmatpush1.bf16.msra.mxu0 %v3519
      %3994 = vmatprep.subr.bf16.mxu0 0
      %3995 = vmatpush1.bf16.msra.mxu0 %v3520
      %3996 = vmatprep.subr.bf16.mxu0 0
      %3997 = vmatpush1.bf16.msra.mxu0 %v3521
      %3998 = vmatprep.subr.bf16.mxu0 0
      %3999 = vmatpush1.bf16.msra.mxu0 0
      %4000 = vmatprep.subr.bf16.mxu0 0
      %4001 = vmatpush1.bf16.msra.mxu0 0
      %4002 = vmatprep.subr.bf16.mxu0 0
      %4003 = vmatpush1.bf16.msra.mxu0 0
      %4004 = vmatprep.subr.bf16.mxu0 0
      %4005 = vmatpush1.bf16.msra.mxu0 0
      %4006 = vmatprep.subr.bf16.mxu0 0
      %4007 = vmatpush1.bf16.msra.mxu0 0
      %4008 = vmatprep.subr.bf16.mxu0 0
      %4009 = vmatpush1.bf16.msra.mxu0 0
      %4010 = vmatprep.subr.bf16.mxu0 0
      %4011 = vmatpush1.bf16.msra.mxu0 0
      %4012 = vmatprep.subr.bf16.mxu0 0
      %4013 = vmatpush1.bf16.msra.mxu0 0
      %4014 = vmatprep.mubr.bf16.mxu0 0
      %4015 = vmatmul.mubr.bf16.gmra.mrb[0].mxu0 %v2975
      %v4016 = vpop.f32.mrb[0].mxu0
      %v4017 = vadd.f32 %v3920, %v4016
      %v4018 = vpop.f32.mrb[0].mxu0
      %v4019 = vpop.f32.mrb[0].mxu0
      %v4020 = vadd.f32 %v3923, %v4019
      %v4021 = vpop.f32.mrb[0].mxu0
      %4022 = vmatprep.mubr.bf16.mxu0 0
      %4023 = vmatmul.mubr.bf16.gmra.mrb[0].mxu0 %v2981
      %v4024 = vpop.f32.mrb[0].mxu0
      %v4025 = vadd.f32 %v3928, %v4024
      %v4026 = vpop.f32.mrb[0].mxu0
      %v4027 = vpop.f32.mrb[0].mxu0
      %v4028 = vadd.f32 %v3931, %v4027
      %v4029 = vpop.f32.mrb[0].mxu0
      %4030 = vmatprep.mubr.bf16.mxu0 0
      %4031 = vmatmul.mubr.bf16.gmra.mrb[0].mxu0 %v2987
      %v4032 = vpop.f32.mrb[0].mxu0
      %v4033 = vadd.f32 %v3936, %v4032
      %v4034 = vpop.f32.mrb[0].mxu0
      %v4035 = vpop.f32.mrb[0].mxu0
      %v4036 = vadd.f32 %v3939, %v4035
      %v4037 = vpop.f32.mrb[0].mxu0
      %4038 = vmatprep.mubr.bf16.mxu0 0
      %4039 = vmatmul.mubr.bf16.gmra.mrb[0].mxu0 %v2993
      %v4040 = vpop.f32.mrb[0].mxu0
      %v4041 = vadd.f32 %v3944, %v4040
      %v4042 = vpop.f32.mrb[0].mxu0
      %v4043 = vpop.f32.mrb[0].mxu0
      %v4044 = vadd.f32 %v3947, %v4043
      %v4045 = vpop.f32.mrb[0].mxu0
      %4046 = vmatprep.mubr.bf16.mxu0 0
      %4047 = vmatmul.mubr.bf16.gmra.mrb[0].mxu0 %v2999
      %v4048 = vpop.f32.mrb[0].mxu0
      %v4049 = vadd.f32 %v3952, %v4048
      %v4050 = vpop.f32.mrb[0].mxu0
      %v4051 = vpop.f32.mrb[0].mxu0
      %v4052 = vadd.f32 %v3955, %v4051
      %v4053 = vpop.f32.mrb[0].mxu0
      %4054 = vmatprep.mubr.bf16.mxu0 0
      %4055 = vmatmul.mubr.bf16.gmra.mrb[0].mxu0 %v3005
      %v4056 = vpop.f32.mrb[0].mxu0
      %v4057 = vadd.f32 %v3960, %v4056
      %v4058 = vpop.f32.mrb[0].mxu0
      %v4059 = vpop.f32.mrb[0].mxu0
      %v4060 = vadd.f32 %v3963, %v4059
      %v4061 = vpop.f32.mrb[0].mxu0
      %4062 = vmatprep.mubr.bf16.mxu0 0
      %4063 = vmatmul.mubr.bf16.gmra.mrb[0].mxu0 %v3011
      %v4064 = vpop.f32.mrb[0].mxu0
      %v4065 = vadd.f32 %v3968, %v4064
      %v4066 = vpop.f32.mrb[0].mxu0
      %v4067 = vpop.f32.mrb[0].mxu0
      %v4068 = vadd.f32 %v3971, %v4067
      %v4069 = vpop.f32.mrb[0].mxu0
      %4070 = vmatprep.mubr.bf16.mxu0 0
      %4071 = vmatmul.mubr.bf16.gmra.mrb[0].mxu0 %v3017
      %v4072 = vpop.f32.mrb[0].mxu0
      %v4073 = vadd.f32 %v3976, %v4072
      %v4074 = vpop.f32.mrb[0].mxu0
      %v4075 = vpop.f32.mrb[0].mxu0
      %v4076 = vadd.f32 %v3979, %v4075
      %v4077 = vpop.f32.mrb[0].mxu0
      %4078 = vdwg.mxu0
      %v4079 = vld [vmem:[%s6] sm:$0x1]
      %v4081 = vlaneseq
      %v4082 = vshrl.u32 %v4081, 7
      %v4083 = vsub.s32 0, %v4082
      %v4084 = vrot.slane %v4079, %v4083
      %v4086 = vmul.f32 %v4017, %v4084
      %v4087 = vmul.f32 %v4020, %v4084
      %v4088 = vmul.f32 %v4025, %v4084
      %v4089 = vmul.f32 %v4028, %v4084
      %v4090 = vmul.f32 %v4033, %v4084
      %v4091 = vmul.f32 %v4036, %v4084
      %v4092 = vmul.f32 %v4041, %v4084
      %v4093 = vmul.f32 %v4044, %v4084
      %v4094 = vmul.f32 %v4049, %v4084
      %v4095 = vmul.f32 %v4052, %v4084
      %v4096 = vmul.f32 %v4057, %v4084
      %v4097 = vmul.f32 %v4060, %v4084
      %v4098 = vmul.f32 %v4065, %v4084
      %v4099 = vmul.f32 %v4068, %v4084
      %v4100 = vmul.f32 %v4073, %v4084
      %v4101 = vmul.f32 %v4076, %v4084
      %v4102 = vld [vmem:[%s7] sm:$0x1]
      %v4104 = vlaneseq
      %v4105 = vshrl.u32 %v4104, 7
      %v4106 = vsub.s32 0, %v4105
      %v4107 = vrot.slane %v4102, %v4106
      %v4109 = vadd.f32 %v4086, %v4107
      %v4110 = vadd.f32 %v4087, %v4107
      %v4111 = vadd.f32 %v4088, %v4107
      %v4112 = vadd.f32 %v4089, %v4107
      %v4113 = vadd.f32 %v4090, %v4107
      %v4114 = vadd.f32 %v4091, %v4107
      %v4115 = vadd.f32 %v4092, %v4107
      %v4116 = vadd.f32 %v4093, %v4107
      %v4117 = vadd.f32 %v4094, %v4107
      %v4118 = vadd.f32 %v4095, %v4107
      %v4119 = vadd.f32 %v4096, %v4107
      %v4120 = vadd.f32 %v4097, %v4107
      %v4121 = vadd.f32 %v4098, %v4107
      %v4122 = vadd.f32 %v4099, %v4107
      %v4123 = vadd.f32 %v4100, %v4107
      %v4124 = vadd.f32 %v4101, %v4107
      %v4125 = vld [vmem:[%s8] sm:$0xf]
      %vm4126 = vcmask 130048
      %v4128 = vsel %vm4126, %v4125, 0
      %4130 = vmatprep.subr.mxu0 0.0
      %4131 = vmatpush1.msra.mxu0 %v4109
      %4132 = vmatprep.subr.mxu0 0.0
      %4133 = vmatpush1.msra.mxu0 %v4110
      %4134 = vmatprep.subr.mxu0 0.0
      %4135 = vmatpush1.msra.mxu0 0.0
      %4136 = vmatprep.subr.mxu0 0.0
      %4137 = vmatpush1.msra.mxu0 0.0
      %4138 = vmatprep.subr.mxu0 0.0
      %4139 = vmatpush1.msra.mxu0 0.0
      %4140 = vmatprep.subr.mxu0 0.0
      %4141 = vmatpush1.msra.mxu0 0.0
      %4142 = vmatprep.subr.mxu0 0.0
      %4143 = vmatpush1.msra.mxu0 0.0
      %4144 = vmatprep.subr.mxu0 0.0
      %4145 = vmatpush1.msra.mxu0 0.0
      %4146 = vmatprep.subr.mxu0 0.0
      %4147 = vmatpush1.msra.mxu0 0.0
      %4148 = vmatprep.subr.mxu0 0.0
      %4149 = vmatpush1.msra.mxu0 0.0
      %4150 = vmatprep.subr.mxu0 0.0
      %4151 = vmatpush1.msra.mxu0 0.0
      %4152 = vmatprep.subr.mxu0 0.0
      %4153 = vmatpush1.msra.mxu0 0.0
      %4154 = vmatprep.subr.mxu0 0.0
      %4155 = vmatpush1.msra.mxu0 0.0
      %4156 = vmatprep.subr.mxu0 0.0
      %4157 = vmatpush1.msra.mxu0 0.0
      %4158 = vmatprep.subr.mxu0 0.0
      %4159 = vmatpush1.msra.mxu0 0.0
      %4160 = vmatprep.subr.mxu0 0.0
      %4161 = vmatpush1.msra.mxu0 0.0
      %4162 = vmatprep.subr.mxu0 0.0
      %4163 = vmatpush1.msra.mxu0 0.0
      %4164 = vmatprep.subr.mxu0 0.0
      %4165 = vmatpush1.msra.mxu0 0.0
      %4166 = vmatprep.subr.mxu0 0.0
      %4167 = vmatpush1.msra.mxu0 0.0
      %4168 = vmatprep.subr.mxu0 0.0
      %4169 = vmatpush1.msra.mxu0 0.0
      %4170 = vmatprep.subr.mxu0 0.0
      %4171 = vmatpush1.msra.mxu0 0.0
      %4172 = vmatprep.subr.mxu0 0.0
      %4173 = vmatpush1.msra.mxu0 0.0
      %4174 = vmatprep.subr.mxu0 0.0
      %4175 = vmatpush1.msra.mxu0 0.0
      %4176 = vmatprep.subr.mxu0 0.0
      %4177 = vmatpush1.msra.mxu0 0.0
      %4178 = vmatprep.subr.mxu0 0.0
      %4179 = vmatpush1.msra.mxu0 0.0
      %4180 = vmatprep.subr.mxu0 0.0
      %4181 = vmatpush1.msra.mxu0 0.0
      %4182 = vmatprep.subr.mxu0 0.0
      %4183 = vmatpush1.msra.mxu0 0.0
      %4184 = vmatprep.subr.mxu0 0.0
      %4185 = vmatpush1.msra.mxu0 0.0
      %4186 = vmatprep.subr.mxu0 0.0
      %4187 = vmatpush1.msra.mxu0 0.0
      %4188 = vmatprep.subr.mxu0 0.0
      %4189 = vmatpush1.msra.mxu0 0.0
      %4190 = vmatprep.subr.mxu0 0.0
      %4191 = vmatpush1.msra.mxu0 0.0
      %4192 = vmatprep.subr.mxu0 0.0
      %4193 = vmatpush1.msra.mxu0 0.0
      %4194 = vmatprep.mubr.f32.mxu0 0.0
      %4195 = vmatmul.mubr.f32.gmra.mrb[0].mxu0 %v4128
      %v4196 = vpop.f32.mrb[0].mxu0
      %v4197 = vadd.f32 0.0, %v4196
      %v4198 = vpop.f32.mrb[0].mxu0
      %4199 = vdwg.mxu0
      %4200 = vmatprep.subr.mxu0 0.0
      %4201 = vmatpush1.msra.mxu0 %v4111
      %4202 = vmatprep.subr.mxu0 0.0
      %4203 = vmatpush1.msra.mxu0 %v4112
      %4204 = vmatprep.subr.mxu0 0.0
      %4205 = vmatpush1.msra.mxu0 0.0
      %4206 = vmatprep.subr.mxu0 0.0
      %4207 = vmatpush1.msra.mxu0 0.0
      %4208 = vmatprep.subr.mxu0 0.0
      %4209 = vmatpush1.msra.mxu0 0.0
      %4210 = vmatprep.subr.mxu0 0.0
      %4211 = vmatpush1.msra.mxu0 0.0
      %4212 = vmatprep.subr.mxu0 0.0
      %4213 = vmatpush1.msra.mxu0 0.0
      %4214 = vmatprep.subr.mxu0 0.0
      %4215 = vmatpush1.msra.mxu0 0.0
      %4216 = vmatprep.subr.mxu0 0.0
      %4217 = vmatpush1.msra.mxu0 0.0
      %4218 = vmatprep.subr.mxu0 0.0
      %4219 = vmatpush1.msra.mxu0 0.0
      %4220 = vmatprep.subr.mxu0 0.0
      %4221 = vmatpush1.msra.mxu0 0.0
      %4222 = vmatprep.subr.mxu0 0.0
      %4223 = vmatpush1.msra.mxu0 0.0
      %4224 = vmatprep.subr.mxu0 0.0
      %4225 = vmatpush1.msra.mxu0 0.0
      %4226 = vmatprep.subr.mxu0 0.0
      %4227 = vmatpush1.msra.mxu0 0.0
      %4228 = vmatprep.subr.mxu0 0.0
      %4229 = vmatpush1.msra.mxu0 0.0
      %4230 = vmatprep.subr.mxu0 0.0
      %4231 = vmatpush1.msra.mxu0 0.0
      %4232 = vmatprep.subr.mxu0 0.0
      %4233 = vmatpush1.msra.mxu0 0.0
      %4234 = vmatprep.subr.mxu0 0.0
      %4235 = vmatpush1.msra.mxu0 0.0
      %4236 = vmatprep.subr.mxu0 0.0
      %4237 = vmatpush1.msra.mxu0 0.0
      %4238 = vmatprep.subr.mxu0 0.0
      %4239 = vmatpush1.msra.mxu0 0.0
      %4240 = vmatprep.subr.mxu0 0.0
      %4241 = vmatpush1.msra.mxu0 0.0
      %4242 = vmatprep.subr.mxu0 0.0
      %4243 = vmatpush1.msra.mxu0 0.0
      %4244 = vmatprep.subr.mxu0 0.0
      %4245 = vmatpush1.msra.mxu0 0.0
      %4246 = vmatprep.subr.mxu0 0.0
      %4247 = vmatpush1.msra.mxu0 0.0
      %4248 = vmatprep.subr.mxu0 0.0
      %4249 = vmatpush1.msra.mxu0 0.0
      %4250 = vmatprep.subr.mxu0 0.0
      %4251 = vmatpush1.msra.mxu0 0.0
      %4252 = vmatprep.subr.mxu0 0.0
      %4253 = vmatpush1.msra.mxu0 0.0
      %4254 = vmatprep.subr.mxu0 0.0
      %4255 = vmatpush1.msra.mxu0 0.0
      %4256 = vmatprep.subr.mxu0 0.0
      %4257 = vmatpush1.msra.mxu0 0.0
      %4258 = vmatprep.subr.mxu0 0.0
      %4259 = vmatpush1.msra.mxu0 0.0
      %4260 = vmatprep.subr.mxu0 0.0
      %4261 = vmatpush1.msra.mxu0 0.0
      %4262 = vmatprep.subr.mxu0 0.0
      %4263 = vmatpush1.msra.mxu0 0.0
      %4264 = vmatprep.mubr.f32.mxu0 0.0
      %4265 = vmatmul.mubr.f32.gmra.mrb[0].mxu0 %v4128
      %v4266 = vpop.f32.mrb[0].mxu0
      %v4267 = vadd.f32 0.0, %v4266
      %v4268 = vpop.f32.mrb[0].mxu0
      %4269 = vdwg.mxu0
      %4270 = vmatprep.subr.mxu0 0.0
      %4271 = vmatpush1.msra.mxu0 %v4113
      %4272 = vmatprep.subr.mxu0 0.0
      %4273 = vmatpush1.msra.mxu0 %v4114
      %4274 = vmatprep.subr.mxu0 0.0
      %4275 = vmatpush1.msra.mxu0 0.0
      %4276 = vmatprep.subr.mxu0 0.0
      %4277 = vmatpush1.msra.mxu0 0.0
      %4278 = vmatprep.subr.mxu0 0.0
      %4279 = vmatpush1.msra.mxu0 0.0
      %4280 = vmatprep.subr.mxu0 0.0
      %4281 = vmatpush1.msra.mxu0 0.0
      %4282 = vmatprep.subr.mxu0 0.0
      %4283 = vmatpush1.msra.mxu0 0.0
      %4284 = vmatprep.subr.mxu0 0.0
      %4285 = vmatpush1.msra.mxu0 0.0
      %4286 = vmatprep.subr.mxu0 0.0
      %4287 = vmatpush1.msra.mxu0 0.0
      %4288 = vmatprep.subr.mxu0 0.0
      %4289 = vmatpush1.msra.mxu0 0.0
      %4290 = vmatprep.subr.mxu0 0.0
      %4291 = vmatpush1.msra.mxu0 0.0
      %4292 = vmatprep.subr.mxu0 0.0
      %4293 = vmatpush1.msra.mxu0 0.0
      %4294 = vmatprep.subr.mxu0 0.0
      %4295 = vmatpush1.msra.mxu0 0.0
      %4296 = vmatprep.subr.mxu0 0.0
      %4297 = vmatpush1.msra.mxu0 0.0
      %4298 = vmatprep.subr.mxu0 0.0
      %4299 = vmatpush1.msra.mxu0 0.0
      %4300 = vmatprep.subr.mxu0 0.0
      %4301 = vmatpush1.msra.mxu0 0.0
      %4302 = vmatprep.subr.mxu0 0.0
      %4303 = vmatpush1.msra.mxu0 0.0
      %4304 = vmatprep.subr.mxu0 0.0
      %4305 = vmatpush1.msra.mxu0 0.0
      %4306 = vmatprep.subr.mxu0 0.0
      %4307 = vmatpush1.msra.mxu0 0.0
      %4308 = vmatprep.subr.mxu0 0.0
      %4309 = vmatpush1.msra.mxu0 0.0
      %4310 = vmatprep.subr.mxu0 0.0
      %4311 = vmatpush1.msra.mxu0 0.0
      %4312 = vmatprep.subr.mxu0 0.0
      %4313 = vmatpush1.msra.mxu0 0.0
      %4314 = vmatprep.subr.mxu0 0.0
      %4315 = vmatpush1.msra.mxu0 0.0
      %4316 = vmatprep.subr.mxu0 0.0
      %4317 = vmatpush1.msra.mxu0 0.0
      %4318 = vmatprep.subr.mxu0 0.0
      %4319 = vmatpush1.msra.mxu0 0.0
      %4320 = vmatprep.subr.mxu0 0.0
      %4321 = vmatpush1.msra.mxu0 0.0
      %4322 = vmatprep.subr.mxu0 0.0
      %4323 = vmatpush1.msra.mxu0 0.0
      %4324 = vmatprep.subr.mxu0 0.0
      %4325 = vmatpush1.msra.mxu0 0.0
      %4326 = vmatprep.subr.mxu0 0.0
      %4327 = vmatpush1.msra.mxu0 0.0
      %4328 = vmatprep.subr.mxu0 0.0
      %4329 = vmatpush1.msra.mxu0 0.0
      %4330 = vmatprep.subr.mxu0 0.0
      %4331 = vmatpush1.msra.mxu0 0.0
      %4332 = vmatprep.subr.mxu0 0.0
      %4333 = vmatpush1.msra.mxu0 0.0
      %4334 = vmatprep.mubr.f32.mxu0 0.0
      %4335 = vmatmul.mubr.f32.gmra.mrb[0].mxu0 %v4128
      %v4336 = vpop.f32.mrb[0].mxu0
      %v4337 = vadd.f32 0.0, %v4336
      %v4338 = vpop.f32.mrb[0].mxu0
      %4339 = vdwg.mxu0
      %4340 = vmatprep.subr.mxu0 0.0
      %4341 = vmatpush1.msra.mxu0 %v4115
      %4342 = vmatprep.subr.mxu0 0.0
      %4343 = vmatpush1.msra.mxu0 %v4116
      %4344 = vmatprep.subr.mxu0 0.0
      %4345 = vmatpush1.msra.mxu0 0.0
      %4346 = vmatprep.subr.mxu0 0.0
      %4347 = vmatpush1.msra.mxu0 0.0
      %4348 = vmatprep.subr.mxu0 0.0
      %4349 = vmatpush1.msra.mxu0 0.0
      %4350 = vmatprep.subr.mxu0 0.0
      %4351 = vmatpush1.msra.mxu0 0.0
      %4352 = vmatprep.subr.mxu0 0.0
      %4353 = vmatpush1.msra.mxu0 0.0
      %4354 = vmatprep.subr.mxu0 0.0
      %4355 = vmatpush1.msra.mxu0 0.0
      %4356 = vmatprep.subr.mxu0 0.0
      %4357 = vmatpush1.msra.mxu0 0.0
      %4358 = vmatprep.subr.mxu0 0.0
      %4359 = vmatpush1.msra.mxu0 0.0
      %4360 = vmatprep.subr.mxu0 0.0
      %4361 = vmatpush1.msra.mxu0 0.0
      %4362 = vmatprep.subr.mxu0 0.0
      %4363 = vmatpush1.msra.mxu0 0.0
      %4364 = vmatprep.subr.mxu0 0.0
      %4365 = vmatpush1.msra.mxu0 0.0
      %4366 = vmatprep.subr.mxu0 0.0
      %4367 = vmatpush1.msra.mxu0 0.0
      %4368 = vmatprep.subr.mxu0 0.0
      %4369 = vmatpush1.msra.mxu0 0.0
      %4370 = vmatprep.subr.mxu0 0.0
      %4371 = vmatpush1.msra.mxu0 0.0
      %4372 = vmatprep.subr.mxu0 0.0
      %4373 = vmatpush1.msra.mxu0 0.0
      %4374 = vmatprep.subr.mxu0 0.0
      %4375 = vmatpush1.msra.mxu0 0.0
      %4376 = vmatprep.subr.mxu0 0.0
      %4377 = vmatpush1.msra.mxu0 0.0
      %4378 = vmatprep.subr.mxu0 0.0
      %4379 = vmatpush1.msra.mxu0 0.0
      %4380 = vmatprep.subr.mxu0 0.0
      %4381 = vmatpush1.msra.mxu0 0.0
      %4382 = vmatprep.subr.mxu0 0.0
      %4383 = vmatpush1.msra.mxu0 0.0
      %4384 = vmatprep.subr.mxu0 0.0
      %4385 = vmatpush1.msra.mxu0 0.0
      %4386 = vmatprep.subr.mxu0 0.0
      %4387 = vmatpush1.msra.mxu0 0.0
      %4388 = vmatprep.subr.mxu0 0.0
      %4389 = vmatpush1.msra.mxu0 0.0
      %4390 = vmatprep.subr.mxu0 0.0
      %4391 = vmatpush1.msra.mxu0 0.0
      %4392 = vmatprep.subr.mxu0 0.0
      %4393 = vmatpush1.msra.mxu0 0.0
      %4394 = vmatprep.subr.mxu0 0.0
      %4395 = vmatpush1.msra.mxu0 0.0
      %4396 = vmatprep.subr.mxu0 0.0
      %4397 = vmatpush1.msra.mxu0 0.0
      %4398 = vmatprep.subr.mxu0 0.0
      %4399 = vmatpush1.msra.mxu0 0.0
      %4400 = vmatprep.subr.mxu0 0.0
      %4401 = vmatpush1.msra.mxu0 0.0
      %4402 = vmatprep.subr.mxu0 0.0
      %4403 = vmatpush1.msra.mxu0 0.0
      %4404 = vmatprep.mubr.f32.mxu0 0.0
      %4405 = vmatmul.mubr.f32.gmra.mrb[0].mxu0 %v4128
      %v4406 = vpop.f32.mrb[0].mxu0
      %v4407 = vadd.f32 0.0, %v4406
      %v4408 = vpop.f32.mrb[0].mxu0
      %4409 = vdwg.mxu0
      %4410 = vmatprep.subr.mxu0 0.0
      %4411 = vmatpush1.msra.mxu0 %v4117
      %4412 = vmatprep.subr.mxu0 0.0
      %4413 = vmatpush1.msra.mxu0 %v4118
      %4414 = vmatprep.subr.mxu0 0.0
      %4415 = vmatpush1.msra.mxu0 0.0
      %4416 = vmatprep.subr.mxu0 0.0
      %4417 = vmatpush1.msra.mxu0 0.0
      %4418 = vmatprep.subr.mxu0 0.0
      %4419 = vmatpush1.msra.mxu0 0.0
      %4420 = vmatprep.subr.mxu0 0.0
      %4421 = vmatpush1.msra.mxu0 0.0
      %4422 = vmatprep.subr.mxu0 0.0
      %4423 = vmatpush1.msra.mxu0 0.0
      %4424 = vmatprep.subr.mxu0 0.0
      %4425 = vmatpush1.msra.mxu0 0.0
      %4426 = vmatprep.subr.mxu0 0.0
      %4427 = vmatpush1.msra.mxu0 0.0
      %4428 = vmatprep.subr.mxu0 0.0
      %4429 = vmatpush1.msra.mxu0 0.0
      %4430 = vmatprep.subr.mxu0 0.0
      %4431 = vmatpush1.msra.mxu0 0.0
      %4432 = vmatprep.subr.mxu0 0.0
      %4433 = vmatpush1.msra.mxu0 0.0
      %4434 = vmatprep.subr.mxu0 0.0
      %4435 = vmatpush1.msra.mxu0 0.0
      %4436 = vmatprep.subr.mxu0 0.0
      %4437 = vmatpush1.msra.mxu0 0.0
      %4438 = vmatprep.subr.mxu0 0.0
      %4439 = vmatpush1.msra.mxu0 0.0
      %4440 = vmatprep.subr.mxu0 0.0
      %4441 = vmatpush1.msra.mxu0 0.0
      %4442 = vmatprep.subr.mxu0 0.0
      %4443 = vmatpush1.msra.mxu0 0.0
      %4444 = vmatprep.subr.mxu0 0.0
      %4445 = vmatpush1.msra.mxu0 0.0
      %4446 = vmatprep.subr.mxu0 0.0
      %4447 = vmatpush1.msra.mxu0 0.0
      %4448 = vmatprep.subr.mxu0 0.0
      %4449 = vmatpush1.msra.mxu0 0.0
      %4450 = vmatprep.subr.mxu0 0.0
      %4451 = vmatpush1.msra.mxu0 0.0
      %4452 = vmatprep.subr.mxu0 0.0
      %4453 = vmatpush1.msra.mxu0 0.0
      %4454 = vmatprep.subr.mxu0 0.0
      %4455 = vmatpush1.msra.mxu0 0.0
      %4456 = vmatprep.subr.mxu0 0.0
      %4457 = vmatpush1.msra.mxu0 0.0
      %4458 = vmatprep.subr.mxu0 0.0
      %4459 = vmatpush1.msra.mxu0 0.0
      %4460 = vmatprep.subr.mxu0 0.0
      %4461 = vmatpush1.msra.mxu0 0.0
      %4462 = vmatprep.subr.mxu0 0.0
      %4463 = vmatpush1.msra.mxu0 0.0
      %4464 = vmatprep.subr.mxu0 0.0
      %4465 = vmatpush1.msra.mxu0 0.0
      %4466 = vmatprep.subr.mxu0 0.0
      %4467 = vmatpush1.msra.mxu0 0.0
      %4468 = vmatprep.subr.mxu0 0.0
      %4469 = vmatpush1.msra.mxu0 0.0
      %4470 = vmatprep.subr.mxu0 0.0
      %4471 = vmatpush1.msra.mxu0 0.0
      %4472 = vmatprep.subr.mxu0 0.0
      %4473 = vmatpush1.msra.mxu0 0.0
      %4474 = vmatprep.mubr.f32.mxu0 0.0
      %4475 = vmatmul.mubr.f32.gmra.mrb[0].mxu0 %v4128
      %v4476 = vpop.f32.mrb[0].mxu0
      %v4477 = vadd.f32 0.0, %v4476
      %v4478 = vpop.f32.mrb[0].mxu0
      %4479 = vdwg.mxu0
      %4480 = vmatprep.subr.mxu0 0.0
      %4481 = vmatpush1.msra.mxu0 %v4119
      %4482 = vmatprep.subr.mxu0 0.0
      %4483 = vmatpush1.msra.mxu0 %v4120
      %4484 = vmatprep.subr.mxu0 0.0
      %4485 = vmatpush1.msra.mxu0 0.0
      %4486 = vmatprep.subr.mxu0 0.0
      %4487 = vmatpush1.msra.mxu0 0.0
      %4488 = vmatprep.subr.mxu0 0.0
      %4489 = vmatpush1.msra.mxu0 0.0
      %4490 = vmatprep.subr.mxu0 0.0
      %4491 = vmatpush1.msra.mxu0 0.0
      %4492 = vmatprep.subr.mxu0 0.0
      %4493 = vmatpush1.msra.mxu0 0.0
      %4494 = vmatprep.subr.mxu0 0.0
      %4495 = vmatpush1.msra.mxu0 0.0
      %4496 = vmatprep.subr.mxu0 0.0
      %4497 = vmatpush1.msra.mxu0 0.0
      %4498 = vmatprep.subr.mxu0 0.0
      %4499 = vmatpush1.msra.mxu0 0.0
      %4500 = vmatprep.subr.mxu0 0.0
      %4501 = vmatpush1.msra.mxu0 0.0
      %4502 = vmatprep.subr.mxu0 0.0
      %4503 = vmatpush1.msra.mxu0 0.0
      %4504 = vmatprep.subr.mxu0 0.0
      %4505 = vmatpush1.msra.mxu0 0.0
      %4506 = vmatprep.subr.mxu0 0.0
      %4507 = vmatpush1.msra.mxu0 0.0
      %4508 = vmatprep.subr.mxu0 0.0
      %4509 = vmatpush1.msra.mxu0 0.0
      %4510 = vmatprep.subr.mxu0 0.0
      %4511 = vmatpush1.msra.mxu0 0.0
      %4512 = vmatprep.subr.mxu0 0.0
      %4513 = vmatpush1.msra.mxu0 0.0
      %4514 = vmatprep.subr.mxu0 0.0
      %4515 = vmatpush1.msra.mxu0 0.0
      %4516 = vmatprep.subr.mxu0 0.0
      %4517 = vmatpush1.msra.mxu0 0.0
      %4518 = vmatprep.subr.mxu0 0.0
      %4519 = vmatpush1.msra.mxu0 0.0
      %4520 = vmatprep.subr.mxu0 0.0
      %4521 = vmatpush1.msra.mxu0 0.0
      %4522 = vmatprep.subr.mxu0 0.0
      %4523 = vmatpush1.msra.mxu0 0.0
      %4524 = vmatprep.subr.mxu0 0.0
      %4525 = vmatpush1.msra.mxu0 0.0
      %4526 = vmatprep.subr.mxu0 0.0
      %4527 = vmatpush1.msra.mxu0 0.0
      %4528 = vmatprep.subr.mxu0 0.0
      %4529 = vmatpush1.msra.mxu0 0.0
      %4530 = vmatprep.subr.mxu0 0.0
      %4531 = vmatpush1.msra.mxu0 0.0
      %4532 = vmatprep.subr.mxu0 0.0
      %4533 = vmatpush1.msra.mxu0 0.0
      %4534 = vmatprep.subr.mxu0 0.0
      %4535 = vmatpush1.msra.mxu0 0.0
      %4536 = vmatprep.subr.mxu0 0.0
      %4537 = vmatpush1.msra.mxu0 0.0
      %4538 = vmatprep.subr.mxu0 0.0
      %4539 = vmatpush1.msra.mxu0 0.0
      %4540 = vmatprep.subr.mxu0 0.0
      %4541 = vmatpush1.msra.mxu0 0.0
      %4542 = vmatprep.subr.mxu0 0.0
      %4543 = vmatpush1.msra.mxu0 0.0
      %4544 = vmatprep.mubr.f32.mxu0 0.0
      %4545 = vmatmul.mubr.f32.gmra.mrb[0].mxu0 %v4128
      %v4546 = vpop.f32.mrb[0].mxu0
      %v4547 = vadd.f32 0.0, %v4546
      %v4548 = vpop.f32.mrb[0].mxu0
      %4549 = vdwg.mxu0
      %4550 = vmatprep.subr.mxu0 0.0
      %4551 = vmatpush1.msra.mxu0 %v4121
      %4552 = vmatprep.subr.mxu0 0.0
      %4553 = vmatpush1.msra.mxu0 %v4122
      %4554 = vmatprep.subr.mxu0 0.0
      %4555 = vmatpush1.msra.mxu0 0.0
      %4556 = vmatprep.subr.mxu0 0.0
      %4557 = vmatpush1.msra.mxu0 0.0
      %4558 = vmatprep.subr.mxu0 0.0
      %4559 = vmatpush1.msra.mxu0 0.0
      %4560 = vmatprep.subr.mxu0 0.0
      %4561 = vmatpush1.msra.mxu0 0.0
      %4562 = vmatprep.subr.mxu0 0.0
      %4563 = vmatpush1.msra.mxu0 0.0
      %4564 = vmatprep.subr.mxu0 0.0
      %4565 = vmatpush1.msra.mxu0 0.0
      %4566 = vmatprep.subr.mxu0 0.0
      %4567 = vmatpush1.msra.mxu0 0.0
      %4568 = vmatprep.subr.mxu0 0.0
      %4569 = vmatpush1.msra.mxu0 0.0
      %4570 = vmatprep.subr.mxu0 0.0
      %4571 = vmatpush1.msra.mxu0 0.0
      %4572 = vmatprep.subr.mxu0 0.0
      %4573 = vmatpush1.msra.mxu0 0.0
      %4574 = vmatprep.subr.mxu0 0.0
      %4575 = vmatpush1.msra.mxu0 0.0
      %4576 = vmatprep.subr.mxu0 0.0
      %4577 = vmatpush1.msra.mxu0 0.0
      %4578 = vmatprep.subr.mxu0 0.0
      %4579 = vmatpush1.msra.mxu0 0.0
      %4580 = vmatprep.subr.mxu0 0.0
      %4581 = vmatpush1.msra.mxu0 0.0
      %4582 = vmatprep.subr.mxu0 0.0
      %4583 = vmatpush1.msra.mxu0 0.0
      %4584 = vmatprep.subr.mxu0 0.0
      %4585 = vmatpush1.msra.mxu0 0.0
      %4586 = vmatprep.subr.mxu0 0.0
      %4587 = vmatpush1.msra.mxu0 0.0
      %4588 = vmatprep.subr.mxu0 0.0
      %4589 = vmatpush1.msra.mxu0 0.0
      %4590 = vmatprep.subr.mxu0 0.0
      %4591 = vmatpush1.msra.mxu0 0.0
      %4592 = vmatprep.subr.mxu0 0.0
      %4593 = vmatpush1.msra.mxu0 0.0
      %4594 = vmatprep.subr.mxu0 0.0
      %4595 = vmatpush1.msra.mxu0 0.0
      %4596 = vmatprep.subr.mxu0 0.0
      %4597 = vmatpush1.msra.mxu0 0.0
      %4598 = vmatprep.subr.mxu0 0.0
      %4599 = vmatpush1.msra.mxu0 0.0
      %4600 = vmatprep.subr.mxu0 0.0
      %4601 = vmatpush1.msra.mxu0 0.0
      %4602 = vmatprep.subr.mxu0 0.0
      %4603 = vmatpush1.msra.mxu0 0.0
      %4604 = vmatprep.subr.mxu0 0.0
      %4605 = vmatpush1.msra.mxu0 0.0
      %4606 = vmatprep.subr.mxu0 0.0
      %4607 = vmatpush1.msra.mxu0 0.0
      %4608 = vmatprep.subr.mxu0 0.0
      %4609 = vmatpush1.msra.mxu0 0.0
      %4610 = vmatprep.subr.mxu0 0.0
      %4611 = vmatpush1.msra.mxu0 0.0
      %4612 = vmatprep.subr.mxu0 0.0
      %4613 = vmatpush1.msra.mxu0 0.0
      %4614 = vmatprep.mubr.f32.mxu0 0.0
      %4615 = vmatmul.mubr.f32.gmra.mrb[0].mxu0 %v4128
      %v4616 = vpop.f32.mrb[0].mxu0
      %v4617 = vadd.f32 0.0, %v4616
      %v4618 = vpop.f32.mrb[0].mxu0
      %4619 = vdwg.mxu0
      %4620 = vmatprep.subr.mxu0 0.0
      %4621 = vmatpush1.msra.mxu0 %v4123
      %4622 = vmatprep.subr.mxu0 0.0
      %4623 = vmatpush1.msra.mxu0 %v4124
      %4624 = vmatprep.subr.mxu0 0.0
      %4625 = vmatpush1.msra.mxu0 0.0
      %4626 = vmatprep.subr.mxu0 0.0
      %4627 = vmatpush1.msra.mxu0 0.0
      %4628 = vmatprep.subr.mxu0 0.0
      %4629 = vmatpush1.msra.mxu0 0.0
      %4630 = vmatprep.subr.mxu0 0.0
      %4631 = vmatpush1.msra.mxu0 0.0
      %4632 = vmatprep.subr.mxu0 0.0
      %4633 = vmatpush1.msra.mxu0 0.0
      %4634 = vmatprep.subr.mxu0 0.0
      %4635 = vmatpush1.msra.mxu0 0.0
      %4636 = vmatprep.subr.mxu0 0.0
      %4637 = vmatpush1.msra.mxu0 0.0
      %4638 = vmatprep.subr.mxu0 0.0
      %4639 = vmatpush1.msra.mxu0 0.0
      %4640 = vmatprep.subr.mxu0 0.0
      %4641 = vmatpush1.msra.mxu0 0.0
      %4642 = vmatprep.subr.mxu0 0.0
      %4643 = vmatpush1.msra.mxu0 0.0
      %4644 = vmatprep.subr.mxu0 0.0
      %4645 = vmatpush1.msra.mxu0 0.0
      %4646 = vmatprep.subr.mxu0 0.0
      %4647 = vmatpush1.msra.mxu0 0.0
      %4648 = vmatprep.subr.mxu0 0.0
      %4649 = vmatpush1.msra.mxu0 0.0
      %4650 = vmatprep.subr.mxu0 0.0
      %4651 = vmatpush1.msra.mxu0 0.0
      %4652 = vmatprep.subr.mxu0 0.0
      %4653 = vmatpush1.msra.mxu0 0.0
      %4654 = vmatprep.subr.mxu0 0.0
      %4655 = vmatpush1.msra.mxu0 0.0
      %4656 = vmatprep.subr.mxu0 0.0
      %4657 = vmatpush1.msra.mxu0 0.0
      %4658 = vmatprep.subr.mxu0 0.0
      %4659 = vmatpush1.msra.mxu0 0.0
      %4660 = vmatprep.subr.mxu0 0.0
      %4661 = vmatpush1.msra.mxu0 0.0
      %4662 = vmatprep.subr.mxu0 0.0
      %4663 = vmatpush1.msra.mxu0 0.0
      %4664 = vmatprep.subr.mxu0 0.0
      %4665 = vmatpush1.msra.mxu0 0.0
      %4666 = vmatprep.subr.mxu0 0.0
      %4667 = vmatpush1.msra.mxu0 0.0
      %4668 = vmatprep.subr.mxu0 0.0
      %4669 = vmatpush1.msra.mxu0 0.0
      %4670 = vmatprep.subr.mxu0 0.0
      %4671 = vmatpush1.msra.mxu0 0.0
      %4672 = vmatprep.subr.mxu0 0.0
      %4673 = vmatpush1.msra.mxu0 0.0
      %4674 = vmatprep.subr.mxu0 0.0
      %4675 = vmatpush1.msra.mxu0 0.0
      %4676 = vmatprep.subr.mxu0 0.0
      %4677 = vmatpush1.msra.mxu0 0.0
      %4678 = vmatprep.subr.mxu0 0.0
      %4679 = vmatpush1.msra.mxu0 0.0
      %4680 = vmatprep.subr.mxu0 0.0
      %4681 = vmatpush1.msra.mxu0 0.0
      %4682 = vmatprep.subr.mxu0 0.0
      %4683 = vmatpush1.msra.mxu0 0.0
      %4684 = vmatprep.mubr.f32.mxu0 0.0
      %4685 = vmatmul.mubr.f32.gmra.mrb[0].mxu0 %v4128
      %v4686 = vpop.f32.mrb[0].mxu0
      %v4687 = vadd.f32 0.0, %v4686
      %v4688 = vpop.f32.mrb[0].mxu0
      %4689 = vdwg.mxu0
      %v4690 = vadd.f32 %v4197, %v4267
      %v4691 = vadd.f32 %v4337, %v4407
      %v4692 = vadd.f32 %v4477, %v4547
      %v4693 = vadd.f32 %v4617, %v4687
      %v4694 = vadd.f32 %v4690, 0.0
      %v4695 = vadd.f32 %v4691, %v4267
      %v4696 = vadd.f32 %v4692, %v4407
      %v4697 = vadd.f32 %v4693, %v4547
      %v4698 = vmul.f32 %v4694, 0.11111111
      %v4699 = vmul.f32 %v4695, 0.11111111
      %v4700 = vmul.f32 %v4696, 0.11111111
      %v4701 = vmul.f32 %v4697, 0.11111111
      %4702 = vst [vmem:[%s372] sm:$0xf] %v4698
      %4703 = vst [vmem:[%s372 + $0x4] sm:$0xf] %v4699
      %4704 = vst [vmem:[%s372 + $0x8] sm:$0xf] %v4700
      %4705 = vst [vmem:[%s372 + $0xc] sm:$0xf] %v4701
      %p4706 = scmp.lt.s32.totalorder %s22, 1
      %s4707 = scalar_select %p4706, %s22, 1
      %s4708 = smul.addr %s4707, 32
      %s4709 = smul.addr %s4708, 4
      %s4710 = scalar_lea.vmem %s9, %s4709
      %p4711 = scmp.lt.s32.totalorder %s22, 1
      %s4712 = scalar_select %p4711, %s22, 1
      %s4713 = smul.addr %s4712, 4
      %s4714 = smul.addr %s4713, 4
      %s4715 = scalar_lea.vmem %s10, %s4714
      // Predicated region
      $region57: #{bga_forward.3} parent=55 // pred_check
        %p4716 = pneg %p234
      $region58: #{bga_forward.3} parent=55 // pred_check_branch
        %4718 = sbr.rel (%p4716) target = $region60
      $region59: #{bga_forward.3} parent=55 // pred_region
        _
      $region60: #{bga_forward.3} parent=55 // pred_fallthru
        _
      // Predicated region
      $region61: #{bga_forward.3} parent=55 // pred_check
        %p4719 = pneg %p260
      $region62: #{bga_forward.3} parent=55 // pred_check_branch
        %4721 = sbr.rel (%p4719) target = $region64
      $region63: #{bga_forward.3} parent=55 // pred_region
        _
      $region64: #{bga_forward.3} parent=55 // pred_fallthru
        _
    $region56: #{bga_forward.3} parent=5 // pred_fallthru
      _
    %p4722 = scmp.le.s32.totalorder 2, %s17
    // Predicated region
    $region65: #{bga_forward.3} parent=5 // pred_check
      %p4723 = pneg %p4722
    $region66: #{bga_forward.3} parent=5 // pred_check_branch
      %4725 = sbr.rel (%p4723) target = $region68
    $region67: #{bga_forward.3} parent=5 // pred_region
      %s4726 = ssub.s32 %s17, 2
      // Predicated region
      $region69: #{bga_forward.3} parent=67 // pred_check
        %p4727 = pneg %p240
      $region70: #{bga_forward.3} parent=67 // pred_check_branch
        %4729 = sbr.rel (%p4727) target = $region72
      $region71: #{bga_forward.3} parent=67 // pred_region
        %p4730 = scmp.lt.s32.totalorder %s23, 1
        %s4731 = scalar_select %p4730, %s23, 1
        %s4732 = smul.addr %s4731, 32
        %s4733 = smul.addr %s4732, 4
        %s4734 = scalar_lea.vmem %s9, %s4733
      $region72: #{bga_forward.3} parent=67 // pred_fallthru
        _
      // Predicated region
      $region73: #{bga_forward.3} parent=67 // pred_check
        %p4735 = pneg %p266
      $region74: #{bga_forward.3} parent=67 // pred_check_branch
        %4737 = sbr.rel (%p4735) target = $region76
      $region75: #{bga_forward.3} parent=67 // pred_region
        %p4738 = scmp.lt.s32.totalorder %s23, 1
        %s4739 = scalar_select %p4738, %s23, 1
        %s4740 = smul.addr %s4739, 4
        %s4741 = smul.addr %s4740, 4
        %s4742 = scalar_lea.vmem %s10, %s4741
      $region76: #{bga_forward.3} parent=67 // pred_fallthru
        _
    $region68: #{bga_forward.3} parent=5 // pred_fallthru
      _
  $region6: #{bga_forward.3} parent=0 // loop_footer
    %s21 = sadd.s32 1, %s17
  $region7: #{bga_forward.3} parent=0 // loop_footer_branch
    %16 = sbr.rel target = $region3
  $region8: #{bga_forward.3} parent=0 // loop_exit
    _

</llo_original>
